<compile_context>
chip_gen: v7x
topology: tpu7x:2x2x1
jax: 0.10.0
libtpu: 0.0.40
codegen_flags: <defaults>
</compile_context>

<pallas_src>
import functools
import math

import jax
import jax.numpy as jnp
from jax.experimental import pallas as pl
from jax.experimental.pallas import tpu as pltpu

_BN_EPS = 1e-5


# ----------------------------------------------------------------------------
# Helpers
# ----------------------------------------------------------------------------
def _bn_relu(y, gamma, beta, eps):
    """Training-mode BatchNorm1d (biased batch stats) + ReLU."""
    mean = jnp.mean(y, axis=0, keepdims=True)
    var = jnp.mean(jnp.square(y - mean), axis=0, keepdims=True)
    y = (y - mean) * jax.lax.rsqrt(var + eps) * gamma + beta
    return jnp.maximum(y, 0.0)


def _dotb(x, w_ref):
    """bf16 x bf16 matmul with f32 accumulation (MXU-friendly, half the bytes)."""
    return jnp.dot(x.astype(jnp.bfloat16), w_ref[...],
                   preferred_element_type=jnp.float32)


def _const_spec(shape):
    n = len(shape)
    return pl.BlockSpec(shape, lambda k, _n=n: (0,) * _n)


# ----------------------------------------------------------------------------
# Fused Posesync kernel
#   - K-streamed face_encoder layer 1 (one frame + one weight slab per step)
#   - last-step epilogue: BN+ReLU, face layers 2-4, landmark encoder,
#     concat-folded discriminator, sigmoid.
# ----------------------------------------------------------------------------
def _posesync_kernel(face_ref, w1_ref, lmk_ref,
                     f1g_ref, f1b_ref,
                     f2w_ref, f2g_ref, f2b_ref,
                     f3w_ref, f3g_ref, f3b_ref,
                     f4w_ref, f4bias_ref,
                     l1w_ref, l1g_ref, l1b_ref,
                     l2w_ref, l2g_ref, l2b_ref,
                     l3w_ref, l3bias_ref,
                     d1wf_ref, d1wl_ref, d1g_ref, d1b_ref,
                     d2w_ref, d2g_ref, d2b_ref,
                     d3w_ref, d3bias_ref,
                     o_ref, acc_ref, *, eps):
    k = pl.program_id(0)

    @pl.when(k == 0)
    def _():
        acc_ref[...] = jnp.zeros_like(acc_ref)

    # face_encoder layer 1, K-tiled over frames; bias cancelled by BN mean sub.
    acc_ref[...] += jnp.dot(face_ref[...], w1_ref[...],
                            preferred_element_type=jnp.float32)

    @pl.when(k == pl.num_programs(0) - 1)
    def _():
        # face_encoder: BN1+ReLU, then layers 2..4 (BN-fed biases omitted)
        f = _bn_relu(acc_ref[...], f1g_ref[...], f1b_ref[...], eps)
        f = _bn_relu(_dotb(f, f2w_ref), f2g_ref[...], f2b_ref[...], eps)
        f = _bn_relu(_dotb(f, f3w_ref), f3g_ref[...], f3b_ref[...], eps)
        f = _dotb(f, f4w_ref) + f4bias_ref[...]                     # (B, 128)

        # landmark_encoder
        l = lmk_ref[...]
        l = _bn_relu(_dotb(l, l1w_ref), l1g_ref[...], l1b_ref[...], eps)
        l = _bn_relu(_dotb(l, l2w_ref), l2g_ref[...], l2b_ref[...], eps)
        l = _dotb(l, l3w_ref) + l3bias_ref[...]                     # (B, 128)

        # discriminator; torch.cat((face, lmk), 1) folded into split weight
        y = _dotb(f, d1wf_ref) + _dotb(l, d1wl_ref)
        y = _bn_relu(y, d1g_ref[...], d1b_ref[...], eps)
        y = _bn_relu(_dotb(y, d2w_ref), d2g_ref[...], d2b_ref[...], eps)
        y = _dotb(y, d3w_ref) + d3bias_ref[...]
        o_ref[...] = jax.nn.sigmoid(y).astype(o_ref.dtype)


def posesync_forward(params, face, landmark):
    """face:     (window_len, B, first_dimension) per-frame backbone embeddings
       landmark: (B, window_len * 68 * 2)
       returns:  (B, 1) sigmoid scores
    """
    wl, B, D = face.shape
    N1 = params["f1_w"].shape[1]

    face = face.astype(jnp.bfloat16)          # halve face DMA; MXU eats bf16
    landmark = landmark.astype(jnp.float32)   # matches torch .float()

    operands = [
        face, params["f1_w"], landmark,
        params["f1_g"], params["f1_b"],
        params["f2_w"], params["f2_g"], params["f2_b"],
        params["f3_w"], params["f3_g"], params["f3_b"],
        params["f4_w"], params["f4_bias"],
        params["l1_w"], params["l1_g"], params["l1_b"],
        params["l2_w"], params["l2_g"], params["l2_b"],
        params["l3_w"], params["l3_bias"],
        params["d1_w_face"], params["d1_w_lmk"], params["d1_g"], params["d1_b"],
        params["d2_w"], params["d2_g"], params["d2_b"],
        params["d3_w"], params["d3_bias"],
    ]

    in_specs = [
        # one face frame per step; leading window dim squeezed out
        pl.BlockSpec((None, B, D), lambda k: (k, 0, 0)),
        # matching (D, 1024) bf16 weight slab per step (frame-major rows)
        pl.BlockSpec((D, N1), lambda k: (k, 0)),
    ] + [_const_spec(x.shape) for x in operands[2:]]

    return pl.pallas_call(
        functools.partial(_posesync_kernel, eps=_BN_EPS),
        out_shape=jax.ShapeDtypeStruct((B, 1), jnp.float32),
        grid=(wl,),
        in_specs=in_specs,
        out_specs=pl.BlockSpec((B, 1), lambda k: (0, 0)),
        scratch_shapes=[pltpu.VMEM((B, N1), jnp.float32)],
        compiler_params=pltpu.CompilerParams(
            dimension_semantics=("arbitrary",),
            # ~9 MiB actually used (2 MiB slab x2 buffers + ~2.4 MiB resident
            # bf16 tail weights x2 + 32 KiB acc); safe on v5e/v6e/v7x.
            vmem_limit_bytes=32 << 20,
        ),
    )(*operands)


# ----------------------------------------------------------------------------
# Deterministic parameter construction (PyTorch-default-style init).
# All matmul weights are bf16 (the model is HBM-bound); biases / BN params f32.
# ----------------------------------------------------------------------------
def _init_linear(key, fan_in, fan_out, dtype=jnp.bfloat16):
    kw, kb = jax.random.split(key)
    bound = 1.0 / math.sqrt(fan_in)
    w = jax.random.uniform(kw, (fan_in, fan_out), jnp.float32, -bound, bound)
    b = jax.random.uniform(kb, (fan_out,), jnp.float32, -bound, bound)
    return w.astype(dtype), b


def make_posesync_params(key, window_len=5, first_dimension=1000):
    keys = jax.random.split(key, 10)
    p = {}

    def bn_defaults(n):
        # PyTorch BatchNorm1d defaults: weight=1, bias=0
        return jnp.ones((1, n), jnp.float32), jnp.zeros((1, n), jnp.float32)

    # face_encoder: 5000 -> 1024 -> 512 -> 256 -> 128
    # f1_w rows are frame-major: rows [k*D:(k+1)*D] multiply frame k, matching
    # the torch.cat order of per-frame embeddings.
    w, _ = _init_linear(keys[0], first_dimension * window_len, 1024)
    p["f1_w"] = w
    p["f1_g"], p["f1_b"] = bn_defaults(1024)
    w, _ = _init_linear(keys[1], 1024, 512)
    p["f2_w"] = w
    p["f2_g"], p["f2_b"] = bn_defaults(512)
    w, _ = _init_linear(keys[2], 512, 256)
    p["f3_w"] = w
    p["f3_g"], p["f3_b"] = bn_defaults(256)
    w, b = _init_linear(keys[3], 256, 128)
    p["f4_w"], p["f4_bias"] = w, b.reshape(1, 128)

    # landmark_encoder: 680 -> 512 -> 256 -> 128
    lmk_in = window_len * 68 * 2
    w, _ = _init_linear(keys[4], lmk_in, 512)
    p["l1_w"] = w
    p["l1_g"], p["l1_b"] = bn_defaults(512)
    w, _ = _init_linear(keys[5], 512, 256)
    p["l2_w"] = w
    p["l2_g"], p["l2_b"] = bn_defaults(256)
    w, b = _init_linear(keys[6], 256, 128)
    p["l3_w"], p["l3_bias"] = w, b.reshape(1, 128)

    # discriminator: 256 -> 64 -> 32 -> 1  (concat folded into split weight)
    w, _ = _init_linear(keys[7], 256, 64)
    p["d1_w_face"], p["d1_w_lmk"] = w[:128], w[128:]
    p["d1_g"], p["d1_b"] = bn_defaults(64)
    w, _ = _init_linear(keys[8], 64, 32)
    p["d2_w"] = w
    p["d2_g"], p["d2_b"] = bn_defaults(32)
    w, b = _init_linear(keys[9], 32, 1)
    p["d3_w"], p["d3_bias"] = w, b.reshape(1, 1)

    return p


if __name__ == "__main__":
    WINDOW_LEN = 5
    FIRST_DIM = 1000   # wide_resnet50_2 output dim
    BATCH = 8

    key = jax.random.PRNGKey(0)
    k_params, k_face, k_lmk = jax.random.split(key, 3)

    params = make_posesync_params(k_params, window_len=WINDOW_LEN,
                                  first_dimension=FIRST_DIM)

    face = jax.random.normal(k_face, (WINDOW_LEN, BATCH, FIRST_DIM), jnp.float32)
    landmark = jax.random.normal(k_lmk, (BATCH, WINDOW_LEN * 68 * 2), jnp.float32)

    out = jax.jit(posesync_forward)(params, face, landmark)
    out = jax.block_until_ready(out)

    assert out.shape == (BATCH, 1), out.shape
    assert out.dtype == jnp.float32
    assert bool(jnp.all((out >= 0.0) & (out <= 1.0)))
    print("KERNEL_OK")
</pallas_src>

<mosaic_0001>
module attributes {stable_mosaic.version = 11 : i64} {
  func.func @_posesync_kernel(%arg0: i32, %arg1: memref<1x8x1000xbf16, #tpu.memory_space<vmem>>, %arg2: memref<1000x1024xbf16, #tpu.memory_space<vmem>>, %arg3: memref<8x680xf32, #tpu.memory_space<vmem>>, %arg4: memref<1x1024xf32, #tpu.memory_space<vmem>>, %arg5: memref<1x1024xf32, #tpu.memory_space<vmem>>, %arg6: memref<1024x512xbf16, #tpu.memory_space<vmem>>, %arg7: memref<1x512xf32, #tpu.memory_space<vmem>>, %arg8: memref<1x512xf32, #tpu.memory_space<vmem>>, %arg9: memref<512x256xbf16, #tpu.memory_space<vmem>>, %arg10: memref<1x256xf32, #tpu.memory_space<vmem>>, %arg11: memref<1x256xf32, #tpu.memory_space<vmem>>, %arg12: memref<256x128xbf16, #tpu.memory_space<vmem>>, %arg13: memref<1x128xf32, #tpu.memory_space<vmem>>, %arg14: memref<680x512xbf16, #tpu.memory_space<vmem>>, %arg15: memref<1x512xf32, #tpu.memory_space<vmem>>, %arg16: memref<1x512xf32, #tpu.memory_space<vmem>>, %arg17: memref<512x256xbf16, #tpu.memory_space<vmem>>, %arg18: memref<1x256xf32, #tpu.memory_space<vmem>>, %arg19: memref<1x256xf32, #tpu.memory_space<vmem>>, %arg20: memref<256x128xbf16, #tpu.memory_space<vmem>>, %arg21: memref<1x128xf32, #tpu.memory_space<vmem>>, %arg22: memref<128x64xbf16, #tpu.memory_space<vmem>>, %arg23: memref<128x64xbf16, #tpu.memory_space<vmem>>, %arg24: memref<1x64xf32, #tpu.memory_space<vmem>>, %arg25: memref<1x64xf32, #tpu.memory_space<vmem>>, %arg26: memref<64x32xbf16, #tpu.memory_space<vmem>>, %arg27: memref<1x32xf32, #tpu.memory_space<vmem>>, %arg28: memref<1x32xf32, #tpu.memory_space<vmem>>, %arg29: memref<32x1xbf16, #tpu.memory_space<vmem>>, %arg30: memref<1x1xf32, #tpu.memory_space<vmem>>, %arg31: memref<8x1xf32, #tpu.memory_space<vmem>>, %arg32: memref<8x1024xf32, #tpu.memory_space<vmem>>) attributes {dimension_semantics = [#tpu.dimension_semantics<arbitrary>], iteration_bounds = array<i64: 5>, scalar_prefetch = 0 : i64, scratch_operands = 1 : i64, tpu.core_type = #tpu.core_type<tc>, window_params = [{transform_indices = @transform_0, window_bounds = array<i64: 1, 8, 1000>}, {transform_indices = @transform_1, window_bounds = array<i64: 1000, 1024>}, {pipeline_mode = #tpu.pipeline_mode<synchronous>, transform_indices = @transform_2, window_bounds = array<i64: 8, 680>}, {pipeline_mode = #tpu.pipeline_mode<synchronous>, transform_indices = @transform_3, window_bounds = array<i64: 1, 1024>}, {pipeline_mode = #tpu.pipeline_mode<synchronous>, transform_indices = @transform_4, window_bounds = array<i64: 1, 1024>}, {pipeline_mode = #tpu.pipeline_mode<synchronous>, transform_indices = @transform_5, window_bounds = array<i64: 1024, 512>}, {pipeline_mode = #tpu.pipeline_mode<synchronous>, transform_indices = @transform_6, window_bounds = array<i64: 1, 512>}, {pipeline_mode = #tpu.pipeline_mode<synchronous>, transform_indices = @transform_7, window_bounds = array<i64: 1, 512>}, {pipeline_mode = #tpu.pipeline_mode<synchronous>, transform_indices = @transform_8, window_bounds = array<i64: 512, 256>}, {pipeline_mode = #tpu.pipeline_mode<synchronous>, transform_indices = @transform_9, window_bounds = array<i64: 1, 256>}, {pipeline_mode = #tpu.pipeline_mode<synchronous>, transform_indices = @transform_10, window_bounds = array<i64: 1, 256>}, {pipeline_mode = #tpu.pipeline_mode<synchronous>, transform_indices = @transform_11, window_bounds = array<i64: 256, 128>}, {pipeline_mode = #tpu.pipeline_mode<synchronous>, transform_indices = @transform_12, window_bounds = array<i64: 1, 128>}, {pipeline_mode = #tpu.pipeline_mode<synchronous>, transform_indices = @transform_13, window_bounds = array<i64: 680, 512>}, {pipeline_mode = #tpu.pipeline_mode<synchronous>, transform_indices = @transform_14, window_bounds = array<i64: 1, 512>}, {pipeline_mode = #tpu.pipeline_mode<synchronous>, transform_indices = @transform_15, window_bounds = array<i64: 1, 512>}, {pipeline_mode = #tpu.pipeline_mode<synchronous>, transform_indices = @transform_16, window_bounds = array<i64: 512, 256>}, {pipeline_mode = #tpu.pipeline_mode<synchronous>, transform_indices = @transform_17, window_bounds = array<i64: 1, 256>}, {pipeline_mode = #tpu.pipeline_mode<synchronous>, transform_indices = @transform_18, window_bounds = array<i64: 1, 256>}, {pipeline_mode = #tpu.pipeline_mode<synchronous>, transform_indices = @transform_19, window_bounds = array<i64: 256, 128>}, {pipeline_mode = #tpu.pipeline_mode<synchronous>, transform_indices = @transform_20, window_bounds = array<i64: 1, 128>}, {pipeline_mode = #tpu.pipeline_mode<synchronous>, transform_indices = @transform_21, window_bounds = array<i64: 128, 64>}, {pipeline_mode = #tpu.pipeline_mode<synchronous>, transform_indices = @transform_22, window_bounds = array<i64: 128, 64>}, {pipeline_mode = #tpu.pipeline_mode<synchronous>, transform_indices = @transform_23, window_bounds = array<i64: 1, 64>}, {pipeline_mode = #tpu.pipeline_mode<synchronous>, transform_indices = @transform_24, window_bounds = array<i64: 1, 64>}, {pipeline_mode = #tpu.pipeline_mode<synchronous>, transform_indices = @transform_25, window_bounds = array<i64: 64, 32>}, {pipeline_mode = #tpu.pipeline_mode<synchronous>, transform_indices = @transform_26, window_bounds = array<i64: 1, 32>}, {pipeline_mode = #tpu.pipeline_mode<synchronous>, transform_indices = @transform_27, window_bounds = array<i64: 1, 32>}, {pipeline_mode = #tpu.pipeline_mode<synchronous>, transform_indices = @transform_28, window_bounds = array<i64: 32, 1>}, {pipeline_mode = #tpu.pipeline_mode<synchronous>, transform_indices = @transform_29, window_bounds = array<i64: 1, 1>}, {pipeline_mode = #tpu.pipeline_mode<synchronous>, transform_indices = @transform_30, window_bounds = array<i64: 8, 1>}]} {
    %c0_i32 = arith.constant 0 : i32
    %0 = arith.cmpi eq, %arg0, %c0_i32 : i32
    %1 = arith.extui %0 : i1 to i32
    %c0_i32_0 = arith.constant 0 : i32
    %2 = arith.cmpi ne, %1, %c0_i32_0 : i32
    scf.if %2 {
      %cst_10 = arith.constant 0.000000e+00 : f32
      %13 = vector.broadcast %cst_10 : f32 to vector<8x1024xf32>
      %c0_11 = arith.constant 0 : index
      %c0_12 = arith.constant 0 : index
      %14 = vector.load %arg32[%c0_11, %c0_12] : memref<8x1024xf32, #tpu.memory_space<vmem>>, vector<8x1024xf32>
      tpu.vector_store %arg32[%c0_11, %c0_12], %13 {strides = array<i32>} : memref<8x1024xf32, #tpu.memory_space<vmem>>, vector<8x1024xf32>,
    } else {
    }
    %c0 = arith.constant 0 : index
    %c0_1 = arith.constant 0 : index
    %3 = vector.load %arg32[%c0, %c0_1] : memref<8x1024xf32, #tpu.memory_space<vmem>>, vector<8x1024xf32>
    %c0_2 = arith.constant 0 : index
    %c0_3 = arith.constant 0 : index
    %c0_4 = arith.constant 0 : index
    %4 = vector.load %arg1[%c0_2, %c0_3, %c0_4] : memref<1x8x1000xbf16, #tpu.memory_space<vmem>>, vector<1x8x1000xbf16>
    %5 = vector.shape_cast %4 : vector<1x8x1000xbf16> to vector<8x1000xbf16>
    %c0_5 = arith.constant 0 : index
    %c0_6 = arith.constant 0 : index
    %6 = vector.load %arg2[%c0_5, %c0_6] : memref<1000x1024xbf16, #tpu.memory_space<vmem>>, vector<1000x1024xbf16>
    %cst = arith.constant dense<0.000000e+00> : vector<8x1024xf32>
    %7 = tpu.matmul %5, %6, %cst {dimension_numbers = #tpu.dot_dimension_numbers<[1], [0], [0], [1], [0, 0, 1, 1], [], []>} : vector<8x1000xbf16>, vector<1000x1024xbf16>, vector<8x1024xf32> -> vector<8x1024xf32>
    %8 = arith.addf %3, %7 : vector<8x1024xf32>
    %c0_7 = arith.constant 0 : index
    %c0_8 = arith.constant 0 : index
    %9 = vector.load %arg32[%c0_7, %c0_8] : memref<8x1024xf32, #tpu.memory_space<vmem>>, vector<8x1024xf32>
    tpu.vector_store %arg32[%c0_7, %c0_8], %8 {strides = array<i32>} : memref<8x1024xf32, #tpu.memory_space<vmem>>, vector<8x1024xf32>,
    %c4_i32 = arith.constant 4 : i32
    %10 = arith.cmpi eq, %arg0, %c4_i32 : i32
    %11 = arith.extui %10 : i1 to i32
    %c0_i32_9 = arith.constant 0 : i32
    %12 = arith.cmpi ne, %11, %c0_i32_9 : i32
    scf.if %12 {
      %c0_10 = arith.constant 0 : index
      %c0_11 = arith.constant 0 : index
      %13 = vector.load %arg32[%c0_10, %c0_11] : memref<8x1024xf32, #tpu.memory_space<vmem>>, vector<8x1024xf32>
      %c0_12 = arith.constant 0 : index
      %c0_13 = arith.constant 0 : index
      %14 = vector.load %arg4[%c0_12, %c0_13] : memref<1x1024xf32, #tpu.memory_space<vmem>>, vector<1x1024xf32>
      %c0_14 = arith.constant 0 : index
      %c0_15 = arith.constant 0 : index
      %15 = vector.load %arg5[%c0_14, %c0_15] : memref<1x1024xf32, #tpu.memory_space<vmem>>, vector<1x1024xf32>
      %cst_16 = arith.constant dense<0.000000e+00> : vector<1024xf32>
      %16 = vector.multi_reduction <add>, %13, %cst_16 [0] : vector<8x1024xf32> to vector<1024xf32>
      %17 = vector.shape_cast %16 : vector<1024xf32> to vector<1x1024xf32>
      %cst_17 = arith.constant 8.000000e+00 : f32
      %18 = vector.broadcast %cst_17 : f32 to vector<1x1024xf32>
      %19 = arith.divf %17, %18 : vector<1x1024xf32>
      %20 = vector.broadcast %19 : vector<1x1024xf32> to vector<8x1024xf32>
      %21 = arith.subf %13, %20 : vector<8x1024xf32>
      %22 = arith.mulf %21, %21 : vector<8x1024xf32>
      %cst_18 = arith.constant dense<0.000000e+00> : vector<1024xf32>
      %23 = vector.multi_reduction <add>, %22, %cst_18 [0] : vector<8x1024xf32> to vector<1024xf32>
      %24 = vector.shape_cast %23 : vector<1024xf32> to vector<1x1024xf32>
      %cst_19 = arith.constant 8.000000e+00 : f32
      %25 = vector.broadcast %cst_19 : f32 to vector<1x1024xf32>
      %26 = arith.divf %24, %25 : vector<1x1024xf32>
      %27 = vector.broadcast %19 : vector<1x1024xf32> to vector<8x1024xf32>
      %28 = arith.subf %13, %27 : vector<8x1024xf32>
      %cst_20 = arith.constant 9.99999974E-6 : f32
      %29 = vector.broadcast %cst_20 : f32 to vector<1x1024xf32>
      %30 = arith.addf %26, %29 : vector<1x1024xf32>
      %31 = math.rsqrt %30 : vector<1x1024xf32>
      %32 = vector.broadcast %31 : vector<1x1024xf32> to vector<8x1024xf32>
      %33 = arith.mulf %28, %32 : vector<8x1024xf32>
      %34 = vector.broadcast %14 : vector<1x1024xf32> to vector<8x1024xf32>
      %35 = arith.mulf %33, %34 : vector<8x1024xf32>
      %36 = vector.broadcast %15 : vector<1x1024xf32> to vector<8x1024xf32>
      %37 = arith.addf %35, %36 : vector<8x1024xf32>
      %cst_21 = arith.constant 0.000000e+00 : f32
      %38 = vector.broadcast %cst_21 : f32 to vector<8x1024xf32>
      %39 = arith.maximumf %37, %38 : vector<8x1024xf32>
      %40 = arith.truncf %39 : vector<8x1024xf32> to vector<8x1024xbf16>
      %c0_22 = arith.constant 0 : index
      %c0_23 = arith.constant 0 : index
      %41 = vector.load %arg6[%c0_22, %c0_23] : memref<1024x512xbf16, #tpu.memory_space<vmem>>, vector<1024x512xbf16>
      %cst_24 = arith.constant dense<0.000000e+00> : vector<8x512xf32>
      %42 = tpu.matmul %40, %41, %cst_24 {dimension_numbers = #tpu.dot_dimension_numbers<[1], [0], [0], [1], [0, 0, 1, 1], [], []>} : vector<8x1024xbf16>, vector<1024x512xbf16>, vector<8x512xf32> -> vector<8x512xf32>
      %c0_25 = arith.constant 0 : index
      %c0_26 = arith.constant 0 : index
      %43 = vector.load %arg7[%c0_25, %c0_26] : memref<1x512xf32, #tpu.memory_space<vmem>>, vector<1x512xf32>
      %c0_27 = arith.constant 0 : index
      %c0_28 = arith.constant 0 : index
      %44 = vector.load %arg8[%c0_27, %c0_28] : memref<1x512xf32, #tpu.memory_space<vmem>>, vector<1x512xf32>
      %cst_29 = arith.constant dense<0.000000e+00> : vector<512xf32>
      %45 = vector.multi_reduction <add>, %42, %cst_29 [0] : vector<8x512xf32> to vector<512xf32>
      %46 = vector.shape_cast %45 : vector<512xf32> to vector<1x512xf32>
      %cst_30 = arith.constant 8.000000e+00 : f32
      %47 = vector.broadcast %cst_30 : f32 to vector<1x512xf32>
      %48 = arith.divf %46, %47 : vector<1x512xf32>
      %49 = vector.broadcast %48 : vector<1x512xf32> to vector<8x512xf32>
      %50 = arith.subf %42, %49 : vector<8x512xf32>
      %51 = arith.mulf %50, %50 : vector<8x512xf32>
      %cst_31 = arith.constant dense<0.000000e+00> : vector<512xf32>
      %52 = vector.multi_reduction <add>, %51, %cst_31 [0] : vector<8x512xf32> to vector<512xf32>
      %53 = vector.shape_cast %52 : vector<512xf32> to vector<1x512xf32>
      %cst_32 = arith.constant 8.000000e+00 : f32
      %54 = vector.broadcast %cst_32 : f32 to vector<1x512xf32>
      %55 = arith.divf %53, %54 : vector<1x512xf32>
      %56 = vector.broadcast %48 : vector<1x512xf32> to vector<8x512xf32>
      %57 = arith.subf %42, %56 : vector<8x512xf32>
      %cst_33 = arith.constant 9.99999974E-6 : f32
      %58 = vector.broadcast %cst_33 : f32 to vector<1x512xf32>
      %59 = arith.addf %55, %58 : vector<1x512xf32>
      %60 = math.rsqrt %59 : vector<1x512xf32>
      %61 = vector.broadcast %60 : vector<1x512xf32> to vector<8x512xf32>
      %62 = arith.mulf %57, %61 : vector<8x512xf32>
      %63 = vector.broadcast %43 : vector<1x512xf32> to vector<8x512xf32>
      %64 = arith.mulf %62, %63 : vector<8x512xf32>
      %65 = vector.broadcast %44 : vector<1x512xf32> to vector<8x512xf32>
      %66 = arith.addf %64, %65 : vector<8x512xf32>
      %cst_34 = arith.constant 0.000000e+00 : f32
      %67 = vector.broadcast %cst_34 : f32 to vector<8x512xf32>
      %68 = arith.maximumf %66, %67 : vector<8x512xf32>
      %69 = arith.truncf %68 : vector<8x512xf32> to vector<8x512xbf16>
      %c0_35 = arith.constant 0 : index
      %c0_36 = arith.constant 0 : index
      %70 = vector.load %arg9[%c0_35, %c0_36] : memref<512x256xbf16, #tpu.memory_space<vmem>>, vector<512x256xbf16>
      %cst_37 = arith.constant dense<0.000000e+00> : vector<8x256xf32>
      %71 = tpu.matmul %69, %70, %cst_37 {dimension_numbers = #tpu.dot_dimension_numbers<[1], [0], [0], [1], [0, 0, 1, 1], [], []>} : vector<8x512xbf16>, vector<512x256xbf16>, vector<8x256xf32> -> vector<8x256xf32>
      %c0_38 = arith.constant 0 : index
      %c0_39 = arith.constant 0 : index
      %72 = vector.load %arg10[%c0_38, %c0_39] : memref<1x256xf32, #tpu.memory_space<vmem>>, vector<1x256xf32>
      %c0_40 = arith.constant 0 : index
      %c0_41 = arith.constant 0 : index
      %73 = vector.load %arg11[%c0_40, %c0_41] : memref<1x256xf32, #tpu.memory_space<vmem>>, vector<1x256xf32>
      %cst_42 = arith.constant dense<0.000000e+00> : vector<256xf32>
      %74 = vector.multi_reduction <add>, %71, %cst_42 [0] : vector<8x256xf32> to vector<256xf32>
      %75 = vector.shape_cast %74 : vector<256xf32> to vector<1x256xf32>
      %cst_43 = arith.constant 8.000000e+00 : f32
      %76 = vector.broadcast %cst_43 : f32 to vector<1x256xf32>
      %77 = arith.divf %75, %76 : vector<1x256xf32>
      %78 = vector.broadcast %77 : vector<1x256xf32> to vector<8x256xf32>
      %79 = arith.subf %71, %78 : vector<8x256xf32>
      %80 = arith.mulf %79, %79 : vector<8x256xf32>
      %cst_44 = arith.constant dense<0.000000e+00> : vector<256xf32>
      %81 = vector.multi_reduction <add>, %80, %cst_44 [0] : vector<8x256xf32> to vector<256xf32>
      %82 = vector.shape_cast %81 : vector<256xf32> to vector<1x256xf32>
      %cst_45 = arith.constant 8.000000e+00 : f32
      %83 = vector.broadcast %cst_45 : f32 to vector<1x256xf32>
      %84 = arith.divf %82, %83 : vector<1x256xf32>
      %85 = vector.broadcast %77 : vector<1x256xf32> to vector<8x256xf32>
      %86 = arith.subf %71, %85 : vector<8x256xf32>
      %cst_46 = arith.constant 9.99999974E-6 : f32
      %87 = vector.broadcast %cst_46 : f32 to vector<1x256xf32>
      %88 = arith.addf %84, %87 : vector<1x256xf32>
      %89 = math.rsqrt %88 : vector<1x256xf32>
      %90 = vector.broadcast %89 : vector<1x256xf32> to vector<8x256xf32>
      %91 = arith.mulf %86, %90 : vector<8x256xf32>
      %92 = vector.broadcast %72 : vector<1x256xf32> to vector<8x256xf32>
      %93 = arith.mulf %91, %92 : vector<8x256xf32>
      %94 = vector.broadcast %73 : vector<1x256xf32> to vector<8x256xf32>
      %95 = arith.addf %93, %94 : vector<8x256xf32>
      %cst_47 = arith.constant 0.000000e+00 : f32
      %96 = vector.broadcast %cst_47 : f32 to vector<8x256xf32>
      %97 = arith.maximumf %95, %96 : vector<8x256xf32>
      %98 = arith.truncf %97 : vector<8x256xf32> to vector<8x256xbf16>
      %c0_48 = arith.constant 0 : index
      %c0_49 = arith.constant 0 : index
      %99 = vector.load %arg12[%c0_48, %c0_49] : memref<256x128xbf16, #tpu.memory_space<vmem>>, vector<256x128xbf16>
      %cst_50 = arith.constant dense<0.000000e+00> : vector<8x128xf32>
      %100 = tpu.matmul %98, %99, %cst_50 {dimension_numbers = #tpu.dot_dimension_numbers<[1], [0], [0], [1], [0, 0, 1, 1], [], []>} : vector<8x256xbf16>, vector<256x128xbf16>, vector<8x128xf32> -> vector<8x128xf32>
      %c0_51 = arith.constant 0 : index
      %c0_52 = arith.constant 0 : index
      %101 = vector.load %arg13[%c0_51, %c0_52] : memref<1x128xf32, #tpu.memory_space<vmem>>, vector<1x128xf32>
      %102 = vector.broadcast %101 : vector<1x128xf32> to vector<8x128xf32>
      %103 = arith.addf %100, %102 : vector<8x128xf32>
      %c0_53 = arith.constant 0 : index
      %c0_54 = arith.constant 0 : index
      %104 = vector.load %arg3[%c0_53, %c0_54] : memref<8x680xf32, #tpu.memory_space<vmem>>, vector<8x680xf32>
      %105 = arith.truncf %104 : vector<8x680xf32> to vector<8x680xbf16>
      %c0_55 = arith.constant 0 : index
      %c0_56 = arith.constant 0 : index
      %106 = vector.load %arg14[%c0_55, %c0_56] : memref<680x512xbf16, #tpu.memory_space<vmem>>, vector<680x512xbf16>
      %cst_57 = arith.constant dense<0.000000e+00> : vector<8x512xf32>
      %107 = tpu.matmul %105, %106, %cst_57 {dimension_numbers = #tpu.dot_dimension_numbers<[1], [0], [0], [1], [0, 0, 1, 1], [], []>} : vector<8x680xbf16>, vector<680x512xbf16>, vector<8x512xf32> -> vector<8x512xf32>
      %c0_58 = arith.constant 0 : index
      %c0_59 = arith.constant 0 : index
      %108 = vector.load %arg15[%c0_58, %c0_59] : memref<1x512xf32, #tpu.memory_space<vmem>>, vector<1x512xf32>
      %c0_60 = arith.constant 0 : index
      %c0_61 = arith.constant 0 : index
      %109 = vector.load %arg16[%c0_60, %c0_61] : memref<1x512xf32, #tpu.memory_space<vmem>>, vector<1x512xf32>
      %cst_62 = arith.constant dense<0.000000e+00> : vector<512xf32>
      %110 = vector.multi_reduction <add>, %107, %cst_62 [0] : vector<8x512xf32> to vector<512xf32>
      %111 = vector.shape_cast %110 : vector<512xf32> to vector<1x512xf32>
      %cst_63 = arith.constant 8.000000e+00 : f32
      %112 = vector.broadcast %cst_63 : f32 to vector<1x512xf32>
      %113 = arith.divf %111, %112 : vector<1x512xf32>
      %114 = vector.broadcast %113 : vector<1x512xf32> to vector<8x512xf32>
      %115 = arith.subf %107, %114 : vector<8x512xf32>
      %116 = arith.mulf %115, %115 : vector<8x512xf32>
      %cst_64 = arith.constant dense<0.000000e+00> : vector<512xf32>
      %117 = vector.multi_reduction <add>, %116, %cst_64 [0] : vector<8x512xf32> to vector<512xf32>
      %118 = vector.shape_cast %117 : vector<512xf32> to vector<1x512xf32>
      %cst_65 = arith.constant 8.000000e+00 : f32
      %119 = vector.broadcast %cst_65 : f32 to vector<1x512xf32>
      %120 = arith.divf %118, %119 : vector<1x512xf32>
      %121 = vector.broadcast %113 : vector<1x512xf32> to vector<8x512xf32>
      %122 = arith.subf %107, %121 : vector<8x512xf32>
      %cst_66 = arith.constant 9.99999974E-6 : f32
      %123 = vector.broadcast %cst_66 : f32 to vector<1x512xf32>
      %124 = arith.addf %120, %123 : vector<1x512xf32>
      %125 = math.rsqrt %124 : vector<1x512xf32>
      %126 = vector.broadcast %125 : vector<1x512xf32> to vector<8x512xf32>
      %127 = arith.mulf %122, %126 : vector<8x512xf32>
      %128 = vector.broadcast %108 : vector<1x512xf32> to vector<8x512xf32>
      %129 = arith.mulf %127, %128 : vector<8x512xf32>
      %130 = vector.broadcast %109 : vector<1x512xf32> to vector<8x512xf32>
      %131 = arith.addf %129, %130 : vector<8x512xf32>
      %cst_67 = arith.constant 0.000000e+00 : f32
      %132 = vector.broadcast %cst_67 : f32 to vector<8x512xf32>
      %133 = arith.maximumf %131, %132 : vector<8x512xf32>
      %134 = arith.truncf %133 : vector<8x512xf32> to vector<8x512xbf16>
      %c0_68 = arith.constant 0 : index
      %c0_69 = arith.constant 0 : index
      %135 = vector.load %arg17[%c0_68, %c0_69] : memref<512x256xbf16, #tpu.memory_space<vmem>>, vector<512x256xbf16>
      %cst_70 = arith.constant dense<0.000000e+00> : vector<8x256xf32>
      %136 = tpu.matmul %134, %135, %cst_70 {dimension_numbers = #tpu.dot_dimension_numbers<[1], [0], [0], [1], [0, 0, 1, 1], [], []>} : vector<8x512xbf16>, vector<512x256xbf16>, vector<8x256xf32> -> vector<8x256xf32>
      %c0_71 = arith.constant 0 : index
      %c0_72 = arith.constant 0 : index
      %137 = vector.load %arg18[%c0_71, %c0_72] : memref<1x256xf32, #tpu.memory_space<vmem>>, vector<1x256xf32>
      %c0_73 = arith.constant 0 : index
      %c0_74 = arith.constant 0 : index
      %138 = vector.load %arg19[%c0_73, %c0_74] : memref<1x256xf32, #tpu.memory_space<vmem>>, vector<1x256xf32>
      %cst_75 = arith.constant dense<0.000000e+00> : vector<256xf32>
      %139 = vector.multi_reduction <add>, %136, %cst_75 [0] : vector<8x256xf32> to vector<256xf32>
      %140 = vector.shape_cast %139 : vector<256xf32> to vector<1x256xf32>
      %cst_76 = arith.constant 8.000000e+00 : f32
      %141 = vector.broadcast %cst_76 : f32 to vector<1x256xf32>
      %142 = arith.divf %140, %141 : vector<1x256xf32>
      %143 = vector.broadcast %142 : vector<1x256xf32> to vector<8x256xf32>
      %144 = arith.subf %136, %143 : vector<8x256xf32>
      %145 = arith.mulf %144, %144 : vector<8x256xf32>
      %cst_77 = arith.constant dense<0.000000e+00> : vector<256xf32>
      %146 = vector.multi_reduction <add>, %145, %cst_77 [0] : vector<8x256xf32> to vector<256xf32>
      %147 = vector.shape_cast %146 : vector<256xf32> to vector<1x256xf32>
      %cst_78 = arith.constant 8.000000e+00 : f32
      %148 = vector.broadcast %cst_78 : f32 to vector<1x256xf32>
      %149 = arith.divf %147, %148 : vector<1x256xf32>
      %150 = vector.broadcast %142 : vector<1x256xf32> to vector<8x256xf32>
      %151 = arith.subf %136, %150 : vector<8x256xf32>
      %cst_79 = arith.constant 9.99999974E-6 : f32
      %152 = vector.broadcast %cst_79 : f32 to vector<1x256xf32>
      %153 = arith.addf %149, %152 : vector<1x256xf32>
      %154 = math.rsqrt %153 : vector<1x256xf32>
      %155 = vector.broadcast %154 : vector<1x256xf32> to vector<8x256xf32>
      %156 = arith.mulf %151, %155 : vector<8x256xf32>
      %157 = vector.broadcast %137 : vector<1x256xf32> to vector<8x256xf32>
      %158 = arith.mulf %156, %157 : vector<8x256xf32>
      %159 = vector.broadcast %138 : vector<1x256xf32> to vector<8x256xf32>
      %160 = arith.addf %158, %159 : vector<8x256xf32>
      %cst_80 = arith.constant 0.000000e+00 : f32
      %161 = vector.broadcast %cst_80 : f32 to vector<8x256xf32>
      %162 = arith.maximumf %160, %161 : vector<8x256xf32>
      %163 = arith.truncf %162 : vector<8x256xf32> to vector<8x256xbf16>
      %c0_81 = arith.constant 0 : index
      %c0_82 = arith.constant 0 : index
      %164 = vector.load %arg20[%c0_81, %c0_82] : memref<256x128xbf16, #tpu.memory_space<vmem>>, vector<256x128xbf16>
      %cst_83 = arith.constant dense<0.000000e+00> : vector<8x128xf32>
      %165 = tpu.matmul %163, %164, %cst_83 {dimension_numbers = #tpu.dot_dimension_numbers<[1], [0], [0], [1], [0, 0, 1, 1], [], []>} : vector<8x256xbf16>, vector<256x128xbf16>, vector<8x128xf32> -> vector<8x128xf32>
      %c0_84 = arith.constant 0 : index
      %c0_85 = arith.constant 0 : index
      %166 = vector.load %arg21[%c0_84, %c0_85] : memref<1x128xf32, #tpu.memory_space<vmem>>, vector<1x128xf32>
      %167 = vector.broadcast %166 : vector<1x128xf32> to vector<8x128xf32>
      %168 = arith.addf %165, %167 : vector<8x128xf32>
      %169 = arith.truncf %103 : vector<8x128xf32> to vector<8x128xbf16>
      %c0_86 = arith.constant 0 : index
      %c0_87 = arith.constant 0 : index
      %170 = vector.load %arg22[%c0_86, %c0_87] : memref<128x64xbf16, #tpu.memory_space<vmem>>, vector<128x64xbf16>
      %cst_88 = arith.constant dense<0.000000e+00> : vector<8x64xf32>
      %171 = tpu.matmul %169, %170, %cst_88 {dimension_numbers = #tpu.dot_dimension_numbers<[1], [0], [0], [1], [0, 0, 1, 1], [], []>} : vector<8x128xbf16>, vector<128x64xbf16>, vector<8x64xf32> -> vector<8x64xf32>
      %172 = arith.truncf %168 : vector<8x128xf32> to vector<8x128xbf16>
      %c0_89 = arith.constant 0 : index
      %c0_90 = arith.constant 0 : index
      %173 = vector.load %arg23[%c0_89, %c0_90] : memref<128x64xbf16, #tpu.memory_space<vmem>>, vector<128x64xbf16>
      %cst_91 = arith.constant dense<0.000000e+00> : vector<8x64xf32>
      %174 = tpu.matmul %172, %173, %cst_91 {dimension_numbers = #tpu.dot_dimension_numbers<[1], [0], [0], [1], [0, 0, 1, 1], [], []>} : vector<8x128xbf16>, vector<128x64xbf16>, vector<8x64xf32> -> vector<8x64xf32>
      %175 = arith.addf %171, %174 : vector<8x64xf32>
      %c0_92 = arith.constant 0 : index
      %c0_93 = arith.constant 0 : index
      %176 = vector.load %arg24[%c0_92, %c0_93] : memref<1x64xf32, #tpu.memory_space<vmem>>, vector<1x64xf32>
      %c0_94 = arith.constant 0 : index
      %c0_95 = arith.constant 0 : index
      %177 = vector.load %arg25[%c0_94, %c0_95] : memref<1x64xf32, #tpu.memory_space<vmem>>, vector<1x64xf32>
      %cst_96 = arith.constant dense<0.000000e+00> : vector<64xf32>
      %178 = vector.multi_reduction <add>, %175, %cst_96 [0] : vector<8x64xf32> to vector<64xf32>
      %179 = vector.shape_cast %178 : vector<64xf32> to vector<1x64xf32>
      %cst_97 = arith.constant 8.000000e+00 : f32
      %180 = vector.broadcast %cst_97 : f32 to vector<1x64xf32>
      %181 = arith.divf %179, %180 : vector<1x64xf32>
      %182 = vector.broadcast %181 : vector<1x64xf32> to vector<8x64xf32>
      %183 = arith.subf %175, %182 : vector<8x64xf32>
      %184 = arith.mulf %183, %183 : vector<8x64xf32>
      %cst_98 = arith.constant dense<0.000000e+00> : vector<64xf32>
      %185 = vector.multi_reduction <add>, %184, %cst_98 [0] : vector<8x64xf32> to vector<64xf32>
      %186 = vector.shape_cast %185 : vector<64xf32> to vector<1x64xf32>
      %cst_99 = arith.constant 8.000000e+00 : f32
      %187 = vector.broadcast %cst_99 : f32 to vector<1x64xf32>
      %188 = arith.divf %186, %187 : vector<1x64xf32>
      %189 = vector.broadcast %181 : vector<1x64xf32> to vector<8x64xf32>
      %190 = arith.subf %175, %189 : vector<8x64xf32>
      %cst_100 = arith.constant 9.99999974E-6 : f32
      %191 = vector.broadcast %cst_100 : f32 to vector<1x64xf32>
      %192 = arith.addf %188, %191 : vector<1x64xf32>
      %193 = math.rsqrt %192 : vector<1x64xf32>
      %194 = vector.broadcast %193 : vector<1x64xf32> to vector<8x64xf32>
      %195 = arith.mulf %190, %194 : vector<8x64xf32>
      %196 = vector.broadcast %176 : vector<1x64xf32> to vector<8x64xf32>
      %197 = arith.mulf %195, %196 : vector<8x64xf32>
      %198 = vector.broadcast %177 : vector<1x64xf32> to vector<8x64xf32>
      %199 = arith.addf %197, %198 : vector<8x64xf32>
      %cst_101 = arith.constant 0.000000e+00 : f32
      %200 = vector.broadcast %cst_101 : f32 to vector<8x64xf32>
      %201 = arith.maximumf %199, %200 : vector<8x64xf32>
      %202 = arith.truncf %201 : vector<8x64xf32> to vector<8x64xbf16>
      %c0_102 = arith.constant 0 : index
      %c0_103 = arith.constant 0 : index
      %203 = vector.load %arg26[%c0_102, %c0_103] : memref<64x32xbf16, #tpu.memory_space<vmem>>, vector<64x32xbf16>
      %cst_104 = arith.constant dense<0.000000e+00> : vector<8x32xf32>
      %204 = tpu.matmul %202, %203, %cst_104 {dimension_numbers = #tpu.dot_dimension_numbers<[1], [0], [0], [1], [0, 0, 1, 1], [], []>} : vector<8x64xbf16>, vector<64x32xbf16>, vector<8x32xf32> -> vector<8x32xf32>
      %c0_105 = arith.constant 0 : index
      %c0_106 = arith.constant 0 : index
      %205 = vector.load %arg27[%c0_105, %c0_106] : memref<1x32xf32, #tpu.memory_space<vmem>>, vector<1x32xf32>
      %c0_107 = arith.constant 0 : index
      %c0_108 = arith.constant 0 : index
      %206 = vector.load %arg28[%c0_107, %c0_108] : memref<1x32xf32, #tpu.memory_space<vmem>>, vector<1x32xf32>
      %cst_109 = arith.constant dense<0.000000e+00> : vector<32xf32>
      %207 = vector.multi_reduction <add>, %204, %cst_109 [0] : vector<8x32xf32> to vector<32xf32>
      %208 = vector.shape_cast %207 : vector<32xf32> to vector<1x32xf32>
      %cst_110 = arith.constant 8.000000e+00 : f32
      %209 = vector.broadcast %cst_110 : f32 to vector<1x32xf32>
      %210 = arith.divf %208, %209 : vector<1x32xf32>
      %211 = vector.broadcast %210 : vector<1x32xf32> to vector<8x32xf32>
      %212 = arith.subf %204, %211 : vector<8x32xf32>
      %213 = arith.mulf %212, %212 : vector<8x32xf32>
      %cst_111 = arith.constant dense<0.000000e+00> : vector<32xf32>
      %214 = vector.multi_reduction <add>, %213, %cst_111 [0] : vector<8x32xf32> to vector<32xf32>
      %215 = vector.shape_cast %214 : vector<32xf32> to vector<1x32xf32>
      %cst_112 = arith.constant 8.000000e+00 : f32
      %216 = vector.broadcast %cst_112 : f32 to vector<1x32xf32>
      %217 = arith.divf %215, %216 : vector<1x32xf32>
      %218 = vector.broadcast %210 : vector<1x32xf32> to vector<8x32xf32>
      %219 = arith.subf %204, %218 : vector<8x32xf32>
      %cst_113 = arith.constant 9.99999974E-6 : f32
      %220 = vector.broadcast %cst_113 : f32 to vector<1x32xf32>
      %221 = arith.addf %217, %220 : vector<1x32xf32>
      %222 = math.rsqrt %221 : vector<1x32xf32>
      %223 = vector.broadcast %222 : vector<1x32xf32> to vector<8x32xf32>
      %224 = arith.mulf %219, %223 : vector<8x32xf32>
      %225 = vector.broadcast %205 : vector<1x32xf32> to vector<8x32xf32>
      %226 = arith.mulf %224, %225 : vector<8x32xf32>
      %227 = vector.broadcast %206 : vector<1x32xf32> to vector<8x32xf32>
      %228 = arith.addf %226, %227 : vector<8x32xf32>
      %cst_114 = arith.constant 0.000000e+00 : f32
      %229 = vector.broadcast %cst_114 : f32 to vector<8x32xf32>
      %230 = arith.maximumf %228, %229 : vector<8x32xf32>
      %231 = arith.truncf %230 : vector<8x32xf32> to vector<8x32xbf16>
      %c0_115 = arith.constant 0 : index
      %c0_116 = arith.constant 0 : index
      %232 = vector.load %arg29[%c0_115, %c0_116] : memref<32x1xbf16, #tpu.memory_space<vmem>>, vector<32x1xbf16>
      %cst_117 = arith.constant dense<0.000000e+00> : vector<8x1xf32>
      %233 = tpu.matmul %231, %232, %cst_117 {dimension_numbers = #tpu.dot_dimension_numbers<[1], [0], [0], [1], [0, 0, 1, 1], [], []>} : vector<8x32xbf16>, vector<32x1xbf16>, vector<8x1xf32> -> vector<8x1xf32>
      %c0_118 = arith.constant 0 : index
      %c0_119 = arith.constant 0 : index
      %234 = vector.load %arg30[%c0_118, %c0_119] : memref<1x1xf32, #tpu.memory_space<vmem>>, vector<1x1xf32>
      %235 = vector.broadcast %234 : vector<1x1xf32> to vector<8x1xf32>
      %236 = arith.addf %233, %235 : vector<8x1xf32>
      %237 = arith.negf %236 : vector<8x1xf32>
      %238 = math.exp %237 : vector<8x1xf32>
      %cst_120 = arith.constant 1.000000e+00 : f32
      %239 = vector.broadcast %cst_120 : f32 to vector<8x1xf32>
      %240 = arith.addf %239, %238 : vector<8x1xf32>
      %241 = arith.divf %239, %240 : vector<8x1xf32>
      %c0_121 = arith.constant 0 : index
      %c0_122 = arith.constant 0 : index
      %242 = vector.load %arg31[%c0_121, %c0_122] : memref<8x1xf32, #tpu.memory_space<vmem>>, vector<8x1xf32>
      tpu.vector_store %arg31[%c0_121, %c0_122], %241 {strides = array<i32>} : memref<8x1xf32, #tpu.memory_space<vmem>>, vector<8x1xf32>,
    } else {
    }
    return
  }
  func.func @transform_0(%arg0: i32) -> (i32, i32, i32) {
    %c0_i32 = arith.constant 0 : i32
    %c0_i32_0 = arith.constant 0 : i32
    %c0_i32_1 = arith.constant 0 : i32
    return %arg0, %c0_i32, %c0_i32_0 : i32, i32, i32
  }
  func.func @transform_1(%arg0: i32) -> (i32, i32) {
    %c0_i32 = arith.constant 0 : i32
    %c0_i32_0 = arith.constant 0 : i32
    return %arg0, %c0_i32 : i32, i32
  }
  func.func @transform_2(%arg0: i32) -> (i32, i32) {
    %c0_i32 = arith.constant 0 : i32
    %c0_i32_0 = arith.constant 0 : i32
    %c0_i32_1 = arith.constant 0 : i32
    return %c0_i32, %c0_i32_0 : i32, i32
  }
  func.func @transform_3(%arg0: i32) -> (i32, i32) {
    %c0_i32 = arith.constant 0 : i32
    %c0_i32_0 = arith.constant 0 : i32
    %c0_i32_1 = arith.constant 0 : i32
    return %c0_i32, %c0_i32_0 : i32, i32
  }
  func.func @transform_4(%arg0: i32) -> (i32, i32) {
    %c0_i32 = arith.constant 0 : i32
    %c0_i32_0 = arith.constant 0 : i32
    %c0_i32_1 = arith.constant 0 : i32
    return %c0_i32, %c0_i32_0 : i32, i32
  }
  func.func @transform_5(%arg0: i32) -> (i32, i32) {
    %c0_i32 = arith.constant 0 : i32
    %c0_i32_0 = arith.constant 0 : i32
    %c0_i32_1 = arith.constant 0 : i32
    return %c0_i32, %c0_i32_0 : i32, i32
  }
  func.func @transform_6(%arg0: i32) -> (i32, i32) {
    %c0_i32 = arith.constant 0 : i32
    %c0_i32_0 = arith.constant 0 : i32
    %c0_i32_1 = arith.constant 0 : i32
    return %c0_i32, %c0_i32_0 : i32, i32
  }
  func.func @transform_7(%arg0: i32) -> (i32, i32) {
    %c0_i32 = arith.constant 0 : i32
    %c0_i32_0 = arith.constant 0 : i32
    %c0_i32_1 = arith.constant 0 : i32
    return %c0_i32, %c0_i32_0 : i32, i32
  }
  func.func @transform_8(%arg0: i32) -> (i32, i32) {
    %c0_i32 = arith.constant 0 : i32
    %c0_i32_0 = arith.constant 0 : i32
    %c0_i32_1 = arith.constant 0 : i32
    return %c0_i32, %c0_i32_0 : i32, i32
  }
  func.func @transform_9(%arg0: i32) -> (i32, i32) {
    %c0_i32 = arith.constant 0 : i32
    %c0_i32_0 = arith.constant 0 : i32
    %c0_i32_1 = arith.constant 0 : i32
    return %c0_i32, %c0_i32_0 : i32, i32
  }
  func.func @transform_10(%arg0: i32) -> (i32, i32) {
    %c0_i32 = arith.constant 0 : i32
    %c0_i32_0 = arith.constant 0 : i32
    %c0_i32_1 = arith.constant 0 : i32
    return %c0_i32, %c0_i32_0 : i32, i32
  }
  func.func @transform_11(%arg0: i32) -> (i32, i32) {
    %c0_i32 = arith.constant 0 : i32
    %c0_i32_0 = arith.constant 0 : i32
    %c0_i32_1 = arith.constant 0 : i32
    return %c0_i32, %c0_i32_0 : i32, i32
  }
  func.func @transform_12(%arg0: i32) -> (i32, i32) {
    %c0_i32 = arith.constant 0 : i32
    %c0_i32_0 = arith.constant 0 : i32
    %c0_i32_1 = arith.constant 0 : i32
    return %c0_i32, %c0_i32_0 : i32, i32
  }
  func.func @transform_13(%arg0: i32) -> (i32, i32) {
    %c0_i32 = arith.constant 0 : i32
    %c0_i32_0 = arith.constant 0 : i32
    %c0_i32_1 = arith.constant 0 : i32
    return %c0_i32, %c0_i32_0 : i32, i32
  }
  func.func @transform_14(%arg0: i32) -> (i32, i32) {
    %c0_i32 = arith.constant 0 : i32
    %c0_i32_0 = arith.constant 0 : i32
    %c0_i32_1 = arith.constant 0 : i32
    return %c0_i32, %c0_i32_0 : i32, i32
  }
  func.func @transform_15(%arg0: i32) -> (i32, i32) {
    %c0_i32 = arith.constant 0 : i32
    %c0_i32_0 = arith.constant 0 : i32
    %c0_i32_1 = arith.constant 0 : i32
    return %c0_i32, %c0_i32_0 : i32, i32
  }
  func.func @transform_16(%arg0: i32) -> (i32, i32) {
    %c0_i32 = arith.constant 0 : i32
    %c0_i32_0 = arith.constant 0 : i32
    %c0_i32_1 = arith.constant 0 : i32
    return %c0_i32, %c0_i32_0 : i32, i32
  }
  func.func @transform_17(%arg0: i32) -> (i32, i32) {
    %c0_i32 = arith.constant 0 : i32
    %c0_i32_0 = arith.constant 0 : i32
    %c0_i32_1 = arith.constant 0 : i32
    return %c0_i32, %c0_i32_0 : i32, i32
  }
  func.func @transform_18(%arg0: i32) -> (i32, i32) {
    %c0_i32 = arith.constant 0 : i32
    %c0_i32_0 = arith.constant 0 : i32
    %c0_i32_1 = arith.constant 0 : i32
    return %c0_i32, %c0_i32_0 : i32, i32
  }
  func.func @transform_19(%arg0: i32) -> (i32, i32) {
    %c0_i32 = arith.constant 0 : i32
    %c0_i32_0 = arith.constant 0 : i32
    %c0_i32_1 = arith.constant 0 : i32
    return %c0_i32, %c0_i32_0 : i32, i32
  }
  func.func @transform_20(%arg0: i32) -> (i32, i32) {
    %c0_i32 = arith.constant 0 : i32
    %c0_i32_0 = arith.constant 0 : i32
    %c0_i32_1 = arith.constant 0 : i32
    return %c0_i32, %c0_i32_0 : i32, i32
  }
  func.func @transform_21(%arg0: i32) -> (i32, i32) {
    %c0_i32 = arith.constant 0 : i32
    %c0_i32_0 = arith.constant 0 : i32
    %c0_i32_1 = arith.constant 0 : i32
    return %c0_i32, %c0_i32_0 : i32, i32
  }
  func.func @transform_22(%arg0: i32) -> (i32, i32) {
    %c0_i32 = arith.constant 0 : i32
    %c0_i32_0 = arith.constant 0 : i32
    %c0_i32_1 = arith.constant 0 : i32
    return %c0_i32, %c0_i32_0 : i32, i32
  }
  func.func @transform_23(%arg0: i32) -> (i32, i32) {
    %c0_i32 = arith.constant 0 : i32
    %c0_i32_0 = arith.constant 0 : i32
    %c0_i32_1 = arith.constant 0 : i32
    return %c0_i32, %c0_i32_0 : i32, i32
  }
  func.func @transform_24(%arg0: i32) -> (i32, i32) {
    %c0_i32 = arith.constant 0 : i32
    %c0_i32_0 = arith.constant 0 : i32
    %c0_i32_1 = arith.constant 0 : i32
    return %c0_i32, %c0_i32_0 : i32, i32
  }
  func.func @transform_25(%arg0: i32) -> (i32, i32) {
    %c0_i32 = arith.constant 0 : i32
    %c0_i32_0 = arith.constant 0 : i32
    %c0_i32_1 = arith.constant 0 : i32
    return %c0_i32, %c0_i32_0 : i32, i32
  }
  func.func @transform_26(%arg0: i32) -> (i32, i32) {
    %c0_i32 = arith.constant 0 : i32
    %c0_i32_0 = arith.constant 0 : i32
    %c0_i32_1 = arith.constant 0 : i32
    return %c0_i32, %c0_i32_0 : i32, i32
  }
  func.func @transform_27(%arg0: i32) -> (i32, i32) {
    %c0_i32 = arith.constant 0 : i32
    %c0_i32_0 = arith.constant 0 : i32
    %c0_i32_1 = arith.constant 0 : i32
    return %c0_i32, %c0_i32_0 : i32, i32
  }
  func.func @transform_28(%arg0: i32) -> (i32, i32) {
    %c0_i32 = arith.constant 0 : i32
    %c0_i32_0 = arith.constant 0 : i32
    %c0_i32_1 = arith.constant 0 : i32
    return %c0_i32, %c0_i32_0 : i32, i32
  }
  func.func @transform_29(%arg0: i32) -> (i32, i32) {
    %c0_i32 = arith.constant 0 : i32
    %c0_i32_0 = arith.constant 0 : i32
    %c0_i32_1 = arith.constant 0 : i32
    return %c0_i32, %c0_i32_0 : i32, i32
  }
  func.func @transform_30(%arg0: i32) -> (i32, i32) {
    %c0_i32 = arith.constant 0 : i32
    %c0_i32_0 = arith.constant 0 : i32
    %c0_i32_1 = arith.constant 0 : i32
    return %c0_i32, %c0_i32_0 : i32, i32
  }
}

</mosaic_0001>

<llo_original>
// kernel: posesync_forward.1
$region0: #{posesync_forward.1}
  #allocation0 [shape = 'u32[]', space=smem, size = 0x4, offset = 0x4, fixed_abs, tag = 'smem constant byte address 0x4 - core index']
  #allocation1 [shape = 'u32[144,128]{1,0:T(1,128)}', space=vmem, size = 0x12000, scoped, tag = 'internal scratch']
  #allocation2 [shape = 'f32[8,1024]{1,0:T(8,128)}', space=vmem, size = 0x8000, scoped, tag = 'scratch operand']
  #allocation3 [shape = 'f32[1,1]{1,0:T(1,128)S(1)}', space=vmem, size = 0x200, scoped, tag = 'scoped memory for posesync_forward.1']
  %s0 = inlined_call_operand.smem [shape: u32[31], index: -1, kind: input, shape index: {}]
  %s1 = sld [smem:[%s0]]
  %s2 = scalar_lea.smem %s0, 1
  %s3 = sld [smem:[%s2]]
  %s4 = scalar_lea.smem %s0, 2
  %s5 = sld [smem:[%s4]]
  %s6 = scalar_lea.smem %s0, 3
  %s7 = sld [smem:[%s6]]
  %s8 = scalar_lea.smem %s0, 4
  %s9 = sld [smem:[%s8]]
  %s10 = scalar_lea.smem %s0, 5
  %s11 = sld [smem:[%s10]]
  %s12 = scalar_lea.smem %s0, 6
  %s13 = sld [smem:[%s12]]
  %s14 = scalar_lea.smem %s0, 7
  %s15 = sld [smem:[%s14]]
  %s16 = scalar_lea.smem %s0, 8
  %s17 = sld [smem:[%s16]]
  %s18 = scalar_lea.smem %s0, 9
  %s19 = sld [smem:[%s18]]
  %s20 = scalar_lea.smem %s0, 10
  %s21 = sld [smem:[%s20]]
  %s22 = scalar_lea.smem %s0, 11
  %s23 = sld [smem:[%s22]]
  %s24 = scalar_lea.smem %s0, 12
  %s25 = sld [smem:[%s24]]
  %s26 = scalar_lea.smem %s0, 13
  %s27 = sld [smem:[%s26]]
  %s28 = scalar_lea.smem %s0, 14
  %s29 = sld [smem:[%s28]]
  %s30 = scalar_lea.smem %s0, 15
  %s31 = sld [smem:[%s30]]
  %s32 = scalar_lea.smem %s0, 16
  %s33 = sld [smem:[%s32]]
  %s34 = scalar_lea.smem %s0, 17
  %s35 = sld [smem:[%s34]]
  %s36 = scalar_lea.smem %s0, 18
  %s37 = sld [smem:[%s36]]
  %s38 = scalar_lea.smem %s0, 19
  %s39 = sld [smem:[%s38]]
  %s40 = scalar_lea.smem %s0, 20
  %s41 = sld [smem:[%s40]]
  %s42 = scalar_lea.smem %s0, 21
  %s43 = sld [smem:[%s42]]
  %s44 = scalar_lea.smem %s0, 22
  %s45 = sld [smem:[%s44]]
  %s46 = scalar_lea.smem %s0, 23
  %s47 = sld [smem:[%s46]]
  %s48 = scalar_lea.smem %s0, 24
  %s49 = sld [smem:[%s48]]
  %s50 = scalar_lea.smem %s0, 25
  %s51 = sld [smem:[%s50]]
  %s52 = scalar_lea.smem %s0, 26
  %s53 = sld [smem:[%s52]]
  %s54 = scalar_lea.smem %s0, 27
  %s55 = sld [smem:[%s54]]
  %s56 = scalar_lea.smem %s0, 28
  %s57 = sld [smem:[%s56]]
  %s58 = scalar_lea.smem %s0, 29
  %s59 = sld [smem:[%s58]]
  %s60 = scalar_lea.smem %s0, 30
  %s61 = sld [smem:[%s60]]
  %s62 = sld [smem:[#allocation0]]
  $region257: #{posesync_forward.1} parent=0
    _
  %s64 = ssub.s32 1, %s62
  %s65 = scalar_select 0, %s64, %s62
  %v66 = vstv %s59
  %67 = vst [vmem:[#allocation3] sm:$0x1] %v66
  $region1: #{posesync_forward.1} parent=0
    #allocation4 [shape = 'u8[4096000]{0}', space=vmem, size = 0x3e8000, scoped, tag = 'input window, operand 1']
    #allocation5 [shape = 's32[2]{0}', space=sflag, size = 0x8, scoped, tag = 'scoped memory for posesync_forward.1']
    #allocation6 [shape = 'u8[24576]{0}', space=vmem, size = 0x6000, scoped, tag = 'input window, operand 2, single buffered']
    #allocation7 [shape = 's32[1]{0}', space=sflag, size = 0x4, scoped, tag = 'scoped memory for posesync_forward.1']
    #allocation8 [shape = 'u8[4096]{0}', space=vmem, size = 0x1000, scoped, tag = 'input window, operand 3, single buffered']
    #allocation9 [shape = 'u8[4096]{0}', space=vmem, size = 0x1000, scoped, tag = 'input window, operand 4, single buffered']
    #allocation10 [shape = 's32[1]{0}', space=sflag, size = 0x4, scoped, tag = 'scoped memory for posesync_forward.1']
    #allocation11 [shape = 'u8[1048576]{0}', space=vmem, size = 0x100000, scoped, tag = 'input window, operand 5, single buffered']
    #allocation12 [shape = 'u8[2048]{0}', space=vmem, size = 0x800, scoped, tag = 'input window, operand 6, single buffered']
    #allocation13 [shape = 's32[1]{0}', space=sflag, size = 0x4, scoped, tag = 'scoped memory for posesync_forward.1']
    #allocation14 [shape = 'u8[2048]{0}', space=vmem, size = 0x800, scoped, tag = 'input window, operand 7, single buffered']
    #allocation15 [shape = 'u8[262144]{0}', space=vmem, size = 0x40000, scoped, tag = 'input window, operand 8, single buffered']
    #allocation16 [shape = 's32[1]{0}', space=sflag, size = 0x4, scoped, tag = 'scoped memory for posesync_forward.1']
    #allocation17 [shape = 'u8[1024]{0}', space=vmem, size = 0x400, scoped, tag = 'input window, operand 9, single buffered']
    #allocation18 [shape = 'u8[1024]{0}', space=vmem, size = 0x400, scoped, tag = 'input window, operand 10, single buffered']
    #allocation19 [shape = 's32[1]{0}', space=sflag, size = 0x4, scoped, tag = 'scoped memory for posesync_forward.1']
    #allocation20 [shape = 'u8[65536]{0}', space=vmem, size = 0x10000, scoped, tag = 'input window, operand 11, single buffered']
    #allocation21 [shape = 'u8[512]{0}', space=vmem, size = 0x400, scoped, tag = 'input window, operand 12, single buffered']
    #allocation22 [shape = 's32[1]{0}', space=sflag, size = 0x4, scoped, tag = 'scoped memory for posesync_forward.1']
    #allocation23 [shape = 'u8[696320]{0}', space=vmem, size = 0xaa000, scoped, tag = 'input window, operand 13, single buffered']
    #allocation24 [shape = 'u8[2048]{0}', space=vmem, size = 0x800, scoped, tag = 'input window, operand 14, single buffered']
    #allocation25 [shape = 's32[1]{0}', space=sflag, size = 0x4, scoped, tag = 'scoped memory for posesync_forward.1']
    #allocation26 [shape = 'u8[2048]{0}', space=vmem, size = 0x800, scoped, tag = 'input window, operand 15, single buffered']
    #allocation27 [shape = 'u8[262144]{0}', space=vmem, size = 0x40000, scoped, tag = 'input window, operand 16, single buffered']
    #allocation28 [shape = 's32[1]{0}', space=sflag, size = 0x4, scoped, tag = 'scoped memory for posesync_forward.1']
    #allocation29 [shape = 'u8[1024]{0}', space=vmem, size = 0x400, scoped, tag = 'input window, operand 17, single buffered']
    #allocation30 [shape = 'u8[1024]{0}', space=vmem, size = 0x400, scoped, tag = 'input window, operand 18, single buffered']
    #allocation31 [shape = 's32[1]{0}', space=sflag, size = 0x4, scoped, tag = 'scoped memory for posesync_forward.1']
    #allocation32 [shape = 'u8[65536]{0}', space=vmem, size = 0x10000, scoped, tag = 'input window, operand 19, single buffered']
    #allocation33 [shape = 'u8[512]{0}', space=vmem, size = 0x400, scoped, tag = 'input window, operand 20, single buffered']
    #allocation34 [shape = 's32[1]{0}', space=sflag, size = 0x4, scoped, tag = 'scoped memory for posesync_forward.1']
    #allocation35 [shape = 'u8[512]{0}', space=vmem, size = 0x400, scoped, tag = 'input window, operand 23, single buffered']
    #allocation36 [shape = 'u8[512]{0}', space=vmem, size = 0x400, scoped, tag = 'input window, operand 24, single buffered']
    #allocation37 [shape = 's32[1]{0}', space=sflag, size = 0x4, scoped, tag = 'scoped memory for posesync_forward.1']
    #allocation38 [shape = 'u8[512]{0}', space=vmem, size = 0x400, scoped, tag = 'input window, operand 26, single buffered']
    #allocation39 [shape = 'u8[512]{0}', space=vmem, size = 0x400, scoped, tag = 'input window, operand 27, single buffered']
    #allocation40 [shape = 's32[1]{0}', space=sflag, size = 0x4, scoped, tag = 'scoped memory for posesync_forward.1']
    %68 = vsyncpa [#allocation5], 0
    %s69 = scalar_lea.sflag [#allocation5], 1
    %70 = vsyncpa %s69, 0
    %71 = vsyncpa [#allocation7], 0
    %72 = vsyncpa [#allocation10], 0
    %73 = vsyncpa [#allocation13], 0
    %74 = vsyncpa [#allocation16], 0
    %75 = vsyncpa [#allocation19], 0
    %76 = vsyncpa [#allocation22], 0
    %77 = vsyncpa [#allocation25], 0
    %78 = vsyncpa [#allocation28], 0
    %79 = vsyncpa [#allocation31], 0
    %80 = vsyncpa [#allocation34], 0
    %81 = vsyncpa [#allocation37], 0
    %82 = vsyncpa [#allocation40], 0
    loop: start=0, step=1, limit=7
    $region2: #{posesync_forward.1} parent=1 // loop_pre_header
      _
    $region3: #{posesync_forward.1} parent=1 // loop_header
      %s84 = sphi 0, %s88
      %p85 = scmp.ge.s32.totalorder %s84, 7
      %s94 = sphi 0, %s96
      %s97 = sphi 0, %s94
      %s98 = sphi 0, %s97
      %s114 = sphi 0, %s98
      %s120 = sphi 0, %s122
      %s123 = sphi 0, %s120
      %s124 = sphi 0, %s123
      %s140 = sphi 0, %s124
      %s144 = sphi 0, %s144
      %s146 = sphi 0, %s144
      %s147 = sphi 0, %s146
      %s161 = sphi 0, %s147
      %s165 = sphi 0, %s165
      %s167 = sphi 0, %s165
      %s168 = sphi 0, %s167
      %s182 = sphi 0, %s168
      %s186 = sphi 0, %s186
      %s188 = sphi 0, %s186
      %s189 = sphi 0, %s188
      %s203 = sphi 0, %s189
      %s207 = sphi 0, %s207
      %s209 = sphi 0, %s207
      %s210 = sphi 0, %s209
      %s224 = sphi 0, %s210
      %s228 = sphi 0, %s228
      %s230 = sphi 0, %s228
      %s231 = sphi 0, %s230
      %s245 = sphi 0, %s231
      %s249 = sphi 0, %s249
      %s251 = sphi 0, %s249
      %s252 = sphi 0, %s251
      %s266 = sphi 0, %s252
      %s270 = sphi 0, %s270
      %s272 = sphi 0, %s270
      %s273 = sphi 0, %s272
      %s287 = sphi 0, %s273
      %s291 = sphi 0, %s291
      %s293 = sphi 0, %s291
      %s294 = sphi 0, %s293
      %s308 = sphi 0, %s294
      %s312 = sphi 0, %s312
      %s314 = sphi 0, %s312
      %s315 = sphi 0, %s314
      %s329 = sphi 0, %s315
      %s333 = sphi 0, %s333
      %s335 = sphi 0, %s333
      %s336 = sphi 0, %s335
      %s350 = sphi 0, %s336
      %s354 = sphi 0, %s354
      %s356 = sphi 0, %s354
      %s357 = sphi 0, %s356
      %s371 = sphi 0, %s357
      %s375 = sphi 0, %s375
      %s377 = sphi 0, %s375
      %s378 = sphi 0, %s377
      %s392 = sphi 0, %s378
      %s396 = sphi 0, %s396
      %s398 = sphi 0, %s396
      %s399 = sphi 0, %s398
      %s413 = sphi 0, %s399
      %s417 = sphi 0, %s417
      %s419 = sphi 0, %s417
      %s420 = sphi 0, %s419
      %s434 = sphi 0, %s420
      %s438 = sphi 0, %s438
      %s440 = sphi 0, %s438
      %s441 = sphi 0, %s440
      %s455 = sphi 0, %s441
      %s459 = sphi 0, %s459
      %s461 = sphi 0, %s459
      %s462 = sphi 0, %s461
      %s476 = sphi 0, %s462
      %s480 = sphi 0, %s480
      %s482 = sphi 0, %s480
      %s483 = sphi 0, %s482
      %s497 = sphi 0, %s483
      %s501 = sphi 0, %s501
      %s503 = sphi 0, %s501
      %s504 = sphi 0, %s503
      %s518 = sphi 0, %s504
      %s522 = sphi 0, %s522
      %s524 = sphi 0, %s522
      %s525 = sphi 0, %s524
      %s539 = sphi 0, %s525
      %s543 = sphi 0, %s543
      %s545 = sphi 0, %s543
      %s546 = sphi 0, %s545
      %s560 = sphi 0, %s546
      %s564 = sphi 0, %s564
      %s566 = sphi 0, %s564
      %s567 = sphi 0, %s566
      %s581 = sphi 0, %s567
      %s585 = sphi 0, %s585
      %s587 = sphi 0, %s585
      %s588 = sphi 0, %s587
      %s602 = sphi 0, %s588
      %s606 = sphi 0, %s606
      %s608 = sphi 0, %s606
      %s609 = sphi 0, %s608
      %s623 = sphi 0, %s609
      %s627 = sphi 0, %s627
      %s629 = sphi 0, %s627
      %s630 = sphi 0, %s629
      %s644 = sphi 0, %s630
      %s648 = sphi 0, %s648
      %s650 = sphi 0, %s648
      %s651 = sphi 0, %s650
      %s665 = sphi 0, %s651
      %s669 = sphi 0, %s669
      %s671 = sphi 0, %s669
      %s672 = sphi 0, %s671
      %s686 = sphi 0, %s672
      %s690 = sphi 0, %s690
      %s692 = sphi 0, %s690
      %s693 = sphi 0, %s692
      %s707 = sphi 0, %s693
      %s711 = sphi 0, %s711
      %s713 = sphi 0, %s711
      %s714 = sphi 0, %s713
      %s728 = sphi 0, %s714
      %s732 = sphi 0, %s732
      %s734 = sphi 0, %s732
      %s735 = sphi 0, %s734
      %s749 = sphi 0, %s735
    $region4: #{posesync_forward.1} parent=1 // loop_header_branch
      %87 = sbr.rel (%p85) target = $region8
    $region5: #{posesync_forward.1} parent=1 // loop_body
      %s89 = ssub.s32 %s84, 1
      %s90 = ssub.s32 %s84, 2
      %s91 = sadd.s32 %s84, 1
      %s92 = ssub.s32 %s84, %s91
      %p93 = scmp.eq.s32.totalorder %s92, 0
      %s95 = sadd.s32 %s94, 1
      %s96 = scalar_select %p93, %s94, %s95
      %p99 = pneg %p93
      %p100 = scmp.eq.s32.totalorder %s84, 4
      %p101 = por %p99, %p100
      %p102 = scmp.ne.s32.totalorder %s94, %s97
      %p103 = scmp.eq.s32.totalorder %s84, 0
      %p104 = por %p102, %p103
      %p105 = scmp.ne.s32.totalorder %s94, %s97
      %p106 = scmp.eq.s32.totalorder %s89, 4
      %p107 = por %p105, %p106
      %p108 = scmp.ne.s32.totalorder %s97, %s98
      %p109 = scmp.eq.s32.totalorder %s89, 0
      %p110 = por %p108, %p109
      %p111 = scmp.ne.s32.totalorder %s97, %s98
      %p112 = scmp.eq.s32.totalorder %s90, 4
      %p113 = por %p111, %p112
      %p115 = scmp.ne.s32.totalorder %s98, %s114
      %p116 = scmp.eq.s32.totalorder %s90, 0
      %p117 = por %p115, %p116
      %s118 = ssub.s32 %s84, %s91
      %p119 = scmp.eq.s32.totalorder %s118, 0
      %s121 = sadd.s32 %s120, 1
      %s122 = scalar_select %p119, %s120, %s121
      %p125 = pneg %p119
      %p126 = scmp.eq.s32.totalorder %s84, 4
      %p127 = por %p125, %p126
      %p128 = scmp.ne.s32.totalorder %s120, %s123
      %p129 = scmp.eq.s32.totalorder %s84, 0
      %p130 = por %p128, %p129
      %p131 = scmp.ne.s32.totalorder %s120, %s123
      %p132 = scmp.eq.s32.totalorder %s89, 4
      %p133 = por %p131, %p132
      %p134 = scmp.ne.s32.totalorder %s123, %s124
      %p135 = scmp.eq.s32.totalorder %s89, 0
      %p136 = por %p134, %p135
      %p137 = scmp.ne.s32.totalorder %s123, %s124
      %p138 = scmp.eq.s32.totalorder %s90, 4
      %p139 = por %p137, %p138
      %p141 = scmp.ne.s32.totalorder %s124, %s140
      %p142 = scmp.eq.s32.totalorder %s90, 0
      %p143 = por %p141, %p142
      %s145 = sadd.s32 %s144, 1
      %p148 = scmp.eq.s32.totalorder %s84, 4
      %p149 = scmp.ne.s32.totalorder %s144, %s146
      %p150 = scmp.eq.s32.totalorder %s84, 0
      %p151 = por %p149, %p150
      %p152 = scmp.ne.s32.totalorder %s144, %s146
      %p153 = scmp.eq.s32.totalorder %s89, 4
      %p154 = por %p152, %p153
      %p155 = scmp.ne.s32.totalorder %s146, %s147
      %p156 = scmp.eq.s32.totalorder %s89, 0
      %p157 = por %p155, %p156
      %p158 = scmp.ne.s32.totalorder %s146, %s147
      %p159 = scmp.eq.s32.totalorder %s90, 4
      %p160 = por %p158, %p159
      %p162 = scmp.ne.s32.totalorder %s147, %s161
      %p163 = scmp.eq.s32.totalorder %s90, 0
      %p164 = por %p162, %p163
      %s166 = sadd.s32 %s165, 1
      %p169 = scmp.eq.s32.totalorder %s84, 4
      %p170 = scmp.ne.s32.totalorder %s165, %s167
      %p171 = scmp.eq.s32.totalorder %s84, 0
      %p172 = por %p170, %p171
      %p173 = scmp.ne.s32.totalorder %s165, %s167
      %p174 = scmp.eq.s32.totalorder %s89, 4
      %p175 = por %p173, %p174
      %p176 = scmp.ne.s32.totalorder %s167, %s168
      %p177 = scmp.eq.s32.totalorder %s89, 0
      %p178 = por %p176, %p177
      %p179 = scmp.ne.s32.totalorder %s167, %s168
      %p180 = scmp.eq.s32.totalorder %s90, 4
      %p181 = por %p179, %p180
      %p183 = scmp.ne.s32.totalorder %s168, %s182
      %p184 = scmp.eq.s32.totalorder %s90, 0
      %p185 = por %p183, %p184
      %s187 = sadd.s32 %s186, 1
      %p190 = scmp.eq.s32.totalorder %s84, 4
      %p191 = scmp.ne.s32.totalorder %s186, %s188
      %p192 = scmp.eq.s32.totalorder %s84, 0
      %p193 = por %p191, %p192
      %p194 = scmp.ne.s32.totalorder %s186, %s188
      %p195 = scmp.eq.s32.totalorder %s89, 4
      %p196 = por %p194, %p195
      %p197 = scmp.ne.s32.totalorder %s188, %s189
      %p198 = scmp.eq.s32.totalorder %s89, 0
      %p199 = por %p197, %p198
      %p200 = scmp.ne.s32.totalorder %s188, %s189
      %p201 = scmp.eq.s32.totalorder %s90, 4
      %p202 = por %p200, %p201
      %p204 = scmp.ne.s32.totalorder %s189, %s203
      %p205 = scmp.eq.s32.totalorder %s90, 0
      %p206 = por %p204, %p205
      %s208 = sadd.s32 %s207, 1
      %p211 = scmp.eq.s32.totalorder %s84, 4
      %p212 = scmp.ne.s32.totalorder %s207, %s209
      %p213 = scmp.eq.s32.totalorder %s84, 0
      %p214 = por %p212, %p213
      %p215 = scmp.ne.s32.totalorder %s207, %s209
      %p216 = scmp.eq.s32.totalorder %s89, 4
      %p217 = por %p215, %p216
      %p218 = scmp.ne.s32.totalorder %s209, %s210
      %p219 = scmp.eq.s32.totalorder %s89, 0
      %p220 = por %p218, %p219
      %p221 = scmp.ne.s32.totalorder %s209, %s210
      %p222 = scmp.eq.s32.totalorder %s90, 4
      %p223 = por %p221, %p222
      %p225 = scmp.ne.s32.totalorder %s210, %s224
      %p226 = scmp.eq.s32.totalorder %s90, 0
      %p227 = por %p225, %p226
      %s229 = sadd.s32 %s228, 1
      %p232 = scmp.eq.s32.totalorder %s84, 4
      %p233 = scmp.ne.s32.totalorder %s228, %s230
      %p234 = scmp.eq.s32.totalorder %s84, 0
      %p235 = por %p233, %p234
      %p236 = scmp.ne.s32.totalorder %s228, %s230
      %p237 = scmp.eq.s32.totalorder %s89, 4
      %p238 = por %p236, %p237
      %p239 = scmp.ne.s32.totalorder %s230, %s231
      %p240 = scmp.eq.s32.totalorder %s89, 0
      %p241 = por %p239, %p240
      %p242 = scmp.ne.s32.totalorder %s230, %s231
      %p243 = scmp.eq.s32.totalorder %s90, 4
      %p244 = por %p242, %p243
      %p246 = scmp.ne.s32.totalorder %s231, %s245
      %p247 = scmp.eq.s32.totalorder %s90, 0
      %p248 = por %p246, %p247
      %s250 = sadd.s32 %s249, 1
      %p253 = scmp.eq.s32.totalorder %s84, 4
      %p254 = scmp.ne.s32.totalorder %s249, %s251
      %p255 = scmp.eq.s32.totalorder %s84, 0
      %p256 = por %p254, %p255
      %p257 = scmp.ne.s32.totalorder %s249, %s251
      %p258 = scmp.eq.s32.totalorder %s89, 4
      %p259 = por %p257, %p258
      %p260 = scmp.ne.s32.totalorder %s251, %s252
      %p261 = scmp.eq.s32.totalorder %s89, 0
      %p262 = por %p260, %p261
      %p263 = scmp.ne.s32.totalorder %s251, %s252
      %p264 = scmp.eq.s32.totalorder %s90, 4
      %p265 = por %p263, %p264
      %p267 = scmp.ne.s32.totalorder %s252, %s266
      %p268 = scmp.eq.s32.totalorder %s90, 0
      %p269 = por %p267, %p268
      %s271 = sadd.s32 %s270, 1
      %p274 = scmp.eq.s32.totalorder %s84, 4
      %p275 = scmp.ne.s32.totalorder %s270, %s272
      %p276 = scmp.eq.s32.totalorder %s84, 0
      %p277 = por %p275, %p276
      %p278 = scmp.ne.s32.totalorder %s270, %s272
      %p279 = scmp.eq.s32.totalorder %s89, 4
      %p280 = por %p278, %p279
      %p281 = scmp.ne.s32.totalorder %s272, %s273
      %p282 = scmp.eq.s32.totalorder %s89, 0
      %p283 = por %p281, %p282
      %p284 = scmp.ne.s32.totalorder %s272, %s273
      %p285 = scmp.eq.s32.totalorder %s90, 4
      %p286 = por %p284, %p285
      %p288 = scmp.ne.s32.totalorder %s273, %s287
      %p289 = scmp.eq.s32.totalorder %s90, 0
      %p290 = por %p288, %p289
      %s292 = sadd.s32 %s291, 1
      %p295 = scmp.eq.s32.totalorder %s84, 4
      %p296 = scmp.ne.s32.totalorder %s291, %s293
      %p297 = scmp.eq.s32.totalorder %s84, 0
      %p298 = por %p296, %p297
      %p299 = scmp.ne.s32.totalorder %s291, %s293
      %p300 = scmp.eq.s32.totalorder %s89, 4
      %p301 = por %p299, %p300
      %p302 = scmp.ne.s32.totalorder %s293, %s294
      %p303 = scmp.eq.s32.totalorder %s89, 0
      %p304 = por %p302, %p303
      %p305 = scmp.ne.s32.totalorder %s293, %s294
      %p306 = scmp.eq.s32.totalorder %s90, 4
      %p307 = por %p305, %p306
      %p309 = scmp.ne.s32.totalorder %s294, %s308
      %p310 = scmp.eq.s32.totalorder %s90, 0
      %p311 = por %p309, %p310
      %s313 = sadd.s32 %s312, 1
      %p316 = scmp.eq.s32.totalorder %s84, 4
      %p317 = scmp.ne.s32.totalorder %s312, %s314
      %p318 = scmp.eq.s32.totalorder %s84, 0
      %p319 = por %p317, %p318
      %p320 = scmp.ne.s32.totalorder %s312, %s314
      %p321 = scmp.eq.s32.totalorder %s89, 4
      %p322 = por %p320, %p321
      %p323 = scmp.ne.s32.totalorder %s314, %s315
      %p324 = scmp.eq.s32.totalorder %s89, 0
      %p325 = por %p323, %p324
      %p326 = scmp.ne.s32.totalorder %s314, %s315
      %p327 = scmp.eq.s32.totalorder %s90, 4
      %p328 = por %p326, %p327
      %p330 = scmp.ne.s32.totalorder %s315, %s329
      %p331 = scmp.eq.s32.totalorder %s90, 0
      %p332 = por %p330, %p331
      %s334 = sadd.s32 %s333, 1
      %p337 = scmp.eq.s32.totalorder %s84, 4
      %p338 = scmp.ne.s32.totalorder %s333, %s335
      %p339 = scmp.eq.s32.totalorder %s84, 0
      %p340 = por %p338, %p339
      %p341 = scmp.ne.s32.totalorder %s333, %s335
      %p342 = scmp.eq.s32.totalorder %s89, 4
      %p343 = por %p341, %p342
      %p344 = scmp.ne.s32.totalorder %s335, %s336
      %p345 = scmp.eq.s32.totalorder %s89, 0
      %p346 = por %p344, %p345
      %p347 = scmp.ne.s32.totalorder %s335, %s336
      %p348 = scmp.eq.s32.totalorder %s90, 4
      %p349 = por %p347, %p348
      %p351 = scmp.ne.s32.totalorder %s336, %s350
      %p352 = scmp.eq.s32.totalorder %s90, 0
      %p353 = por %p351, %p352
      %s355 = sadd.s32 %s354, 1
      %p358 = scmp.eq.s32.totalorder %s84, 4
      %p359 = scmp.ne.s32.totalorder %s354, %s356
      %p360 = scmp.eq.s32.totalorder %s84, 0
      %p361 = por %p359, %p360
      %p362 = scmp.ne.s32.totalorder %s354, %s356
      %p363 = scmp.eq.s32.totalorder %s89, 4
      %p364 = por %p362, %p363
      %p365 = scmp.ne.s32.totalorder %s356, %s357
      %p366 = scmp.eq.s32.totalorder %s89, 0
      %p367 = por %p365, %p366
      %p368 = scmp.ne.s32.totalorder %s356, %s357
      %p369 = scmp.eq.s32.totalorder %s90, 4
      %p370 = por %p368, %p369
      %p372 = scmp.ne.s32.totalorder %s357, %s371
      %p373 = scmp.eq.s32.totalorder %s90, 0
      %p374 = por %p372, %p373
      %s376 = sadd.s32 %s375, 1
      %p379 = scmp.eq.s32.totalorder %s84, 4
      %p380 = scmp.ne.s32.totalorder %s375, %s377
      %p381 = scmp.eq.s32.totalorder %s84, 0
      %p382 = por %p380, %p381
      %p383 = scmp.ne.s32.totalorder %s375, %s377
      %p384 = scmp.eq.s32.totalorder %s89, 4
      %p385 = por %p383, %p384
      %p386 = scmp.ne.s32.totalorder %s377, %s378
      %p387 = scmp.eq.s32.totalorder %s89, 0
      %p388 = por %p386, %p387
      %p389 = scmp.ne.s32.totalorder %s377, %s378
      %p390 = scmp.eq.s32.totalorder %s90, 4
      %p391 = por %p389, %p390
      %p393 = scmp.ne.s32.totalorder %s378, %s392
      %p394 = scmp.eq.s32.totalorder %s90, 0
      %p395 = por %p393, %p394
      %s397 = sadd.s32 %s396, 1
      %p400 = scmp.eq.s32.totalorder %s84, 4
      %p401 = scmp.ne.s32.totalorder %s396, %s398
      %p402 = scmp.eq.s32.totalorder %s84, 0
      %p403 = por %p401, %p402
      %p404 = scmp.ne.s32.totalorder %s396, %s398
      %p405 = scmp.eq.s32.totalorder %s89, 4
      %p406 = por %p404, %p405
      %p407 = scmp.ne.s32.totalorder %s398, %s399
      %p408 = scmp.eq.s32.totalorder %s89, 0
      %p409 = por %p407, %p408
      %p410 = scmp.ne.s32.totalorder %s398, %s399
      %p411 = scmp.eq.s32.totalorder %s90, 4
      %p412 = por %p410, %p411
      %p414 = scmp.ne.s32.totalorder %s399, %s413
      %p415 = scmp.eq.s32.totalorder %s90, 0
      %p416 = por %p414, %p415
      %s418 = sadd.s32 %s417, 1
      %p421 = scmp.eq.s32.totalorder %s84, 4
      %p422 = scmp.ne.s32.totalorder %s417, %s419
      %p423 = scmp.eq.s32.totalorder %s84, 0
      %p424 = por %p422, %p423
      %p425 = scmp.ne.s32.totalorder %s417, %s419
      %p426 = scmp.eq.s32.totalorder %s89, 4
      %p427 = por %p425, %p426
      %p428 = scmp.ne.s32.totalorder %s419, %s420
      %p429 = scmp.eq.s32.totalorder %s89, 0
      %p430 = por %p428, %p429
      %p431 = scmp.ne.s32.totalorder %s419, %s420
      %p432 = scmp.eq.s32.totalorder %s90, 4
      %p433 = por %p431, %p432
      %p435 = scmp.ne.s32.totalorder %s420, %s434
      %p436 = scmp.eq.s32.totalorder %s90, 0
      %p437 = por %p435, %p436
      %s439 = sadd.s32 %s438, 1
      %p442 = scmp.eq.s32.totalorder %s84, 4
      %p443 = scmp.ne.s32.totalorder %s438, %s440
      %p444 = scmp.eq.s32.totalorder %s84, 0
      %p445 = por %p443, %p444
      %p446 = scmp.ne.s32.totalorder %s438, %s440
      %p447 = scmp.eq.s32.totalorder %s89, 4
      %p448 = por %p446, %p447
      %p449 = scmp.ne.s32.totalorder %s440, %s441
      %p450 = scmp.eq.s32.totalorder %s89, 0
      %p451 = por %p449, %p450
      %p452 = scmp.ne.s32.totalorder %s440, %s441
      %p453 = scmp.eq.s32.totalorder %s90, 4
      %p454 = por %p452, %p453
      %p456 = scmp.ne.s32.totalorder %s441, %s455
      %p457 = scmp.eq.s32.totalorder %s90, 0
      %p458 = por %p456, %p457
      %s460 = sadd.s32 %s459, 1
      %p463 = scmp.eq.s32.totalorder %s84, 4
      %p464 = scmp.ne.s32.totalorder %s459, %s461
      %p465 = scmp.eq.s32.totalorder %s84, 0
      %p466 = por %p464, %p465
      %p467 = scmp.ne.s32.totalorder %s459, %s461
      %p468 = scmp.eq.s32.totalorder %s89, 4
      %p469 = por %p467, %p468
      %p470 = scmp.ne.s32.totalorder %s461, %s462
      %p471 = scmp.eq.s32.totalorder %s89, 0
      %p472 = por %p470, %p471
      %p473 = scmp.ne.s32.totalorder %s461, %s462
      %p474 = scmp.eq.s32.totalorder %s90, 4
      %p475 = por %p473, %p474
      %p477 = scmp.ne.s32.totalorder %s462, %s476
      %p478 = scmp.eq.s32.totalorder %s90, 0
      %p479 = por %p477, %p478
      %s481 = sadd.s32 %s480, 1
      %p484 = scmp.eq.s32.totalorder %s84, 4
      %p485 = scmp.ne.s32.totalorder %s480, %s482
      %p486 = scmp.eq.s32.totalorder %s84, 0
      %p487 = por %p485, %p486
      %p488 = scmp.ne.s32.totalorder %s480, %s482
      %p489 = scmp.eq.s32.totalorder %s89, 4
      %p490 = por %p488, %p489
      %p491 = scmp.ne.s32.totalorder %s482, %s483
      %p492 = scmp.eq.s32.totalorder %s89, 0
      %p493 = por %p491, %p492
      %p494 = scmp.ne.s32.totalorder %s482, %s483
      %p495 = scmp.eq.s32.totalorder %s90, 4
      %p496 = por %p494, %p495
      %p498 = scmp.ne.s32.totalorder %s483, %s497
      %p499 = scmp.eq.s32.totalorder %s90, 0
      %p500 = por %p498, %p499
      %s502 = sadd.s32 %s501, 1
      %p505 = scmp.eq.s32.totalorder %s84, 4
      %p506 = scmp.ne.s32.totalorder %s501, %s503
      %p507 = scmp.eq.s32.totalorder %s84, 0
      %p508 = por %p506, %p507
      %p509 = scmp.ne.s32.totalorder %s501, %s503
      %p510 = scmp.eq.s32.totalorder %s89, 4
      %p511 = por %p509, %p510
      %p512 = scmp.ne.s32.totalorder %s503, %s504
      %p513 = scmp.eq.s32.totalorder %s89, 0
      %p514 = por %p512, %p513
      %p515 = scmp.ne.s32.totalorder %s503, %s504
      %p516 = scmp.eq.s32.totalorder %s90, 4
      %p517 = por %p515, %p516
      %p519 = scmp.ne.s32.totalorder %s504, %s518
      %p520 = scmp.eq.s32.totalorder %s90, 0
      %p521 = por %p519, %p520
      %s523 = sadd.s32 %s522, 1
      %p526 = scmp.eq.s32.totalorder %s84, 4
      %p527 = scmp.ne.s32.totalorder %s522, %s524
      %p528 = scmp.eq.s32.totalorder %s84, 0
      %p529 = por %p527, %p528
      %p530 = scmp.ne.s32.totalorder %s522, %s524
      %p531 = scmp.eq.s32.totalorder %s89, 4
      %p532 = por %p530, %p531
      %p533 = scmp.ne.s32.totalorder %s524, %s525
      %p534 = scmp.eq.s32.totalorder %s89, 0
      %p535 = por %p533, %p534
      %p536 = scmp.ne.s32.totalorder %s524, %s525
      %p537 = scmp.eq.s32.totalorder %s90, 4
      %p538 = por %p536, %p537
      %p540 = scmp.ne.s32.totalorder %s525, %s539
      %p541 = scmp.eq.s32.totalorder %s90, 0
      %p542 = por %p540, %p541
      %s544 = sadd.s32 %s543, 1
      %p547 = scmp.eq.s32.totalorder %s84, 4
      %p548 = scmp.ne.s32.totalorder %s543, %s545
      %p549 = scmp.eq.s32.totalorder %s84, 0
      %p550 = por %p548, %p549
      %p551 = scmp.ne.s32.totalorder %s543, %s545
      %p552 = scmp.eq.s32.totalorder %s89, 4
      %p553 = por %p551, %p552
      %p554 = scmp.ne.s32.totalorder %s545, %s546
      %p555 = scmp.eq.s32.totalorder %s89, 0
      %p556 = por %p554, %p555
      %p557 = scmp.ne.s32.totalorder %s545, %s546
      %p558 = scmp.eq.s32.totalorder %s90, 4
      %p559 = por %p557, %p558
      %p561 = scmp.ne.s32.totalorder %s546, %s560
      %p562 = scmp.eq.s32.totalorder %s90, 0
      %p563 = por %p561, %p562
      %s565 = sadd.s32 %s564, 1
      %p568 = scmp.eq.s32.totalorder %s84, 4
      %p569 = scmp.ne.s32.totalorder %s564, %s566
      %p570 = scmp.eq.s32.totalorder %s84, 0
      %p571 = por %p569, %p570
      %p572 = scmp.ne.s32.totalorder %s564, %s566
      %p573 = scmp.eq.s32.totalorder %s89, 4
      %p574 = por %p572, %p573
      %p575 = scmp.ne.s32.totalorder %s566, %s567
      %p576 = scmp.eq.s32.totalorder %s89, 0
      %p577 = por %p575, %p576
      %p578 = scmp.ne.s32.totalorder %s566, %s567
      %p579 = scmp.eq.s32.totalorder %s90, 4
      %p580 = por %p578, %p579
      %p582 = scmp.ne.s32.totalorder %s567, %s581
      %p583 = scmp.eq.s32.totalorder %s90, 0
      %p584 = por %p582, %p583
      %s586 = sadd.s32 %s585, 1
      %p589 = scmp.eq.s32.totalorder %s84, 4
      %p590 = scmp.ne.s32.totalorder %s585, %s587
      %p591 = scmp.eq.s32.totalorder %s84, 0
      %p592 = por %p590, %p591
      %p593 = scmp.ne.s32.totalorder %s585, %s587
      %p594 = scmp.eq.s32.totalorder %s89, 4
      %p595 = por %p593, %p594
      %p596 = scmp.ne.s32.totalorder %s587, %s588
      %p597 = scmp.eq.s32.totalorder %s89, 0
      %p598 = por %p596, %p597
      %p599 = scmp.ne.s32.totalorder %s587, %s588
      %p600 = scmp.eq.s32.totalorder %s90, 4
      %p601 = por %p599, %p600
      %p603 = scmp.ne.s32.totalorder %s588, %s602
      %p604 = scmp.eq.s32.totalorder %s90, 0
      %p605 = por %p603, %p604
      %s607 = sadd.s32 %s606, 1
      %p610 = scmp.eq.s32.totalorder %s84, 4
      %p611 = scmp.ne.s32.totalorder %s606, %s608
      %p612 = scmp.eq.s32.totalorder %s84, 0
      %p613 = por %p611, %p612
      %p614 = scmp.ne.s32.totalorder %s606, %s608
      %p615 = scmp.eq.s32.totalorder %s89, 4
      %p616 = por %p614, %p615
      %p617 = scmp.ne.s32.totalorder %s608, %s609
      %p618 = scmp.eq.s32.totalorder %s89, 0
      %p619 = por %p617, %p618
      %p620 = scmp.ne.s32.totalorder %s608, %s609
      %p621 = scmp.eq.s32.totalorder %s90, 4
      %p622 = por %p620, %p621
      %p624 = scmp.ne.s32.totalorder %s609, %s623
      %p625 = scmp.eq.s32.totalorder %s90, 0
      %p626 = por %p624, %p625
      %s628 = sadd.s32 %s627, 1
      %p631 = scmp.eq.s32.totalorder %s84, 4
      %p632 = scmp.ne.s32.totalorder %s627, %s629
      %p633 = scmp.eq.s32.totalorder %s84, 0
      %p634 = por %p632, %p633
      %p635 = scmp.ne.s32.totalorder %s627, %s629
      %p636 = scmp.eq.s32.totalorder %s89, 4
      %p637 = por %p635, %p636
      %p638 = scmp.ne.s32.totalorder %s629, %s630
      %p639 = scmp.eq.s32.totalorder %s89, 0
      %p640 = por %p638, %p639
      %p641 = scmp.ne.s32.totalorder %s629, %s630
      %p642 = scmp.eq.s32.totalorder %s90, 4
      %p643 = por %p641, %p642
      %p645 = scmp.ne.s32.totalorder %s630, %s644
      %p646 = scmp.eq.s32.totalorder %s90, 0
      %p647 = por %p645, %p646
      %s649 = sadd.s32 %s648, 1
      %p652 = scmp.eq.s32.totalorder %s84, 4
      %p653 = scmp.ne.s32.totalorder %s648, %s650
      %p654 = scmp.eq.s32.totalorder %s84, 0
      %p655 = por %p653, %p654
      %p656 = scmp.ne.s32.totalorder %s648, %s650
      %p657 = scmp.eq.s32.totalorder %s89, 4
      %p658 = por %p656, %p657
      %p659 = scmp.ne.s32.totalorder %s650, %s651
      %p660 = scmp.eq.s32.totalorder %s89, 0
      %p661 = por %p659, %p660
      %p662 = scmp.ne.s32.totalorder %s650, %s651
      %p663 = scmp.eq.s32.totalorder %s90, 4
      %p664 = por %p662, %p663
      %p666 = scmp.ne.s32.totalorder %s651, %s665
      %p667 = scmp.eq.s32.totalorder %s90, 0
      %p668 = por %p666, %p667
      %s670 = sadd.s32 %s669, 1
      %p673 = scmp.eq.s32.totalorder %s84, 4
      %p674 = scmp.ne.s32.totalorder %s669, %s671
      %p675 = scmp.eq.s32.totalorder %s84, 0
      %p676 = por %p674, %p675
      %p677 = scmp.ne.s32.totalorder %s669, %s671
      %p678 = scmp.eq.s32.totalorder %s89, 4
      %p679 = por %p677, %p678
      %p680 = scmp.ne.s32.totalorder %s671, %s672
      %p681 = scmp.eq.s32.totalorder %s89, 0
      %p682 = por %p680, %p681
      %p683 = scmp.ne.s32.totalorder %s671, %s672
      %p684 = scmp.eq.s32.totalorder %s90, 4
      %p685 = por %p683, %p684
      %p687 = scmp.ne.s32.totalorder %s672, %s686
      %p688 = scmp.eq.s32.totalorder %s90, 0
      %p689 = por %p687, %p688
      %s691 = sadd.s32 %s690, 1
      %p694 = scmp.eq.s32.totalorder %s84, 4
      %p695 = scmp.ne.s32.totalorder %s690, %s692
      %p696 = scmp.eq.s32.totalorder %s84, 0
      %p697 = por %p695, %p696
      %p698 = scmp.ne.s32.totalorder %s690, %s692
      %p699 = scmp.eq.s32.totalorder %s89, 4
      %p700 = por %p698, %p699
      %p701 = scmp.ne.s32.totalorder %s692, %s693
      %p702 = scmp.eq.s32.totalorder %s89, 0
      %p703 = por %p701, %p702
      %p704 = scmp.ne.s32.totalorder %s692, %s693
      %p705 = scmp.eq.s32.totalorder %s90, 4
      %p706 = por %p704, %p705
      %p708 = scmp.ne.s32.totalorder %s693, %s707
      %p709 = scmp.eq.s32.totalorder %s90, 0
      %p710 = por %p708, %p709
      %s712 = sadd.s32 %s711, 1
      %p715 = scmp.eq.s32.totalorder %s84, 4
      %p716 = scmp.ne.s32.totalorder %s711, %s713
      %p717 = scmp.eq.s32.totalorder %s84, 0
      %p718 = por %p716, %p717
      %p719 = scmp.ne.s32.totalorder %s711, %s713
      %p720 = scmp.eq.s32.totalorder %s89, 4
      %p721 = por %p719, %p720
      %p722 = scmp.ne.s32.totalorder %s713, %s714
      %p723 = scmp.eq.s32.totalorder %s89, 0
      %p724 = por %p722, %p723
      %p725 = scmp.ne.s32.totalorder %s713, %s714
      %p726 = scmp.eq.s32.totalorder %s90, 4
      %p727 = por %p725, %p726
      %p729 = scmp.ne.s32.totalorder %s714, %s728
      %p730 = scmp.eq.s32.totalorder %s90, 0
      %p731 = por %p729, %p730
      %s733 = sadd.s32 %s732, 1
      %p736 = scmp.eq.s32.totalorder %s84, 4
      %p737 = scmp.ne.s32.totalorder %s732, %s734
      %p738 = scmp.eq.s32.totalorder %s84, 0
      %p739 = por %p737, %p738
      %p740 = scmp.ne.s32.totalorder %s732, %s734
      %p741 = scmp.eq.s32.totalorder %s89, 4
      %p742 = por %p740, %p741
      %p743 = scmp.ne.s32.totalorder %s734, %s735
      %p744 = scmp.eq.s32.totalorder %s89, 0
      %p745 = por %p743, %p744
      %p746 = scmp.ne.s32.totalorder %s734, %s735
      %p747 = scmp.eq.s32.totalorder %s90, 4
      %p748 = por %p746, %p747
      %p750 = scmp.ne.s32.totalorder %s735, %s749
      %p751 = scmp.eq.s32.totalorder %s90, 0
      %p752 = por %p750, %p751
      %p753 = scmp.le.s32.totalorder 1, %s84
      %p754 = scmp.lt.s32.totalorder %s84, 6
      %p755 = pnand %p753, %p754
      %p756 = pneg %p755
      // Predicated region
      $region9: #{posesync_forward.1} parent=5 // pred_check
        _
      $region10: #{posesync_forward.1} parent=5 // pred_check_branch
        %758 = sbr.rel (%p755) target = $region12
      $region11: #{posesync_forward.1} parent=5 // pred_region
        %s759 = ssub.s32 %s84, 1
        // Predicated region
        $region13: #{posesync_forward.1} parent=11 // pred_check
          %p760 = pneg %p157
        $region14: #{posesync_forward.1} parent=11 // pred_check_branch
          %762 = sbr.rel (%p760) target = $region16
        $region15: #{posesync_forward.1} parent=11 // pred_region
          %s764 = ssub.s32 768, 768
          %765 = vsyncadd [#allocation7], %s764
          %s767 = sshll.u32 [#allocation6], 4
          %s768 = int_to_ptr.vmem [resolvable:$true] %s767
          %770 = dma.hbm_to_vmem [thread:$0]  %s5, 768, %s768, [#allocation7]
        $region16: #{posesync_forward.1} parent=11 // pred_fallthru
          _
        // Predicated region
        $region17: #{posesync_forward.1} parent=11 // pred_check
          %p771 = pneg %p178
        $region18: #{posesync_forward.1} parent=11 // pred_check_branch
          %773 = sbr.rel (%p771) target = $region20
        $region19: #{posesync_forward.1} parent=11 // pred_region
          %s775 = ssub.s32 128, 128
          %776 = vsyncadd [#allocation7], %s775
          %s778 = sshll.u32 [#allocation8], 4
          %s779 = int_to_ptr.vmem [resolvable:$true] %s778
          %781 = dma.hbm_to_vmem [thread:$0]  %s7, 128, %s779, [#allocation7]
        $region20: #{posesync_forward.1} parent=11 // pred_fallthru
          _
        // Predicated region
        $region21: #{posesync_forward.1} parent=11 // pred_check
          %p782 = pneg %p199
        $region22: #{posesync_forward.1} parent=11 // pred_check_branch
          %784 = sbr.rel (%p782) target = $region24
        $region23: #{posesync_forward.1} parent=11 // pred_region
          %s786 = ssub.s32 128, 128
          %787 = vsyncadd [#allocation10], %s786
          %s789 = sshll.u32 [#allocation9], 4
          %s790 = int_to_ptr.vmem [resolvable:$true] %s789
          %792 = dma.hbm_to_vmem [thread:$0]  %s9, 128, %s790, [#allocation10]
        $region24: #{posesync_forward.1} parent=11 // pred_fallthru
          _
        // Predicated region
        $region25: #{posesync_forward.1} parent=11 // pred_check
          %p793 = pneg %p220
        $region26: #{posesync_forward.1} parent=11 // pred_check_branch
          %795 = sbr.rel (%p793) target = $region28
        $region27: #{posesync_forward.1} parent=11 // pred_region
          %s797 = ssub.s32 32768, 32768
          %798 = vsyncadd [#allocation10], %s797
          %s799 = sshll.u32 [#allocation11], 4
          %s800 = int_to_ptr.vmem [resolvable:$true] %s799
          %805 = dma.hbm_to_vmem [thread:$0]  %s11, 32768, %s800, [#allocation10], 256, 256, 16
        $region28: #{posesync_forward.1} parent=11 // pred_fallthru
          _
        // Predicated region
        $region29: #{posesync_forward.1} parent=11 // pred_check
          %p806 = pneg %p241
        $region30: #{posesync_forward.1} parent=11 // pred_check_branch
          %808 = sbr.rel (%p806) target = $region32
        $region31: #{posesync_forward.1} parent=11 // pred_region
          %s810 = ssub.s32 64, 64
          %811 = vsyncadd [#allocation13], %s810
          %s813 = sshll.u32 [#allocation12], 4
          %s814 = int_to_ptr.vmem [resolvable:$true] %s813
          %816 = dma.hbm_to_vmem [thread:$0]  %s13, 64, %s814, [#allocation13]
        $region32: #{posesync_forward.1} parent=11 // pred_fallthru
          _
        // Predicated region
        $region33: #{posesync_forward.1} parent=11 // pred_check
          %p817 = pneg %p262
        $region34: #{posesync_forward.1} parent=11 // pred_check_branch
          %819 = sbr.rel (%p817) target = $region36
        $region35: #{posesync_forward.1} parent=11 // pred_region
          %s821 = ssub.s32 64, 64
          %822 = vsyncadd [#allocation13], %s821
          %s824 = sshll.u32 [#allocation14], 4
          %s825 = int_to_ptr.vmem [resolvable:$true] %s824
          %827 = dma.hbm_to_vmem [thread:$0]  %s15, 64, %s825, [#allocation13]
        $region36: #{posesync_forward.1} parent=11 // pred_fallthru
          _
        // Predicated region
        $region37: #{posesync_forward.1} parent=11 // pred_check
          %p828 = pneg %p283
        $region38: #{posesync_forward.1} parent=11 // pred_check_branch
          %830 = sbr.rel (%p828) target = $region40
        $region39: #{posesync_forward.1} parent=11 // pred_region
          %s832 = ssub.s32 8192, 8192
          %833 = vsyncadd [#allocation16], %s832
          %s834 = sshll.u32 [#allocation15], 4
          %s835 = int_to_ptr.vmem [resolvable:$true] %s834
          %840 = dma.hbm_to_vmem [thread:$0]  %s17, 8192, %s835, [#allocation16], 128, 128, 8
        $region40: #{posesync_forward.1} parent=11 // pred_fallthru
          _
        // Predicated region
        $region41: #{posesync_forward.1} parent=11 // pred_check
          %p841 = pneg %p304
        $region42: #{posesync_forward.1} parent=11 // pred_check_branch
          %843 = sbr.rel (%p841) target = $region44
        $region43: #{posesync_forward.1} parent=11 // pred_region
          %s845 = ssub.s32 32, 32
          %846 = vsyncadd [#allocation16], %s845
          %s848 = sshll.u32 [#allocation17], 4
          %s849 = int_to_ptr.vmem [resolvable:$true] %s848
          %851 = dma.hbm_to_vmem [thread:$0]  %s19, 32, %s849, [#allocation16]
        $region44: #{posesync_forward.1} parent=11 // pred_fallthru
          _
        // Predicated region
        $region45: #{posesync_forward.1} parent=11 // pred_check
          %p852 = pneg %p325
        $region46: #{posesync_forward.1} parent=11 // pred_check_branch
          %854 = sbr.rel (%p852) target = $region48
        $region47: #{posesync_forward.1} parent=11 // pred_region
          %s856 = ssub.s32 32, 32
          %857 = vsyncadd [#allocation19], %s856
          %s859 = sshll.u32 [#allocation18], 4
          %s860 = int_to_ptr.vmem [resolvable:$true] %s859
          %862 = dma.hbm_to_vmem [thread:$0]  %s21, 32, %s860, [#allocation19]
        $region48: #{posesync_forward.1} parent=11 // pred_fallthru
          _
        // Predicated region
        $region49: #{posesync_forward.1} parent=11 // pred_check
          %p863 = pneg %p346
        $region50: #{posesync_forward.1} parent=11 // pred_check_branch
          %865 = sbr.rel (%p863) target = $region52
        $region51: #{posesync_forward.1} parent=11 // pred_region
          %s867 = ssub.s32 2048, 2048
          %868 = vsyncadd [#allocation19], %s867
          %s869 = sshll.u32 [#allocation20], 4
          %s870 = int_to_ptr.vmem [resolvable:$true] %s869
          %875 = dma.hbm_to_vmem [thread:$0]  %s23, 2048, %s870, [#allocation19], 64, 64, 4
        $region52: #{posesync_forward.1} parent=11 // pred_fallthru
          _
        // Predicated region
        $region53: #{posesync_forward.1} parent=11 // pred_check
          %p876 = pneg %p367
        $region54: #{posesync_forward.1} parent=11 // pred_check_branch
          %878 = sbr.rel (%p876) target = $region56
        $region55: #{posesync_forward.1} parent=11 // pred_region
          %s880 = ssub.s32 16, 16
          %881 = vsyncadd [#allocation22], %s880
          %s883 = sshll.u32 [#allocation21], 4
          %s884 = int_to_ptr.vmem [resolvable:$true] %s883
          %886 = dma.hbm_to_vmem [thread:$0]  %s25, 16, %s884, [#allocation22]
        $region56: #{posesync_forward.1} parent=11 // pred_fallthru
          _
        // Predicated region
        $region57: #{posesync_forward.1} parent=11 // pred_check
          %p887 = pneg %p388
        $region58: #{posesync_forward.1} parent=11 // pred_check_branch
          %889 = sbr.rel (%p887) target = $region60
        $region59: #{posesync_forward.1} parent=11 // pred_region
          %s891 = ssub.s32 21760, 21760
          %892 = vsyncadd [#allocation22], %s891
          %s893 = sshll.u32 [#allocation23], 4
          %s894 = int_to_ptr.vmem [resolvable:$true] %s893
          %899 = dma.hbm_to_vmem [thread:$0]  %s27, 21760, %s894, [#allocation22], 256, 256, 16
        $region60: #{posesync_forward.1} parent=11 // pred_fallthru
          _
        // Predicated region
        $region61: #{posesync_forward.1} parent=11 // pred_check
          %p900 = pneg %p409
        $region62: #{posesync_forward.1} parent=11 // pred_check_branch
          %902 = sbr.rel (%p900) target = $region64
        $region63: #{posesync_forward.1} parent=11 // pred_region
          %s904 = ssub.s32 64, 64
          %905 = vsyncadd [#allocation25], %s904
          %s907 = sshll.u32 [#allocation24], 4
          %s908 = int_to_ptr.vmem [resolvable:$true] %s907
          %910 = dma.hbm_to_vmem [thread:$0]  %s29, 64, %s908, [#allocation25]
        $region64: #{posesync_forward.1} parent=11 // pred_fallthru
          _
        // Predicated region
        $region65: #{posesync_forward.1} parent=11 // pred_check
          %p911 = pneg %p430
        $region66: #{posesync_forward.1} parent=11 // pred_check_branch
          %913 = sbr.rel (%p911) target = $region68
        $region67: #{posesync_forward.1} parent=11 // pred_region
          %s915 = ssub.s32 64, 64
          %916 = vsyncadd [#allocation25], %s915
          %s918 = sshll.u32 [#allocation26], 4
          %s919 = int_to_ptr.vmem [resolvable:$true] %s918
          %921 = dma.hbm_to_vmem [thread:$0]  %s31, 64, %s919, [#allocation25]
        $region68: #{posesync_forward.1} parent=11 // pred_fallthru
          _
        // Predicated region
        $region69: #{posesync_forward.1} parent=11 // pred_check
          %p922 = pneg %p451
        $region70: #{posesync_forward.1} parent=11 // pred_check_branch
          %924 = sbr.rel (%p922) target = $region72
        $region71: #{posesync_forward.1} parent=11 // pred_region
          %s926 = ssub.s32 8192, 8192
          %927 = vsyncadd [#allocation28], %s926
          %s928 = sshll.u32 [#allocation27], 4
          %s929 = int_to_ptr.vmem [resolvable:$true] %s928
          %934 = dma.hbm_to_vmem [thread:$0]  %s33, 8192, %s929, [#allocation28], 128, 128, 8
        $region72: #{posesync_forward.1} parent=11 // pred_fallthru
          _
        // Predicated region
        $region73: #{posesync_forward.1} parent=11 // pred_check
          %p935 = pneg %p472
        $region74: #{posesync_forward.1} parent=11 // pred_check_branch
          %937 = sbr.rel (%p935) target = $region76
        $region75: #{posesync_forward.1} parent=11 // pred_region
          %s939 = ssub.s32 32, 32
          %940 = vsyncadd [#allocation28], %s939
          %s942 = sshll.u32 [#allocation29], 4
          %s943 = int_to_ptr.vmem [resolvable:$true] %s942
          %945 = dma.hbm_to_vmem [thread:$0]  %s35, 32, %s943, [#allocation28]
        $region76: #{posesync_forward.1} parent=11 // pred_fallthru
          _
        // Predicated region
        $region77: #{posesync_forward.1} parent=11 // pred_check
          %p946 = pneg %p493
        $region78: #{posesync_forward.1} parent=11 // pred_check_branch
          %948 = sbr.rel (%p946) target = $region80
        $region79: #{posesync_forward.1} parent=11 // pred_region
          %s950 = ssub.s32 32, 32
          %951 = vsyncadd [#allocation31], %s950
          %s953 = sshll.u32 [#allocation30], 4
          %s954 = int_to_ptr.vmem [resolvable:$true] %s953
          %956 = dma.hbm_to_vmem [thread:$0]  %s37, 32, %s954, [#allocation31]
        $region80: #{posesync_forward.1} parent=11 // pred_fallthru
          _
        // Predicated region
        $region81: #{posesync_forward.1} parent=11 // pred_check
          %p957 = pneg %p514
        $region82: #{posesync_forward.1} parent=11 // pred_check_branch
          %959 = sbr.rel (%p957) target = $region84
        $region83: #{posesync_forward.1} parent=11 // pred_region
          %s961 = ssub.s32 2048, 2048
          %962 = vsyncadd [#allocation31], %s961
          %s963 = sshll.u32 [#allocation32], 4
          %s964 = int_to_ptr.vmem [resolvable:$true] %s963
          %969 = dma.hbm_to_vmem [thread:$0]  %s39, 2048, %s964, [#allocation31], 64, 64, 4
        $region84: #{posesync_forward.1} parent=11 // pred_fallthru
          _
        // Predicated region
        $region85: #{posesync_forward.1} parent=11 // pred_check
          %p970 = pneg %p535
        $region86: #{posesync_forward.1} parent=11 // pred_check_branch
          %972 = sbr.rel (%p970) target = $region88
        $region87: #{posesync_forward.1} parent=11 // pred_region
          %s974 = ssub.s32 16, 16
          %975 = vsyncadd [#allocation34], %s974
          %s977 = sshll.u32 [#allocation33], 4
          %s978 = int_to_ptr.vmem [resolvable:$true] %s977
          %980 = dma.hbm_to_vmem [thread:$0]  %s41, 16, %s978, [#allocation34]
        $region88: #{posesync_forward.1} parent=11 // pred_fallthru
          _
        // Predicated region
        $region89: #{posesync_forward.1} parent=11 // pred_check
          %p981 = pneg %p556
        $region90: #{posesync_forward.1} parent=11 // pred_check_branch
          %983 = sbr.rel (%p981) target = $region92
        $region91: #{posesync_forward.1} parent=11 // pred_region
          _
        $region92: #{posesync_forward.1} parent=11 // pred_fallthru
          _
        // Predicated region
        $region93: #{posesync_forward.1} parent=11 // pred_check
          %p984 = pneg %p577
        $region94: #{posesync_forward.1} parent=11 // pred_check_branch
          %986 = sbr.rel (%p984) target = $region96
        $region95: #{posesync_forward.1} parent=11 // pred_region
          _
        $region96: #{posesync_forward.1} parent=11 // pred_fallthru
          _
        // Predicated region
        $region97: #{posesync_forward.1} parent=11 // pred_check
          %p987 = pneg %p598
        $region98: #{posesync_forward.1} parent=11 // pred_check_branch
          %989 = sbr.rel (%p987) target = $region100
        $region99: #{posesync_forward.1} parent=11 // pred_region
          %s991 = ssub.s32 16, 16
          %992 = vsyncadd [#allocation34], %s991
          %s994 = sshll.u32 [#allocation35], 4
          %s995 = int_to_ptr.vmem [resolvable:$true] %s994
          %997 = dma.hbm_to_vmem [thread:$0]  %s47, 16, %s995, [#allocation34]
        $region100: #{posesync_forward.1} parent=11 // pred_fallthru
          _
        // Predicated region
        $region101: #{posesync_forward.1} parent=11 // pred_check
          %p998 = pneg %p619
        $region102: #{posesync_forward.1} parent=11 // pred_check_branch
          %1000 = sbr.rel (%p998) target = $region104
        $region103: #{posesync_forward.1} parent=11 // pred_region
          %s1002 = ssub.s32 16, 16
          %1003 = vsyncadd [#allocation37], %s1002
          %s1005 = sshll.u32 [#allocation36], 4
          %s1006 = int_to_ptr.vmem [resolvable:$true] %s1005
          %1008 = dma.hbm_to_vmem [thread:$0]  %s49, 16, %s1006, [#allocation37]
        $region104: #{posesync_forward.1} parent=11 // pred_fallthru
          _
        // Predicated region
        $region105: #{posesync_forward.1} parent=11 // pred_check
          %p1009 = pneg %p640
        $region106: #{posesync_forward.1} parent=11 // pred_check_branch
          %1011 = sbr.rel (%p1009) target = $region108
        $region107: #{posesync_forward.1} parent=11 // pred_region
          _
        $region108: #{posesync_forward.1} parent=11 // pred_fallthru
          _
        // Predicated region
        $region109: #{posesync_forward.1} parent=11 // pred_check
          %p1012 = pneg %p661
        $region110: #{posesync_forward.1} parent=11 // pred_check_branch
          %1014 = sbr.rel (%p1012) target = $region112
        $region111: #{posesync_forward.1} parent=11 // pred_region
          %s1016 = ssub.s32 16, 16
          %1017 = vsyncadd [#allocation37], %s1016
          %s1019 = sshll.u32 [#allocation38], 4
          %s1020 = int_to_ptr.vmem [resolvable:$true] %s1019
          %1022 = dma.hbm_to_vmem [thread:$0]  %s53, 16, %s1020, [#allocation37]
        $region112: #{posesync_forward.1} parent=11 // pred_fallthru
          _
        // Predicated region
        $region113: #{posesync_forward.1} parent=11 // pred_check
          %p1023 = pneg %p682
        $region114: #{posesync_forward.1} parent=11 // pred_check_branch
          %1025 = sbr.rel (%p1023) target = $region116
        $region115: #{posesync_forward.1} parent=11 // pred_region
          %s1027 = ssub.s32 16, 16
          %1028 = vsyncadd [#allocation40], %s1027
          %s1030 = sshll.u32 [#allocation39], 4
          %s1031 = int_to_ptr.vmem [resolvable:$true] %s1030
          %1033 = dma.hbm_to_vmem [thread:$0]  %s55, 16, %s1031, [#allocation40]
        $region116: #{posesync_forward.1} parent=11 // pred_fallthru
          _
        // Predicated region
        $region117: #{posesync_forward.1} parent=11 // pred_check
          %p1034 = pneg %p703
        $region118: #{posesync_forward.1} parent=11 // pred_check_branch
          %1036 = sbr.rel (%p1034) target = $region120
        $region119: #{posesync_forward.1} parent=11 // pred_region
          _
        $region120: #{posesync_forward.1} parent=11 // pred_fallthru
          _
        // Predicated region
        $region121: #{posesync_forward.1} parent=11 // pred_check
          %p1037 = pneg %p724
        $region122: #{posesync_forward.1} parent=11 // pred_check_branch
          %1039 = sbr.rel (%p1037) target = $region124
        $region123: #{posesync_forward.1} parent=11 // pred_region
          _
        $region124: #{posesync_forward.1} parent=11 // pred_fallthru
          _
      $region12: #{posesync_forward.1} parent=5 // pred_fallthru
        _
      %p1040 = scmp.lt.s32.totalorder %s84, 5
      // Predicated region
      $region125: #{posesync_forward.1} parent=5 // pred_check
        %p1041 = pneg %p1040
      $region126: #{posesync_forward.1} parent=5 // pred_check_branch
        %1043 = sbr.rel (%p1041) target = $region128
      $region127: #{posesync_forward.1} parent=5 // pred_region
        // Predicated region
        $region129: #{posesync_forward.1} parent=127 // pred_check
          %p1044 = pneg %p104
        $region130: #{posesync_forward.1} parent=127 // pred_check_branch
          %1046 = sbr.rel (%p1044) target = $region132
        $region131: #{posesync_forward.1} parent=127 // pred_region
          %p1047 = scmp.lt.s32.totalorder %s84, 4
          %s1048 = scalar_select %p1047, %s84, 4
          %s1049 = smul.addr %s1048, 8
          %s1050 = smul.addr %s1049, 4
          %s1051 = scalar_lea.vmem %s1, %s1050
        $region132: #{posesync_forward.1} parent=127 // pred_fallthru
          _
        // Predicated region
        $region133: #{posesync_forward.1} parent=127 // pred_check
          %p1052 = pneg %p130
        $region134: #{posesync_forward.1} parent=127 // pred_check_branch
          %1054 = sbr.rel (%p1052) target = $region136
        $region135: #{posesync_forward.1} parent=127 // pred_region
          %s1055 = sand.u32 %s120, 1
          %s1056 = scalar_lea.sflag [#allocation5], %s1055
          %s1057 = sand.u32 %s120, 1
          %s1058 = smul.addr %s1057, 4000
          %s1059 = scalar_lea.vmem [#allocation4], %s1058
          %s1060 = smul.u32 125, %s84
          %s1062 = ssub.s32 64000, 64000
          %1063 = vsyncadd %s1056, %s1062
          %s1064 = smul.addr %s1060, 8
          %s1065 = smul.addr %s1064, 64
          %s1066 = scalar_lea.hbm %s3, %s1065
          %s1067 = sshll.u32 %s1059, 4
          %s1068 = int_to_ptr.vmem [resolvable:$true] %s1067
          %1073 = dma.hbm_to_vmem [thread:$0]  %s1066, 64000, %s1068, %s1056, 512, 512, 32
        $region136: #{posesync_forward.1} parent=127 // pred_fallthru
          _
      $region128: #{posesync_forward.1} parent=5 // pred_fallthru
        _
      %p1074 = scmp.le.s32.totalorder 1, %s84
      %p1075 = scmp.lt.s32.totalorder %s84, 6
      %p1076 = pnand %p1074, %p1075
      %p1077 = pneg %p1076
      // Predicated region
      $region137: #{posesync_forward.1} parent=5 // pred_check
        _
      $region138: #{posesync_forward.1} parent=5 // pred_check_branch
        %1079 = sbr.rel (%p1076) target = $region140
      $region139: #{posesync_forward.1} parent=5 // pred_region
        %s1080 = ssub.s32 %s84, 1
        %s1081 = sand.u32 %s123, 1
        %s1082 = scalar_lea.sflag [#allocation5], %s1081
        %s1083 = sand.u32 %s123, 1
        %s1084 = smul.addr %s1083, 4000
        %s1085 = scalar_lea.vmem [#allocation4], %s1084
        // Predicated region
        $region141: #{posesync_forward.1} parent=139 // pred_check
          %p1086 = pneg %p136
        $region142: #{posesync_forward.1} parent=139 // pred_check_branch
          %1088 = sbr.rel (%p1086) target = $region144
        $region143: #{posesync_forward.1} parent=139 // pred_region
          %1089 = dma.done %s1082, 64000
        $region144: #{posesync_forward.1} parent=139 // pred_fallthru
          _
        // Predicated region
        $region145: #{posesync_forward.1} parent=139 // pred_check
          %p1090 = pneg %p157
        $region146: #{posesync_forward.1} parent=139 // pred_check_branch
          %1092 = sbr.rel (%p1090) target = $region148
        $region147: #{posesync_forward.1} parent=139 // pred_region
          %1093 = dma.done [#allocation7], 768
        $region148: #{posesync_forward.1} parent=139 // pred_fallthru
          _
        // Predicated region
        $region149: #{posesync_forward.1} parent=139 // pred_check
          %p1094 = pneg %p178
        $region150: #{posesync_forward.1} parent=139 // pred_check_branch
          %1096 = sbr.rel (%p1094) target = $region152
        $region151: #{posesync_forward.1} parent=139 // pred_region
          %1097 = dma.done [#allocation7], 128
        $region152: #{posesync_forward.1} parent=139 // pred_fallthru
          _
        // Predicated region
        $region153: #{posesync_forward.1} parent=139 // pred_check
          %p1098 = pneg %p199
        $region154: #{posesync_forward.1} parent=139 // pred_check_branch
          %1100 = sbr.rel (%p1098) target = $region156
        $region155: #{posesync_forward.1} parent=139 // pred_region
          %1101 = dma.done [#allocation10], 128
        $region156: #{posesync_forward.1} parent=139 // pred_fallthru
          _
        // Predicated region
        $region157: #{posesync_forward.1} parent=139 // pred_check
          %p1102 = pneg %p220
        $region158: #{posesync_forward.1} parent=139 // pred_check_branch
          %1104 = sbr.rel (%p1102) target = $region160
        $region159: #{posesync_forward.1} parent=139 // pred_region
          %1105 = dma.done [#allocation10], 32768
        $region160: #{posesync_forward.1} parent=139 // pred_fallthru
          _
        // Predicated region
        $region161: #{posesync_forward.1} parent=139 // pred_check
          %p1106 = pneg %p241
        $region162: #{posesync_forward.1} parent=139 // pred_check_branch
          %1108 = sbr.rel (%p1106) target = $region164
        $region163: #{posesync_forward.1} parent=139 // pred_region
          %1109 = dma.done [#allocation13], 64
        $region164: #{posesync_forward.1} parent=139 // pred_fallthru
          _
        // Predicated region
        $region165: #{posesync_forward.1} parent=139 // pred_check
          %p1110 = pneg %p262
        $region166: #{posesync_forward.1} parent=139 // pred_check_branch
          %1112 = sbr.rel (%p1110) target = $region168
        $region167: #{posesync_forward.1} parent=139 // pred_region
          %1113 = dma.done [#allocation13], 64
        $region168: #{posesync_forward.1} parent=139 // pred_fallthru
          _
        // Predicated region
        $region169: #{posesync_forward.1} parent=139 // pred_check
          %p1114 = pneg %p283
        $region170: #{posesync_forward.1} parent=139 // pred_check_branch
          %1116 = sbr.rel (%p1114) target = $region172
        $region171: #{posesync_forward.1} parent=139 // pred_region
          %1117 = dma.done [#allocation16], 8192
        $region172: #{posesync_forward.1} parent=139 // pred_fallthru
          _
        // Predicated region
        $region173: #{posesync_forward.1} parent=139 // pred_check
          %p1118 = pneg %p304
        $region174: #{posesync_forward.1} parent=139 // pred_check_branch
          %1120 = sbr.rel (%p1118) target = $region176
        $region175: #{posesync_forward.1} parent=139 // pred_region
          %1121 = dma.done [#allocation16], 32
        $region176: #{posesync_forward.1} parent=139 // pred_fallthru
          _
        // Predicated region
        $region177: #{posesync_forward.1} parent=139 // pred_check
          %p1122 = pneg %p325
        $region178: #{posesync_forward.1} parent=139 // pred_check_branch
          %1124 = sbr.rel (%p1122) target = $region180
        $region179: #{posesync_forward.1} parent=139 // pred_region
          %1125 = dma.done [#allocation19], 32
        $region180: #{posesync_forward.1} parent=139 // pred_fallthru
          _
        // Predicated region
        $region181: #{posesync_forward.1} parent=139 // pred_check
          %p1126 = pneg %p346
        $region182: #{posesync_forward.1} parent=139 // pred_check_branch
          %1128 = sbr.rel (%p1126) target = $region184
        $region183: #{posesync_forward.1} parent=139 // pred_region
          %1129 = dma.done [#allocation19], 2048
        $region184: #{posesync_forward.1} parent=139 // pred_fallthru
          _
        // Predicated region
        $region185: #{posesync_forward.1} parent=139 // pred_check
          %p1130 = pneg %p367
        $region186: #{posesync_forward.1} parent=139 // pred_check_branch
          %1132 = sbr.rel (%p1130) target = $region188
        $region187: #{posesync_forward.1} parent=139 // pred_region
          %1133 = dma.done [#allocation22], 16
        $region188: #{posesync_forward.1} parent=139 // pred_fallthru
          _
        // Predicated region
        $region189: #{posesync_forward.1} parent=139 // pred_check
          %p1134 = pneg %p388
        $region190: #{posesync_forward.1} parent=139 // pred_check_branch
          %1136 = sbr.rel (%p1134) target = $region192
        $region191: #{posesync_forward.1} parent=139 // pred_region
          %1137 = dma.done [#allocation22], 21760
        $region192: #{posesync_forward.1} parent=139 // pred_fallthru
          _
        // Predicated region
        $region193: #{posesync_forward.1} parent=139 // pred_check
          %p1138 = pneg %p409
        $region194: #{posesync_forward.1} parent=139 // pred_check_branch
          %1140 = sbr.rel (%p1138) target = $region196
        $region195: #{posesync_forward.1} parent=139 // pred_region
          %1141 = dma.done [#allocation25], 64
        $region196: #{posesync_forward.1} parent=139 // pred_fallthru
          _
        // Predicated region
        $region197: #{posesync_forward.1} parent=139 // pred_check
          %p1142 = pneg %p430
        $region198: #{posesync_forward.1} parent=139 // pred_check_branch
          %1144 = sbr.rel (%p1142) target = $region200
        $region199: #{posesync_forward.1} parent=139 // pred_region
          %1145 = dma.done [#allocation25], 64
        $region200: #{posesync_forward.1} parent=139 // pred_fallthru
          _
        // Predicated region
        $region201: #{posesync_forward.1} parent=139 // pred_check
          %p1146 = pneg %p451
        $region202: #{posesync_forward.1} parent=139 // pred_check_branch
          %1148 = sbr.rel (%p1146) target = $region204
        $region203: #{posesync_forward.1} parent=139 // pred_region
          %1149 = dma.done [#allocation28], 8192
        $region204: #{posesync_forward.1} parent=139 // pred_fallthru
          _
        // Predicated region
        $region205: #{posesync_forward.1} parent=139 // pred_check
          %p1150 = pneg %p472
        $region206: #{posesync_forward.1} parent=139 // pred_check_branch
          %1152 = sbr.rel (%p1150) target = $region208
        $region207: #{posesync_forward.1} parent=139 // pred_region
          %1153 = dma.done [#allocation28], 32
        $region208: #{posesync_forward.1} parent=139 // pred_fallthru
          _
        // Predicated region
        $region209: #{posesync_forward.1} parent=139 // pred_check
          %p1154 = pneg %p493
        $region210: #{posesync_forward.1} parent=139 // pred_check_branch
          %1156 = sbr.rel (%p1154) target = $region212
        $region211: #{posesync_forward.1} parent=139 // pred_region
          %1157 = dma.done [#allocation31], 32
        $region212: #{posesync_forward.1} parent=139 // pred_fallthru
          _
        // Predicated region
        $region213: #{posesync_forward.1} parent=139 // pred_check
          %p1158 = pneg %p514
        $region214: #{posesync_forward.1} parent=139 // pred_check_branch
          %1160 = sbr.rel (%p1158) target = $region216
        $region215: #{posesync_forward.1} parent=139 // pred_region
          %1161 = dma.done [#allocation31], 2048
        $region216: #{posesync_forward.1} parent=139 // pred_fallthru
          _
        // Predicated region
        $region217: #{posesync_forward.1} parent=139 // pred_check
          %p1162 = pneg %p535
        $region218: #{posesync_forward.1} parent=139 // pred_check_branch
          %1164 = sbr.rel (%p1162) target = $region220
        $region219: #{posesync_forward.1} parent=139 // pred_region
          %1165 = dma.done [#allocation34], 16
        $region220: #{posesync_forward.1} parent=139 // pred_fallthru
          _
        // Predicated region
        $region221: #{posesync_forward.1} parent=139 // pred_check
          %p1166 = pneg %p598
        $region222: #{posesync_forward.1} parent=139 // pred_check_branch
          %1168 = sbr.rel (%p1166) target = $region224
        $region223: #{posesync_forward.1} parent=139 // pred_region
          %1169 = dma.done [#allocation34], 16
        $region224: #{posesync_forward.1} parent=139 // pred_fallthru
          _
        // Predicated region
        $region225: #{posesync_forward.1} parent=139 // pred_check
          %p1170 = pneg %p619
        $region226: #{posesync_forward.1} parent=139 // pred_check_branch
          %1172 = sbr.rel (%p1170) target = $region228
        $region227: #{posesync_forward.1} parent=139 // pred_region
          %1173 = dma.done [#allocation37], 16
        $region228: #{posesync_forward.1} parent=139 // pred_fallthru
          _
        // Predicated region
        $region229: #{posesync_forward.1} parent=139 // pred_check
          %p1174 = pneg %p661
        $region230: #{posesync_forward.1} parent=139 // pred_check_branch
          %1176 = sbr.rel (%p1174) target = $region232
        $region231: #{posesync_forward.1} parent=139 // pred_region
          %1177 = dma.done [#allocation37], 16
        $region232: #{posesync_forward.1} parent=139 // pred_fallthru
          _
        // Predicated region
        $region233: #{posesync_forward.1} parent=139 // pred_check
          %p1178 = pneg %p682
        $region234: #{posesync_forward.1} parent=139 // pred_check_branch
          %1180 = sbr.rel (%p1178) target = $region236
        $region235: #{posesync_forward.1} parent=139 // pred_region
          %1181 = dma.done [#allocation40], 16
        $region236: #{posesync_forward.1} parent=139 // pred_fallthru
          _
        %p1182 = scmp.lt.s32.totalorder %s89, 4
        %s1183 = scalar_select %p1182, %s89, 4
        %s1184 = smul.addr %s1183, 8
        %s1185 = smul.addr %s1184, 4
        %s1186 = scalar_lea.vmem %s1, %s1185
        %p1187 = pneg %p110
        %p1188 = pneg %p107
        %s1189 = sand.u32 %s123, 1
        %s1190 = scalar_lea.sflag [#allocation5], %s1189
        %s1191 = sand.u32 %s123, 1
        %s1192 = smul.addr %s1191, 4000
        %s1193 = scalar_lea.vmem [#allocation4], %s1192
        %p1194 = pneg %p136
        %p1195 = pneg %p133
        %p1196 = pneg %p157
        %p1197 = pneg %p154
        %p1198 = pneg %p178
        %p1199 = pneg %p175
        %p1200 = pneg %p199
        %p1201 = pneg %p196
        %p1202 = pneg %p220
        %p1203 = pneg %p217
        %p1204 = pneg %p241
        %p1205 = pneg %p238
        %p1206 = pneg %p262
        %p1207 = pneg %p259
        %p1208 = pneg %p283
        %p1209 = pneg %p280
        %p1210 = pneg %p304
        %p1211 = pneg %p301
        %p1212 = pneg %p325
        %p1213 = pneg %p322
        %p1214 = pneg %p346
        %p1215 = pneg %p343
        %p1216 = pneg %p367
        %p1217 = pneg %p364
        %p1218 = pneg %p388
        %p1219 = pneg %p385
        %p1220 = pneg %p409
        %p1221 = pneg %p406
        %p1222 = pneg %p430
        %p1223 = pneg %p427
        %p1224 = pneg %p451
        %p1225 = pneg %p448
        %p1226 = pneg %p472
        %p1227 = pneg %p469
        %p1228 = pneg %p493
        %p1229 = pneg %p490
        %p1230 = pneg %p514
        %p1231 = pneg %p511
        %p1232 = pneg %p535
        %p1233 = pneg %p532
        %p1234 = pneg %p556
        %p1235 = pneg %p553
        %p1236 = pneg %p577
        %p1237 = pneg %p574
        %p1238 = pneg %p598
        %p1239 = pneg %p595
        %p1240 = pneg %p619
        %p1241 = pneg %p616
        %p1242 = pneg %p640
        %p1243 = pneg %p637
        %p1244 = pneg %p661
        %p1245 = pneg %p658
        %p1246 = pneg %p682
        %p1247 = pneg %p679
        %p1248 = pneg %p703
        %p1249 = pneg %p700
        %p1250 = pneg %p724
        %p1251 = pneg %p721
        %p1252 = pneg %p745
        %p1253 = pneg %p742
        %p1254 = scmp.lt.s32.totalorder %s89, 4
        %s1255 = scalar_select %p1254, %s89, 4
        %s1256 = smul.addr %s1255, 8
        %s1257 = smul.addr %s1256, 4
        %s1258 = scalar_lea.vmem %s1, %s1257
        %s1259 = smul.u32 125, %s89
        %p1261 = scmp.eq.s32.totalorder %s89, 0
        // Predicated region
        $region237: #{posesync_forward.1} parent=139 // pred_check
          %p1262 = pneg %p1261
        $region238: #{posesync_forward.1} parent=139 // pred_check_branch
          %1264 = sbr.rel (%p1262) target = $region240
        $region239: #{posesync_forward.1} parent=139 // pred_region
          %1265 = vst [vmem:[#allocation2] sm:$0xff] 0.0
          %1266 = vst [vmem:[#allocation2 + $0x8] sm:$0xff] 0.0
          %1267 = vst [vmem:[#allocation2 + $0x10] sm:$0xff] 0.0
          %1268 = vst [vmem:[#allocation2 + $0x18] sm:$0xff] 0.0
          %1269 = vst [vmem:[#allocation2 + $0x20] sm:$0xff] 0.0
          %1270 = vst [vmem:[#allocation2 + $0x28] sm:$0xff] 0.0
          %1271 = vst [vmem:[#allocation2 + $0x30] sm:$0xff] 0.0
          %1272 = vst [vmem:[#allocation2 + $0x38] sm:$0xff] 0.0
        $region240: #{posesync_forward.1} parent=139 // pred_fallthru
          _
        %v1273 = vld [vmem:[#allocation2] sm:$0xff]
        %v1274 = vld [vmem:[#allocation2 + $0x8] sm:$0xff]
        %v1275 = vld [vmem:[#allocation2 + $0x10] sm:$0xff]
        %v1276 = vld [vmem:[#allocation2 + $0x18] sm:$0xff]
        %v1277 = vld [vmem:[#allocation2 + $0x20] sm:$0xff]
        %v1278 = vld [vmem:[#allocation2 + $0x28] sm:$0xff]
        %v1279 = vld [vmem:[#allocation2 + $0x30] sm:$0xff]
        %v1280 = vld [vmem:[#allocation2 + $0x38] sm:$0xff]
        %v1281 = vld [vmem:[%s1258] sm:$0xff]
        %v1282 = vld [vmem:[%s1258 + $0x8] sm:$0xff]
        %v1283 = vld [vmem:[%s1258 + $0x10] sm:$0xff]
        %v1284 = vld [vmem:[%s1258 + $0x18] sm:$0xff]
        %v1285 = vld [vmem:[%s1085] sm:$0xff]
        %v1286 = vld [vmem:[%s1085 + $0x8] sm:$0xff]
        %v1287 = vld [vmem:[%s1085 + $0x10] sm:$0xff]
        %v1288 = vld [vmem:[%s1085 + $0x18] sm:$0xff]
        %v1289 = vld [vmem:[%s1085 + $0x20] sm:$0xff]
        %v1290 = vld [vmem:[%s1085 + $0x28] sm:$0xff]
        %v1291 = vld [vmem:[%s1085 + $0x30] sm:$0xff]
        %v1292 = vld [vmem:[%s1085 + $0x38] sm:$0xff]
        %v1293 = vld [vmem:[%s1085 + $0x40] sm:$0xff]
        %v1294 = vld [vmem:[%s1085 + $0x48] sm:$0xff]
        %v1295 = vld [vmem:[%s1085 + $0x50] sm:$0xff]
        %v1296 = vld [vmem:[%s1085 + $0x58] sm:$0xff]
        %v1297 = vld [vmem:[%s1085 + $0x60] sm:$0xff]
        %v1298 = vld [vmem:[%s1085 + $0x68] sm:$0xff]
        %v1299 = vld [vmem:[%s1085 + $0x70] sm:$0xff]
        %v1300 = vld [vmem:[%s1085 + $0x78] sm:$0xff]
        %v1301 = vld [vmem:[%s1085 + $0x80] sm:$0xff]
        %v1302 = vld [vmem:[%s1085 + $0x88] sm:$0xff]
        %v1303 = vld [vmem:[%s1085 + $0x90] sm:$0xff]
        %v1304 = vld [vmem:[%s1085 + $0x98] sm:$0xff]
        %v1305 = vld [vmem:[%s1085 + $0xa0] sm:$0xff]
        %v1306 = vld [vmem:[%s1085 + $0xa8] sm:$0xff]
        %v1307 = vld [vmem:[%s1085 + $0xb0] sm:$0xff]
        %v1308 = vld [vmem:[%s1085 + $0xb8] sm:$0xff]
        %v1309 = vld [vmem:[%s1085 + $0xc0] sm:$0xff]
        %v1310 = vld [vmem:[%s1085 + $0xc8] sm:$0xff]
        %v1311 = vld [vmem:[%s1085 + $0xd0] sm:$0xff]
        %v1312 = vld [vmem:[%s1085 + $0xd8] sm:$0xff]
        %v1313 = vld [vmem:[%s1085 + $0xe0] sm:$0xff]
        %v1314 = vld [vmem:[%s1085 + $0xe8] sm:$0xff]
        %v1315 = vld [vmem:[%s1085 + $0xf0] sm:$0xff]
        %v1316 = vld [vmem:[%s1085 + $0xf8] sm:$0xff]
        %v1317 = vld [vmem:[%s1085 + $0x100] sm:$0xff]
        %v1318 = vld [vmem:[%s1085 + $0x108] sm:$0xff]
        %v1319 = vld [vmem:[%s1085 + $0x110] sm:$0xff]
        %v1320 = vld [vmem:[%s1085 + $0x118] sm:$0xff]
        %v1321 = vld [vmem:[%s1085 + $0x120] sm:$0xff]
        %v1322 = vld [vmem:[%s1085 + $0x128] sm:$0xff]
        %v1323 = vld [vmem:[%s1085 + $0x130] sm:$0xff]
        %v1324 = vld [vmem:[%s1085 + $0x138] sm:$0xff]
        %v1325 = vld [vmem:[%s1085 + $0x140] sm:$0xff]
        %v1326 = vld [vmem:[%s1085 + $0x148] sm:$0xff]
        %v1327 = vld [vmem:[%s1085 + $0x150] sm:$0xff]
        %v1328 = vld [vmem:[%s1085 + $0x158] sm:$0xff]
        %v1329 = vld [vmem:[%s1085 + $0x160] sm:$0xff]
        %v1330 = vld [vmem:[%s1085 + $0x168] sm:$0xff]
        %v1331 = vld [vmem:[%s1085 + $0x170] sm:$0xff]
        %v1332 = vld [vmem:[%s1085 + $0x178] sm:$0xff]
        %v1333 = vld [vmem:[%s1085 + $0x180] sm:$0xff]
        %v1334 = vld [vmem:[%s1085 + $0x188] sm:$0xff]
        %v1335 = vld [vmem:[%s1085 + $0x190] sm:$0xff]
        %v1336 = vld [vmem:[%s1085 + $0x198] sm:$0xff]
        %v1337 = vld [vmem:[%s1085 + $0x1a0] sm:$0xff]
        %v1338 = vld [vmem:[%s1085 + $0x1a8] sm:$0xff]
        %v1339 = vld [vmem:[%s1085 + $0x1b0] sm:$0xff]
        %v1340 = vld [vmem:[%s1085 + $0x1b8] sm:$0xff]
        %v1341 = vld [vmem:[%s1085 + $0x1c0] sm:$0xff]
        %v1342 = vld [vmem:[%s1085 + $0x1c8] sm:$0xff]
        %v1343 = vld [vmem:[%s1085 + $0x1d0] sm:$0xff]
        %v1344 = vld [vmem:[%s1085 + $0x1d8] sm:$0xff]
        %v1345 = vld [vmem:[%s1085 + $0x1e0] sm:$0xff]
        %v1346 = vld [vmem:[%s1085 + $0x1e8] sm:$0xff]
        %v1347 = vld [vmem:[%s1085 + $0x1f0] sm:$0xff]
        %v1348 = vld [vmem:[%s1085 + $0x1f8] sm:$0xff]
        %v1349 = vld [vmem:[%s1085 + $0x200] sm:$0xff]
        %v1350 = vld [vmem:[%s1085 + $0x208] sm:$0xff]
        %v1351 = vld [vmem:[%s1085 + $0x210] sm:$0xff]
        %v1352 = vld [vmem:[%s1085 + $0x218] sm:$0xff]
        %v1353 = vld [vmem:[%s1085 + $0x220] sm:$0xff]
        %v1354 = vld [vmem:[%s1085 + $0x228] sm:$0xff]
        %v1355 = vld [vmem:[%s1085 + $0x230] sm:$0xff]
        %v1356 = vld [vmem:[%s1085 + $0x238] sm:$0xff]
        %v1357 = vld [vmem:[%s1085 + $0x240] sm:$0xff]
        %v1358 = vld [vmem:[%s1085 + $0x248] sm:$0xff]
        %v1359 = vld [vmem:[%s1085 + $0x250] sm:$0xff]
        %v1360 = vld [vmem:[%s1085 + $0x258] sm:$0xff]
        %v1361 = vld [vmem:[%s1085 + $0x260] sm:$0xff]
        %v1362 = vld [vmem:[%s1085 + $0x268] sm:$0xff]
        %v1363 = vld [vmem:[%s1085 + $0x270] sm:$0xff]
        %v1364 = vld [vmem:[%s1085 + $0x278] sm:$0xff]
        %v1365 = vld [vmem:[%s1085 + $0x280] sm:$0xff]
        %v1366 = vld [vmem:[%s1085 + $0x288] sm:$0xff]
        %v1367 = vld [vmem:[%s1085 + $0x290] sm:$0xff]
        %v1368 = vld [vmem:[%s1085 + $0x298] sm:$0xff]
        %v1369 = vld [vmem:[%s1085 + $0x2a0] sm:$0xff]
        %v1370 = vld [vmem:[%s1085 + $0x2a8] sm:$0xff]
        %v1371 = vld [vmem:[%s1085 + $0x2b0] sm:$0xff]
        %v1372 = vld [vmem:[%s1085 + $0x2b8] sm:$0xff]
        %v1373 = vld [vmem:[%s1085 + $0x2c0] sm:$0xff]
        %v1374 = vld [vmem:[%s1085 + $0x2c8] sm:$0xff]
        %v1375 = vld [vmem:[%s1085 + $0x2d0] sm:$0xff]
        %v1376 = vld [vmem:[%s1085 + $0x2d8] sm:$0xff]
        %v1377 = vld [vmem:[%s1085 + $0x2e0] sm:$0xff]
        %v1378 = vld [vmem:[%s1085 + $0x2e8] sm:$0xff]
        %v1379 = vld [vmem:[%s1085 + $0x2f0] sm:$0xff]
        %v1380 = vld [vmem:[%s1085 + $0x2f8] sm:$0xff]
        %v1381 = vld [vmem:[%s1085 + $0x300] sm:$0xff]
        %v1382 = vld [vmem:[%s1085 + $0x308] sm:$0xff]
        %v1383 = vld [vmem:[%s1085 + $0x310] sm:$0xff]
        %v1384 = vld [vmem:[%s1085 + $0x318] sm:$0xff]
        %v1385 = vld [vmem:[%s1085 + $0x320] sm:$0xff]
        %v1386 = vld [vmem:[%s1085 + $0x328] sm:$0xff]
        %v1387 = vld [vmem:[%s1085 + $0x330] sm:$0xff]
        %v1388 = vld [vmem:[%s1085 + $0x338] sm:$0xff]
        %v1389 = vld [vmem:[%s1085 + $0x340] sm:$0xff]
        %v1390 = vld [vmem:[%s1085 + $0x348] sm:$0xff]
        %v1391 = vld [vmem:[%s1085 + $0x350] sm:$0xff]
        %v1392 = vld [vmem:[%s1085 + $0x358] sm:$0xff]
        %v1393 = vld [vmem:[%s1085 + $0x360] sm:$0xff]
        %v1394 = vld [vmem:[%s1085 + $0x368] sm:$0xff]
        %v1395 = vld [vmem:[%s1085 + $0x370] sm:$0xff]
        %v1396 = vld [vmem:[%s1085 + $0x378] sm:$0xff]
        %v1397 = vld [vmem:[%s1085 + $0x380] sm:$0xff]
        %v1398 = vld [vmem:[%s1085 + $0x388] sm:$0xff]
        %v1399 = vld [vmem:[%s1085 + $0x390] sm:$0xff]
        %v1400 = vld [vmem:[%s1085 + $0x398] sm:$0xff]
        %v1401 = vld [vmem:[%s1085 + $0x3a0] sm:$0xff]
        %v1402 = vld [vmem:[%s1085 + $0x3a8] sm:$0xff]
        %v1403 = vld [vmem:[%s1085 + $0x3b0] sm:$0xff]
        %v1404 = vld [vmem:[%s1085 + $0x3b8] sm:$0xff]
        %v1405 = vld [vmem:[%s1085 + $0x3c0] sm:$0xff]
        %v1406 = vld [vmem:[%s1085 + $0x3c8] sm:$0xff]
        %v1407 = vld [vmem:[%s1085 + $0x3d0] sm:$0xff]
        %v1408 = vld [vmem:[%s1085 + $0x3d8] sm:$0xff]
        %v1409 = vld [vmem:[%s1085 + $0x3e0] sm:$0xff]
        %v1410 = vld [vmem:[%s1085 + $0x3e8] sm:$0xff]
        %v1411 = vld [vmem:[%s1085 + $0x3f0] sm:$0xff]
        %v1412 = vld [vmem:[%s1085 + $0x3f8] sm:$0xff]
        %v1413 = vld [vmem:[%s1085 + $0x400] sm:$0xff]
        %v1414 = vld [vmem:[%s1085 + $0x408] sm:$0xff]
        %v1415 = vld [vmem:[%s1085 + $0x410] sm:$0xff]
        %v1416 = vld [vmem:[%s1085 + $0x418] sm:$0xff]
        %v1417 = vld [vmem:[%s1085 + $0x420] sm:$0xff]
        %v1418 = vld [vmem:[%s1085 + $0x428] sm:$0xff]
        %v1419 = vld [vmem:[%s1085 + $0x430] sm:$0xff]
        %v1420 = vld [vmem:[%s1085 + $0x438] sm:$0xff]
        %v1421 = vld [vmem:[%s1085 + $0x440] sm:$0xff]
        %v1422 = vld [vmem:[%s1085 + $0x448] sm:$0xff]
        %v1423 = vld [vmem:[%s1085 + $0x450] sm:$0xff]
        %v1424 = vld [vmem:[%s1085 + $0x458] sm:$0xff]
        %v1425 = vld [vmem:[%s1085 + $0x460] sm:$0xff]
        %v1426 = vld [vmem:[%s1085 + $0x468] sm:$0xff]
        %v1427 = vld [vmem:[%s1085 + $0x470] sm:$0xff]
        %v1428 = vld [vmem:[%s1085 + $0x478] sm:$0xff]
        %v1429 = vld [vmem:[%s1085 + $0x480] sm:$0xff]
        %v1430 = vld [vmem:[%s1085 + $0x488] sm:$0xff]
        %v1431 = vld [vmem:[%s1085 + $0x490] sm:$0xff]
        %v1432 = vld [vmem:[%s1085 + $0x498] sm:$0xff]
        %v1433 = vld [vmem:[%s1085 + $0x4a0] sm:$0xff]
        %v1434 = vld [vmem:[%s1085 + $0x4a8] sm:$0xff]
        %v1435 = vld [vmem:[%s1085 + $0x4b0] sm:$0xff]
        %v1436 = vld [vmem:[%s1085 + $0x4b8] sm:$0xff]
        %v1437 = vld [vmem:[%s1085 + $0x4c0] sm:$0xff]
        %v1438 = vld [vmem:[%s1085 + $0x4c8] sm:$0xff]
        %v1439 = vld [vmem:[%s1085 + $0x4d0] sm:$0xff]
        %v1440 = vld [vmem:[%s1085 + $0x4d8] sm:$0xff]
        %v1441 = vld [vmem:[%s1085 + $0x4e0] sm:$0xff]
        %v1442 = vld [vmem:[%s1085 + $0x4e8] sm:$0xff]
        %v1443 = vld [vmem:[%s1085 + $0x4f0] sm:$0xff]
        %v1444 = vld [vmem:[%s1085 + $0x4f8] sm:$0xff]
        %v1445 = vld [vmem:[%s1085 + $0x500] sm:$0xff]
        %v1446 = vld [vmem:[%s1085 + $0x508] sm:$0xff]
        %v1447 = vld [vmem:[%s1085 + $0x510] sm:$0xff]
        %v1448 = vld [vmem:[%s1085 + $0x518] sm:$0xff]
        %v1449 = vld [vmem:[%s1085 + $0x520] sm:$0xff]
        %v1450 = vld [vmem:[%s1085 + $0x528] sm:$0xff]
        %v1451 = vld [vmem:[%s1085 + $0x530] sm:$0xff]
        %v1452 = vld [vmem:[%s1085 + $0x538] sm:$0xff]
        %v1453 = vld [vmem:[%s1085 + $0x540] sm:$0xff]
        %v1454 = vld [vmem:[%s1085 + $0x548] sm:$0xff]
        %v1455 = vld [vmem:[%s1085 + $0x550] sm:$0xff]
        %v1456 = vld [vmem:[%s1085 + $0x558] sm:$0xff]
        %v1457 = vld [vmem:[%s1085 + $0x560] sm:$0xff]
        %v1458 = vld [vmem:[%s1085 + $0x568] sm:$0xff]
        %v1459 = vld [vmem:[%s1085 + $0x570] sm:$0xff]
        %v1460 = vld [vmem:[%s1085 + $0x578] sm:$0xff]
        %v1461 = vld [vmem:[%s1085 + $0x580] sm:$0xff]
        %v1462 = vld [vmem:[%s1085 + $0x588] sm:$0xff]
        %v1463 = vld [vmem:[%s1085 + $0x590] sm:$0xff]
        %v1464 = vld [vmem:[%s1085 + $0x598] sm:$0xff]
        %v1465 = vld [vmem:[%s1085 + $0x5a0] sm:$0xff]
        %v1466 = vld [vmem:[%s1085 + $0x5a8] sm:$0xff]
        %v1467 = vld [vmem:[%s1085 + $0x5b0] sm:$0xff]
        %v1468 = vld [vmem:[%s1085 + $0x5b8] sm:$0xff]
        %v1469 = vld [vmem:[%s1085 + $0x5c0] sm:$0xff]
        %v1470 = vld [vmem:[%s1085 + $0x5c8] sm:$0xff]
        %v1471 = vld [vmem:[%s1085 + $0x5d0] sm:$0xff]
        %v1472 = vld [vmem:[%s1085 + $0x5d8] sm:$0xff]
        %v1473 = vld [vmem:[%s1085 + $0x5e0] sm:$0xff]
        %v1474 = vld [vmem:[%s1085 + $0x5e8] sm:$0xff]
        %v1475 = vld [vmem:[%s1085 + $0x5f0] sm:$0xff]
        %v1476 = vld [vmem:[%s1085 + $0x5f8] sm:$0xff]
        %v1477 = vld [vmem:[%s1085 + $0x600] sm:$0xff]
        %v1478 = vld [vmem:[%s1085 + $0x608] sm:$0xff]
        %v1479 = vld [vmem:[%s1085 + $0x610] sm:$0xff]
        %v1480 = vld [vmem:[%s1085 + $0x618] sm:$0xff]
        %v1481 = vld [vmem:[%s1085 + $0x620] sm:$0xff]
        %v1482 = vld [vmem:[%s1085 + $0x628] sm:$0xff]
        %v1483 = vld [vmem:[%s1085 + $0x630] sm:$0xff]
        %v1484 = vld [vmem:[%s1085 + $0x638] sm:$0xff]
        %v1485 = vld [vmem:[%s1085 + $0x640] sm:$0xff]
        %v1486 = vld [vmem:[%s1085 + $0x648] sm:$0xff]
        %v1487 = vld [vmem:[%s1085 + $0x650] sm:$0xff]
        %v1488 = vld [vmem:[%s1085 + $0x658] sm:$0xff]
        %v1489 = vld [vmem:[%s1085 + $0x660] sm:$0xff]
        %v1490 = vld [vmem:[%s1085 + $0x668] sm:$0xff]
        %v1491 = vld [vmem:[%s1085 + $0x670] sm:$0xff]
        %v1492 = vld [vmem:[%s1085 + $0x678] sm:$0xff]
        %v1493 = vld [vmem:[%s1085 + $0x680] sm:$0xff]
        %v1494 = vld [vmem:[%s1085 + $0x688] sm:$0xff]
        %v1495 = vld [vmem:[%s1085 + $0x690] sm:$0xff]
        %v1496 = vld [vmem:[%s1085 + $0x698] sm:$0xff]
        %v1497 = vld [vmem:[%s1085 + $0x6a0] sm:$0xff]
        %v1498 = vld [vmem:[%s1085 + $0x6a8] sm:$0xff]
        %v1499 = vld [vmem:[%s1085 + $0x6b0] sm:$0xff]
        %v1500 = vld [vmem:[%s1085 + $0x6b8] sm:$0xff]
        %v1501 = vld [vmem:[%s1085 + $0x6c0] sm:$0xff]
        %v1502 = vld [vmem:[%s1085 + $0x6c8] sm:$0xff]
        %v1503 = vld [vmem:[%s1085 + $0x6d0] sm:$0xff]
        %v1504 = vld [vmem:[%s1085 + $0x6d8] sm:$0xff]
        %v1505 = vld [vmem:[%s1085 + $0x6e0] sm:$0xff]
        %v1506 = vld [vmem:[%s1085 + $0x6e8] sm:$0xff]
        %v1507 = vld [vmem:[%s1085 + $0x6f0] sm:$0xff]
        %v1508 = vld [vmem:[%s1085 + $0x6f8] sm:$0xff]
        %v1509 = vld [vmem:[%s1085 + $0x700] sm:$0xff]
        %v1510 = vld [vmem:[%s1085 + $0x708] sm:$0xff]
        %v1511 = vld [vmem:[%s1085 + $0x710] sm:$0xff]
        %v1512 = vld [vmem:[%s1085 + $0x718] sm:$0xff]
        %v1513 = vld [vmem:[%s1085 + $0x720] sm:$0xff]
        %v1514 = vld [vmem:[%s1085 + $0x728] sm:$0xff]
        %v1515 = vld [vmem:[%s1085 + $0x730] sm:$0xff]
        %v1516 = vld [vmem:[%s1085 + $0x738] sm:$0xff]
        %v1517 = vld [vmem:[%s1085 + $0x740] sm:$0xff]
        %v1518 = vld [vmem:[%s1085 + $0x748] sm:$0xff]
        %v1519 = vld [vmem:[%s1085 + $0x750] sm:$0xff]
        %v1520 = vld [vmem:[%s1085 + $0x758] sm:$0xff]
        %v1521 = vld [vmem:[%s1085 + $0x760] sm:$0xff]
        %v1522 = vld [vmem:[%s1085 + $0x768] sm:$0xff]
        %v1523 = vld [vmem:[%s1085 + $0x770] sm:$0xff]
        %v1524 = vld [vmem:[%s1085 + $0x778] sm:$0xff]
        %v1525 = vld [vmem:[%s1085 + $0x780] sm:$0xff]
        %v1526 = vld [vmem:[%s1085 + $0x788] sm:$0xff]
        %v1527 = vld [vmem:[%s1085 + $0x790] sm:$0xff]
        %v1528 = vld [vmem:[%s1085 + $0x798] sm:$0xff]
        %v1529 = vld [vmem:[%s1085 + $0x7a0] sm:$0xff]
        %v1530 = vld [vmem:[%s1085 + $0x7a8] sm:$0xff]
        %v1531 = vld [vmem:[%s1085 + $0x7b0] sm:$0xff]
        %v1532 = vld [vmem:[%s1085 + $0x7b8] sm:$0xff]
        %v1533 = vld [vmem:[%s1085 + $0x7c0] sm:$0xff]
        %v1534 = vld [vmem:[%s1085 + $0x7c8] sm:$0xff]
        %v1535 = vld [vmem:[%s1085 + $0x7d0] sm:$0xff]
        %v1536 = vld [vmem:[%s1085 + $0x7d8] sm:$0xff]
        %v1537 = vld [vmem:[%s1085 + $0x7e0] sm:$0xff]
        %v1538 = vld [vmem:[%s1085 + $0x7e8] sm:$0xff]
        %v1539 = vld [vmem:[%s1085 + $0x7f0] sm:$0xff]
        %v1540 = vld [vmem:[%s1085 + $0x7f8] sm:$0xff]
        %v1541 = vld [vmem:[%s1085 + $0x800] sm:$0xff]
        %v1542 = vld [vmem:[%s1085 + $0x808] sm:$0xff]
        %v1543 = vld [vmem:[%s1085 + $0x810] sm:$0xff]
        %v1544 = vld [vmem:[%s1085 + $0x818] sm:$0xff]
        %v1545 = vld [vmem:[%s1085 + $0x820] sm:$0xff]
        %v1546 = vld [vmem:[%s1085 + $0x828] sm:$0xff]
        %v1547 = vld [vmem:[%s1085 + $0x830] sm:$0xff]
        %v1548 = vld [vmem:[%s1085 + $0x838] sm:$0xff]
        %v1549 = vld [vmem:[%s1085 + $0x840] sm:$0xff]
        %v1550 = vld [vmem:[%s1085 + $0x848] sm:$0xff]
        %v1551 = vld [vmem:[%s1085 + $0x850] sm:$0xff]
        %v1552 = vld [vmem:[%s1085 + $0x858] sm:$0xff]
        %v1553 = vld [vmem:[%s1085 + $0x860] sm:$0xff]
        %v1554 = vld [vmem:[%s1085 + $0x868] sm:$0xff]
        %v1555 = vld [vmem:[%s1085 + $0x870] sm:$0xff]
        %v1556 = vld [vmem:[%s1085 + $0x878] sm:$0xff]
        %v1557 = vld [vmem:[%s1085 + $0x880] sm:$0xff]
        %v1558 = vld [vmem:[%s1085 + $0x888] sm:$0xff]
        %v1559 = vld [vmem:[%s1085 + $0x890] sm:$0xff]
        %v1560 = vld [vmem:[%s1085 + $0x898] sm:$0xff]
        %v1561 = vld [vmem:[%s1085 + $0x8a0] sm:$0xff]
        %v1562 = vld [vmem:[%s1085 + $0x8a8] sm:$0xff]
        %v1563 = vld [vmem:[%s1085 + $0x8b0] sm:$0xff]
        %v1564 = vld [vmem:[%s1085 + $0x8b8] sm:$0xff]
        %v1565 = vld [vmem:[%s1085 + $0x8c0] sm:$0xff]
        %v1566 = vld [vmem:[%s1085 + $0x8c8] sm:$0xff]
        %v1567 = vld [vmem:[%s1085 + $0x8d0] sm:$0xff]
        %v1568 = vld [vmem:[%s1085 + $0x8d8] sm:$0xff]
        %v1569 = vld [vmem:[%s1085 + $0x8e0] sm:$0xff]
        %v1570 = vld [vmem:[%s1085 + $0x8e8] sm:$0xff]
        %v1571 = vld [vmem:[%s1085 + $0x8f0] sm:$0xff]
        %v1572 = vld [vmem:[%s1085 + $0x8f8] sm:$0xff]
        %v1573 = vld [vmem:[%s1085 + $0x900] sm:$0xff]
        %v1574 = vld [vmem:[%s1085 + $0x908] sm:$0xff]
        %v1575 = vld [vmem:[%s1085 + $0x910] sm:$0xff]
        %v1576 = vld [vmem:[%s1085 + $0x918] sm:$0xff]
        %v1577 = vld [vmem:[%s1085 + $0x920] sm:$0xff]
        %v1578 = vld [vmem:[%s1085 + $0x928] sm:$0xff]
        %v1579 = vld [vmem:[%s1085 + $0x930] sm:$0xff]
        %v1580 = vld [vmem:[%s1085 + $0x938] sm:$0xff]
        %v1581 = vld [vmem:[%s1085 + $0x940] sm:$0xff]
        %v1582 = vld [vmem:[%s1085 + $0x948] sm:$0xff]
        %v1583 = vld [vmem:[%s1085 + $0x950] sm:$0xff]
        %v1584 = vld [vmem:[%s1085 + $0x958] sm:$0xff]
        %v1585 = vld [vmem:[%s1085 + $0x960] sm:$0xff]
        %v1586 = vld [vmem:[%s1085 + $0x968] sm:$0xff]
        %v1587 = vld [vmem:[%s1085 + $0x970] sm:$0xff]
        %v1588 = vld [vmem:[%s1085 + $0x978] sm:$0xff]
        %v1589 = vld [vmem:[%s1085 + $0x980] sm:$0xff]
        %v1590 = vld [vmem:[%s1085 + $0x988] sm:$0xff]
        %v1591 = vld [vmem:[%s1085 + $0x990] sm:$0xff]
        %v1592 = vld [vmem:[%s1085 + $0x998] sm:$0xff]
        %v1593 = vld [vmem:[%s1085 + $0x9a0] sm:$0xff]
        %v1594 = vld [vmem:[%s1085 + $0x9a8] sm:$0xff]
        %v1595 = vld [vmem:[%s1085 + $0x9b0] sm:$0xff]
        %v1596 = vld [vmem:[%s1085 + $0x9b8] sm:$0xff]
        %v1597 = vld [vmem:[%s1085 + $0x9c0] sm:$0xff]
        %v1598 = vld [vmem:[%s1085 + $0x9c8] sm:$0xff]
        %v1599 = vld [vmem:[%s1085 + $0x9d0] sm:$0xff]
        %v1600 = vld [vmem:[%s1085 + $0x9d8] sm:$0xff]
        %v1601 = vld [vmem:[%s1085 + $0x9e0] sm:$0xff]
        %v1602 = vld [vmem:[%s1085 + $0x9e8] sm:$0xff]
        %v1603 = vld [vmem:[%s1085 + $0x9f0] sm:$0xff]
        %v1604 = vld [vmem:[%s1085 + $0x9f8] sm:$0xff]
        %v1605 = vld [vmem:[%s1085 + $0xa00] sm:$0xff]
        %v1606 = vld [vmem:[%s1085 + $0xa08] sm:$0xff]
        %v1607 = vld [vmem:[%s1085 + $0xa10] sm:$0xff]
        %v1608 = vld [vmem:[%s1085 + $0xa18] sm:$0xff]
        %v1609 = vld [vmem:[%s1085 + $0xa20] sm:$0xff]
        %v1610 = vld [vmem:[%s1085 + $0xa28] sm:$0xff]
        %v1611 = vld [vmem:[%s1085 + $0xa30] sm:$0xff]
        %v1612 = vld [vmem:[%s1085 + $0xa38] sm:$0xff]
        %v1613 = vld [vmem:[%s1085 + $0xa40] sm:$0xff]
        %v1614 = vld [vmem:[%s1085 + $0xa48] sm:$0xff]
        %v1615 = vld [vmem:[%s1085 + $0xa50] sm:$0xff]
        %v1616 = vld [vmem:[%s1085 + $0xa58] sm:$0xff]
        %v1617 = vld [vmem:[%s1085 + $0xa60] sm:$0xff]
        %v1618 = vld [vmem:[%s1085 + $0xa68] sm:$0xff]
        %v1619 = vld [vmem:[%s1085 + $0xa70] sm:$0xff]
        %v1620 = vld [vmem:[%s1085 + $0xa78] sm:$0xff]
        %v1621 = vld [vmem:[%s1085 + $0xa80] sm:$0xff]
        %v1622 = vld [vmem:[%s1085 + $0xa88] sm:$0xff]
        %v1623 = vld [vmem:[%s1085 + $0xa90] sm:$0xff]
        %v1624 = vld [vmem:[%s1085 + $0xa98] sm:$0xff]
        %v1625 = vld [vmem:[%s1085 + $0xaa0] sm:$0xff]
        %v1626 = vld [vmem:[%s1085 + $0xaa8] sm:$0xff]
        %v1627 = vld [vmem:[%s1085 + $0xab0] sm:$0xff]
        %v1628 = vld [vmem:[%s1085 + $0xab8] sm:$0xff]
        %v1629 = vld [vmem:[%s1085 + $0xac0] sm:$0xff]
        %v1630 = vld [vmem:[%s1085 + $0xac8] sm:$0xff]
        %v1631 = vld [vmem:[%s1085 + $0xad0] sm:$0xff]
        %v1632 = vld [vmem:[%s1085 + $0xad8] sm:$0xff]
        %v1633 = vld [vmem:[%s1085 + $0xae0] sm:$0xff]
        %v1634 = vld [vmem:[%s1085 + $0xae8] sm:$0xff]
        %v1635 = vld [vmem:[%s1085 + $0xaf0] sm:$0xff]
        %v1636 = vld [vmem:[%s1085 + $0xaf8] sm:$0xff]
        %v1637 = vld [vmem:[%s1085 + $0xb00] sm:$0xff]
        %v1638 = vld [vmem:[%s1085 + $0xb08] sm:$0xff]
        %v1639 = vld [vmem:[%s1085 + $0xb10] sm:$0xff]
        %v1640 = vld [vmem:[%s1085 + $0xb18] sm:$0xff]
        %v1641 = vld [vmem:[%s1085 + $0xb20] sm:$0xff]
        %v1642 = vld [vmem:[%s1085 + $0xb28] sm:$0xff]
        %v1643 = vld [vmem:[%s1085 + $0xb30] sm:$0xff]
        %v1644 = vld [vmem:[%s1085 + $0xb38] sm:$0xff]
        %v1645 = vld [vmem:[%s1085 + $0xb40] sm:$0xff]
        %v1646 = vld [vmem:[%s1085 + $0xb48] sm:$0xff]
        %v1647 = vld [vmem:[%s1085 + $0xb50] sm:$0xff]
        %v1648 = vld [vmem:[%s1085 + $0xb58] sm:$0xff]
        %v1649 = vld [vmem:[%s1085 + $0xb60] sm:$0xff]
        %v1650 = vld [vmem:[%s1085 + $0xb68] sm:$0xff]
        %v1651 = vld [vmem:[%s1085 + $0xb70] sm:$0xff]
        %v1652 = vld [vmem:[%s1085 + $0xb78] sm:$0xff]
        %v1653 = vld [vmem:[%s1085 + $0xb80] sm:$0xff]
        %v1654 = vld [vmem:[%s1085 + $0xb88] sm:$0xff]
        %v1655 = vld [vmem:[%s1085 + $0xb90] sm:$0xff]
        %v1656 = vld [vmem:[%s1085 + $0xb98] sm:$0xff]
        %v1657 = vld [vmem:[%s1085 + $0xba0] sm:$0xff]
        %v1658 = vld [vmem:[%s1085 + $0xba8] sm:$0xff]
        %v1659 = vld [vmem:[%s1085 + $0xbb0] sm:$0xff]
        %v1660 = vld [vmem:[%s1085 + $0xbb8] sm:$0xff]
        %v1661 = vld [vmem:[%s1085 + $0xbc0] sm:$0xff]
        %v1662 = vld [vmem:[%s1085 + $0xbc8] sm:$0xff]
        %v1663 = vld [vmem:[%s1085 + $0xbd0] sm:$0xff]
        %v1664 = vld [vmem:[%s1085 + $0xbd8] sm:$0xff]
        %v1665 = vld [vmem:[%s1085 + $0xbe0] sm:$0xff]
        %v1666 = vld [vmem:[%s1085 + $0xbe8] sm:$0xff]
        %v1667 = vld [vmem:[%s1085 + $0xbf0] sm:$0xff]
        %v1668 = vld [vmem:[%s1085 + $0xbf8] sm:$0xff]
        %v1669 = vld [vmem:[%s1085 + $0xc00] sm:$0xff]
        %v1670 = vld [vmem:[%s1085 + $0xc08] sm:$0xff]
        %v1671 = vld [vmem:[%s1085 + $0xc10] sm:$0xff]
        %v1672 = vld [vmem:[%s1085 + $0xc18] sm:$0xff]
        %v1673 = vld [vmem:[%s1085 + $0xc20] sm:$0xff]
        %v1674 = vld [vmem:[%s1085 + $0xc28] sm:$0xff]
        %v1675 = vld [vmem:[%s1085 + $0xc30] sm:$0xff]
        %v1676 = vld [vmem:[%s1085 + $0xc38] sm:$0xff]
        %v1677 = vld [vmem:[%s1085 + $0xc40] sm:$0xff]
        %v1678 = vld [vmem:[%s1085 + $0xc48] sm:$0xff]
        %v1679 = vld [vmem:[%s1085 + $0xc50] sm:$0xff]
        %v1680 = vld [vmem:[%s1085 + $0xc58] sm:$0xff]
        %v1681 = vld [vmem:[%s1085 + $0xc60] sm:$0xff]
        %v1682 = vld [vmem:[%s1085 + $0xc68] sm:$0xff]
        %v1683 = vld [vmem:[%s1085 + $0xc70] sm:$0xff]
        %v1684 = vld [vmem:[%s1085 + $0xc78] sm:$0xff]
        %v1685 = vld [vmem:[%s1085 + $0xc80] sm:$0xff]
        %v1686 = vld [vmem:[%s1085 + $0xc88] sm:$0xff]
        %v1687 = vld [vmem:[%s1085 + $0xc90] sm:$0xff]
        %v1688 = vld [vmem:[%s1085 + $0xc98] sm:$0xff]
        %v1689 = vld [vmem:[%s1085 + $0xca0] sm:$0xff]
        %v1690 = vld [vmem:[%s1085 + $0xca8] sm:$0xff]
        %v1691 = vld [vmem:[%s1085 + $0xcb0] sm:$0xff]
        %v1692 = vld [vmem:[%s1085 + $0xcb8] sm:$0xff]
        %v1693 = vld [vmem:[%s1085 + $0xcc0] sm:$0xff]
        %v1694 = vld [vmem:[%s1085 + $0xcc8] sm:$0xff]
        %v1695 = vld [vmem:[%s1085 + $0xcd0] sm:$0xff]
        %v1696 = vld [vmem:[%s1085 + $0xcd8] sm:$0xff]
        %v1697 = vld [vmem:[%s1085 + $0xce0] sm:$0xff]
        %v1698 = vld [vmem:[%s1085 + $0xce8] sm:$0xff]
        %v1699 = vld [vmem:[%s1085 + $0xcf0] sm:$0xff]
        %v1700 = vld [vmem:[%s1085 + $0xcf8] sm:$0xff]
        %v1701 = vld [vmem:[%s1085 + $0xd00] sm:$0xff]
        %v1702 = vld [vmem:[%s1085 + $0xd08] sm:$0xff]
        %v1703 = vld [vmem:[%s1085 + $0xd10] sm:$0xff]
        %v1704 = vld [vmem:[%s1085 + $0xd18] sm:$0xff]
        %v1705 = vld [vmem:[%s1085 + $0xd20] sm:$0xff]
        %v1706 = vld [vmem:[%s1085 + $0xd28] sm:$0xff]
        %v1707 = vld [vmem:[%s1085 + $0xd30] sm:$0xff]
        %v1708 = vld [vmem:[%s1085 + $0xd38] sm:$0xff]
        %v1709 = vld [vmem:[%s1085 + $0xd40] sm:$0xff]
        %v1710 = vld [vmem:[%s1085 + $0xd48] sm:$0xff]
        %v1711 = vld [vmem:[%s1085 + $0xd50] sm:$0xff]
        %v1712 = vld [vmem:[%s1085 + $0xd58] sm:$0xff]
        %v1713 = vld [vmem:[%s1085 + $0xd60] sm:$0xff]
        %v1714 = vld [vmem:[%s1085 + $0xd68] sm:$0xff]
        %v1715 = vld [vmem:[%s1085 + $0xd70] sm:$0xff]
        %v1716 = vld [vmem:[%s1085 + $0xd78] sm:$0xff]
        %v1717 = vld [vmem:[%s1085 + $0xd80] sm:$0xff]
        %v1718 = vld [vmem:[%s1085 + $0xd88] sm:$0xff]
        %v1719 = vld [vmem:[%s1085 + $0xd90] sm:$0xff]
        %v1720 = vld [vmem:[%s1085 + $0xd98] sm:$0xff]
        %v1721 = vld [vmem:[%s1085 + $0xda0] sm:$0xff]
        %v1722 = vld [vmem:[%s1085 + $0xda8] sm:$0xff]
        %v1723 = vld [vmem:[%s1085 + $0xdb0] sm:$0xff]
        %v1724 = vld [vmem:[%s1085 + $0xdb8] sm:$0xff]
        %v1725 = vld [vmem:[%s1085 + $0xdc0] sm:$0xff]
        %v1726 = vld [vmem:[%s1085 + $0xdc8] sm:$0xff]
        %v1727 = vld [vmem:[%s1085 + $0xdd0] sm:$0xff]
        %v1728 = vld [vmem:[%s1085 + $0xdd8] sm:$0xff]
        %v1729 = vld [vmem:[%s1085 + $0xde0] sm:$0xff]
        %v1730 = vld [vmem:[%s1085 + $0xde8] sm:$0xff]
        %v1731 = vld [vmem:[%s1085 + $0xdf0] sm:$0xff]
        %v1732 = vld [vmem:[%s1085 + $0xdf8] sm:$0xff]
        %v1733 = vld [vmem:[%s1085 + $0xe00] sm:$0xff]
        %v1734 = vld [vmem:[%s1085 + $0xe08] sm:$0xff]
        %v1735 = vld [vmem:[%s1085 + $0xe10] sm:$0xff]
        %v1736 = vld [vmem:[%s1085 + $0xe18] sm:$0xff]
        %v1737 = vld [vmem:[%s1085 + $0xe20] sm:$0xff]
        %v1738 = vld [vmem:[%s1085 + $0xe28] sm:$0xff]
        %v1739 = vld [vmem:[%s1085 + $0xe30] sm:$0xff]
        %v1740 = vld [vmem:[%s1085 + $0xe38] sm:$0xff]
        %v1741 = vld [vmem:[%s1085 + $0xe40] sm:$0xff]
        %v1742 = vld [vmem:[%s1085 + $0xe48] sm:$0xff]
        %v1743 = vld [vmem:[%s1085 + $0xe50] sm:$0xff]
        %v1744 = vld [vmem:[%s1085 + $0xe58] sm:$0xff]
        %v1745 = vld [vmem:[%s1085 + $0xe60] sm:$0xff]
        %v1746 = vld [vmem:[%s1085 + $0xe68] sm:$0xff]
        %v1747 = vld [vmem:[%s1085 + $0xe70] sm:$0xff]
        %v1748 = vld [vmem:[%s1085 + $0xe78] sm:$0xff]
        %v1749 = vld [vmem:[%s1085 + $0xe80] sm:$0xff]
        %v1750 = vld [vmem:[%s1085 + $0xe88] sm:$0xff]
        %v1751 = vld [vmem:[%s1085 + $0xe90] sm:$0xff]
        %v1752 = vld [vmem:[%s1085 + $0xe98] sm:$0xff]
        %v1753 = vld [vmem:[%s1085 + $0xea0] sm:$0xff]
        %v1754 = vld [vmem:[%s1085 + $0xea8] sm:$0xff]
        %v1755 = vld [vmem:[%s1085 + $0xeb0] sm:$0xff]
        %v1756 = vld [vmem:[%s1085 + $0xeb8] sm:$0xff]
        %v1757 = vld [vmem:[%s1085 + $0xec0] sm:$0xff]
        %v1758 = vld [vmem:[%s1085 + $0xec8] sm:$0xff]
        %v1759 = vld [vmem:[%s1085 + $0xed0] sm:$0xff]
        %v1760 = vld [vmem:[%s1085 + $0xed8] sm:$0xff]
        %v1761 = vld [vmem:[%s1085 + $0xee0] sm:$0xff]
        %v1762 = vld [vmem:[%s1085 + $0xee8] sm:$0xff]
        %v1763 = vld [vmem:[%s1085 + $0xef0] sm:$0xff]
        %v1764 = vld [vmem:[%s1085 + $0xef8] sm:$0xff]
        %v1765 = vld [vmem:[%s1085 + $0xf00] sm:$0xff]
        %v1766 = vld [vmem:[%s1085 + $0xf08] sm:$0xff]
        %v1767 = vld [vmem:[%s1085 + $0xf10] sm:$0xff]
        %v1768 = vld [vmem:[%s1085 + $0xf18] sm:$0xff]
        %v1769 = vld [vmem:[%s1085 + $0xf20] sm:$0xff]
        %v1770 = vld [vmem:[%s1085 + $0xf28] sm:$0xff]
        %v1771 = vld [vmem:[%s1085 + $0xf30] sm:$0xff]
        %v1772 = vld [vmem:[%s1085 + $0xf38] sm:$0xff]
        %v1773 = vld [vmem:[%s1085 + $0xf40] sm:$0xff]
        %v1774 = vld [vmem:[%s1085 + $0xf48] sm:$0xff]
        %v1775 = vld [vmem:[%s1085 + $0xf50] sm:$0xff]
        %v1776 = vld [vmem:[%s1085 + $0xf58] sm:$0xff]
        %v1777 = vld [vmem:[%s1085 + $0xf60] sm:$0xff]
        %v1778 = vld [vmem:[%s1085 + $0xf68] sm:$0xff]
        %v1779 = vld [vmem:[%s1085 + $0xf70] sm:$0xff]
        %v1780 = vld [vmem:[%s1085 + $0xf78] sm:$0xff]
        %v1781 = vld [vmem:[%s1085 + $0xf80] sm:$0xff]
        %v1782 = vld [vmem:[%s1085 + $0xf88] sm:$0xff]
        %v1783 = vld [vmem:[%s1085 + $0xf90] sm:$0xff]
        %v1784 = vld [vmem:[%s1085 + $0xf98] sm:$0xff]
        %v1789 = vunpack.c.l.b16 %v1281
        %v1790 = vunpack.c.h.b16 %v1281
        %v1791 = vunpack.c.l.b16 %v1282
        %v1792 = vunpack.c.h.b16 %v1282
        %v1793 = vunpack.c.l.b16 %v1283
        %v1794 = vunpack.c.h.b16 %v1283
        %v1795 = vunpack.c.l.b16 %v1284
        %v1796 = vunpack.c.h.b16 %v1284
        %v1797 = vpack.c.b16 %v1789, %v1789
        %v1798 = vpack.c.b16 %v1790, %v1790
        %v1799 = vpack.c.b16 %v1791, %v1791
        %v1800 = vpack.c.b16 %v1792, %v1792
        %v1801 = vpack.c.b16 %v1793, %v1793
        %v1802 = vpack.c.b16 %v1794, %v1794
        %v1803 = vpack.c.b16 %v1795, %v1795
        %v1804 = vpack.c.b16 %v1796, %v1796
        %v2312 = vunpack.c.l.b16 %v1285
        %v2313 = vunpack.c.h.b16 %v1285
        %v2314 = vunpack.c.l.b16 %v1286
        %v2315 = vunpack.c.h.b16 %v1286
        %v2316 = vunpack.c.l.b16 %v1287
        %v2317 = vunpack.c.h.b16 %v1287
        %v2318 = vunpack.c.l.b16 %v1288
        %v2319 = vunpack.c.h.b16 %v1288
        %v2320 = vunpack.c.l.b16 %v1289
        %v2321 = vunpack.c.h.b16 %v1289
        %v2322 = vunpack.c.l.b16 %v1290
        %v2323 = vunpack.c.h.b16 %v1290
        %v2324 = vunpack.c.l.b16 %v1291
        %v2325 = vunpack.c.h.b16 %v1291
        %v2326 = vunpack.c.l.b16 %v1292
        %v2327 = vunpack.c.h.b16 %v1292
        %v2328 = vunpack.c.l.b16 %v1293
        %v2329 = vunpack.c.h.b16 %v1293
        %v2330 = vunpack.c.l.b16 %v1294
        %v2331 = vunpack.c.h.b16 %v1294
        %v2332 = vunpack.c.l.b16 %v1295
        %v2333 = vunpack.c.h.b16 %v1295
        %v2334 = vunpack.c.l.b16 %v1296
        %v2335 = vunpack.c.h.b16 %v1296
        %v2336 = vunpack.c.l.b16 %v1297
        %v2337 = vunpack.c.h.b16 %v1297
        %v2338 = vunpack.c.l.b16 %v1298
        %v2339 = vunpack.c.h.b16 %v1298
        %v2340 = vunpack.c.l.b16 %v1299
        %v2341 = vunpack.c.h.b16 %v1299
        %v2342 = vunpack.c.l.b16 %v1300
        %v2343 = vunpack.c.h.b16 %v1300
        %v2344 = vunpack.c.l.b16 %v1301
        %v2345 = vunpack.c.h.b16 %v1301
        %v2346 = vunpack.c.l.b16 %v1302
        %v2347 = vunpack.c.h.b16 %v1302
        %v2348 = vunpack.c.l.b16 %v1303
        %v2349 = vunpack.c.h.b16 %v1303
        %v2350 = vunpack.c.l.b16 %v1304
        %v2351 = vunpack.c.h.b16 %v1304
        %v2352 = vunpack.c.l.b16 %v1305
        %v2353 = vunpack.c.h.b16 %v1305
        %v2354 = vunpack.c.l.b16 %v1306
        %v2355 = vunpack.c.h.b16 %v1306
        %v2356 = vunpack.c.l.b16 %v1307
        %v2357 = vunpack.c.h.b16 %v1307
        %v2358 = vunpack.c.l.b16 %v1308
        %v2359 = vunpack.c.h.b16 %v1308
        %v2360 = vunpack.c.l.b16 %v1309
        %v2361 = vunpack.c.h.b16 %v1309
        %v2362 = vunpack.c.l.b16 %v1310
        %v2363 = vunpack.c.h.b16 %v1310
        %v2364 = vunpack.c.l.b16 %v1311
        %v2365 = vunpack.c.h.b16 %v1311
        %v2366 = vunpack.c.l.b16 %v1312
        %v2367 = vunpack.c.h.b16 %v1312
        %v2368 = vunpack.c.l.b16 %v1313
        %v2369 = vunpack.c.h.b16 %v1313
        %v2370 = vunpack.c.l.b16 %v1314
        %v2371 = vunpack.c.h.b16 %v1314
        %v2372 = vunpack.c.l.b16 %v1315
        %v2373 = vunpack.c.h.b16 %v1315
        %v2374 = vunpack.c.l.b16 %v1316
        %v2375 = vunpack.c.h.b16 %v1316
        %v2376 = vunpack.c.l.b16 %v1317
        %v2377 = vunpack.c.h.b16 %v1317
        %v2378 = vunpack.c.l.b16 %v1318
        %v2379 = vunpack.c.h.b16 %v1318
        %v2380 = vunpack.c.l.b16 %v1319
        %v2381 = vunpack.c.h.b16 %v1319
        %v2382 = vunpack.c.l.b16 %v1320
        %v2383 = vunpack.c.h.b16 %v1320
        %v2384 = vunpack.c.l.b16 %v1321
        %v2385 = vunpack.c.h.b16 %v1321
        %v2386 = vunpack.c.l.b16 %v1322
        %v2387 = vunpack.c.h.b16 %v1322
        %v2388 = vunpack.c.l.b16 %v1323
        %v2389 = vunpack.c.h.b16 %v1323
        %v2390 = vunpack.c.l.b16 %v1324
        %v2391 = vunpack.c.h.b16 %v1324
        %v2392 = vunpack.c.l.b16 %v1325
        %v2393 = vunpack.c.h.b16 %v1325
        %v2394 = vunpack.c.l.b16 %v1326
        %v2395 = vunpack.c.h.b16 %v1326
        %v2396 = vunpack.c.l.b16 %v1327
        %v2397 = vunpack.c.h.b16 %v1327
        %v2398 = vunpack.c.l.b16 %v1328
        %v2399 = vunpack.c.h.b16 %v1328
        %v2400 = vunpack.c.l.b16 %v1329
        %v2401 = vunpack.c.h.b16 %v1329
        %v2402 = vunpack.c.l.b16 %v1330
        %v2403 = vunpack.c.h.b16 %v1330
        %v2404 = vunpack.c.l.b16 %v1331
        %v2405 = vunpack.c.h.b16 %v1331
        %v2406 = vunpack.c.l.b16 %v1332
        %v2407 = vunpack.c.h.b16 %v1332
        %v2408 = vunpack.c.l.b16 %v1333
        %v2409 = vunpack.c.h.b16 %v1333
        %v2410 = vunpack.c.l.b16 %v1334
        %v2411 = vunpack.c.h.b16 %v1334
        %v2412 = vunpack.c.l.b16 %v1335
        %v2413 = vunpack.c.h.b16 %v1335
        %v2414 = vunpack.c.l.b16 %v1336
        %v2415 = vunpack.c.h.b16 %v1336
        %v2416 = vunpack.c.l.b16 %v1337
        %v2417 = vunpack.c.h.b16 %v1337
        %v2418 = vunpack.c.l.b16 %v1338
        %v2419 = vunpack.c.h.b16 %v1338
        %v2420 = vunpack.c.l.b16 %v1339
        %v2421 = vunpack.c.h.b16 %v1339
        %v2422 = vunpack.c.l.b16 %v1340
        %v2423 = vunpack.c.h.b16 %v1340
        %v2424 = vunpack.c.l.b16 %v1341
        %v2425 = vunpack.c.h.b16 %v1341
        %v2426 = vunpack.c.l.b16 %v1342
        %v2427 = vunpack.c.h.b16 %v1342
        %v2428 = vunpack.c.l.b16 %v1343
        %v2429 = vunpack.c.h.b16 %v1343
        %v2430 = vunpack.c.l.b16 %v1344
        %v2431 = vunpack.c.h.b16 %v1344
        %v2432 = vunpack.c.l.b16 %v1345
        %v2433 = vunpack.c.h.b16 %v1345
        %v2434 = vunpack.c.l.b16 %v1346
        %v2435 = vunpack.c.h.b16 %v1346
        %v2436 = vunpack.c.l.b16 %v1347
        %v2437 = vunpack.c.h.b16 %v1347
        %v2438 = vunpack.c.l.b16 %v1348
        %v2439 = vunpack.c.h.b16 %v1348
        %v2440 = vunpack.c.l.b16 %v1349
        %v2441 = vunpack.c.h.b16 %v1349
        %v2442 = vunpack.c.l.b16 %v1350
        %v2443 = vunpack.c.h.b16 %v1350
        %v2444 = vunpack.c.l.b16 %v1351
        %v2445 = vunpack.c.h.b16 %v1351
        %v2446 = vunpack.c.l.b16 %v1352
        %v2447 = vunpack.c.h.b16 %v1352
        %v2448 = vunpack.c.l.b16 %v1353
        %v2449 = vunpack.c.h.b16 %v1353
        %v2450 = vunpack.c.l.b16 %v1354
        %v2451 = vunpack.c.h.b16 %v1354
        %v2452 = vunpack.c.l.b16 %v1355
        %v2453 = vunpack.c.h.b16 %v1355
        %v2454 = vunpack.c.l.b16 %v1356
        %v2455 = vunpack.c.h.b16 %v1356
        %v2456 = vunpack.c.l.b16 %v1357
        %v2457 = vunpack.c.h.b16 %v1357
        %v2458 = vunpack.c.l.b16 %v1358
        %v2459 = vunpack.c.h.b16 %v1358
        %v2460 = vunpack.c.l.b16 %v1359
        %v2461 = vunpack.c.h.b16 %v1359
        %v2462 = vunpack.c.l.b16 %v1360
        %v2463 = vunpack.c.h.b16 %v1360
        %v2464 = vunpack.c.l.b16 %v1361
        %v2465 = vunpack.c.h.b16 %v1361
        %v2466 = vunpack.c.l.b16 %v1362
        %v2467 = vunpack.c.h.b16 %v1362
        %v2468 = vunpack.c.l.b16 %v1363
        %v2469 = vunpack.c.h.b16 %v1363
        %v2470 = vunpack.c.l.b16 %v1364
        %v2471 = vunpack.c.h.b16 %v1364
        %v2472 = vunpack.c.l.b16 %v1365
        %v2473 = vunpack.c.h.b16 %v1365
        %v2474 = vunpack.c.l.b16 %v1366
        %v2475 = vunpack.c.h.b16 %v1366
        %v2476 = vunpack.c.l.b16 %v1367
        %v2477 = vunpack.c.h.b16 %v1367
        %v2478 = vunpack.c.l.b16 %v1368
        %v2479 = vunpack.c.h.b16 %v1368
        %v2480 = vunpack.c.l.b16 %v1369
        %v2481 = vunpack.c.h.b16 %v1369
        %v2482 = vunpack.c.l.b16 %v1370
        %v2483 = vunpack.c.h.b16 %v1370
        %v2484 = vunpack.c.l.b16 %v1371
        %v2485 = vunpack.c.h.b16 %v1371
        %v2486 = vunpack.c.l.b16 %v1372
        %v2487 = vunpack.c.h.b16 %v1372
        %v2488 = vunpack.c.l.b16 %v1373
        %v2489 = vunpack.c.h.b16 %v1373
        %v2490 = vunpack.c.l.b16 %v1374
        %v2491 = vunpack.c.h.b16 %v1374
        %v2492 = vunpack.c.l.b16 %v1375
        %v2493 = vunpack.c.h.b16 %v1375
        %v2494 = vunpack.c.l.b16 %v1376
        %v2495 = vunpack.c.h.b16 %v1376
        %v2496 = vunpack.c.l.b16 %v1377
        %v2497 = vunpack.c.h.b16 %v1377
        %v2498 = vunpack.c.l.b16 %v1378
        %v2499 = vunpack.c.h.b16 %v1378
        %v2500 = vunpack.c.l.b16 %v1379
        %v2501 = vunpack.c.h.b16 %v1379
        %v2502 = vunpack.c.l.b16 %v1380
        %v2503 = vunpack.c.h.b16 %v1380
        %v2504 = vunpack.c.l.b16 %v1381
        %v2505 = vunpack.c.h.b16 %v1381
        %v2506 = vunpack.c.l.b16 %v1382
        %v2507 = vunpack.c.h.b16 %v1382
        %v2508 = vunpack.c.l.b16 %v1383
        %v2509 = vunpack.c.h.b16 %v1383
        %v2510 = vunpack.c.l.b16 %v1384
        %v2511 = vunpack.c.h.b16 %v1384
        %v2512 = vunpack.c.l.b16 %v1385
        %v2513 = vunpack.c.h.b16 %v1385
        %v2514 = vunpack.c.l.b16 %v1386
        %v2515 = vunpack.c.h.b16 %v1386
        %v2516 = vunpack.c.l.b16 %v1387
        %v2517 = vunpack.c.h.b16 %v1387
        %v2518 = vunpack.c.l.b16 %v1388
        %v2519 = vunpack.c.h.b16 %v1388
        %v2520 = vunpack.c.l.b16 %v1389
        %v2521 = vunpack.c.h.b16 %v1389
        %v2522 = vunpack.c.l.b16 %v1390
        %v2523 = vunpack.c.h.b16 %v1390
        %v2524 = vunpack.c.l.b16 %v1391
        %v2525 = vunpack.c.h.b16 %v1391
        %v2526 = vunpack.c.l.b16 %v1392
        %v2527 = vunpack.c.h.b16 %v1392
        %v2528 = vunpack.c.l.b16 %v1393
        %v2529 = vunpack.c.h.b16 %v1393
        %v2530 = vunpack.c.l.b16 %v1394
        %v2531 = vunpack.c.h.b16 %v1394
        %v2532 = vunpack.c.l.b16 %v1395
        %v2533 = vunpack.c.h.b16 %v1395
        %v2534 = vunpack.c.l.b16 %v1396
        %v2535 = vunpack.c.h.b16 %v1396
        %v2536 = vunpack.c.l.b16 %v1397
        %v2537 = vunpack.c.h.b16 %v1397
        %v2538 = vunpack.c.l.b16 %v1398
        %v2539 = vunpack.c.h.b16 %v1398
        %v2540 = vunpack.c.l.b16 %v1399
        %v2541 = vunpack.c.h.b16 %v1399
        %v2542 = vunpack.c.l.b16 %v1400
        %v2543 = vunpack.c.h.b16 %v1400
        %v2544 = vunpack.c.l.b16 %v1401
        %v2545 = vunpack.c.h.b16 %v1401
        %v2546 = vunpack.c.l.b16 %v1402
        %v2547 = vunpack.c.h.b16 %v1402
        %v2548 = vunpack.c.l.b16 %v1403
        %v2549 = vunpack.c.h.b16 %v1403
        %v2550 = vunpack.c.l.b16 %v1404
        %v2551 = vunpack.c.h.b16 %v1404
        %v2552 = vunpack.c.l.b16 %v1405
        %v2553 = vunpack.c.h.b16 %v1405
        %v2554 = vunpack.c.l.b16 %v1406
        %v2555 = vunpack.c.h.b16 %v1406
        %v2556 = vunpack.c.l.b16 %v1407
        %v2557 = vunpack.c.h.b16 %v1407
        %v2558 = vunpack.c.l.b16 %v1408
        %v2559 = vunpack.c.h.b16 %v1408
        %v2560 = vunpack.c.l.b16 %v1409
        %v2561 = vunpack.c.h.b16 %v1409
        %v2562 = vunpack.c.l.b16 %v1410
        %v2563 = vunpack.c.h.b16 %v1410
        %v2564 = vunpack.c.l.b16 %v1411
        %v2565 = vunpack.c.h.b16 %v1411
        %v2566 = vunpack.c.l.b16 %v1412
        %v2567 = vunpack.c.h.b16 %v1412
        %v2568 = vunpack.c.l.b16 %v1413
        %v2569 = vunpack.c.h.b16 %v1413
        %v2570 = vunpack.c.l.b16 %v1414
        %v2571 = vunpack.c.h.b16 %v1414
        %v2572 = vunpack.c.l.b16 %v1415
        %v2573 = vunpack.c.h.b16 %v1415
        %v2574 = vunpack.c.l.b16 %v1416
        %v2575 = vunpack.c.h.b16 %v1416
        %v2576 = vunpack.c.l.b16 %v1417
        %v2577 = vunpack.c.h.b16 %v1417
        %v2578 = vunpack.c.l.b16 %v1418
        %v2579 = vunpack.c.h.b16 %v1418
        %v2580 = vunpack.c.l.b16 %v1419
        %v2581 = vunpack.c.h.b16 %v1419
        %v2582 = vunpack.c.l.b16 %v1420
        %v2583 = vunpack.c.h.b16 %v1420
        %v2584 = vunpack.c.l.b16 %v1421
        %v2585 = vunpack.c.h.b16 %v1421
        %v2586 = vunpack.c.l.b16 %v1422
        %v2587 = vunpack.c.h.b16 %v1422
        %v2588 = vunpack.c.l.b16 %v1423
        %v2589 = vunpack.c.h.b16 %v1423
        %v2590 = vunpack.c.l.b16 %v1424
        %v2591 = vunpack.c.h.b16 %v1424
        %v2592 = vunpack.c.l.b16 %v1425
        %v2593 = vunpack.c.h.b16 %v1425
        %v2594 = vunpack.c.l.b16 %v1426
        %v2595 = vunpack.c.h.b16 %v1426
        %v2596 = vunpack.c.l.b16 %v1427
        %v2597 = vunpack.c.h.b16 %v1427
        %v2598 = vunpack.c.l.b16 %v1428
        %v2599 = vunpack.c.h.b16 %v1428
        %v2600 = vunpack.c.l.b16 %v1429
        %v2601 = vunpack.c.h.b16 %v1429
        %v2602 = vunpack.c.l.b16 %v1430
        %v2603 = vunpack.c.h.b16 %v1430
        %v2604 = vunpack.c.l.b16 %v1431
        %v2605 = vunpack.c.h.b16 %v1431
        %v2606 = vunpack.c.l.b16 %v1432
        %v2607 = vunpack.c.h.b16 %v1432
        %v2608 = vunpack.c.l.b16 %v1433
        %v2609 = vunpack.c.h.b16 %v1433
        %v2610 = vunpack.c.l.b16 %v1434
        %v2611 = vunpack.c.h.b16 %v1434
        %v2612 = vunpack.c.l.b16 %v1435
        %v2613 = vunpack.c.h.b16 %v1435
        %v2614 = vunpack.c.l.b16 %v1436
        %v2615 = vunpack.c.h.b16 %v1436
        %v2616 = vunpack.c.l.b16 %v1437
        %v2617 = vunpack.c.h.b16 %v1437
        %v2618 = vunpack.c.l.b16 %v1438
        %v2619 = vunpack.c.h.b16 %v1438
        %v2620 = vunpack.c.l.b16 %v1439
        %v2621 = vunpack.c.h.b16 %v1439
        %v2622 = vunpack.c.l.b16 %v1440
        %v2623 = vunpack.c.h.b16 %v1440
        %v2624 = vunpack.c.l.b16 %v1441
        %v2625 = vunpack.c.h.b16 %v1441
        %v2626 = vunpack.c.l.b16 %v1442
        %v2627 = vunpack.c.h.b16 %v1442
        %v2628 = vunpack.c.l.b16 %v1443
        %v2629 = vunpack.c.h.b16 %v1443
        %v2630 = vunpack.c.l.b16 %v1444
        %v2631 = vunpack.c.h.b16 %v1444
        %v2632 = vunpack.c.l.b16 %v1445
        %v2633 = vunpack.c.h.b16 %v1445
        %v2634 = vunpack.c.l.b16 %v1446
        %v2635 = vunpack.c.h.b16 %v1446
        %v2636 = vunpack.c.l.b16 %v1447
        %v2637 = vunpack.c.h.b16 %v1447
        %v2638 = vunpack.c.l.b16 %v1448
        %v2639 = vunpack.c.h.b16 %v1448
        %v2640 = vunpack.c.l.b16 %v1449
        %v2641 = vunpack.c.h.b16 %v1449
        %v2642 = vunpack.c.l.b16 %v1450
        %v2643 = vunpack.c.h.b16 %v1450
        %v2644 = vunpack.c.l.b16 %v1451
        %v2645 = vunpack.c.h.b16 %v1451
        %v2646 = vunpack.c.l.b16 %v1452
        %v2647 = vunpack.c.h.b16 %v1452
        %v2648 = vunpack.c.l.b16 %v1453
        %v2649 = vunpack.c.h.b16 %v1453
        %v2650 = vunpack.c.l.b16 %v1454
        %v2651 = vunpack.c.h.b16 %v1454
        %v2652 = vunpack.c.l.b16 %v1455
        %v2653 = vunpack.c.h.b16 %v1455
        %v2654 = vunpack.c.l.b16 %v1456
        %v2655 = vunpack.c.h.b16 %v1456
        %v2656 = vunpack.c.l.b16 %v1457
        %v2657 = vunpack.c.h.b16 %v1457
        %v2658 = vunpack.c.l.b16 %v1458
        %v2659 = vunpack.c.h.b16 %v1458
        %v2660 = vunpack.c.l.b16 %v1459
        %v2661 = vunpack.c.h.b16 %v1459
        %v2662 = vunpack.c.l.b16 %v1460
        %v2663 = vunpack.c.h.b16 %v1460
        %v2664 = vunpack.c.l.b16 %v1461
        %v2665 = vunpack.c.h.b16 %v1461
        %v2666 = vunpack.c.l.b16 %v1462
        %v2667 = vunpack.c.h.b16 %v1462
        %v2668 = vunpack.c.l.b16 %v1463
        %v2669 = vunpack.c.h.b16 %v1463
        %v2670 = vunpack.c.l.b16 %v1464
        %v2671 = vunpack.c.h.b16 %v1464
        %v2672 = vunpack.c.l.b16 %v1465
        %v2673 = vunpack.c.h.b16 %v1465
        %v2674 = vunpack.c.l.b16 %v1466
        %v2675 = vunpack.c.h.b16 %v1466
        %v2676 = vunpack.c.l.b16 %v1467
        %v2677 = vunpack.c.h.b16 %v1467
        %v2678 = vunpack.c.l.b16 %v1468
        %v2679 = vunpack.c.h.b16 %v1468
        %v2680 = vunpack.c.l.b16 %v1469
        %v2681 = vunpack.c.h.b16 %v1469
        %v2682 = vunpack.c.l.b16 %v1470
        %v2683 = vunpack.c.h.b16 %v1470
        %v2684 = vunpack.c.l.b16 %v1471
        %v2685 = vunpack.c.h.b16 %v1471
        %v2686 = vunpack.c.l.b16 %v1472
        %v2687 = vunpack.c.h.b16 %v1472
        %v2688 = vunpack.c.l.b16 %v1473
        %v2689 = vunpack.c.h.b16 %v1473
        %v2690 = vunpack.c.l.b16 %v1474
        %v2691 = vunpack.c.h.b16 %v1474
        %v2692 = vunpack.c.l.b16 %v1475
        %v2693 = vunpack.c.h.b16 %v1475
        %v2694 = vunpack.c.l.b16 %v1476
        %v2695 = vunpack.c.h.b16 %v1476
        %v2696 = vunpack.c.l.b16 %v1477
        %v2697 = vunpack.c.h.b16 %v1477
        %v2698 = vunpack.c.l.b16 %v1478
        %v2699 = vunpack.c.h.b16 %v1478
        %v2700 = vunpack.c.l.b16 %v1479
        %v2701 = vunpack.c.h.b16 %v1479
        %v2702 = vunpack.c.l.b16 %v1480
        %v2703 = vunpack.c.h.b16 %v1480
        %v2704 = vunpack.c.l.b16 %v1481
        %v2705 = vunpack.c.h.b16 %v1481
        %v2706 = vunpack.c.l.b16 %v1482
        %v2707 = vunpack.c.h.b16 %v1482
        %v2708 = vunpack.c.l.b16 %v1483
        %v2709 = vunpack.c.h.b16 %v1483
        %v2710 = vunpack.c.l.b16 %v1484
        %v2711 = vunpack.c.h.b16 %v1484
        %v2712 = vunpack.c.l.b16 %v1485
        %v2713 = vunpack.c.h.b16 %v1485
        %v2714 = vunpack.c.l.b16 %v1486
        %v2715 = vunpack.c.h.b16 %v1486
        %v2716 = vunpack.c.l.b16 %v1487
        %v2717 = vunpack.c.h.b16 %v1487
        %v2718 = vunpack.c.l.b16 %v1488
        %v2719 = vunpack.c.h.b16 %v1488
        %v2720 = vunpack.c.l.b16 %v1489
        %v2721 = vunpack.c.h.b16 %v1489
        %v2722 = vunpack.c.l.b16 %v1490
        %v2723 = vunpack.c.h.b16 %v1490
        %v2724 = vunpack.c.l.b16 %v1491
        %v2725 = vunpack.c.h.b16 %v1491
        %v2726 = vunpack.c.l.b16 %v1492
        %v2727 = vunpack.c.h.b16 %v1492
        %v2728 = vunpack.c.l.b16 %v1493
        %v2729 = vunpack.c.h.b16 %v1493
        %v2730 = vunpack.c.l.b16 %v1494
        %v2731 = vunpack.c.h.b16 %v1494
        %v2732 = vunpack.c.l.b16 %v1495
        %v2733 = vunpack.c.h.b16 %v1495
        %v2734 = vunpack.c.l.b16 %v1496
        %v2735 = vunpack.c.h.b16 %v1496
        %v2736 = vunpack.c.l.b16 %v1497
        %v2737 = vunpack.c.h.b16 %v1497
        %v2738 = vunpack.c.l.b16 %v1498
        %v2739 = vunpack.c.h.b16 %v1498
        %v2740 = vunpack.c.l.b16 %v1499
        %v2741 = vunpack.c.h.b16 %v1499
        %v2742 = vunpack.c.l.b16 %v1500
        %v2743 = vunpack.c.h.b16 %v1500
        %v2744 = vunpack.c.l.b16 %v1501
        %v2745 = vunpack.c.h.b16 %v1501
        %v2746 = vunpack.c.l.b16 %v1502
        %v2747 = vunpack.c.h.b16 %v1502
        %v2748 = vunpack.c.l.b16 %v1503
        %v2749 = vunpack.c.h.b16 %v1503
        %v2750 = vunpack.c.l.b16 %v1504
        %v2751 = vunpack.c.h.b16 %v1504
        %v2752 = vunpack.c.l.b16 %v1505
        %v2753 = vunpack.c.h.b16 %v1505
        %v2754 = vunpack.c.l.b16 %v1506
        %v2755 = vunpack.c.h.b16 %v1506
        %v2756 = vunpack.c.l.b16 %v1507
        %v2757 = vunpack.c.h.b16 %v1507
        %v2758 = vunpack.c.l.b16 %v1508
        %v2759 = vunpack.c.h.b16 %v1508
        %v2760 = vunpack.c.l.b16 %v1509
        %v2761 = vunpack.c.h.b16 %v1509
        %v2762 = vunpack.c.l.b16 %v1510
        %v2763 = vunpack.c.h.b16 %v1510
        %v2764 = vunpack.c.l.b16 %v1511
        %v2765 = vunpack.c.h.b16 %v1511
        %v2766 = vunpack.c.l.b16 %v1512
        %v2767 = vunpack.c.h.b16 %v1512
        %v2768 = vunpack.c.l.b16 %v1513
        %v2769 = vunpack.c.h.b16 %v1513
        %v2770 = vunpack.c.l.b16 %v1514
        %v2771 = vunpack.c.h.b16 %v1514
        %v2772 = vunpack.c.l.b16 %v1515
        %v2773 = vunpack.c.h.b16 %v1515
        %v2774 = vunpack.c.l.b16 %v1516
        %v2775 = vunpack.c.h.b16 %v1516
        %v2776 = vunpack.c.l.b16 %v1517
        %v2777 = vunpack.c.h.b16 %v1517
        %v2778 = vunpack.c.l.b16 %v1518
        %v2779 = vunpack.c.h.b16 %v1518
        %v2780 = vunpack.c.l.b16 %v1519
        %v2781 = vunpack.c.h.b16 %v1519
        %v2782 = vunpack.c.l.b16 %v1520
        %v2783 = vunpack.c.h.b16 %v1520
        %v2784 = vunpack.c.l.b16 %v1521
        %v2785 = vunpack.c.h.b16 %v1521
        %v2786 = vunpack.c.l.b16 %v1522
        %v2787 = vunpack.c.h.b16 %v1522
        %v2788 = vunpack.c.l.b16 %v1523
        %v2789 = vunpack.c.h.b16 %v1523
        %v2790 = vunpack.c.l.b16 %v1524
        %v2791 = vunpack.c.h.b16 %v1524
        %v2792 = vunpack.c.l.b16 %v1525
        %v2793 = vunpack.c.h.b16 %v1525
        %v2794 = vunpack.c.l.b16 %v1526
        %v2795 = vunpack.c.h.b16 %v1526
        %v2796 = vunpack.c.l.b16 %v1527
        %v2797 = vunpack.c.h.b16 %v1527
        %v2798 = vunpack.c.l.b16 %v1528
        %v2799 = vunpack.c.h.b16 %v1528
        %v2800 = vunpack.c.l.b16 %v1529
        %v2801 = vunpack.c.h.b16 %v1529
        %v2802 = vunpack.c.l.b16 %v1530
        %v2803 = vunpack.c.h.b16 %v1530
        %v2804 = vunpack.c.l.b16 %v1531
        %v2805 = vunpack.c.h.b16 %v1531
        %v2806 = vunpack.c.l.b16 %v1532
        %v2807 = vunpack.c.h.b16 %v1532
        %v2808 = vunpack.c.l.b16 %v1533
        %v2809 = vunpack.c.h.b16 %v1533
        %v2810 = vunpack.c.l.b16 %v1534
        %v2811 = vunpack.c.h.b16 %v1534
        %v2812 = vunpack.c.l.b16 %v1535
        %v2813 = vunpack.c.h.b16 %v1535
        %v2814 = vunpack.c.l.b16 %v1536
        %v2815 = vunpack.c.h.b16 %v1536
        %v2816 = vunpack.c.l.b16 %v1537
        %v2817 = vunpack.c.h.b16 %v1537
        %v2818 = vunpack.c.l.b16 %v1538
        %v2819 = vunpack.c.h.b16 %v1538
        %v2820 = vunpack.c.l.b16 %v1539
        %v2821 = vunpack.c.h.b16 %v1539
        %v2822 = vunpack.c.l.b16 %v1540
        %v2823 = vunpack.c.h.b16 %v1540
        %v2824 = vunpack.c.l.b16 %v1541
        %v2825 = vunpack.c.h.b16 %v1541
        %v2826 = vunpack.c.l.b16 %v1542
        %v2827 = vunpack.c.h.b16 %v1542
        %v2828 = vunpack.c.l.b16 %v1543
        %v2829 = vunpack.c.h.b16 %v1543
        %v2830 = vunpack.c.l.b16 %v1544
        %v2831 = vunpack.c.h.b16 %v1544
        %v2832 = vunpack.c.l.b16 %v1545
        %v2833 = vunpack.c.h.b16 %v1545
        %v2834 = vunpack.c.l.b16 %v1546
        %v2835 = vunpack.c.h.b16 %v1546
        %v2836 = vunpack.c.l.b16 %v1547
        %v2837 = vunpack.c.h.b16 %v1547
        %v2838 = vunpack.c.l.b16 %v1548
        %v2839 = vunpack.c.h.b16 %v1548
        %v2840 = vunpack.c.l.b16 %v1549
        %v2841 = vunpack.c.h.b16 %v1549
        %v2842 = vunpack.c.l.b16 %v1550
        %v2843 = vunpack.c.h.b16 %v1550
        %v2844 = vunpack.c.l.b16 %v1551
        %v2845 = vunpack.c.h.b16 %v1551
        %v2846 = vunpack.c.l.b16 %v1552
        %v2847 = vunpack.c.h.b16 %v1552
        %v2848 = vunpack.c.l.b16 %v1553
        %v2849 = vunpack.c.h.b16 %v1553
        %v2850 = vunpack.c.l.b16 %v1554
        %v2851 = vunpack.c.h.b16 %v1554
        %v2852 = vunpack.c.l.b16 %v1555
        %v2853 = vunpack.c.h.b16 %v1555
        %v2854 = vunpack.c.l.b16 %v1556
        %v2855 = vunpack.c.h.b16 %v1556
        %v2856 = vunpack.c.l.b16 %v1557
        %v2857 = vunpack.c.h.b16 %v1557
        %v2858 = vunpack.c.l.b16 %v1558
        %v2859 = vunpack.c.h.b16 %v1558
        %v2860 = vunpack.c.l.b16 %v1559
        %v2861 = vunpack.c.h.b16 %v1559
        %v2862 = vunpack.c.l.b16 %v1560
        %v2863 = vunpack.c.h.b16 %v1560
        %v2864 = vunpack.c.l.b16 %v1561
        %v2865 = vunpack.c.h.b16 %v1561
        %v2866 = vunpack.c.l.b16 %v1562
        %v2867 = vunpack.c.h.b16 %v1562
        %v2868 = vunpack.c.l.b16 %v1563
        %v2869 = vunpack.c.h.b16 %v1563
        %v2870 = vunpack.c.l.b16 %v1564
        %v2871 = vunpack.c.h.b16 %v1564
        %v2872 = vunpack.c.l.b16 %v1565
        %v2873 = vunpack.c.h.b16 %v1565
        %v2874 = vunpack.c.l.b16 %v1566
        %v2875 = vunpack.c.h.b16 %v1566
        %v2876 = vunpack.c.l.b16 %v1567
        %v2877 = vunpack.c.h.b16 %v1567
        %v2878 = vunpack.c.l.b16 %v1568
        %v2879 = vunpack.c.h.b16 %v1568
        %v2880 = vunpack.c.l.b16 %v1569
        %v2881 = vunpack.c.h.b16 %v1569
        %v2882 = vunpack.c.l.b16 %v1570
        %v2883 = vunpack.c.h.b16 %v1570
        %v2884 = vunpack.c.l.b16 %v1571
        %v2885 = vunpack.c.h.b16 %v1571
        %v2886 = vunpack.c.l.b16 %v1572
        %v2887 = vunpack.c.h.b16 %v1572
        %v2888 = vunpack.c.l.b16 %v1573
        %v2889 = vunpack.c.h.b16 %v1573
        %v2890 = vunpack.c.l.b16 %v1574
        %v2891 = vunpack.c.h.b16 %v1574
        %v2892 = vunpack.c.l.b16 %v1575
        %v2893 = vunpack.c.h.b16 %v1575
        %v2894 = vunpack.c.l.b16 %v1576
        %v2895 = vunpack.c.h.b16 %v1576
        %v2896 = vunpack.c.l.b16 %v1577
        %v2897 = vunpack.c.h.b16 %v1577
        %v2898 = vunpack.c.l.b16 %v1578
        %v2899 = vunpack.c.h.b16 %v1578
        %v2900 = vunpack.c.l.b16 %v1579
        %v2901 = vunpack.c.h.b16 %v1579
        %v2902 = vunpack.c.l.b16 %v1580
        %v2903 = vunpack.c.h.b16 %v1580
        %v2904 = vunpack.c.l.b16 %v1581
        %v2905 = vunpack.c.h.b16 %v1581
        %v2906 = vunpack.c.l.b16 %v1582
        %v2907 = vunpack.c.h.b16 %v1582
        %v2908 = vunpack.c.l.b16 %v1583
        %v2909 = vunpack.c.h.b16 %v1583
        %v2910 = vunpack.c.l.b16 %v1584
        %v2911 = vunpack.c.h.b16 %v1584
        %v2912 = vunpack.c.l.b16 %v1585
        %v2913 = vunpack.c.h.b16 %v1585
        %v2914 = vunpack.c.l.b16 %v1586
        %v2915 = vunpack.c.h.b16 %v1586
        %v2916 = vunpack.c.l.b16 %v1587
        %v2917 = vunpack.c.h.b16 %v1587
        %v2918 = vunpack.c.l.b16 %v1588
        %v2919 = vunpack.c.h.b16 %v1588
        %v2920 = vunpack.c.l.b16 %v1589
        %v2921 = vunpack.c.h.b16 %v1589
        %v2922 = vunpack.c.l.b16 %v1590
        %v2923 = vunpack.c.h.b16 %v1590
        %v2924 = vunpack.c.l.b16 %v1591
        %v2925 = vunpack.c.h.b16 %v1591
        %v2926 = vunpack.c.l.b16 %v1592
        %v2927 = vunpack.c.h.b16 %v1592
        %v2928 = vunpack.c.l.b16 %v1593
        %v2929 = vunpack.c.h.b16 %v1593
        %v2930 = vunpack.c.l.b16 %v1594
        %v2931 = vunpack.c.h.b16 %v1594
        %v2932 = vunpack.c.l.b16 %v1595
        %v2933 = vunpack.c.h.b16 %v1595
        %v2934 = vunpack.c.l.b16 %v1596
        %v2935 = vunpack.c.h.b16 %v1596
        %v2936 = vunpack.c.l.b16 %v1597
        %v2937 = vunpack.c.h.b16 %v1597
        %v2938 = vunpack.c.l.b16 %v1598
        %v2939 = vunpack.c.h.b16 %v1598
        %v2940 = vunpack.c.l.b16 %v1599
        %v2941 = vunpack.c.h.b16 %v1599
        %v2942 = vunpack.c.l.b16 %v1600
        %v2943 = vunpack.c.h.b16 %v1600
        %v2944 = vunpack.c.l.b16 %v1601
        %v2945 = vunpack.c.h.b16 %v1601
        %v2946 = vunpack.c.l.b16 %v1602
        %v2947 = vunpack.c.h.b16 %v1602
        %v2948 = vunpack.c.l.b16 %v1603
        %v2949 = vunpack.c.h.b16 %v1603
        %v2950 = vunpack.c.l.b16 %v1604
        %v2951 = vunpack.c.h.b16 %v1604
        %v2952 = vunpack.c.l.b16 %v1605
        %v2953 = vunpack.c.h.b16 %v1605
        %v2954 = vunpack.c.l.b16 %v1606
        %v2955 = vunpack.c.h.b16 %v1606
        %v2956 = vunpack.c.l.b16 %v1607
        %v2957 = vunpack.c.h.b16 %v1607
        %v2958 = vunpack.c.l.b16 %v1608
        %v2959 = vunpack.c.h.b16 %v1608
        %v2960 = vunpack.c.l.b16 %v1609
        %v2961 = vunpack.c.h.b16 %v1609
        %v2962 = vunpack.c.l.b16 %v1610
        %v2963 = vunpack.c.h.b16 %v1610
        %v2964 = vunpack.c.l.b16 %v1611
        %v2965 = vunpack.c.h.b16 %v1611
        %v2966 = vunpack.c.l.b16 %v1612
        %v2967 = vunpack.c.h.b16 %v1612
        %v2968 = vunpack.c.l.b16 %v1613
        %v2969 = vunpack.c.h.b16 %v1613
        %v2970 = vunpack.c.l.b16 %v1614
        %v2971 = vunpack.c.h.b16 %v1614
        %v2972 = vunpack.c.l.b16 %v1615
        %v2973 = vunpack.c.h.b16 %v1615
        %v2974 = vunpack.c.l.b16 %v1616
        %v2975 = vunpack.c.h.b16 %v1616
        %v2976 = vunpack.c.l.b16 %v1617
        %v2977 = vunpack.c.h.b16 %v1617
        %v2978 = vunpack.c.l.b16 %v1618
        %v2979 = vunpack.c.h.b16 %v1618
        %v2980 = vunpack.c.l.b16 %v1619
        %v2981 = vunpack.c.h.b16 %v1619
        %v2982 = vunpack.c.l.b16 %v1620
        %v2983 = vunpack.c.h.b16 %v1620
        %v2984 = vunpack.c.l.b16 %v1621
        %v2985 = vunpack.c.h.b16 %v1621
        %v2986 = vunpack.c.l.b16 %v1622
        %v2987 = vunpack.c.h.b16 %v1622
        %v2988 = vunpack.c.l.b16 %v1623
        %v2989 = vunpack.c.h.b16 %v1623
        %v2990 = vunpack.c.l.b16 %v1624
        %v2991 = vunpack.c.h.b16 %v1624
        %v2992 = vunpack.c.l.b16 %v1625
        %v2993 = vunpack.c.h.b16 %v1625
        %v2994 = vunpack.c.l.b16 %v1626
        %v2995 = vunpack.c.h.b16 %v1626
        %v2996 = vunpack.c.l.b16 %v1627
        %v2997 = vunpack.c.h.b16 %v1627
        %v2998 = vunpack.c.l.b16 %v1628
        %v2999 = vunpack.c.h.b16 %v1628
        %v3000 = vunpack.c.l.b16 %v1629
        %v3001 = vunpack.c.h.b16 %v1629
        %v3002 = vunpack.c.l.b16 %v1630
        %v3003 = vunpack.c.h.b16 %v1630
        %v3004 = vunpack.c.l.b16 %v1631
        %v3005 = vunpack.c.h.b16 %v1631
        %v3006 = vunpack.c.l.b16 %v1632
        %v3007 = vunpack.c.h.b16 %v1632
        %v3008 = vunpack.c.l.b16 %v1633
        %v3009 = vunpack.c.h.b16 %v1633
        %v3010 = vunpack.c.l.b16 %v1634
        %v3011 = vunpack.c.h.b16 %v1634
        %v3012 = vunpack.c.l.b16 %v1635
        %v3013 = vunpack.c.h.b16 %v1635
        %v3014 = vunpack.c.l.b16 %v1636
        %v3015 = vunpack.c.h.b16 %v1636
        %v3016 = vunpack.c.l.b16 %v1637
        %v3017 = vunpack.c.h.b16 %v1637
        %v3018 = vunpack.c.l.b16 %v1638
        %v3019 = vunpack.c.h.b16 %v1638
        %v3020 = vunpack.c.l.b16 %v1639
        %v3021 = vunpack.c.h.b16 %v1639
        %v3022 = vunpack.c.l.b16 %v1640
        %v3023 = vunpack.c.h.b16 %v1640
        %v3024 = vunpack.c.l.b16 %v1641
        %v3025 = vunpack.c.h.b16 %v1641
        %v3026 = vunpack.c.l.b16 %v1642
        %v3027 = vunpack.c.h.b16 %v1642
        %v3028 = vunpack.c.l.b16 %v1643
        %v3029 = vunpack.c.h.b16 %v1643
        %v3030 = vunpack.c.l.b16 %v1644
        %v3031 = vunpack.c.h.b16 %v1644
        %v3032 = vunpack.c.l.b16 %v1645
        %v3033 = vunpack.c.h.b16 %v1645
        %v3034 = vunpack.c.l.b16 %v1646
        %v3035 = vunpack.c.h.b16 %v1646
        %v3036 = vunpack.c.l.b16 %v1647
        %v3037 = vunpack.c.h.b16 %v1647
        %v3038 = vunpack.c.l.b16 %v1648
        %v3039 = vunpack.c.h.b16 %v1648
        %v3040 = vunpack.c.l.b16 %v1649
        %v3041 = vunpack.c.h.b16 %v1649
        %v3042 = vunpack.c.l.b16 %v1650
        %v3043 = vunpack.c.h.b16 %v1650
        %v3044 = vunpack.c.l.b16 %v1651
        %v3045 = vunpack.c.h.b16 %v1651
        %v3046 = vunpack.c.l.b16 %v1652
        %v3047 = vunpack.c.h.b16 %v1652
        %v3048 = vunpack.c.l.b16 %v1653
        %v3049 = vunpack.c.h.b16 %v1653
        %v3050 = vunpack.c.l.b16 %v1654
        %v3051 = vunpack.c.h.b16 %v1654
        %v3052 = vunpack.c.l.b16 %v1655
        %v3053 = vunpack.c.h.b16 %v1655
        %v3054 = vunpack.c.l.b16 %v1656
        %v3055 = vunpack.c.h.b16 %v1656
        %v3056 = vunpack.c.l.b16 %v1657
        %v3057 = vunpack.c.h.b16 %v1657
        %v3058 = vunpack.c.l.b16 %v1658
        %v3059 = vunpack.c.h.b16 %v1658
        %v3060 = vunpack.c.l.b16 %v1659
        %v3061 = vunpack.c.h.b16 %v1659
        %v3062 = vunpack.c.l.b16 %v1660
        %v3063 = vunpack.c.h.b16 %v1660
        %v3064 = vunpack.c.l.b16 %v1661
        %v3065 = vunpack.c.h.b16 %v1661
        %v3066 = vunpack.c.l.b16 %v1662
        %v3067 = vunpack.c.h.b16 %v1662
        %v3068 = vunpack.c.l.b16 %v1663
        %v3069 = vunpack.c.h.b16 %v1663
        %v3070 = vunpack.c.l.b16 %v1664
        %v3071 = vunpack.c.h.b16 %v1664
        %v3072 = vunpack.c.l.b16 %v1665
        %v3073 = vunpack.c.h.b16 %v1665
        %v3074 = vunpack.c.l.b16 %v1666
        %v3075 = vunpack.c.h.b16 %v1666
        %v3076 = vunpack.c.l.b16 %v1667
        %v3077 = vunpack.c.h.b16 %v1667
        %v3078 = vunpack.c.l.b16 %v1668
        %v3079 = vunpack.c.h.b16 %v1668
        %v3080 = vunpack.c.l.b16 %v1669
        %v3081 = vunpack.c.h.b16 %v1669
        %v3082 = vunpack.c.l.b16 %v1670
        %v3083 = vunpack.c.h.b16 %v1670
        %v3084 = vunpack.c.l.b16 %v1671
        %v3085 = vunpack.c.h.b16 %v1671
        %v3086 = vunpack.c.l.b16 %v1672
        %v3087 = vunpack.c.h.b16 %v1672
        %v3088 = vunpack.c.l.b16 %v1673
        %v3089 = vunpack.c.h.b16 %v1673
        %v3090 = vunpack.c.l.b16 %v1674
        %v3091 = vunpack.c.h.b16 %v1674
        %v3092 = vunpack.c.l.b16 %v1675
        %v3093 = vunpack.c.h.b16 %v1675
        %v3094 = vunpack.c.l.b16 %v1676
        %v3095 = vunpack.c.h.b16 %v1676
        %v3096 = vunpack.c.l.b16 %v1677
        %v3097 = vunpack.c.h.b16 %v1677
        %v3098 = vunpack.c.l.b16 %v1678
        %v3099 = vunpack.c.h.b16 %v1678
        %v3100 = vunpack.c.l.b16 %v1679
        %v3101 = vunpack.c.h.b16 %v1679
        %v3102 = vunpack.c.l.b16 %v1680
        %v3103 = vunpack.c.h.b16 %v1680
        %v3104 = vunpack.c.l.b16 %v1681
        %v3105 = vunpack.c.h.b16 %v1681
        %v3106 = vunpack.c.l.b16 %v1682
        %v3107 = vunpack.c.h.b16 %v1682
        %v3108 = vunpack.c.l.b16 %v1683
        %v3109 = vunpack.c.h.b16 %v1683
        %v3110 = vunpack.c.l.b16 %v1684
        %v3111 = vunpack.c.h.b16 %v1684
        %v3112 = vunpack.c.l.b16 %v1685
        %v3113 = vunpack.c.h.b16 %v1685
        %v3114 = vunpack.c.l.b16 %v1686
        %v3115 = vunpack.c.h.b16 %v1686
        %v3116 = vunpack.c.l.b16 %v1687
        %v3117 = vunpack.c.h.b16 %v1687
        %v3118 = vunpack.c.l.b16 %v1688
        %v3119 = vunpack.c.h.b16 %v1688
        %v3120 = vunpack.c.l.b16 %v1689
        %v3121 = vunpack.c.h.b16 %v1689
        %v3122 = vunpack.c.l.b16 %v1690
        %v3123 = vunpack.c.h.b16 %v1690
        %v3124 = vunpack.c.l.b16 %v1691
        %v3125 = vunpack.c.h.b16 %v1691
        %v3126 = vunpack.c.l.b16 %v1692
        %v3127 = vunpack.c.h.b16 %v1692
        %v3128 = vunpack.c.l.b16 %v1693
        %v3129 = vunpack.c.h.b16 %v1693
        %v3130 = vunpack.c.l.b16 %v1694
        %v3131 = vunpack.c.h.b16 %v1694
        %v3132 = vunpack.c.l.b16 %v1695
        %v3133 = vunpack.c.h.b16 %v1695
        %v3134 = vunpack.c.l.b16 %v1696
        %v3135 = vunpack.c.h.b16 %v1696
        %v3136 = vunpack.c.l.b16 %v1697
        %v3137 = vunpack.c.h.b16 %v1697
        %v3138 = vunpack.c.l.b16 %v1698
        %v3139 = vunpack.c.h.b16 %v1698
        %v3140 = vunpack.c.l.b16 %v1699
        %v3141 = vunpack.c.h.b16 %v1699
        %v3142 = vunpack.c.l.b16 %v1700
        %v3143 = vunpack.c.h.b16 %v1700
        %v3144 = vunpack.c.l.b16 %v1701
        %v3145 = vunpack.c.h.b16 %v1701
        %v3146 = vunpack.c.l.b16 %v1702
        %v3147 = vunpack.c.h.b16 %v1702
        %v3148 = vunpack.c.l.b16 %v1703
        %v3149 = vunpack.c.h.b16 %v1703
        %v3150 = vunpack.c.l.b16 %v1704
        %v3151 = vunpack.c.h.b16 %v1704
        %v3152 = vunpack.c.l.b16 %v1705
        %v3153 = vunpack.c.h.b16 %v1705
        %v3154 = vunpack.c.l.b16 %v1706
        %v3155 = vunpack.c.h.b16 %v1706
        %v3156 = vunpack.c.l.b16 %v1707
        %v3157 = vunpack.c.h.b16 %v1707
        %v3158 = vunpack.c.l.b16 %v1708
        %v3159 = vunpack.c.h.b16 %v1708
        %v3160 = vunpack.c.l.b16 %v1709
        %v3161 = vunpack.c.h.b16 %v1709
        %v3162 = vunpack.c.l.b16 %v1710
        %v3163 = vunpack.c.h.b16 %v1710
        %v3164 = vunpack.c.l.b16 %v1711
        %v3165 = vunpack.c.h.b16 %v1711
        %v3166 = vunpack.c.l.b16 %v1712
        %v3167 = vunpack.c.h.b16 %v1712
        %v3168 = vunpack.c.l.b16 %v1713
        %v3169 = vunpack.c.h.b16 %v1713
        %v3170 = vunpack.c.l.b16 %v1714
        %v3171 = vunpack.c.h.b16 %v1714
        %v3172 = vunpack.c.l.b16 %v1715
        %v3173 = vunpack.c.h.b16 %v1715
        %v3174 = vunpack.c.l.b16 %v1716
        %v3175 = vunpack.c.h.b16 %v1716
        %v3176 = vunpack.c.l.b16 %v1717
        %v3177 = vunpack.c.h.b16 %v1717
        %v3178 = vunpack.c.l.b16 %v1718
        %v3179 = vunpack.c.h.b16 %v1718
        %v3180 = vunpack.c.l.b16 %v1719
        %v3181 = vunpack.c.h.b16 %v1719
        %v3182 = vunpack.c.l.b16 %v1720
        %v3183 = vunpack.c.h.b16 %v1720
        %v3184 = vunpack.c.l.b16 %v1721
        %v3185 = vunpack.c.h.b16 %v1721
        %v3186 = vunpack.c.l.b16 %v1722
        %v3187 = vunpack.c.h.b16 %v1722
        %v3188 = vunpack.c.l.b16 %v1723
        %v3189 = vunpack.c.h.b16 %v1723
        %v3190 = vunpack.c.l.b16 %v1724
        %v3191 = vunpack.c.h.b16 %v1724
        %v3192 = vunpack.c.l.b16 %v1725
        %v3193 = vunpack.c.h.b16 %v1725
        %v3194 = vunpack.c.l.b16 %v1726
        %v3195 = vunpack.c.h.b16 %v1726
        %v3196 = vunpack.c.l.b16 %v1727
        %v3197 = vunpack.c.h.b16 %v1727
        %v3198 = vunpack.c.l.b16 %v1728
        %v3199 = vunpack.c.h.b16 %v1728
        %v3200 = vunpack.c.l.b16 %v1729
        %v3201 = vunpack.c.h.b16 %v1729
        %v3202 = vunpack.c.l.b16 %v1730
        %v3203 = vunpack.c.h.b16 %v1730
        %v3204 = vunpack.c.l.b16 %v1731
        %v3205 = vunpack.c.h.b16 %v1731
        %v3206 = vunpack.c.l.b16 %v1732
        %v3207 = vunpack.c.h.b16 %v1732
        %v3208 = vunpack.c.l.b16 %v1733
        %v3209 = vunpack.c.h.b16 %v1733
        %v3210 = vunpack.c.l.b16 %v1734
        %v3211 = vunpack.c.h.b16 %v1734
        %v3212 = vunpack.c.l.b16 %v1735
        %v3213 = vunpack.c.h.b16 %v1735
        %v3214 = vunpack.c.l.b16 %v1736
        %v3215 = vunpack.c.h.b16 %v1736
        %v3216 = vunpack.c.l.b16 %v1737
        %v3217 = vunpack.c.h.b16 %v1737
        %v3218 = vunpack.c.l.b16 %v1738
        %v3219 = vunpack.c.h.b16 %v1738
        %v3220 = vunpack.c.l.b16 %v1739
        %v3221 = vunpack.c.h.b16 %v1739
        %v3222 = vunpack.c.l.b16 %v1740
        %v3223 = vunpack.c.h.b16 %v1740
        %v3224 = vunpack.c.l.b16 %v1741
        %v3225 = vunpack.c.h.b16 %v1741
        %v3226 = vunpack.c.l.b16 %v1742
        %v3227 = vunpack.c.h.b16 %v1742
        %v3228 = vunpack.c.l.b16 %v1743
        %v3229 = vunpack.c.h.b16 %v1743
        %v3230 = vunpack.c.l.b16 %v1744
        %v3231 = vunpack.c.h.b16 %v1744
        %v3232 = vunpack.c.l.b16 %v1745
        %v3233 = vunpack.c.h.b16 %v1745
        %v3234 = vunpack.c.l.b16 %v1746
        %v3235 = vunpack.c.h.b16 %v1746
        %v3236 = vunpack.c.l.b16 %v1747
        %v3237 = vunpack.c.h.b16 %v1747
        %v3238 = vunpack.c.l.b16 %v1748
        %v3239 = vunpack.c.h.b16 %v1748
        %v3240 = vunpack.c.l.b16 %v1749
        %v3241 = vunpack.c.h.b16 %v1749
        %v3242 = vunpack.c.l.b16 %v1750
        %v3243 = vunpack.c.h.b16 %v1750
        %v3244 = vunpack.c.l.b16 %v1751
        %v3245 = vunpack.c.h.b16 %v1751
        %v3246 = vunpack.c.l.b16 %v1752
        %v3247 = vunpack.c.h.b16 %v1752
        %v3248 = vunpack.c.l.b16 %v1753
        %v3249 = vunpack.c.h.b16 %v1753
        %v3250 = vunpack.c.l.b16 %v1754
        %v3251 = vunpack.c.h.b16 %v1754
        %v3252 = vunpack.c.l.b16 %v1755
        %v3253 = vunpack.c.h.b16 %v1755
        %v3254 = vunpack.c.l.b16 %v1756
        %v3255 = vunpack.c.h.b16 %v1756
        %v3256 = vunpack.c.l.b16 %v1757
        %v3257 = vunpack.c.h.b16 %v1757
        %v3258 = vunpack.c.l.b16 %v1758
        %v3259 = vunpack.c.h.b16 %v1758
        %v3260 = vunpack.c.l.b16 %v1759
        %v3261 = vunpack.c.h.b16 %v1759
        %v3262 = vunpack.c.l.b16 %v1760
        %v3263 = vunpack.c.h.b16 %v1760
        %v3264 = vunpack.c.l.b16 %v1761
        %v3265 = vunpack.c.h.b16 %v1761
        %v3266 = vunpack.c.l.b16 %v1762
        %v3267 = vunpack.c.h.b16 %v1762
        %v3268 = vunpack.c.l.b16 %v1763
        %v3269 = vunpack.c.h.b16 %v1763
        %v3270 = vunpack.c.l.b16 %v1764
        %v3271 = vunpack.c.h.b16 %v1764
        %v3272 = vunpack.c.l.b16 %v1765
        %v3273 = vunpack.c.h.b16 %v1765
        %v3274 = vunpack.c.l.b16 %v1766
        %v3275 = vunpack.c.h.b16 %v1766
        %v3276 = vunpack.c.l.b16 %v1767
        %v3277 = vunpack.c.h.b16 %v1767
        %v3278 = vunpack.c.l.b16 %v1768
        %v3279 = vunpack.c.h.b16 %v1768
        %v3280 = vunpack.c.l.b16 %v1769
        %v3281 = vunpack.c.h.b16 %v1769
        %v3282 = vunpack.c.l.b16 %v1770
        %v3283 = vunpack.c.h.b16 %v1770
        %v3284 = vunpack.c.l.b16 %v1771
        %v3285 = vunpack.c.h.b16 %v1771
        %v3286 = vunpack.c.l.b16 %v1772
        %v3287 = vunpack.c.h.b16 %v1772
        %v3288 = vunpack.c.l.b16 %v1773
        %v3289 = vunpack.c.h.b16 %v1773
        %v3290 = vunpack.c.l.b16 %v1774
        %v3291 = vunpack.c.h.b16 %v1774
        %v3292 = vunpack.c.l.b16 %v1775
        %v3293 = vunpack.c.h.b16 %v1775
        %v3294 = vunpack.c.l.b16 %v1776
        %v3295 = vunpack.c.h.b16 %v1776
        %v3296 = vunpack.c.l.b16 %v1777
        %v3297 = vunpack.c.h.b16 %v1777
        %v3298 = vunpack.c.l.b16 %v1778
        %v3299 = vunpack.c.h.b16 %v1778
        %v3300 = vunpack.c.l.b16 %v1779
        %v3301 = vunpack.c.h.b16 %v1779
        %v3302 = vunpack.c.l.b16 %v1780
        %v3303 = vunpack.c.h.b16 %v1780
        %v3304 = vunpack.c.l.b16 %v1781
        %v3305 = vunpack.c.h.b16 %v1781
        %v3306 = vunpack.c.l.b16 %v1782
        %v3307 = vunpack.c.h.b16 %v1782
        %v3308 = vunpack.c.l.b16 %v1783
        %v3309 = vunpack.c.h.b16 %v1783
        %v3310 = vunpack.c.l.b16 %v1784
        %v3311 = vunpack.c.h.b16 %v1784
        %v3312 = vpack.c.b16 %v2320, %v2312
        %v3313 = vpack.c.b16 %v2321, %v2313
        %v3314 = vpack.c.b16 %v2322, %v2314
        %v3315 = vpack.c.b16 %v2323, %v2315
        %v3316 = vpack.c.b16 %v2324, %v2316
        %v3317 = vpack.c.b16 %v2325, %v2317
        %v3318 = vpack.c.b16 %v2326, %v2318
        %v3319 = vpack.c.b16 %v2327, %v2319
        %v3320 = vpack.c.b16 %v2336, %v2328
        %v3321 = vpack.c.b16 %v2337, %v2329
        %v3322 = vpack.c.b16 %v2338, %v2330
        %v3323 = vpack.c.b16 %v2339, %v2331
        %v3324 = vpack.c.b16 %v2340, %v2332
        %v3325 = vpack.c.b16 %v2341, %v2333
        %v3326 = vpack.c.b16 %v2342, %v2334
        %v3327 = vpack.c.b16 %v2343, %v2335
        %v3328 = vpack.c.b16 %v2352, %v2344
        %v3329 = vpack.c.b16 %v2353, %v2345
        %v3330 = vpack.c.b16 %v2354, %v2346
        %v3331 = vpack.c.b16 %v2355, %v2347
        %v3332 = vpack.c.b16 %v2356, %v2348
        %v3333 = vpack.c.b16 %v2357, %v2349
        %v3334 = vpack.c.b16 %v2358, %v2350
        %v3335 = vpack.c.b16 %v2359, %v2351
        %v3336 = vpack.c.b16 %v2368, %v2360
        %v3337 = vpack.c.b16 %v2369, %v2361
        %v3338 = vpack.c.b16 %v2370, %v2362
        %v3339 = vpack.c.b16 %v2371, %v2363
        %v3340 = vpack.c.b16 %v2372, %v2364
        %v3341 = vpack.c.b16 %v2373, %v2365
        %v3342 = vpack.c.b16 %v2374, %v2366
        %v3343 = vpack.c.b16 %v2375, %v2367
        %v3344 = vpack.c.b16 %v2384, %v2376
        %v3345 = vpack.c.b16 %v2385, %v2377
        %v3346 = vpack.c.b16 %v2386, %v2378
        %v3347 = vpack.c.b16 %v2387, %v2379
        %v3348 = vpack.c.b16 %v2388, %v2380
        %v3349 = vpack.c.b16 %v2389, %v2381
        %v3350 = vpack.c.b16 %v2390, %v2382
        %v3351 = vpack.c.b16 %v2391, %v2383
        %v3352 = vpack.c.b16 %v2400, %v2392
        %v3353 = vpack.c.b16 %v2401, %v2393
        %v3354 = vpack.c.b16 %v2402, %v2394
        %v3355 = vpack.c.b16 %v2403, %v2395
        %v3356 = vpack.c.b16 %v2404, %v2396
        %v3357 = vpack.c.b16 %v2405, %v2397
        %v3358 = vpack.c.b16 %v2406, %v2398
        %v3359 = vpack.c.b16 %v2407, %v2399
        %v3360 = vpack.c.b16 %v2416, %v2408
        %v3361 = vpack.c.b16 %v2417, %v2409
        %v3362 = vpack.c.b16 %v2418, %v2410
        %v3363 = vpack.c.b16 %v2419, %v2411
        %v3364 = vpack.c.b16 %v2420, %v2412
        %v3365 = vpack.c.b16 %v2421, %v2413
        %v3366 = vpack.c.b16 %v2422, %v2414
        %v3367 = vpack.c.b16 %v2423, %v2415
        %v3368 = vpack.c.b16 %v2432, %v2424
        %v3369 = vpack.c.b16 %v2433, %v2425
        %v3370 = vpack.c.b16 %v2434, %v2426
        %v3371 = vpack.c.b16 %v2435, %v2427
        %v3372 = vpack.c.b16 %v2436, %v2428
        %v3373 = vpack.c.b16 %v2437, %v2429
        %v3374 = vpack.c.b16 %v2438, %v2430
        %v3375 = vpack.c.b16 %v2439, %v2431
        %v3376 = vpack.c.b16 %v2448, %v2440
        %v3377 = vpack.c.b16 %v2449, %v2441
        %v3378 = vpack.c.b16 %v2450, %v2442
        %v3379 = vpack.c.b16 %v2451, %v2443
        %v3380 = vpack.c.b16 %v2452, %v2444
        %v3381 = vpack.c.b16 %v2453, %v2445
        %v3382 = vpack.c.b16 %v2454, %v2446
        %v3383 = vpack.c.b16 %v2455, %v2447
        %v3384 = vpack.c.b16 %v2464, %v2456
        %v3385 = vpack.c.b16 %v2465, %v2457
        %v3386 = vpack.c.b16 %v2466, %v2458
        %v3387 = vpack.c.b16 %v2467, %v2459
        %v3388 = vpack.c.b16 %v2468, %v2460
        %v3389 = vpack.c.b16 %v2469, %v2461
        %v3390 = vpack.c.b16 %v2470, %v2462
        %v3391 = vpack.c.b16 %v2471, %v2463
        %v3392 = vpack.c.b16 %v2480, %v2472
        %v3393 = vpack.c.b16 %v2481, %v2473
        %v3394 = vpack.c.b16 %v2482, %v2474
        %v3395 = vpack.c.b16 %v2483, %v2475
        %v3396 = vpack.c.b16 %v2484, %v2476
        %v3397 = vpack.c.b16 %v2485, %v2477
        %v3398 = vpack.c.b16 %v2486, %v2478
        %v3399 = vpack.c.b16 %v2487, %v2479
        %v3400 = vpack.c.b16 %v2496, %v2488
        %v3401 = vpack.c.b16 %v2497, %v2489
        %v3402 = vpack.c.b16 %v2498, %v2490
        %v3403 = vpack.c.b16 %v2499, %v2491
        %v3404 = vpack.c.b16 %v2500, %v2492
        %v3405 = vpack.c.b16 %v2501, %v2493
        %v3406 = vpack.c.b16 %v2502, %v2494
        %v3407 = vpack.c.b16 %v2503, %v2495
        %v3408 = vpack.c.b16 %v2512, %v2504
        %v3409 = vpack.c.b16 %v2513, %v2505
        %v3410 = vpack.c.b16 %v2514, %v2506
        %v3411 = vpack.c.b16 %v2515, %v2507
        %v3412 = vpack.c.b16 %v2516, %v2508
        %v3413 = vpack.c.b16 %v2517, %v2509
        %v3414 = vpack.c.b16 %v2518, %v2510
        %v3415 = vpack.c.b16 %v2519, %v2511
        %v3416 = vpack.c.b16 %v2528, %v2520
        %v3417 = vpack.c.b16 %v2529, %v2521
        %v3418 = vpack.c.b16 %v2530, %v2522
        %v3419 = vpack.c.b16 %v2531, %v2523
        %v3420 = vpack.c.b16 %v2532, %v2524
        %v3421 = vpack.c.b16 %v2533, %v2525
        %v3422 = vpack.c.b16 %v2534, %v2526
        %v3423 = vpack.c.b16 %v2535, %v2527
        %v3424 = vpack.c.b16 %v2544, %v2536
        %v3425 = vpack.c.b16 %v2545, %v2537
        %v3426 = vpack.c.b16 %v2546, %v2538
        %v3427 = vpack.c.b16 %v2547, %v2539
        %v3428 = vpack.c.b16 %v2548, %v2540
        %v3429 = vpack.c.b16 %v2549, %v2541
        %v3430 = vpack.c.b16 %v2550, %v2542
        %v3431 = vpack.c.b16 %v2551, %v2543
        %v3432 = vpack.c.b16 %v2560, %v2552
        %v3433 = vpack.c.b16 %v2561, %v2553
        %v3434 = vpack.c.b16 %v2562, %v2554
        %v3435 = vpack.c.b16 %v2563, %v2555
        %v3436 = vpack.c.b16 %v2564, %v2556
        %v3437 = vpack.c.b16 %v2565, %v2557
        %v3438 = vpack.c.b16 %v2566, %v2558
        %v3439 = vpack.c.b16 %v2567, %v2559
        %v3440 = vpack.c.b16 %v2576, %v2568
        %v3441 = vpack.c.b16 %v2577, %v2569
        %v3442 = vpack.c.b16 %v2578, %v2570
        %v3443 = vpack.c.b16 %v2579, %v2571
        %v3444 = vpack.c.b16 %v2580, %v2572
        %v3445 = vpack.c.b16 %v2581, %v2573
        %v3446 = vpack.c.b16 %v2582, %v2574
        %v3447 = vpack.c.b16 %v2583, %v2575
        %v3448 = vpack.c.b16 %v2592, %v2584
        %v3449 = vpack.c.b16 %v2593, %v2585
        %v3450 = vpack.c.b16 %v2594, %v2586
        %v3451 = vpack.c.b16 %v2595, %v2587
        %v3452 = vpack.c.b16 %v2596, %v2588
        %v3453 = vpack.c.b16 %v2597, %v2589
        %v3454 = vpack.c.b16 %v2598, %v2590
        %v3455 = vpack.c.b16 %v2599, %v2591
        %v3456 = vpack.c.b16 %v2608, %v2600
        %v3457 = vpack.c.b16 %v2609, %v2601
        %v3458 = vpack.c.b16 %v2610, %v2602
        %v3459 = vpack.c.b16 %v2611, %v2603
        %v3460 = vpack.c.b16 %v2612, %v2604
        %v3461 = vpack.c.b16 %v2613, %v2605
        %v3462 = vpack.c.b16 %v2614, %v2606
        %v3463 = vpack.c.b16 %v2615, %v2607
        %v3464 = vpack.c.b16 %v2624, %v2616
        %v3465 = vpack.c.b16 %v2625, %v2617
        %v3466 = vpack.c.b16 %v2626, %v2618
        %v3467 = vpack.c.b16 %v2627, %v2619
        %v3468 = vpack.c.b16 %v2628, %v2620
        %v3469 = vpack.c.b16 %v2629, %v2621
        %v3470 = vpack.c.b16 %v2630, %v2622
        %v3471 = vpack.c.b16 %v2631, %v2623
        %v3472 = vpack.c.b16 %v2640, %v2632
        %v3473 = vpack.c.b16 %v2641, %v2633
        %v3474 = vpack.c.b16 %v2642, %v2634
        %v3475 = vpack.c.b16 %v2643, %v2635
        %v3476 = vpack.c.b16 %v2644, %v2636
        %v3477 = vpack.c.b16 %v2645, %v2637
        %v3478 = vpack.c.b16 %v2646, %v2638
        %v3479 = vpack.c.b16 %v2647, %v2639
        %v3480 = vpack.c.b16 %v2656, %v2648
        %v3481 = vpack.c.b16 %v2657, %v2649
        %v3482 = vpack.c.b16 %v2658, %v2650
        %v3483 = vpack.c.b16 %v2659, %v2651
        %v3484 = vpack.c.b16 %v2660, %v2652
        %v3485 = vpack.c.b16 %v2661, %v2653
        %v3486 = vpack.c.b16 %v2662, %v2654
        %v3487 = vpack.c.b16 %v2663, %v2655
        %v3488 = vpack.c.b16 %v2672, %v2664
        %v3489 = vpack.c.b16 %v2673, %v2665
        %v3490 = vpack.c.b16 %v2674, %v2666
        %v3491 = vpack.c.b16 %v2675, %v2667
        %v3492 = vpack.c.b16 %v2676, %v2668
        %v3493 = vpack.c.b16 %v2677, %v2669
        %v3494 = vpack.c.b16 %v2678, %v2670
        %v3495 = vpack.c.b16 %v2679, %v2671
        %v3496 = vpack.c.b16 %v2688, %v2680
        %v3497 = vpack.c.b16 %v2689, %v2681
        %v3498 = vpack.c.b16 %v2690, %v2682
        %v3499 = vpack.c.b16 %v2691, %v2683
        %v3500 = vpack.c.b16 %v2692, %v2684
        %v3501 = vpack.c.b16 %v2693, %v2685
        %v3502 = vpack.c.b16 %v2694, %v2686
        %v3503 = vpack.c.b16 %v2695, %v2687
        %v3504 = vpack.c.b16 %v2704, %v2696
        %v3505 = vpack.c.b16 %v2705, %v2697
        %v3506 = vpack.c.b16 %v2706, %v2698
        %v3507 = vpack.c.b16 %v2707, %v2699
        %v3508 = vpack.c.b16 %v2708, %v2700
        %v3509 = vpack.c.b16 %v2709, %v2701
        %v3510 = vpack.c.b16 %v2710, %v2702
        %v3511 = vpack.c.b16 %v2711, %v2703
        %v3512 = vpack.c.b16 %v2720, %v2712
        %v3513 = vpack.c.b16 %v2721, %v2713
        %v3514 = vpack.c.b16 %v2722, %v2714
        %v3515 = vpack.c.b16 %v2723, %v2715
        %v3516 = vpack.c.b16 %v2724, %v2716
        %v3517 = vpack.c.b16 %v2725, %v2717
        %v3518 = vpack.c.b16 %v2726, %v2718
        %v3519 = vpack.c.b16 %v2727, %v2719
        %v3520 = vpack.c.b16 %v2736, %v2728
        %v3521 = vpack.c.b16 %v2737, %v2729
        %v3522 = vpack.c.b16 %v2738, %v2730
        %v3523 = vpack.c.b16 %v2739, %v2731
        %v3524 = vpack.c.b16 %v2740, %v2732
        %v3525 = vpack.c.b16 %v2741, %v2733
        %v3526 = vpack.c.b16 %v2742, %v2734
        %v3527 = vpack.c.b16 %v2743, %v2735
        %v3528 = vpack.c.b16 %v2752, %v2744
        %v3529 = vpack.c.b16 %v2753, %v2745
        %v3530 = vpack.c.b16 %v2754, %v2746
        %v3531 = vpack.c.b16 %v2755, %v2747
        %v3532 = vpack.c.b16 %v2756, %v2748
        %v3533 = vpack.c.b16 %v2757, %v2749
        %v3534 = vpack.c.b16 %v2758, %v2750
        %v3535 = vpack.c.b16 %v2759, %v2751
        %v3536 = vpack.c.b16 %v2768, %v2760
        %v3537 = vpack.c.b16 %v2769, %v2761
        %v3538 = vpack.c.b16 %v2770, %v2762
        %v3539 = vpack.c.b16 %v2771, %v2763
        %v3540 = vpack.c.b16 %v2772, %v2764
        %v3541 = vpack.c.b16 %v2773, %v2765
        %v3542 = vpack.c.b16 %v2774, %v2766
        %v3543 = vpack.c.b16 %v2775, %v2767
        %v3544 = vpack.c.b16 %v2784, %v2776
        %v3545 = vpack.c.b16 %v2785, %v2777
        %v3546 = vpack.c.b16 %v2786, %v2778
        %v3547 = vpack.c.b16 %v2787, %v2779
        %v3548 = vpack.c.b16 %v2788, %v2780
        %v3549 = vpack.c.b16 %v2789, %v2781
        %v3550 = vpack.c.b16 %v2790, %v2782
        %v3551 = vpack.c.b16 %v2791, %v2783
        %v3552 = vpack.c.b16 %v2800, %v2792
        %v3553 = vpack.c.b16 %v2801, %v2793
        %v3554 = vpack.c.b16 %v2802, %v2794
        %v3555 = vpack.c.b16 %v2803, %v2795
        %v3556 = vpack.c.b16 %v2804, %v2796
        %v3557 = vpack.c.b16 %v2805, %v2797
        %v3558 = vpack.c.b16 %v2806, %v2798
        %v3559 = vpack.c.b16 %v2807, %v2799
        %v3560 = vpack.c.b16 %v2816, %v2808
        %v3561 = vpack.c.b16 %v2817, %v2809
        %v3562 = vpack.c.b16 %v2818, %v2810
        %v3563 = vpack.c.b16 %v2819, %v2811
        %v3564 = vpack.c.b16 %v2820, %v2812
        %v3565 = vpack.c.b16 %v2821, %v2813
        %v3566 = vpack.c.b16 %v2822, %v2814
        %v3567 = vpack.c.b16 %v2823, %v2815
        %v3568 = vpack.c.b16 %v2832, %v2824
        %v3569 = vpack.c.b16 %v2833, %v2825
        %v3570 = vpack.c.b16 %v2834, %v2826
        %v3571 = vpack.c.b16 %v2835, %v2827
        %v3572 = vpack.c.b16 %v2836, %v2828
        %v3573 = vpack.c.b16 %v2837, %v2829
        %v3574 = vpack.c.b16 %v2838, %v2830
        %v3575 = vpack.c.b16 %v2839, %v2831
        %v3576 = vpack.c.b16 %v2848, %v2840
        %v3577 = vpack.c.b16 %v2849, %v2841
        %v3578 = vpack.c.b16 %v2850, %v2842
        %v3579 = vpack.c.b16 %v2851, %v2843
        %v3580 = vpack.c.b16 %v2852, %v2844
        %v3581 = vpack.c.b16 %v2853, %v2845
        %v3582 = vpack.c.b16 %v2854, %v2846
        %v3583 = vpack.c.b16 %v2855, %v2847
        %v3584 = vpack.c.b16 %v2864, %v2856
        %v3585 = vpack.c.b16 %v2865, %v2857
        %v3586 = vpack.c.b16 %v2866, %v2858
        %v3587 = vpack.c.b16 %v2867, %v2859
        %v3588 = vpack.c.b16 %v2868, %v2860
        %v3589 = vpack.c.b16 %v2869, %v2861
        %v3590 = vpack.c.b16 %v2870, %v2862
        %v3591 = vpack.c.b16 %v2871, %v2863
        %v3592 = vpack.c.b16 %v2880, %v2872
        %v3593 = vpack.c.b16 %v2881, %v2873
        %v3594 = vpack.c.b16 %v2882, %v2874
        %v3595 = vpack.c.b16 %v2883, %v2875
        %v3596 = vpack.c.b16 %v2884, %v2876
        %v3597 = vpack.c.b16 %v2885, %v2877
        %v3598 = vpack.c.b16 %v2886, %v2878
        %v3599 = vpack.c.b16 %v2887, %v2879
        %v3600 = vpack.c.b16 %v2896, %v2888
        %v3601 = vpack.c.b16 %v2897, %v2889
        %v3602 = vpack.c.b16 %v2898, %v2890
        %v3603 = vpack.c.b16 %v2899, %v2891
        %v3604 = vpack.c.b16 %v2900, %v2892
        %v3605 = vpack.c.b16 %v2901, %v2893
        %v3606 = vpack.c.b16 %v2902, %v2894
        %v3607 = vpack.c.b16 %v2903, %v2895
        %v3608 = vpack.c.b16 %v2912, %v2904
        %v3609 = vpack.c.b16 %v2913, %v2905
        %v3610 = vpack.c.b16 %v2914, %v2906
        %v3611 = vpack.c.b16 %v2915, %v2907
        %v3612 = vpack.c.b16 %v2916, %v2908
        %v3613 = vpack.c.b16 %v2917, %v2909
        %v3614 = vpack.c.b16 %v2918, %v2910
        %v3615 = vpack.c.b16 %v2919, %v2911
        %v3616 = vpack.c.b16 %v2928, %v2920
        %v3617 = vpack.c.b16 %v2929, %v2921
        %v3618 = vpack.c.b16 %v2930, %v2922
        %v3619 = vpack.c.b16 %v2931, %v2923
        %v3620 = vpack.c.b16 %v2932, %v2924
        %v3621 = vpack.c.b16 %v2933, %v2925
        %v3622 = vpack.c.b16 %v2934, %v2926
        %v3623 = vpack.c.b16 %v2935, %v2927
        %v3624 = vpack.c.b16 %v2944, %v2936
        %v3625 = vpack.c.b16 %v2945, %v2937
        %v3626 = vpack.c.b16 %v2946, %v2938
        %v3627 = vpack.c.b16 %v2947, %v2939
        %v3628 = vpack.c.b16 %v2948, %v2940
        %v3629 = vpack.c.b16 %v2949, %v2941
        %v3630 = vpack.c.b16 %v2950, %v2942
        %v3631 = vpack.c.b16 %v2951, %v2943
        %v3632 = vpack.c.b16 %v2960, %v2952
        %v3633 = vpack.c.b16 %v2961, %v2953
        %v3634 = vpack.c.b16 %v2962, %v2954
        %v3635 = vpack.c.b16 %v2963, %v2955
        %v3636 = vpack.c.b16 %v2964, %v2956
        %v3637 = vpack.c.b16 %v2965, %v2957
        %v3638 = vpack.c.b16 %v2966, %v2958
        %v3639 = vpack.c.b16 %v2967, %v2959
        %v3640 = vpack.c.b16 %v2976, %v2968
        %v3641 = vpack.c.b16 %v2977, %v2969
        %v3642 = vpack.c.b16 %v2978, %v2970
        %v3643 = vpack.c.b16 %v2979, %v2971
        %v3644 = vpack.c.b16 %v2980, %v2972
        %v3645 = vpack.c.b16 %v2981, %v2973
        %v3646 = vpack.c.b16 %v2982, %v2974
        %v3647 = vpack.c.b16 %v2983, %v2975
        %v3648 = vpack.c.b16 %v2992, %v2984
        %v3649 = vpack.c.b16 %v2993, %v2985
        %v3650 = vpack.c.b16 %v2994, %v2986
        %v3651 = vpack.c.b16 %v2995, %v2987
        %v3652 = vpack.c.b16 %v2996, %v2988
        %v3653 = vpack.c.b16 %v2997, %v2989
        %v3654 = vpack.c.b16 %v2998, %v2990
        %v3655 = vpack.c.b16 %v2999, %v2991
        %v3656 = vpack.c.b16 %v3008, %v3000
        %v3657 = vpack.c.b16 %v3009, %v3001
        %v3658 = vpack.c.b16 %v3010, %v3002
        %v3659 = vpack.c.b16 %v3011, %v3003
        %v3660 = vpack.c.b16 %v3012, %v3004
        %v3661 = vpack.c.b16 %v3013, %v3005
        %v3662 = vpack.c.b16 %v3014, %v3006
        %v3663 = vpack.c.b16 %v3015, %v3007
        %v3664 = vpack.c.b16 %v3024, %v3016
        %v3665 = vpack.c.b16 %v3025, %v3017
        %v3666 = vpack.c.b16 %v3026, %v3018
        %v3667 = vpack.c.b16 %v3027, %v3019
        %v3668 = vpack.c.b16 %v3028, %v3020
        %v3669 = vpack.c.b16 %v3029, %v3021
        %v3670 = vpack.c.b16 %v3030, %v3022
        %v3671 = vpack.c.b16 %v3031, %v3023
        %v3672 = vpack.c.b16 %v3040, %v3032
        %v3673 = vpack.c.b16 %v3041, %v3033
        %v3674 = vpack.c.b16 %v3042, %v3034
        %v3675 = vpack.c.b16 %v3043, %v3035
        %v3676 = vpack.c.b16 %v3044, %v3036
        %v3677 = vpack.c.b16 %v3045, %v3037
        %v3678 = vpack.c.b16 %v3046, %v3038
        %v3679 = vpack.c.b16 %v3047, %v3039
        %v3680 = vpack.c.b16 %v3056, %v3048
        %v3681 = vpack.c.b16 %v3057, %v3049
        %v3682 = vpack.c.b16 %v3058, %v3050
        %v3683 = vpack.c.b16 %v3059, %v3051
        %v3684 = vpack.c.b16 %v3060, %v3052
        %v3685 = vpack.c.b16 %v3061, %v3053
        %v3686 = vpack.c.b16 %v3062, %v3054
        %v3687 = vpack.c.b16 %v3063, %v3055
        %v3688 = vpack.c.b16 %v3072, %v3064
        %v3689 = vpack.c.b16 %v3073, %v3065
        %v3690 = vpack.c.b16 %v3074, %v3066
        %v3691 = vpack.c.b16 %v3075, %v3067
        %v3692 = vpack.c.b16 %v3076, %v3068
        %v3693 = vpack.c.b16 %v3077, %v3069
        %v3694 = vpack.c.b16 %v3078, %v3070
        %v3695 = vpack.c.b16 %v3079, %v3071
        %v3696 = vpack.c.b16 %v3088, %v3080
        %v3697 = vpack.c.b16 %v3089, %v3081
        %v3698 = vpack.c.b16 %v3090, %v3082
        %v3699 = vpack.c.b16 %v3091, %v3083
        %v3700 = vpack.c.b16 %v3092, %v3084
        %v3701 = vpack.c.b16 %v3093, %v3085
        %v3702 = vpack.c.b16 %v3094, %v3086
        %v3703 = vpack.c.b16 %v3095, %v3087
        %v3704 = vpack.c.b16 %v3104, %v3096
        %v3705 = vpack.c.b16 %v3105, %v3097
        %v3706 = vpack.c.b16 %v3106, %v3098
        %v3707 = vpack.c.b16 %v3107, %v3099
        %v3708 = vpack.c.b16 %v3108, %v3100
        %v3709 = vpack.c.b16 %v3109, %v3101
        %v3710 = vpack.c.b16 %v3110, %v3102
        %v3711 = vpack.c.b16 %v3111, %v3103
        %v3712 = vpack.c.b16 %v3120, %v3112
        %v3713 = vpack.c.b16 %v3121, %v3113
        %v3714 = vpack.c.b16 %v3122, %v3114
        %v3715 = vpack.c.b16 %v3123, %v3115
        %v3716 = vpack.c.b16 %v3124, %v3116
        %v3717 = vpack.c.b16 %v3125, %v3117
        %v3718 = vpack.c.b16 %v3126, %v3118
        %v3719 = vpack.c.b16 %v3127, %v3119
        %v3720 = vpack.c.b16 %v3136, %v3128
        %v3721 = vpack.c.b16 %v3137, %v3129
        %v3722 = vpack.c.b16 %v3138, %v3130
        %v3723 = vpack.c.b16 %v3139, %v3131
        %v3724 = vpack.c.b16 %v3140, %v3132
        %v3725 = vpack.c.b16 %v3141, %v3133
        %v3726 = vpack.c.b16 %v3142, %v3134
        %v3727 = vpack.c.b16 %v3143, %v3135
        %v3728 = vpack.c.b16 %v3152, %v3144
        %v3729 = vpack.c.b16 %v3153, %v3145
        %v3730 = vpack.c.b16 %v3154, %v3146
        %v3731 = vpack.c.b16 %v3155, %v3147
        %v3732 = vpack.c.b16 %v3156, %v3148
        %v3733 = vpack.c.b16 %v3157, %v3149
        %v3734 = vpack.c.b16 %v3158, %v3150
        %v3735 = vpack.c.b16 %v3159, %v3151
        %v3736 = vpack.c.b16 %v3168, %v3160
        %v3737 = vpack.c.b16 %v3169, %v3161
        %v3738 = vpack.c.b16 %v3170, %v3162
        %v3739 = vpack.c.b16 %v3171, %v3163
        %v3740 = vpack.c.b16 %v3172, %v3164
        %v3741 = vpack.c.b16 %v3173, %v3165
        %v3742 = vpack.c.b16 %v3174, %v3166
        %v3743 = vpack.c.b16 %v3175, %v3167
        %v3744 = vpack.c.b16 %v3184, %v3176
        %v3745 = vpack.c.b16 %v3185, %v3177
        %v3746 = vpack.c.b16 %v3186, %v3178
        %v3747 = vpack.c.b16 %v3187, %v3179
        %v3748 = vpack.c.b16 %v3188, %v3180
        %v3749 = vpack.c.b16 %v3189, %v3181
        %v3750 = vpack.c.b16 %v3190, %v3182
        %v3751 = vpack.c.b16 %v3191, %v3183
        %v3752 = vpack.c.b16 %v3200, %v3192
        %v3753 = vpack.c.b16 %v3201, %v3193
        %v3754 = vpack.c.b16 %v3202, %v3194
        %v3755 = vpack.c.b16 %v3203, %v3195
        %v3756 = vpack.c.b16 %v3204, %v3196
        %v3757 = vpack.c.b16 %v3205, %v3197
        %v3758 = vpack.c.b16 %v3206, %v3198
        %v3759 = vpack.c.b16 %v3207, %v3199
        %v3760 = vpack.c.b16 %v3216, %v3208
        %v3761 = vpack.c.b16 %v3217, %v3209
        %v3762 = vpack.c.b16 %v3218, %v3210
        %v3763 = vpack.c.b16 %v3219, %v3211
        %v3764 = vpack.c.b16 %v3220, %v3212
        %v3765 = vpack.c.b16 %v3221, %v3213
        %v3766 = vpack.c.b16 %v3222, %v3214
        %v3767 = vpack.c.b16 %v3223, %v3215
        %v3768 = vpack.c.b16 %v3232, %v3224
        %v3769 = vpack.c.b16 %v3233, %v3225
        %v3770 = vpack.c.b16 %v3234, %v3226
        %v3771 = vpack.c.b16 %v3235, %v3227
        %v3772 = vpack.c.b16 %v3236, %v3228
        %v3773 = vpack.c.b16 %v3237, %v3229
        %v3774 = vpack.c.b16 %v3238, %v3230
        %v3775 = vpack.c.b16 %v3239, %v3231
        %v3776 = vpack.c.b16 %v3248, %v3240
        %v3777 = vpack.c.b16 %v3249, %v3241
        %v3778 = vpack.c.b16 %v3250, %v3242
        %v3779 = vpack.c.b16 %v3251, %v3243
        %v3780 = vpack.c.b16 %v3252, %v3244
        %v3781 = vpack.c.b16 %v3253, %v3245
        %v3782 = vpack.c.b16 %v3254, %v3246
        %v3783 = vpack.c.b16 %v3255, %v3247
        %v3784 = vpack.c.b16 %v3264, %v3256
        %v3785 = vpack.c.b16 %v3265, %v3257
        %v3786 = vpack.c.b16 %v3266, %v3258
        %v3787 = vpack.c.b16 %v3267, %v3259
        %v3788 = vpack.c.b16 %v3268, %v3260
        %v3789 = vpack.c.b16 %v3269, %v3261
        %v3790 = vpack.c.b16 %v3270, %v3262
        %v3791 = vpack.c.b16 %v3271, %v3263
        %v3792 = vpack.c.b16 %v3280, %v3272
        %v3793 = vpack.c.b16 %v3281, %v3273
        %v3794 = vpack.c.b16 %v3282, %v3274
        %v3795 = vpack.c.b16 %v3283, %v3275
        %v3796 = vpack.c.b16 %v3284, %v3276
        %v3797 = vpack.c.b16 %v3285, %v3277
        %v3798 = vpack.c.b16 %v3286, %v3278
        %v3799 = vpack.c.b16 %v3287, %v3279
        %v3800 = vpack.c.b16 %v3296, %v3288
        %v3801 = vpack.c.b16 %v3297, %v3289
        %v3802 = vpack.c.b16 %v3298, %v3290
        %v3803 = vpack.c.b16 %v3299, %v3291
        %v3804 = vpack.c.b16 %v3300, %v3292
        %v3805 = vpack.c.b16 %v3301, %v3293
        %v3806 = vpack.c.b16 %v3302, %v3294
        %v3807 = vpack.c.b16 %v3303, %v3295
        %v3808 = vpack.c.b16 %v3304, %v3304
        %v3809 = vpack.c.b16 %v3305, %v3305
        %v3810 = vpack.c.b16 %v3306, %v3306
        %v3811 = vpack.c.b16 %v3307, %v3307
        %v3812 = vpack.c.b16 %v3308, %v3308
        %v3813 = vpack.c.b16 %v3309, %v3309
        %v3814 = vpack.c.b16 %v3310, %v3310
        %v3815 = vpack.c.b16 %v3311, %v3311
        %vm4312 = vcmask 850944
        %v4314 = vsel %vm4312, %v1804, 0
        %vm4316 = vcmask 1043456
        %v4318 = vsel %vm4316, %v3808, 0
        %v4321 = vsel %vm4316, %v3809, 0
        %v4324 = vsel %vm4316, %v3810, 0
        %v4327 = vsel %vm4316, %v3811, 0
        %v4330 = vsel %vm4316, %v3812, 0
        %v4333 = vsel %vm4316, %v3813, 0
        %v4336 = vsel %vm4316, %v3814, 0
        %v4339 = vsel %vm4316, %v3815, 0
        %4341 = vmatprep.subr.bf16.mxu0 %v3313
        %4342 = vmatpush1.bf16.msra.mxu0 %v3312
        %4343 = vmatprep.subr.bf16.mxu0 %v3321
        %4344 = vmatpush1.bf16.msra.mxu0 %v3320
        %4345 = vmatprep.subr.bf16.mxu0 %v3329
        %4346 = vmatpush1.bf16.msra.mxu0 %v3328
        %4347 = vmatprep.subr.bf16.mxu0 %v3337
        %4348 = vmatpush1.bf16.msra.mxu0 %v3336
        %4349 = vmatprep.subr.bf16.mxu0 %v3345
        %4350 = vmatpush1.bf16.msra.mxu0 %v3344
        %4351 = vmatprep.subr.bf16.mxu0 %v3353
        %4352 = vmatpush1.bf16.msra.mxu0 %v3352
        %4353 = vmatprep.subr.bf16.mxu0 %v3361
        %4354 = vmatpush1.bf16.msra.mxu0 %v3360
        %4355 = vmatprep.subr.bf16.mxu0 %v3369
        %4356 = vmatpush1.bf16.msra.mxu0 %v3368
        %4357 = vmatprep.subr.bf16.mxu0 %v3377
        %4358 = vmatpush1.bf16.msra.mxu0 %v3376
        %4359 = vmatprep.subr.bf16.mxu0 %v3385
        %4360 = vmatpush1.bf16.msra.mxu0 %v3384
        %4361 = vmatprep.subr.bf16.mxu0 %v3393
        %4362 = vmatpush1.bf16.msra.mxu0 %v3392
        %4363 = vmatprep.subr.bf16.mxu0 %v3401
        %4364 = vmatpush1.bf16.msra.mxu0 %v3400
        %4365 = vmatprep.subr.bf16.mxu0 %v3409
        %4366 = vmatpush1.bf16.msra.mxu0 %v3408
        %4367 = vmatprep.subr.bf16.mxu0 %v3417
        %4368 = vmatpush1.bf16.msra.mxu0 %v3416
        %4369 = vmatprep.subr.bf16.mxu0 %v3425
        %4370 = vmatpush1.bf16.msra.mxu0 %v3424
        %4371 = vmatprep.subr.bf16.mxu0 %v3433
        %4372 = vmatpush1.bf16.msra.mxu0 %v3432
        %4373 = vmatprep.mubr.bf16.mxu0 %v1798
        %4374 = vmatmul.mubr.bf16.gmra.mrb[0].mxu0 %v1797
        %v4375 = vpop.f32.mrb[0].mxu0
        %v4376 = vadd.f32 0.0, %v4375
        %v4377 = vpop.f32.mrb[0].mxu0
        %v4378 = vadd.f32 0.0, %v4377
        %v4379 = vpop.f32.mrb[0].mxu0
        %v4380 = vpop.f32.mrb[0].mxu0
        %4381 = vdwg.mxu0
        %4382 = vmatprep.subr.bf16.mxu0 %v3441
        %4383 = vmatpush1.bf16.msra.mxu0 %v3440
        %4384 = vmatprep.subr.bf16.mxu0 %v3449
        %4385 = vmatpush1.bf16.msra.mxu0 %v3448
        %4386 = vmatprep.subr.bf16.mxu0 %v3457
        %4387 = vmatpush1.bf16.msra.mxu0 %v3456
        %4388 = vmatprep.subr.bf16.mxu0 %v3465
        %4389 = vmatpush1.bf16.msra.mxu0 %v3464
        %4390 = vmatprep.subr.bf16.mxu0 %v3473
        %4391 = vmatpush1.bf16.msra.mxu0 %v3472
        %4392 = vmatprep.subr.bf16.mxu0 %v3481
        %4393 = vmatpush1.bf16.msra.mxu0 %v3480
        %4394 = vmatprep.subr.bf16.mxu0 %v3489
        %4395 = vmatpush1.bf16.msra.mxu0 %v3488
        %4396 = vmatprep.subr.bf16.mxu0 %v3497
        %4397 = vmatpush1.bf16.msra.mxu0 %v3496
        %4398 = vmatprep.subr.bf16.mxu0 %v3505
        %4399 = vmatpush1.bf16.msra.mxu0 %v3504
        %4400 = vmatprep.subr.bf16.mxu0 %v3513
        %4401 = vmatpush1.bf16.msra.mxu0 %v3512
        %4402 = vmatprep.subr.bf16.mxu0 %v3521
        %4403 = vmatpush1.bf16.msra.mxu0 %v3520
        %4404 = vmatprep.subr.bf16.mxu0 %v3529
        %4405 = vmatpush1.bf16.msra.mxu0 %v3528
        %4406 = vmatprep.subr.bf16.mxu0 %v3537
        %4407 = vmatpush1.bf16.msra.mxu0 %v3536
        %4408 = vmatprep.subr.bf16.mxu0 %v3545
        %4409 = vmatpush1.bf16.msra.mxu0 %v3544
        %4410 = vmatprep.subr.bf16.mxu0 %v3553
        %4411 = vmatpush1.bf16.msra.mxu0 %v3552
        %4412 = vmatprep.subr.bf16.mxu0 %v3561
        %4413 = vmatpush1.bf16.msra.mxu0 %v3560
        %4414 = vmatprep.mubr.bf16.mxu0 %v1800
        %4415 = vmatmul.mubr.bf16.gmra.mrb[0].mxu0 %v1799
        %v4416 = vpop.f32.mrb[0].mxu0
        %v4417 = vadd.f32 %v4376, %v4416
        %v4418 = vpop.f32.mrb[0].mxu0
        %v4419 = vadd.f32 %v4378, %v4418
        %v4420 = vpop.f32.mrb[0].mxu0
        %v4421 = vpop.f32.mrb[0].mxu0
        %4422 = vdwg.mxu0
        %4423 = vmatprep.subr.bf16.mxu0 %v3569
        %4424 = vmatpush1.bf16.msra.mxu0 %v3568
        %4425 = vmatprep.subr.bf16.mxu0 %v3577
        %4426 = vmatpush1.bf16.msra.mxu0 %v3576
        %4427 = vmatprep.subr.bf16.mxu0 %v3585
        %4428 = vmatpush1.bf16.msra.mxu0 %v3584
        %4429 = vmatprep.subr.bf16.mxu0 %v3593
        %4430 = vmatpush1.bf16.msra.mxu0 %v3592
        %4431 = vmatprep.subr.bf16.mxu0 %v3601
        %4432 = vmatpush1.bf16.msra.mxu0 %v3600
        %4433 = vmatprep.subr.bf16.mxu0 %v3609
        %4434 = vmatpush1.bf16.msra.mxu0 %v3608
        %4435 = vmatprep.subr.bf16.mxu0 %v3617
        %4436 = vmatpush1.bf16.msra.mxu0 %v3616
        %4437 = vmatprep.subr.bf16.mxu0 %v3625
        %4438 = vmatpush1.bf16.msra.mxu0 %v3624
        %4439 = vmatprep.subr.bf16.mxu0 %v3633
        %4440 = vmatpush1.bf16.msra.mxu0 %v3632
        %4441 = vmatprep.subr.bf16.mxu0 %v3641
        %4442 = vmatpush1.bf16.msra.mxu0 %v3640
        %4443 = vmatprep.subr.bf16.mxu0 %v3649
        %4444 = vmatpush1.bf16.msra.mxu0 %v3648
        %4445 = vmatprep.subr.bf16.mxu0 %v3657
        %4446 = vmatpush1.bf16.msra.mxu0 %v3656
        %4447 = vmatprep.subr.bf16.mxu0 %v3665
        %4448 = vmatpush1.bf16.msra.mxu0 %v3664
        %4449 = vmatprep.subr.bf16.mxu0 %v3673
        %4450 = vmatpush1.bf16.msra.mxu0 %v3672
        %4451 = vmatprep.subr.bf16.mxu0 %v3681
        %4452 = vmatpush1.bf16.msra.mxu0 %v3680
        %4453 = vmatprep.subr.bf16.mxu0 %v3689
        %4454 = vmatpush1.bf16.msra.mxu0 %v3688
        %4455 = vmatprep.mubr.bf16.mxu0 %v1802
        %4456 = vmatmul.mubr.bf16.gmra.mrb[0].mxu0 %v1801
        %v4457 = vpop.f32.mrb[0].mxu0
        %v4458 = vadd.f32 %v4417, %v4457
        %v4459 = vpop.f32.mrb[0].mxu0
        %v4460 = vadd.f32 %v4419, %v4459
        %v4461 = vpop.f32.mrb[0].mxu0
        %v4462 = vpop.f32.mrb[0].mxu0
        %4463 = vdwg.mxu0
        %4464 = vmatprep.subr.bf16.mxu0 %v3697
        %4465 = vmatpush1.bf16.msra.mxu0 %v3696
        %4466 = vmatprep.subr.bf16.mxu0 %v3705
        %4467 = vmatpush1.bf16.msra.mxu0 %v3704
        %4468 = vmatprep.subr.bf16.mxu0 %v3713
        %4469 = vmatpush1.bf16.msra.mxu0 %v3712
        %4470 = vmatprep.subr.bf16.mxu0 %v3721
        %4471 = vmatpush1.bf16.msra.mxu0 %v3720
        %4472 = vmatprep.subr.bf16.mxu0 %v3729
        %4473 = vmatpush1.bf16.msra.mxu0 %v3728
        %4474 = vmatprep.subr.bf16.mxu0 %v3737
        %4475 = vmatpush1.bf16.msra.mxu0 %v3736
        %4476 = vmatprep.subr.bf16.mxu0 %v3745
        %4477 = vmatpush1.bf16.msra.mxu0 %v3744
        %4478 = vmatprep.subr.bf16.mxu0 %v3753
        %4479 = vmatpush1.bf16.msra.mxu0 %v3752
        %4480 = vmatprep.subr.bf16.mxu0 %v3761
        %4481 = vmatpush1.bf16.msra.mxu0 %v3760
        %4482 = vmatprep.subr.bf16.mxu0 %v3769
        %4483 = vmatpush1.bf16.msra.mxu0 %v3768
        %4484 = vmatprep.subr.bf16.mxu0 %v3777
        %4485 = vmatpush1.bf16.msra.mxu0 %v3776
        %4486 = vmatprep.subr.bf16.mxu0 %v3785
        %4487 = vmatpush1.bf16.msra.mxu0 %v3784
        %4488 = vmatprep.subr.bf16.mxu0 %v3793
        %4489 = vmatpush1.bf16.msra.mxu0 %v3792
        %4490 = vmatprep.subr.bf16.mxu0 %v3801
        %4491 = vmatpush1.bf16.msra.mxu0 %v3800
        %4492 = vmatprep.subr.bf16.mxu0 %v4321
        %4493 = vmatpush1.bf16.msra.mxu0 %v4318
        %4494 = vmatprep.subr.bf16.mxu0 0
        %4495 = vmatpush1.bf16.msra.mxu0 0
        %4496 = vmatprep.mubr.bf16.mxu0 %v4314
        %4497 = vmatmul.mubr.bf16.gmra.mrb[0].mxu0 %v1803
        %v4498 = vpop.f32.mrb[0].mxu0
        %v4499 = vadd.f32 %v4458, %v4498
        %v4500 = vpop.f32.mrb[0].mxu0
        %v4501 = vadd.f32 %v4460, %v4500
        %v4502 = vpop.f32.mrb[0].mxu0
        %v4503 = vpop.f32.mrb[0].mxu0
        %4504 = vdwg.mxu0
        %4505 = vmatprep.subr.bf16.mxu0 %v3315
        %4506 = vmatpush1.bf16.msra.mxu0 %v3314
        %4507 = vmatprep.subr.bf16.mxu0 %v3323
        %4508 = vmatpush1.bf16.msra.mxu0 %v3322
        %4509 = vmatprep.subr.bf16.mxu0 %v3331
        %4510 = vmatpush1.bf16.msra.mxu0 %v3330
        %4511 = vmatprep.subr.bf16.mxu0 %v3339
        %4512 = vmatpush1.bf16.msra.mxu0 %v3338
        %4513 = vmatprep.subr.bf16.mxu0 %v3347
        %4514 = vmatpush1.bf16.msra.mxu0 %v3346
        %4515 = vmatprep.subr.bf16.mxu0 %v3355
        %4516 = vmatpush1.bf16.msra.mxu0 %v3354
        %4517 = vmatprep.subr.bf16.mxu0 %v3363
        %4518 = vmatpush1.bf16.msra.mxu0 %v3362
        %4519 = vmatprep.subr.bf16.mxu0 %v3371
        %4520 = vmatpush1.bf16.msra.mxu0 %v3370
        %4521 = vmatprep.subr.bf16.mxu0 %v3379
        %4522 = vmatpush1.bf16.msra.mxu0 %v3378
        %4523 = vmatprep.subr.bf16.mxu0 %v3387
        %4524 = vmatpush1.bf16.msra.mxu0 %v3386
        %4525 = vmatprep.subr.bf16.mxu0 %v3395
        %4526 = vmatpush1.bf16.msra.mxu0 %v3394
        %4527 = vmatprep.subr.bf16.mxu0 %v3403
        %4528 = vmatpush1.bf16.msra.mxu0 %v3402
        %4529 = vmatprep.subr.bf16.mxu0 %v3411
        %4530 = vmatpush1.bf16.msra.mxu0 %v3410
        %4531 = vmatprep.subr.bf16.mxu0 %v3419
        %4532 = vmatpush1.bf16.msra.mxu0 %v3418
        %4533 = vmatprep.subr.bf16.mxu0 %v3427
        %4534 = vmatpush1.bf16.msra.mxu0 %v3426
        %4535 = vmatprep.subr.bf16.mxu0 %v3435
        %4536 = vmatpush1.bf16.msra.mxu0 %v3434
        %4537 = vmatprep.mubr.bf16.mxu0 %v1798
        %4538 = vmatmul.mubr.bf16.gmra.mrb[0].mxu0 %v1797
        %v4539 = vpop.f32.mrb[0].mxu0
        %v4540 = vadd.f32 0.0, %v4539
        %v4541 = vpop.f32.mrb[0].mxu0
        %v4542 = vadd.f32 0.0, %v4541
        %v4543 = vpop.f32.mrb[0].mxu0
        %v4544 = vpop.f32.mrb[0].mxu0
        %4545 = vdwg.mxu0
        %4546 = vmatprep.subr.bf16.mxu0 %v3443
        %4547 = vmatpush1.bf16.msra.mxu0 %v3442
        %4548 = vmatprep.subr.bf16.mxu0 %v3451
        %4549 = vmatpush1.bf16.msra.mxu0 %v3450
        %4550 = vmatprep.subr.bf16.mxu0 %v3459
        %4551 = vmatpush1.bf16.msra.mxu0 %v3458
        %4552 = vmatprep.subr.bf16.mxu0 %v3467
        %4553 = vmatpush1.bf16.msra.mxu0 %v3466
        %4554 = vmatprep.subr.bf16.mxu0 %v3475
        %4555 = vmatpush1.bf16.msra.mxu0 %v3474
        %4556 = vmatprep.subr.bf16.mxu0 %v3483
        %4557 = vmatpush1.bf16.msra.mxu0 %v3482
        %4558 = vmatprep.subr.bf16.mxu0 %v3491
        %4559 = vmatpush1.bf16.msra.mxu0 %v3490
        %4560 = vmatprep.subr.bf16.mxu0 %v3499
        %4561 = vmatpush1.bf16.msra.mxu0 %v3498
        %4562 = vmatprep.subr.bf16.mxu0 %v3507
        %4563 = vmatpush1.bf16.msra.mxu0 %v3506
        %4564 = vmatprep.subr.bf16.mxu0 %v3515
        %4565 = vmatpush1.bf16.msra.mxu0 %v3514
        %4566 = vmatprep.subr.bf16.mxu0 %v3523
        %4567 = vmatpush1.bf16.msra.mxu0 %v3522
        %4568 = vmatprep.subr.bf16.mxu0 %v3531
        %4569 = vmatpush1.bf16.msra.mxu0 %v3530
        %4570 = vmatprep.subr.bf16.mxu0 %v3539
        %4571 = vmatpush1.bf16.msra.mxu0 %v3538
        %4572 = vmatprep.subr.bf16.mxu0 %v3547
        %4573 = vmatpush1.bf16.msra.mxu0 %v3546
        %4574 = vmatprep.subr.bf16.mxu0 %v3555
        %4575 = vmatpush1.bf16.msra.mxu0 %v3554
        %4576 = vmatprep.subr.bf16.mxu0 %v3563
        %4577 = vmatpush1.bf16.msra.mxu0 %v3562
        %4578 = vmatprep.mubr.bf16.mxu0 %v1800
        %4579 = vmatmul.mubr.bf16.gmra.mrb[0].mxu0 %v1799
        %v4580 = vpop.f32.mrb[0].mxu0
        %v4581 = vadd.f32 %v4540, %v4580
        %v4582 = vpop.f32.mrb[0].mxu0
        %v4583 = vadd.f32 %v4542, %v4582
        %v4584 = vpop.f32.mrb[0].mxu0
        %v4585 = vpop.f32.mrb[0].mxu0
        %4586 = vdwg.mxu0
        %4587 = vmatprep.subr.bf16.mxu0 %v3571
        %4588 = vmatpush1.bf16.msra.mxu0 %v3570
        %4589 = vmatprep.subr.bf16.mxu0 %v3579
        %4590 = vmatpush1.bf16.msra.mxu0 %v3578
        %4591 = vmatprep.subr.bf16.mxu0 %v3587
        %4592 = vmatpush1.bf16.msra.mxu0 %v3586
        %4593 = vmatprep.subr.bf16.mxu0 %v3595
        %4594 = vmatpush1.bf16.msra.mxu0 %v3594
        %4595 = vmatprep.subr.bf16.mxu0 %v3603
        %4596 = vmatpush1.bf16.msra.mxu0 %v3602
        %4597 = vmatprep.subr.bf16.mxu0 %v3611
        %4598 = vmatpush1.bf16.msra.mxu0 %v3610
        %4599 = vmatprep.subr.bf16.mxu0 %v3619
        %4600 = vmatpush1.bf16.msra.mxu0 %v3618
        %4601 = vmatprep.subr.bf16.mxu0 %v3627
        %4602 = vmatpush1.bf16.msra.mxu0 %v3626
        %4603 = vmatprep.subr.bf16.mxu0 %v3635
        %4604 = vmatpush1.bf16.msra.mxu0 %v3634
        %4605 = vmatprep.subr.bf16.mxu0 %v3643
        %4606 = vmatpush1.bf16.msra.mxu0 %v3642
        %4607 = vmatprep.subr.bf16.mxu0 %v3651
        %4608 = vmatpush1.bf16.msra.mxu0 %v3650
        %4609 = vmatprep.subr.bf16.mxu0 %v3659
        %4610 = vmatpush1.bf16.msra.mxu0 %v3658
        %4611 = vmatprep.subr.bf16.mxu0 %v3667
        %4612 = vmatpush1.bf16.msra.mxu0 %v3666
        %4613 = vmatprep.subr.bf16.mxu0 %v3675
        %4614 = vmatpush1.bf16.msra.mxu0 %v3674
        %4615 = vmatprep.subr.bf16.mxu0 %v3683
        %4616 = vmatpush1.bf16.msra.mxu0 %v3682
        %4617 = vmatprep.subr.bf16.mxu0 %v3691
        %4618 = vmatpush1.bf16.msra.mxu0 %v3690
        %4619 = vmatprep.mubr.bf16.mxu0 %v1802
        %4620 = vmatmul.mubr.bf16.gmra.mrb[0].mxu0 %v1801
        %v4621 = vpop.f32.mrb[0].mxu0
        %v4622 = vadd.f32 %v4581, %v4621
        %v4623 = vpop.f32.mrb[0].mxu0
        %v4624 = vadd.f32 %v4583, %v4623
        %v4625 = vpop.f32.mrb[0].mxu0
        %v4626 = vpop.f32.mrb[0].mxu0
        %4627 = vdwg.mxu0
        %4628 = vmatprep.subr.bf16.mxu0 %v3699
        %4629 = vmatpush1.bf16.msra.mxu0 %v3698
        %4630 = vmatprep.subr.bf16.mxu0 %v3707
        %4631 = vmatpush1.bf16.msra.mxu0 %v3706
        %4632 = vmatprep.subr.bf16.mxu0 %v3715
        %4633 = vmatpush1.bf16.msra.mxu0 %v3714
        %4634 = vmatprep.subr.bf16.mxu0 %v3723
        %4635 = vmatpush1.bf16.msra.mxu0 %v3722
        %4636 = vmatprep.subr.bf16.mxu0 %v3731
        %4637 = vmatpush1.bf16.msra.mxu0 %v3730
        %4638 = vmatprep.subr.bf16.mxu0 %v3739
        %4639 = vmatpush1.bf16.msra.mxu0 %v3738
        %4640 = vmatprep.subr.bf16.mxu0 %v3747
        %4641 = vmatpush1.bf16.msra.mxu0 %v3746
        %4642 = vmatprep.subr.bf16.mxu0 %v3755
        %4643 = vmatpush1.bf16.msra.mxu0 %v3754
        %4644 = vmatprep.subr.bf16.mxu0 %v3763
        %4645 = vmatpush1.bf16.msra.mxu0 %v3762
        %4646 = vmatprep.subr.bf16.mxu0 %v3771
        %4647 = vmatpush1.bf16.msra.mxu0 %v3770
        %4648 = vmatprep.subr.bf16.mxu0 %v3779
        %4649 = vmatpush1.bf16.msra.mxu0 %v3778
        %4650 = vmatprep.subr.bf16.mxu0 %v3787
        %4651 = vmatpush1.bf16.msra.mxu0 %v3786
        %4652 = vmatprep.subr.bf16.mxu0 %v3795
        %4653 = vmatpush1.bf16.msra.mxu0 %v3794
        %4654 = vmatprep.subr.bf16.mxu0 %v3803
        %4655 = vmatpush1.bf16.msra.mxu0 %v3802
        %4656 = vmatprep.subr.bf16.mxu0 %v4327
        %4657 = vmatpush1.bf16.msra.mxu0 %v4324
        %4658 = vmatprep.subr.bf16.mxu0 0
        %4659 = vmatpush1.bf16.msra.mxu0 0
        %4660 = vmatprep.mubr.bf16.mxu0 %v4314
        %4661 = vmatmul.mubr.bf16.gmra.mrb[0].mxu0 %v1803
        %v4662 = vpop.f32.mrb[0].mxu0
        %v4663 = vadd.f32 %v4622, %v4662
        %v4664 = vpop.f32.mrb[0].mxu0
        %v4665 = vadd.f32 %v4624, %v4664
        %v4666 = vpop.f32.mrb[0].mxu0
        %v4667 = vpop.f32.mrb[0].mxu0
        %4668 = vdwg.mxu0
        %4669 = vmatprep.subr.bf16.mxu0 %v3317
        %4670 = vmatpush1.bf16.msra.mxu0 %v3316
        %4671 = vmatprep.subr.bf16.mxu0 %v3325
        %4672 = vmatpush1.bf16.msra.mxu0 %v3324
        %4673 = vmatprep.subr.bf16.mxu0 %v3333
        %4674 = vmatpush1.bf16.msra.mxu0 %v3332
        %4675 = vmatprep.subr.bf16.mxu0 %v3341
        %4676 = vmatpush1.bf16.msra.mxu0 %v3340
        %4677 = vmatprep.subr.bf16.mxu0 %v3349
        %4678 = vmatpush1.bf16.msra.mxu0 %v3348
        %4679 = vmatprep.subr.bf16.mxu0 %v3357
        %4680 = vmatpush1.bf16.msra.mxu0 %v3356
        %4681 = vmatprep.subr.bf16.mxu0 %v3365
        %4682 = vmatpush1.bf16.msra.mxu0 %v3364
        %4683 = vmatprep.subr.bf16.mxu0 %v3373
        %4684 = vmatpush1.bf16.msra.mxu0 %v3372
        %4685 = vmatprep.subr.bf16.mxu0 %v3381
        %4686 = vmatpush1.bf16.msra.mxu0 %v3380
        %4687 = vmatprep.subr.bf16.mxu0 %v3389
        %4688 = vmatpush1.bf16.msra.mxu0 %v3388
        %4689 = vmatprep.subr.bf16.mxu0 %v3397
        %4690 = vmatpush1.bf16.msra.mxu0 %v3396
        %4691 = vmatprep.subr.bf16.mxu0 %v3405
        %4692 = vmatpush1.bf16.msra.mxu0 %v3404
        %4693 = vmatprep.subr.bf16.mxu0 %v3413
        %4694 = vmatpush1.bf16.msra.mxu0 %v3412
        %4695 = vmatprep.subr.bf16.mxu0 %v3421
        %4696 = vmatpush1.bf16.msra.mxu0 %v3420
        %4697 = vmatprep.subr.bf16.mxu0 %v3429
        %4698 = vmatpush1.bf16.msra.mxu0 %v3428
        %4699 = vmatprep.subr.bf16.mxu0 %v3437
        %4700 = vmatpush1.bf16.msra.mxu0 %v3436
        %4701 = vmatprep.mubr.bf16.mxu0 %v1798
        %4702 = vmatmul.mubr.bf16.gmra.mrb[0].mxu0 %v1797
        %v4703 = vpop.f32.mrb[0].mxu0
        %v4704 = vadd.f32 0.0, %v4703
        %v4705 = vpop.f32.mrb[0].mxu0
        %v4706 = vadd.f32 0.0, %v4705
        %v4707 = vpop.f32.mrb[0].mxu0
        %v4708 = vpop.f32.mrb[0].mxu0
        %4709 = vdwg.mxu0
        %4710 = vmatprep.subr.bf16.mxu0 %v3445
        %4711 = vmatpush1.bf16.msra.mxu0 %v3444
        %4712 = vmatprep.subr.bf16.mxu0 %v3453
        %4713 = vmatpush1.bf16.msra.mxu0 %v3452
        %4714 = vmatprep.subr.bf16.mxu0 %v3461
        %4715 = vmatpush1.bf16.msra.mxu0 %v3460
        %4716 = vmatprep.subr.bf16.mxu0 %v3469
        %4717 = vmatpush1.bf16.msra.mxu0 %v3468
        %4718 = vmatprep.subr.bf16.mxu0 %v3477
        %4719 = vmatpush1.bf16.msra.mxu0 %v3476
        %4720 = vmatprep.subr.bf16.mxu0 %v3485
        %4721 = vmatpush1.bf16.msra.mxu0 %v3484
        %4722 = vmatprep.subr.bf16.mxu0 %v3493
        %4723 = vmatpush1.bf16.msra.mxu0 %v3492
        %4724 = vmatprep.subr.bf16.mxu0 %v3501
        %4725 = vmatpush1.bf16.msra.mxu0 %v3500
        %4726 = vmatprep.subr.bf16.mxu0 %v3509
        %4727 = vmatpush1.bf16.msra.mxu0 %v3508
        %4728 = vmatprep.subr.bf16.mxu0 %v3517
        %4729 = vmatpush1.bf16.msra.mxu0 %v3516
        %4730 = vmatprep.subr.bf16.mxu0 %v3525
        %4731 = vmatpush1.bf16.msra.mxu0 %v3524
        %4732 = vmatprep.subr.bf16.mxu0 %v3533
        %4733 = vmatpush1.bf16.msra.mxu0 %v3532
        %4734 = vmatprep.subr.bf16.mxu0 %v3541
        %4735 = vmatpush1.bf16.msra.mxu0 %v3540
        %4736 = vmatprep.subr.bf16.mxu0 %v3549
        %4737 = vmatpush1.bf16.msra.mxu0 %v3548
        %4738 = vmatprep.subr.bf16.mxu0 %v3557
        %4739 = vmatpush1.bf16.msra.mxu0 %v3556
        %4740 = vmatprep.subr.bf16.mxu0 %v3565
        %4741 = vmatpush1.bf16.msra.mxu0 %v3564
        %4742 = vmatprep.mubr.bf16.mxu0 %v1800
        %4743 = vmatmul.mubr.bf16.gmra.mrb[0].mxu0 %v1799
        %v4744 = vpop.f32.mrb[0].mxu0
        %v4745 = vadd.f32 %v4704, %v4744
        %v4746 = vpop.f32.mrb[0].mxu0
        %v4747 = vadd.f32 %v4706, %v4746
        %v4748 = vpop.f32.mrb[0].mxu0
        %v4749 = vpop.f32.mrb[0].mxu0
        %4750 = vdwg.mxu0
        %4751 = vmatprep.subr.bf16.mxu0 %v3573
        %4752 = vmatpush1.bf16.msra.mxu0 %v3572
        %4753 = vmatprep.subr.bf16.mxu0 %v3581
        %4754 = vmatpush1.bf16.msra.mxu0 %v3580
        %4755 = vmatprep.subr.bf16.mxu0 %v3589
        %4756 = vmatpush1.bf16.msra.mxu0 %v3588
        %4757 = vmatprep.subr.bf16.mxu0 %v3597
        %4758 = vmatpush1.bf16.msra.mxu0 %v3596
        %4759 = vmatprep.subr.bf16.mxu0 %v3605
        %4760 = vmatpush1.bf16.msra.mxu0 %v3604
        %4761 = vmatprep.subr.bf16.mxu0 %v3613
        %4762 = vmatpush1.bf16.msra.mxu0 %v3612
        %4763 = vmatprep.subr.bf16.mxu0 %v3621
        %4764 = vmatpush1.bf16.msra.mxu0 %v3620
        %4765 = vmatprep.subr.bf16.mxu0 %v3629
        %4766 = vmatpush1.bf16.msra.mxu0 %v3628
        %4767 = vmatprep.subr.bf16.mxu0 %v3637
        %4768 = vmatpush1.bf16.msra.mxu0 %v3636
        %4769 = vmatprep.subr.bf16.mxu0 %v3645
        %4770 = vmatpush1.bf16.msra.mxu0 %v3644
        %4771 = vmatprep.subr.bf16.mxu0 %v3653
        %4772 = vmatpush1.bf16.msra.mxu0 %v3652
        %4773 = vmatprep.subr.bf16.mxu0 %v3661
        %4774 = vmatpush1.bf16.msra.mxu0 %v3660
        %4775 = vmatprep.subr.bf16.mxu0 %v3669
        %4776 = vmatpush1.bf16.msra.mxu0 %v3668
        %4777 = vmatprep.subr.bf16.mxu0 %v3677
        %4778 = vmatpush1.bf16.msra.mxu0 %v3676
        %4779 = vmatprep.subr.bf16.mxu0 %v3685
        %4780 = vmatpush1.bf16.msra.mxu0 %v3684
        %4781 = vmatprep.subr.bf16.mxu0 %v3693
        %4782 = vmatpush1.bf16.msra.mxu0 %v3692
        %4783 = vmatprep.mubr.bf16.mxu0 %v1802
        %4784 = vmatmul.mubr.bf16.gmra.mrb[0].mxu0 %v1801
        %v4785 = vpop.f32.mrb[0].mxu0
        %v4786 = vadd.f32 %v4745, %v4785
        %v4787 = vpop.f32.mrb[0].mxu0
        %v4788 = vadd.f32 %v4747, %v4787
        %v4789 = vpop.f32.mrb[0].mxu0
        %v4790 = vpop.f32.mrb[0].mxu0
        %4791 = vdwg.mxu0
        %4792 = vmatprep.subr.bf16.mxu0 %v3701
        %4793 = vmatpush1.bf16.msra.mxu0 %v3700
        %4794 = vmatprep.subr.bf16.mxu0 %v3709
        %4795 = vmatpush1.bf16.msra.mxu0 %v3708
        %4796 = vmatprep.subr.bf16.mxu0 %v3717
        %4797 = vmatpush1.bf16.msra.mxu0 %v3716
        %4798 = vmatprep.subr.bf16.mxu0 %v3725
        %4799 = vmatpush1.bf16.msra.mxu0 %v3724
        %4800 = vmatprep.subr.bf16.mxu0 %v3733
        %4801 = vmatpush1.bf16.msra.mxu0 %v3732
        %4802 = vmatprep.subr.bf16.mxu0 %v3741
        %4803 = vmatpush1.bf16.msra.mxu0 %v3740
        %4804 = vmatprep.subr.bf16.mxu0 %v3749
        %4805 = vmatpush1.bf16.msra.mxu0 %v3748
        %4806 = vmatprep.subr.bf16.mxu0 %v3757
        %4807 = vmatpush1.bf16.msra.mxu0 %v3756
        %4808 = vmatprep.subr.bf16.mxu0 %v3765
        %4809 = vmatpush1.bf16.msra.mxu0 %v3764
        %4810 = vmatprep.subr.bf16.mxu0 %v3773
        %4811 = vmatpush1.bf16.msra.mxu0 %v3772
        %4812 = vmatprep.subr.bf16.mxu0 %v3781
        %4813 = vmatpush1.bf16.msra.mxu0 %v3780
        %4814 = vmatprep.subr.bf16.mxu0 %v3789
        %4815 = vmatpush1.bf16.msra.mxu0 %v3788
        %4816 = vmatprep.subr.bf16.mxu0 %v3797
        %4817 = vmatpush1.bf16.msra.mxu0 %v3796
        %4818 = vmatprep.subr.bf16.mxu0 %v3805
        %4819 = vmatpush1.bf16.msra.mxu0 %v3804
        %4820 = vmatprep.subr.bf16.mxu0 %v4333
        %4821 = vmatpush1.bf16.msra.mxu0 %v4330
        %4822 = vmatprep.subr.bf16.mxu0 0
        %4823 = vmatpush1.bf16.msra.mxu0 0
        %4824 = vmatprep.mubr.bf16.mxu0 %v4314
        %4825 = vmatmul.mubr.bf16.gmra.mrb[0].mxu0 %v1803
        %v4826 = vpop.f32.mrb[0].mxu0
        %v4827 = vadd.f32 %v4786, %v4826
        %v4828 = vpop.f32.mrb[0].mxu0
        %v4829 = vadd.f32 %v4788, %v4828
        %v4830 = vpop.f32.mrb[0].mxu0
        %v4831 = vpop.f32.mrb[0].mxu0
        %4832 = vdwg.mxu0
        %4833 = vmatprep.subr.bf16.mxu0 %v3319
        %4834 = vmatpush1.bf16.msra.mxu0 %v3318
        %4835 = vmatprep.subr.bf16.mxu0 %v3327
        %4836 = vmatpush1.bf16.msra.mxu0 %v3326
        %4837 = vmatprep.subr.bf16.mxu0 %v3335
        %4838 = vmatpush1.bf16.msra.mxu0 %v3334
        %4839 = vmatprep.subr.bf16.mxu0 %v3343
        %4840 = vmatpush1.bf16.msra.mxu0 %v3342
        %4841 = vmatprep.subr.bf16.mxu0 %v3351
        %4842 = vmatpush1.bf16.msra.mxu0 %v3350
        %4843 = vmatprep.subr.bf16.mxu0 %v3359
        %4844 = vmatpush1.bf16.msra.mxu0 %v3358
        %4845 = vmatprep.subr.bf16.mxu0 %v3367
        %4846 = vmatpush1.bf16.msra.mxu0 %v3366
        %4847 = vmatprep.subr.bf16.mxu0 %v3375
        %4848 = vmatpush1.bf16.msra.mxu0 %v3374
        %4849 = vmatprep.subr.bf16.mxu0 %v3383
        %4850 = vmatpush1.bf16.msra.mxu0 %v3382
        %4851 = vmatprep.subr.bf16.mxu0 %v3391
        %4852 = vmatpush1.bf16.msra.mxu0 %v3390
        %4853 = vmatprep.subr.bf16.mxu0 %v3399
        %4854 = vmatpush1.bf16.msra.mxu0 %v3398
        %4855 = vmatprep.subr.bf16.mxu0 %v3407
        %4856 = vmatpush1.bf16.msra.mxu0 %v3406
        %4857 = vmatprep.subr.bf16.mxu0 %v3415
        %4858 = vmatpush1.bf16.msra.mxu0 %v3414
        %4859 = vmatprep.subr.bf16.mxu0 %v3423
        %4860 = vmatpush1.bf16.msra.mxu0 %v3422
        %4861 = vmatprep.subr.bf16.mxu0 %v3431
        %4862 = vmatpush1.bf16.msra.mxu0 %v3430
        %4863 = vmatprep.subr.bf16.mxu0 %v3439
        %4864 = vmatpush1.bf16.msra.mxu0 %v3438
        %4865 = vmatprep.mubr.bf16.mxu0 %v1798
        %4866 = vmatmul.mubr.bf16.gmra.mrb[0].mxu0 %v1797
        %v4867 = vpop.f32.mrb[0].mxu0
        %v4868 = vadd.f32 0.0, %v4867
        %v4869 = vpop.f32.mrb[0].mxu0
        %v4870 = vadd.f32 0.0, %v4869
        %v4871 = vpop.f32.mrb[0].mxu0
        %v4872 = vpop.f32.mrb[0].mxu0
        %4873 = vdwg.mxu0
        %4874 = vmatprep.subr.bf16.mxu0 %v3447
        %4875 = vmatpush1.bf16.msra.mxu0 %v3446
        %4876 = vmatprep.subr.bf16.mxu0 %v3455
        %4877 = vmatpush1.bf16.msra.mxu0 %v3454
        %4878 = vmatprep.subr.bf16.mxu0 %v3463
        %4879 = vmatpush1.bf16.msra.mxu0 %v3462
        %4880 = vmatprep.subr.bf16.mxu0 %v3471
        %4881 = vmatpush1.bf16.msra.mxu0 %v3470
        %4882 = vmatprep.subr.bf16.mxu0 %v3479
        %4883 = vmatpush1.bf16.msra.mxu0 %v3478
        %4884 = vmatprep.subr.bf16.mxu0 %v3487
        %4885 = vmatpush1.bf16.msra.mxu0 %v3486
        %4886 = vmatprep.subr.bf16.mxu0 %v3495
        %4887 = vmatpush1.bf16.msra.mxu0 %v3494
        %4888 = vmatprep.subr.bf16.mxu0 %v3503
        %4889 = vmatpush1.bf16.msra.mxu0 %v3502
        %4890 = vmatprep.subr.bf16.mxu0 %v3511
        %4891 = vmatpush1.bf16.msra.mxu0 %v3510
        %4892 = vmatprep.subr.bf16.mxu0 %v3519
        %4893 = vmatpush1.bf16.msra.mxu0 %v3518
        %4894 = vmatprep.subr.bf16.mxu0 %v3527
        %4895 = vmatpush1.bf16.msra.mxu0 %v3526
        %4896 = vmatprep.subr.bf16.mxu0 %v3535
        %4897 = vmatpush1.bf16.msra.mxu0 %v3534
        %4898 = vmatprep.subr.bf16.mxu0 %v3543
        %4899 = vmatpush1.bf16.msra.mxu0 %v3542
        %4900 = vmatprep.subr.bf16.mxu0 %v3551
        %4901 = vmatpush1.bf16.msra.mxu0 %v3550
        %4902 = vmatprep.subr.bf16.mxu0 %v3559
        %4903 = vmatpush1.bf16.msra.mxu0 %v3558
        %4904 = vmatprep.subr.bf16.mxu0 %v3567
        %4905 = vmatpush1.bf16.msra.mxu0 %v3566
        %4906 = vmatprep.mubr.bf16.mxu0 %v1800
        %4907 = vmatmul.mubr.bf16.gmra.mrb[0].mxu0 %v1799
        %v4908 = vpop.f32.mrb[0].mxu0
        %v4909 = vadd.f32 %v4868, %v4908
        %v4910 = vpop.f32.mrb[0].mxu0
        %v4911 = vadd.f32 %v4870, %v4910
        %v4912 = vpop.f32.mrb[0].mxu0
        %v4913 = vpop.f32.mrb[0].mxu0
        %4914 = vdwg.mxu0
        %4915 = vmatprep.subr.bf16.mxu0 %v3575
        %4916 = vmatpush1.bf16.msra.mxu0 %v3574
        %4917 = vmatprep.subr.bf16.mxu0 %v3583
        %4918 = vmatpush1.bf16.msra.mxu0 %v3582
        %4919 = vmatprep.subr.bf16.mxu0 %v3591
        %4920 = vmatpush1.bf16.msra.mxu0 %v3590
        %4921 = vmatprep.subr.bf16.mxu0 %v3599
        %4922 = vmatpush1.bf16.msra.mxu0 %v3598
        %4923 = vmatprep.subr.bf16.mxu0 %v3607
        %4924 = vmatpush1.bf16.msra.mxu0 %v3606
        %4925 = vmatprep.subr.bf16.mxu0 %v3615
        %4926 = vmatpush1.bf16.msra.mxu0 %v3614
        %4927 = vmatprep.subr.bf16.mxu0 %v3623
        %4928 = vmatpush1.bf16.msra.mxu0 %v3622
        %4929 = vmatprep.subr.bf16.mxu0 %v3631
        %4930 = vmatpush1.bf16.msra.mxu0 %v3630
        %4931 = vmatprep.subr.bf16.mxu0 %v3639
        %4932 = vmatpush1.bf16.msra.mxu0 %v3638
        %4933 = vmatprep.subr.bf16.mxu0 %v3647
        %4934 = vmatpush1.bf16.msra.mxu0 %v3646
        %4935 = vmatprep.subr.bf16.mxu0 %v3655
        %4936 = vmatpush1.bf16.msra.mxu0 %v3654
        %4937 = vmatprep.subr.bf16.mxu0 %v3663
        %4938 = vmatpush1.bf16.msra.mxu0 %v3662
        %4939 = vmatprep.subr.bf16.mxu0 %v3671
        %4940 = vmatpush1.bf16.msra.mxu0 %v3670
        %4941 = vmatprep.subr.bf16.mxu0 %v3679
        %4942 = vmatpush1.bf16.msra.mxu0 %v3678
        %4943 = vmatprep.subr.bf16.mxu0 %v3687
        %4944 = vmatpush1.bf16.msra.mxu0 %v3686
        %4945 = vmatprep.subr.bf16.mxu0 %v3695
        %4946 = vmatpush1.bf16.msra.mxu0 %v3694
        %4947 = vmatprep.mubr.bf16.mxu0 %v1802
        %4948 = vmatmul.mubr.bf16.gmra.mrb[0].mxu0 %v1801
        %v4949 = vpop.f32.mrb[0].mxu0
        %v4950 = vadd.f32 %v4909, %v4949
        %v4951 = vpop.f32.mrb[0].mxu0
        %v4952 = vadd.f32 %v4911, %v4951
        %v4953 = vpop.f32.mrb[0].mxu0
        %v4954 = vpop.f32.mrb[0].mxu0
        %4955 = vdwg.mxu0
        %4956 = vmatprep.subr.bf16.mxu0 %v3703
        %4957 = vmatpush1.bf16.msra.mxu0 %v3702
        %4958 = vmatprep.subr.bf16.mxu0 %v3711
        %4959 = vmatpush1.bf16.msra.mxu0 %v3710
        %4960 = vmatprep.subr.bf16.mxu0 %v3719
        %4961 = vmatpush1.bf16.msra.mxu0 %v3718
        %4962 = vmatprep.subr.bf16.mxu0 %v3727
        %4963 = vmatpush1.bf16.msra.mxu0 %v3726
        %4964 = vmatprep.subr.bf16.mxu0 %v3735
        %4965 = vmatpush1.bf16.msra.mxu0 %v3734
        %4966 = vmatprep.subr.bf16.mxu0 %v3743
        %4967 = vmatpush1.bf16.msra.mxu0 %v3742
        %4968 = vmatprep.subr.bf16.mxu0 %v3751
        %4969 = vmatpush1.bf16.msra.mxu0 %v3750
        %4970 = vmatprep.subr.bf16.mxu0 %v3759
        %4971 = vmatpush1.bf16.msra.mxu0 %v3758
        %4972 = vmatprep.subr.bf16.mxu0 %v3767
        %4973 = vmatpush1.bf16.msra.mxu0 %v3766
        %4974 = vmatprep.subr.bf16.mxu0 %v3775
        %4975 = vmatpush1.bf16.msra.mxu0 %v3774
        %4976 = vmatprep.subr.bf16.mxu0 %v3783
        %4977 = vmatpush1.bf16.msra.mxu0 %v3782
        %4978 = vmatprep.subr.bf16.mxu0 %v3791
        %4979 = vmatpush1.bf16.msra.mxu0 %v3790
        %4980 = vmatprep.subr.bf16.mxu0 %v3799
        %4981 = vmatpush1.bf16.msra.mxu0 %v3798
        %4982 = vmatprep.subr.bf16.mxu0 %v3807
        %4983 = vmatpush1.bf16.msra.mxu0 %v3806
        %4984 = vmatprep.subr.bf16.mxu0 %v4339
        %4985 = vmatpush1.bf16.msra.mxu0 %v4336
        %4986 = vmatprep.subr.bf16.mxu0 0
        %4987 = vmatpush1.bf16.msra.mxu0 0
        %4988 = vmatprep.mubr.bf16.mxu0 %v4314
        %4989 = vmatmul.mubr.bf16.gmra.mrb[0].mxu0 %v1803
        %v4990 = vpop.f32.mrb[0].mxu0
        %v4991 = vadd.f32 %v4950, %v4990
        %v4992 = vpop.f32.mrb[0].mxu0
        %v4993 = vadd.f32 %v4952, %v4992
        %v4994 = vpop.f32.mrb[0].mxu0
        %v4995 = vpop.f32.mrb[0].mxu0
        %4996 = vdwg.mxu0
        %v4997 = vadd.f32 %v1273, %v4499
        %v4998 = vadd.f32 %v1274, %v4501
        %v4999 = vadd.f32 %v1275, %v4663
        %v5000 = vadd.f32 %v1276, %v4665
        %v5001 = vadd.f32 %v1277, %v4827
        %v5002 = vadd.f32 %v1278, %v4829
        %v5003 = vadd.f32 %v1279, %v4991
        %v5004 = vadd.f32 %v1280, %v4993
        %5005 = vst [vmem:[#allocation2] sm:$0xff] %v4997
        %5006 = vst [vmem:[#allocation2 + $0x8] sm:$0xff] %v4998
        %5007 = vst [vmem:[#allocation2 + $0x10] sm:$0xff] %v4999
        %5008 = vst [vmem:[#allocation2 + $0x18] sm:$0xff] %v5000
        %5009 = vst [vmem:[#allocation2 + $0x20] sm:$0xff] %v5001
        %5010 = vst [vmem:[#allocation2 + $0x28] sm:$0xff] %v5002
        %5011 = vst [vmem:[#allocation2 + $0x30] sm:$0xff] %v5003
        %5012 = vst [vmem:[#allocation2 + $0x38] sm:$0xff] %v5004
        %p5013 = scmp.eq.s32.totalorder %s89, 4
        // Predicated region
        $region241: #{posesync_forward.1} parent=139 // pred_check
          %p5014 = pneg %p5013
        $region242: #{posesync_forward.1} parent=139 // pred_check_branch
          %5016 = sbr.rel (%p5014) target = $region244
        $region243: #{posesync_forward.1} parent=139 // pred_region
          %v5017 = vld [vmem:[#allocation2] sm:$0xff]
          %v5018 = vld [vmem:[#allocation2 + $0x8] sm:$0xff]
          %v5019 = vld [vmem:[#allocation2 + $0x10] sm:$0xff]
          %v5020 = vld [vmem:[#allocation2 + $0x18] sm:$0xff]
          %v5021 = vld [vmem:[#allocation2 + $0x20] sm:$0xff]
          %v5022 = vld [vmem:[#allocation2 + $0x28] sm:$0xff]
          %v5023 = vld [vmem:[#allocation2 + $0x30] sm:$0xff]
          %v5024 = vld [vmem:[#allocation2 + $0x38] sm:$0xff]
          %v5025 = vld [vmem:[#allocation8] sm:$0xff]
          %v5026 = vld [vmem:[#allocation9] sm:$0xff]
          %v5027 = vrot.slane %v5017, 4
          %v5028 = vadd.f32 %v5017, %v5027
          %v5029 = vrot.slane %v5028, 2
          %v5030 = vadd.f32 %v5028, %v5029
          %v5031 = vrot.slane %v5030, 1
          %v5032 = vadd.f32 %v5030, %v5031
          %v5033 = vrot.slane %v5018, 4
          %v5034 = vadd.f32 %v5018, %v5033
          %v5035 = vrot.slane %v5034, 2
          %v5036 = vadd.f32 %v5034, %v5035
          %v5037 = vrot.slane %v5036, 1
          %v5038 = vadd.f32 %v5036, %v5037
          %v5039 = vrot.slane %v5019, 4
          %v5040 = vadd.f32 %v5019, %v5039
          %v5041 = vrot.slane %v5040, 2
          %v5042 = vadd.f32 %v5040, %v5041
          %v5043 = vrot.slane %v5042, 1
          %v5044 = vadd.f32 %v5042, %v5043
          %v5045 = vrot.slane %v5020, 4
          %v5046 = vadd.f32 %v5020, %v5045
          %v5047 = vrot.slane %v5046, 2
          %v5048 = vadd.f32 %v5046, %v5047
          %v5049 = vrot.slane %v5048, 1
          %v5050 = vadd.f32 %v5048, %v5049
          %v5051 = vrot.slane %v5021, 4
          %v5052 = vadd.f32 %v5021, %v5051
          %v5053 = vrot.slane %v5052, 2
          %v5054 = vadd.f32 %v5052, %v5053
          %v5055 = vrot.slane %v5054, 1
          %v5056 = vadd.f32 %v5054, %v5055
          %v5057 = vrot.slane %v5022, 4
          %v5058 = vadd.f32 %v5022, %v5057
          %v5059 = vrot.slane %v5058, 2
          %v5060 = vadd.f32 %v5058, %v5059
          %v5061 = vrot.slane %v5060, 1
          %v5062 = vadd.f32 %v5060, %v5061
          %v5063 = vrot.slane %v5023, 4
          %v5064 = vadd.f32 %v5023, %v5063
          %v5065 = vrot.slane %v5064, 2
          %v5066 = vadd.f32 %v5064, %v5065
          %v5067 = vrot.slane %v5066, 1
          %v5068 = vadd.f32 %v5066, %v5067
          %v5069 = vrot.slane %v5024, 4
          %v5070 = vadd.f32 %v5024, %v5069
          %v5071 = vrot.slane %v5070, 2
          %v5072 = vadd.f32 %v5070, %v5071
          %v5073 = vrot.slane %v5072, 1
          %v5074 = vadd.f32 %v5072, %v5073
          %v5075 = vrcp.pop 8.0
          %v5076 = vmul.f32 %v5032, %v5075
          %v5077 = vmul.f32 %v5038, %v5075
          %v5078 = vmul.f32 %v5044, %v5075
          %v5079 = vmul.f32 %v5050, %v5075
          %v5080 = vmul.f32 %v5056, %v5075
          %v5081 = vmul.f32 %v5062, %v5075
          %v5082 = vmul.f32 %v5068, %v5075
          %v5083 = vmul.f32 %v5074, %v5075
          %v5084 = vsub.f32 %v5017, %v5076
          %v5085 = vsub.f32 %v5018, %v5077
          %v5086 = vsub.f32 %v5019, %v5078
          %v5087 = vsub.f32 %v5020, %v5079
          %v5088 = vsub.f32 %v5021, %v5080
          %v5089 = vsub.f32 %v5022, %v5081
          %v5090 = vsub.f32 %v5023, %v5082
          %v5091 = vsub.f32 %v5024, %v5083
          %v5092 = vmul.f32 %v5084, %v5084
          %v5093 = vmul.f32 %v5085, %v5085
          %v5094 = vmul.f32 %v5086, %v5086
          %v5095 = vmul.f32 %v5087, %v5087
          %v5096 = vmul.f32 %v5088, %v5088
          %v5097 = vmul.f32 %v5089, %v5089
          %v5098 = vmul.f32 %v5090, %v5090
          %v5099 = vmul.f32 %v5091, %v5091
          %v5100 = vrot.slane %v5092, 4
          %v5101 = vadd.f32 %v5092, %v5100
          %v5102 = vrot.slane %v5101, 2
          %v5103 = vadd.f32 %v5101, %v5102
          %v5104 = vrot.slane %v5103, 1
          %v5105 = vadd.f32 %v5103, %v5104
          %v5106 = vrot.slane %v5093, 4
          %v5107 = vadd.f32 %v5093, %v5106
          %v5108 = vrot.slane %v5107, 2
          %v5109 = vadd.f32 %v5107, %v5108
          %v5110 = vrot.slane %v5109, 1
          %v5111 = vadd.f32 %v5109, %v5110
          %v5112 = vrot.slane %v5094, 4
          %v5113 = vadd.f32 %v5094, %v5112
          %v5114 = vrot.slane %v5113, 2
          %v5115 = vadd.f32 %v5113, %v5114
          %v5116 = vrot.slane %v5115, 1
          %v5117 = vadd.f32 %v5115, %v5116
          %v5118 = vrot.slane %v5095, 4
          %v5119 = vadd.f32 %v5095, %v5118
          %v5120 = vrot.slane %v5119, 2
          %v5121 = vadd.f32 %v5119, %v5120
          %v5122 = vrot.slane %v5121, 1
          %v5123 = vadd.f32 %v5121, %v5122
          %v5124 = vrot.slane %v5096, 4
          %v5125 = vadd.f32 %v5096, %v5124
          %v5126 = vrot.slane %v5125, 2
          %v5127 = vadd.f32 %v5125, %v5126
          %v5128 = vrot.slane %v5127, 1
          %v5129 = vadd.f32 %v5127, %v5128
          %v5130 = vrot.slane %v5097, 4
          %v5131 = vadd.f32 %v5097, %v5130
          %v5132 = vrot.slane %v5131, 2
          %v5133 = vadd.f32 %v5131, %v5132
          %v5134 = vrot.slane %v5133, 1
          %v5135 = vadd.f32 %v5133, %v5134
          %v5136 = vrot.slane %v5098, 4
          %v5137 = vadd.f32 %v5098, %v5136
          %v5138 = vrot.slane %v5137, 2
          %v5139 = vadd.f32 %v5137, %v5138
          %v5140 = vrot.slane %v5139, 1
          %v5141 = vadd.f32 %v5139, %v5140
          %v5142 = vrot.slane %v5099, 4
          %v5143 = vadd.f32 %v5099, %v5142
          %v5144 = vrot.slane %v5143, 2
          %v5145 = vadd.f32 %v5143, %v5144
          %v5146 = vrot.slane %v5145, 1
          %v5147 = vadd.f32 %v5145, %v5146
          %v5148 = vmul.f32 %v5105, %v5075
          %v5149 = vmul.f32 %v5111, %v5075
          %v5150 = vmul.f32 %v5117, %v5075
          %v5151 = vmul.f32 %v5123, %v5075
          %v5152 = vmul.f32 %v5129, %v5075
          %v5153 = vmul.f32 %v5135, %v5075
          %v5154 = vmul.f32 %v5141, %v5075
          %v5155 = vmul.f32 %v5147, %v5075
          %v5156 = vadd.f32 %v5148, 1e-05
          %v5157 = vadd.f32 %v5149, 1e-05
          %v5158 = vadd.f32 %v5150, 1e-05
          %v5159 = vadd.f32 %v5151, 1e-05
          %v5160 = vadd.f32 %v5152, 1e-05
          %v5161 = vadd.f32 %v5153, 1e-05
          %v5162 = vadd.f32 %v5154, 1e-05
          %v5163 = vadd.f32 %v5155, 1e-05
          %v5164 = vrsqrt.pop %v5156
          %v5165 = vrsqrt.pop %v5157
          %v5166 = vrsqrt.pop %v5158
          %v5167 = vrsqrt.pop %v5159
          %v5168 = vrsqrt.pop %v5160
          %v5169 = vrsqrt.pop %v5161
          %v5170 = vrsqrt.pop %v5162
          %v5171 = vrsqrt.pop %v5163
          %v5172 = vmul.f32 %v5084, %v5164
          %v5173 = vmul.f32 %v5085, %v5165
          %v5174 = vmul.f32 %v5086, %v5166
          %v5175 = vmul.f32 %v5087, %v5167
          %v5176 = vmul.f32 %v5088, %v5168
          %v5177 = vmul.f32 %v5089, %v5169
          %v5178 = vmul.f32 %v5090, %v5170
          %v5179 = vmul.f32 %v5091, %v5171
          %v5181 = vlaneseq
          %v5182 = vshrl.u32 %v5181, 7
          %v5183 = vsub.s32 0, %v5182
          %v5184 = vrot.slane %v5025, %v5183
          %v5185 = vlaneseq
          %v5186 = vshrl.u32 %v5185, 7
          %v5187 = vsub.s32 1, %v5186
          %v5188 = vrot.slane %v5025, %v5187
          %v5189 = vlaneseq
          %v5190 = vshrl.u32 %v5189, 7
          %v5191 = vsub.s32 2, %v5190
          %v5192 = vrot.slane %v5025, %v5191
          %v5193 = vlaneseq
          %v5194 = vshrl.u32 %v5193, 7
          %v5195 = vsub.s32 3, %v5194
          %v5196 = vrot.slane %v5025, %v5195
          %v5197 = vlaneseq
          %v5198 = vshrl.u32 %v5197, 7
          %v5199 = vsub.s32 4, %v5198
          %v5200 = vrot.slane %v5025, %v5199
          %v5201 = vlaneseq
          %v5202 = vshrl.u32 %v5201, 7
          %v5203 = vsub.s32 5, %v5202
          %v5204 = vrot.slane %v5025, %v5203
          %v5205 = vlaneseq
          %v5206 = vshrl.u32 %v5205, 7
          %v5207 = vsub.s32 6, %v5206
          %v5208 = vrot.slane %v5025, %v5207
          %v5209 = vlaneseq
          %v5210 = vshrl.u32 %v5209, 7
          %v5211 = vsub.s32 7, %v5210
          %v5212 = vrot.slane %v5025, %v5211
          %v5221 = vmul.f32 %v5172, %v5184
          %v5222 = vmul.f32 %v5173, %v5188
          %v5223 = vmul.f32 %v5174, %v5192
          %v5224 = vmul.f32 %v5175, %v5196
          %v5225 = vmul.f32 %v5176, %v5200
          %v5226 = vmul.f32 %v5177, %v5204
          %v5227 = vmul.f32 %v5178, %v5208
          %v5228 = vmul.f32 %v5179, %v5212
          %v5230 = vlaneseq
          %v5231 = vshrl.u32 %v5230, 7
          %v5232 = vsub.s32 0, %v5231
          %v5233 = vrot.slane %v5026, %v5232
          %v5234 = vlaneseq
          %v5235 = vshrl.u32 %v5234, 7
          %v5236 = vsub.s32 1, %v5235
          %v5237 = vrot.slane %v5026, %v5236
          %v5238 = vlaneseq
          %v5239 = vshrl.u32 %v5238, 7
          %v5240 = vsub.s32 2, %v5239
          %v5241 = vrot.slane %v5026, %v5240
          %v5242 = vlaneseq
          %v5243 = vshrl.u32 %v5242, 7
          %v5244 = vsub.s32 3, %v5243
          %v5245 = vrot.slane %v5026, %v5244
          %v5246 = vlaneseq
          %v5247 = vshrl.u32 %v5246, 7
          %v5248 = vsub.s32 4, %v5247
          %v5249 = vrot.slane %v5026, %v5248
          %v5250 = vlaneseq
          %v5251 = vshrl.u32 %v5250, 7
          %v5252 = vsub.s32 5, %v5251
          %v5253 = vrot.slane %v5026, %v5252
          %v5254 = vlaneseq
          %v5255 = vshrl.u32 %v5254, 7
          %v5256 = vsub.s32 6, %v5255
          %v5257 = vrot.slane %v5026, %v5256
          %v5258 = vlaneseq
          %v5259 = vshrl.u32 %v5258, 7
          %v5260 = vsub.s32 7, %v5259
          %v5261 = vrot.slane %v5026, %v5260
          %v5270 = vadd.f32 %v5221, %v5233
          %v5271 = vadd.f32 %v5222, %v5237
          %v5272 = vadd.f32 %v5223, %v5241
          %v5273 = vadd.f32 %v5224, %v5245
          %v5274 = vadd.f32 %v5225, %v5249
          %v5275 = vadd.f32 %v5226, %v5253
          %v5276 = vadd.f32 %v5227, %v5257
          %v5277 = vadd.f32 %v5228, %v5261
          %v5278 = vmax.f32 %v5270, 0.0
          %v5279 = vmax.f32 %v5271, 0.0
          %v5280 = vmax.f32 %v5272, 0.0
          %v5281 = vmax.f32 %v5273, 0.0
          %v5282 = vmax.f32 %v5274, 0.0
          %v5283 = vmax.f32 %v5275, 0.0
          %v5284 = vmax.f32 %v5276, 0.0
          %v5285 = vmax.f32 %v5277, 0.0
          %v5286 = vpack.c.bf16 %v5278, %v5278
          %v5287 = vpack.c.bf16 %v5279, %v5279
          %v5288 = vpack.c.bf16 %v5280, %v5280
          %v5289 = vpack.c.bf16 %v5281, %v5281
          %v5290 = vpack.c.bf16 %v5282, %v5282
          %v5291 = vpack.c.bf16 %v5283, %v5283
          %v5292 = vpack.c.bf16 %v5284, %v5284
          %v5293 = vpack.c.bf16 %v5285, %v5285
          %v5294 = vld [vmem:[#allocation11] sm:$0xff]
          %v5295 = vld [vmem:[#allocation11 + $0x8] sm:$0xff]
          %v5296 = vld [vmem:[#allocation11 + $0x10] sm:$0xff]
          %v5297 = vld [vmem:[#allocation11 + $0x18] sm:$0xff]
          %v5298 = vld [vmem:[#allocation11 + $0x20] sm:$0xff]
          %v5299 = vld [vmem:[#allocation11 + $0x28] sm:$0xff]
          %v5300 = vld [vmem:[#allocation11 + $0x30] sm:$0xff]
          %v5301 = vld [vmem:[#allocation11 + $0x38] sm:$0xff]
          %v5302 = vld [vmem:[#allocation11 + $0x40] sm:$0xff]
          %v5303 = vld [vmem:[#allocation11 + $0x48] sm:$0xff]
          %v5304 = vld [vmem:[#allocation11 + $0x50] sm:$0xff]
          %v5305 = vld [vmem:[#allocation11 + $0x58] sm:$0xff]
          %v5306 = vld [vmem:[#allocation11 + $0x60] sm:$0xff]
          %v5307 = vld [vmem:[#allocation11 + $0x68] sm:$0xff]
          %v5308 = vld [vmem:[#allocation11 + $0x70] sm:$0xff]
          %v5309 = vld [vmem:[#allocation11 + $0x78] sm:$0xff]
          %v5310 = vld [vmem:[#allocation11 + $0x80] sm:$0xff]
          %v5311 = vld [vmem:[#allocation11 + $0x88] sm:$0xff]
          %v5312 = vld [vmem:[#allocation11 + $0x90] sm:$0xff]
          %v5313 = vld [vmem:[#allocation11 + $0x98] sm:$0xff]
          %v5314 = vld [vmem:[#allocation11 + $0xa0] sm:$0xff]
          %v5315 = vld [vmem:[#allocation11 + $0xa8] sm:$0xff]
          %v5316 = vld [vmem:[#allocation11 + $0xb0] sm:$0xff]
          %v5317 = vld [vmem:[#allocation11 + $0xb8] sm:$0xff]
          %v5318 = vld [vmem:[#allocation11 + $0xc0] sm:$0xff]
          %v5319 = vld [vmem:[#allocation11 + $0xc8] sm:$0xff]
          %v5320 = vld [vmem:[#allocation11 + $0xd0] sm:$0xff]
          %v5321 = vld [vmem:[#allocation11 + $0xd8] sm:$0xff]
          %v5322 = vld [vmem:[#allocation11 + $0xe0] sm:$0xff]
          %v5323 = vld [vmem:[#allocation11 + $0xe8] sm:$0xff]
          %v5324 = vld [vmem:[#allocation11 + $0xf0] sm:$0xff]
          %v5325 = vld [vmem:[#allocation11 + $0xf8] sm:$0xff]
          %v5326 = vld [vmem:[#allocation11 + $0x100] sm:$0xff]
          %v5327 = vld [vmem:[#allocation11 + $0x108] sm:$0xff]
          %v5328 = vld [vmem:[#allocation11 + $0x110] sm:$0xff]
          %v5329 = vld [vmem:[#allocation11 + $0x118] sm:$0xff]
          %v5330 = vld [vmem:[#allocation11 + $0x120] sm:$0xff]
          %v5331 = vld [vmem:[#allocation11 + $0x128] sm:$0xff]
          %v5332 = vld [vmem:[#allocation11 + $0x130] sm:$0xff]
          %v5333 = vld [vmem:[#allocation11 + $0x138] sm:$0xff]
          %v5334 = vld [vmem:[#allocation11 + $0x140] sm:$0xff]
          %v5335 = vld [vmem:[#allocation11 + $0x148] sm:$0xff]
          %v5336 = vld [vmem:[#allocation11 + $0x150] sm:$0xff]
          %v5337 = vld [vmem:[#allocation11 + $0x158] sm:$0xff]
          %v5338 = vld [vmem:[#allocation11 + $0x160] sm:$0xff]
          %v5339 = vld [vmem:[#allocation11 + $0x168] sm:$0xff]
          %v5340 = vld [vmem:[#allocation11 + $0x170] sm:$0xff]
          %v5341 = vld [vmem:[#allocation11 + $0x178] sm:$0xff]
          %v5342 = vld [vmem:[#allocation11 + $0x180] sm:$0xff]
          %v5343 = vld [vmem:[#allocation11 + $0x188] sm:$0xff]
          %v5344 = vld [vmem:[#allocation11 + $0x190] sm:$0xff]
          %v5345 = vld [vmem:[#allocation11 + $0x198] sm:$0xff]
          %v5346 = vld [vmem:[#allocation11 + $0x1a0] sm:$0xff]
          %v5347 = vld [vmem:[#allocation11 + $0x1a8] sm:$0xff]
          %v5348 = vld [vmem:[#allocation11 + $0x1b0] sm:$0xff]
          %v5349 = vld [vmem:[#allocation11 + $0x1b8] sm:$0xff]
          %v5350 = vld [vmem:[#allocation11 + $0x1c0] sm:$0xff]
          %v5351 = vld [vmem:[#allocation11 + $0x1c8] sm:$0xff]
          %v5352 = vld [vmem:[#allocation11 + $0x1d0] sm:$0xff]
          %v5353 = vld [vmem:[#allocation11 + $0x1d8] sm:$0xff]
          %v5354 = vld [vmem:[#allocation11 + $0x1e0] sm:$0xff]
          %v5355 = vld [vmem:[#allocation11 + $0x1e8] sm:$0xff]
          %v5356 = vld [vmem:[#allocation11 + $0x1f0] sm:$0xff]
          %v5357 = vld [vmem:[#allocation11 + $0x1f8] sm:$0xff]
          %v5358 = vld [vmem:[#allocation11 + $0x200] sm:$0xff]
          %v5359 = vld [vmem:[#allocation11 + $0x208] sm:$0xff]
          %v5360 = vld [vmem:[#allocation11 + $0x210] sm:$0xff]
          %v5361 = vld [vmem:[#allocation11 + $0x218] sm:$0xff]
          %v5362 = vld [vmem:[#allocation11 + $0x220] sm:$0xff]
          %v5363 = vld [vmem:[#allocation11 + $0x228] sm:$0xff]
          %v5364 = vld [vmem:[#allocation11 + $0x230] sm:$0xff]
          %v5365 = vld [vmem:[#allocation11 + $0x238] sm:$0xff]
          %v5366 = vld [vmem:[#allocation11 + $0x240] sm:$0xff]
          %v5367 = vld [vmem:[#allocation11 + $0x248] sm:$0xff]
          %v5368 = vld [vmem:[#allocation11 + $0x250] sm:$0xff]
          %v5369 = vld [vmem:[#allocation11 + $0x258] sm:$0xff]
          %v5370 = vld [vmem:[#allocation11 + $0x260] sm:$0xff]
          %v5371 = vld [vmem:[#allocation11 + $0x268] sm:$0xff]
          %v5372 = vld [vmem:[#allocation11 + $0x270] sm:$0xff]
          %v5373 = vld [vmem:[#allocation11 + $0x278] sm:$0xff]
          %v5374 = vld [vmem:[#allocation11 + $0x280] sm:$0xff]
          %v5375 = vld [vmem:[#allocation11 + $0x288] sm:$0xff]
          %v5376 = vld [vmem:[#allocation11 + $0x290] sm:$0xff]
          %v5377 = vld [vmem:[#allocation11 + $0x298] sm:$0xff]
          %v5378 = vld [vmem:[#allocation11 + $0x2a0] sm:$0xff]
          %v5379 = vld [vmem:[#allocation11 + $0x2a8] sm:$0xff]
          %v5380 = vld [vmem:[#allocation11 + $0x2b0] sm:$0xff]
          %v5381 = vld [vmem:[#allocation11 + $0x2b8] sm:$0xff]
          %v5382 = vld [vmem:[#allocation11 + $0x2c0] sm:$0xff]
          %v5383 = vld [vmem:[#allocation11 + $0x2c8] sm:$0xff]
          %v5384 = vld [vmem:[#allocation11 + $0x2d0] sm:$0xff]
          %v5385 = vld [vmem:[#allocation11 + $0x2d8] sm:$0xff]
          %v5386 = vld [vmem:[#allocation11 + $0x2e0] sm:$0xff]
          %v5387 = vld [vmem:[#allocation11 + $0x2e8] sm:$0xff]
          %v5388 = vld [vmem:[#allocation11 + $0x2f0] sm:$0xff]
          %v5389 = vld [vmem:[#allocation11 + $0x2f8] sm:$0xff]
          %v5390 = vld [vmem:[#allocation11 + $0x300] sm:$0xff]
          %v5391 = vld [vmem:[#allocation11 + $0x308] sm:$0xff]
          %v5392 = vld [vmem:[#allocation11 + $0x310] sm:$0xff]
          %v5393 = vld [vmem:[#allocation11 + $0x318] sm:$0xff]
          %v5394 = vld [vmem:[#allocation11 + $0x320] sm:$0xff]
          %v5395 = vld [vmem:[#allocation11 + $0x328] sm:$0xff]
          %v5396 = vld [vmem:[#allocation11 + $0x330] sm:$0xff]
          %v5397 = vld [vmem:[#allocation11 + $0x338] sm:$0xff]
          %v5398 = vld [vmem:[#allocation11 + $0x340] sm:$0xff]
          %v5399 = vld [vmem:[#allocation11 + $0x348] sm:$0xff]
          %v5400 = vld [vmem:[#allocation11 + $0x350] sm:$0xff]
          %v5401 = vld [vmem:[#allocation11 + $0x358] sm:$0xff]
          %v5402 = vld [vmem:[#allocation11 + $0x360] sm:$0xff]
          %v5403 = vld [vmem:[#allocation11 + $0x368] sm:$0xff]
          %v5404 = vld [vmem:[#allocation11 + $0x370] sm:$0xff]
          %v5405 = vld [vmem:[#allocation11 + $0x378] sm:$0xff]
          %v5406 = vld [vmem:[#allocation11 + $0x380] sm:$0xff]
          %v5407 = vld [vmem:[#allocation11 + $0x388] sm:$0xff]
          %v5408 = vld [vmem:[#allocation11 + $0x390] sm:$0xff]
          %v5409 = vld [vmem:[#allocation11 + $0x398] sm:$0xff]
          %v5410 = vld [vmem:[#allocation11 + $0x3a0] sm:$0xff]
          %v5411 = vld [vmem:[#allocation11 + $0x3a8] sm:$0xff]
          %v5412 = vld [vmem:[#allocation11 + $0x3b0] sm:$0xff]
          %v5413 = vld [vmem:[#allocation11 + $0x3b8] sm:$0xff]
          %v5414 = vld [vmem:[#allocation11 + $0x3c0] sm:$0xff]
          %v5415 = vld [vmem:[#allocation11 + $0x3c8] sm:$0xff]
          %v5416 = vld [vmem:[#allocation11 + $0x3d0] sm:$0xff]
          %v5417 = vld [vmem:[#allocation11 + $0x3d8] sm:$0xff]
          %v5418 = vld [vmem:[#allocation11 + $0x3e0] sm:$0xff]
          %v5419 = vld [vmem:[#allocation11 + $0x3e8] sm:$0xff]
          %v5420 = vld [vmem:[#allocation11 + $0x3f0] sm:$0xff]
          %v5421 = vld [vmem:[#allocation11 + $0x3f8] sm:$0xff]
          %v5422 = vld [vmem:[#allocation11 + $0x400] sm:$0xff]
          %v5423 = vld [vmem:[#allocation11 + $0x408] sm:$0xff]
          %v5424 = vld [vmem:[#allocation11 + $0x410] sm:$0xff]
          %v5425 = vld [vmem:[#allocation11 + $0x418] sm:$0xff]
          %v5426 = vld [vmem:[#allocation11 + $0x420] sm:$0xff]
          %v5427 = vld [vmem:[#allocation11 + $0x428] sm:$0xff]
          %v5428 = vld [vmem:[#allocation11 + $0x430] sm:$0xff]
          %v5429 = vld [vmem:[#allocation11 + $0x438] sm:$0xff]
          %v5430 = vld [vmem:[#allocation11 + $0x440] sm:$0xff]
          %v5431 = vld [vmem:[#allocation11 + $0x448] sm:$0xff]
          %v5432 = vld [vmem:[#allocation11 + $0x450] sm:$0xff]
          %v5433 = vld [vmem:[#allocation11 + $0x458] sm:$0xff]
          %v5434 = vld [vmem:[#allocation11 + $0x460] sm:$0xff]
          %v5435 = vld [vmem:[#allocation11 + $0x468] sm:$0xff]
          %v5436 = vld [vmem:[#allocation11 + $0x470] sm:$0xff]
          %v5437 = vld [vmem:[#allocation11 + $0x478] sm:$0xff]
          %v5438 = vld [vmem:[#allocation11 + $0x480] sm:$0xff]
          %v5439 = vld [vmem:[#allocation11 + $0x488] sm:$0xff]
          %v5440 = vld [vmem:[#allocation11 + $0x490] sm:$0xff]
          %v5441 = vld [vmem:[#allocation11 + $0x498] sm:$0xff]
          %v5442 = vld [vmem:[#allocation11 + $0x4a0] sm:$0xff]
          %v5443 = vld [vmem:[#allocation11 + $0x4a8] sm:$0xff]
          %v5444 = vld [vmem:[#allocation11 + $0x4b0] sm:$0xff]
          %v5445 = vld [vmem:[#allocation11 + $0x4b8] sm:$0xff]
          %v5446 = vld [vmem:[#allocation11 + $0x4c0] sm:$0xff]
          %v5447 = vld [vmem:[#allocation11 + $0x4c8] sm:$0xff]
          %v5448 = vld [vmem:[#allocation11 + $0x4d0] sm:$0xff]
          %v5449 = vld [vmem:[#allocation11 + $0x4d8] sm:$0xff]
          %v5450 = vld [vmem:[#allocation11 + $0x4e0] sm:$0xff]
          %v5451 = vld [vmem:[#allocation11 + $0x4e8] sm:$0xff]
          %v5452 = vld [vmem:[#allocation11 + $0x4f0] sm:$0xff]
          %v5453 = vld [vmem:[#allocation11 + $0x4f8] sm:$0xff]
          %v5454 = vld [vmem:[#allocation11 + $0x500] sm:$0xff]
          %v5455 = vld [vmem:[#allocation11 + $0x508] sm:$0xff]
          %v5456 = vld [vmem:[#allocation11 + $0x510] sm:$0xff]
          %v5457 = vld [vmem:[#allocation11 + $0x518] sm:$0xff]
          %v5458 = vld [vmem:[#allocation11 + $0x520] sm:$0xff]
          %v5459 = vld [vmem:[#allocation11 + $0x528] sm:$0xff]
          %v5460 = vld [vmem:[#allocation11 + $0x530] sm:$0xff]
          %v5461 = vld [vmem:[#allocation11 + $0x538] sm:$0xff]
          %v5462 = vld [vmem:[#allocation11 + $0x540] sm:$0xff]
          %v5463 = vld [vmem:[#allocation11 + $0x548] sm:$0xff]
          %v5464 = vld [vmem:[#allocation11 + $0x550] sm:$0xff]
          %v5465 = vld [vmem:[#allocation11 + $0x558] sm:$0xff]
          %v5466 = vld [vmem:[#allocation11 + $0x560] sm:$0xff]
          %v5467 = vld [vmem:[#allocation11 + $0x568] sm:$0xff]
          %v5468 = vld [vmem:[#allocation11 + $0x570] sm:$0xff]
          %v5469 = vld [vmem:[#allocation11 + $0x578] sm:$0xff]
          %v5470 = vld [vmem:[#allocation11 + $0x580] sm:$0xff]
          %v5471 = vld [vmem:[#allocation11 + $0x588] sm:$0xff]
          %v5472 = vld [vmem:[#allocation11 + $0x590] sm:$0xff]
          %v5473 = vld [vmem:[#allocation11 + $0x598] sm:$0xff]
          %v5474 = vld [vmem:[#allocation11 + $0x5a0] sm:$0xff]
          %v5475 = vld [vmem:[#allocation11 + $0x5a8] sm:$0xff]
          %v5476 = vld [vmem:[#allocation11 + $0x5b0] sm:$0xff]
          %v5477 = vld [vmem:[#allocation11 + $0x5b8] sm:$0xff]
          %v5478 = vld [vmem:[#allocation11 + $0x5c0] sm:$0xff]
          %v5479 = vld [vmem:[#allocation11 + $0x5c8] sm:$0xff]
          %v5480 = vld [vmem:[#allocation11 + $0x5d0] sm:$0xff]
          %v5481 = vld [vmem:[#allocation11 + $0x5d8] sm:$0xff]
          %v5482 = vld [vmem:[#allocation11 + $0x5e0] sm:$0xff]
          %v5483 = vld [vmem:[#allocation11 + $0x5e8] sm:$0xff]
          %v5484 = vld [vmem:[#allocation11 + $0x5f0] sm:$0xff]
          %v5485 = vld [vmem:[#allocation11 + $0x5f8] sm:$0xff]
          %v5486 = vld [vmem:[#allocation11 + $0x600] sm:$0xff]
          %v5487 = vld [vmem:[#allocation11 + $0x608] sm:$0xff]
          %v5488 = vld [vmem:[#allocation11 + $0x610] sm:$0xff]
          %v5489 = vld [vmem:[#allocation11 + $0x618] sm:$0xff]
          %v5490 = vld [vmem:[#allocation11 + $0x620] sm:$0xff]
          %v5491 = vld [vmem:[#allocation11 + $0x628] sm:$0xff]
          %v5492 = vld [vmem:[#allocation11 + $0x630] sm:$0xff]
          %v5493 = vld [vmem:[#allocation11 + $0x638] sm:$0xff]
          %v5494 = vld [vmem:[#allocation11 + $0x640] sm:$0xff]
          %v5495 = vld [vmem:[#allocation11 + $0x648] sm:$0xff]
          %v5496 = vld [vmem:[#allocation11 + $0x650] sm:$0xff]
          %v5497 = vld [vmem:[#allocation11 + $0x658] sm:$0xff]
          %v5498 = vld [vmem:[#allocation11 + $0x660] sm:$0xff]
          %v5499 = vld [vmem:[#allocation11 + $0x668] sm:$0xff]
          %v5500 = vld [vmem:[#allocation11 + $0x670] sm:$0xff]
          %v5501 = vld [vmem:[#allocation11 + $0x678] sm:$0xff]
          %v5502 = vld [vmem:[#allocation11 + $0x680] sm:$0xff]
          %v5503 = vld [vmem:[#allocation11 + $0x688] sm:$0xff]
          %v5504 = vld [vmem:[#allocation11 + $0x690] sm:$0xff]
          %v5505 = vld [vmem:[#allocation11 + $0x698] sm:$0xff]
          %v5506 = vld [vmem:[#allocation11 + $0x6a0] sm:$0xff]
          %v5507 = vld [vmem:[#allocation11 + $0x6a8] sm:$0xff]
          %v5508 = vld [vmem:[#allocation11 + $0x6b0] sm:$0xff]
          %v5509 = vld [vmem:[#allocation11 + $0x6b8] sm:$0xff]
          %v5510 = vld [vmem:[#allocation11 + $0x6c0] sm:$0xff]
          %v5511 = vld [vmem:[#allocation11 + $0x6c8] sm:$0xff]
          %v5512 = vld [vmem:[#allocation11 + $0x6d0] sm:$0xff]
          %v5513 = vld [vmem:[#allocation11 + $0x6d8] sm:$0xff]
          %v5514 = vld [vmem:[#allocation11 + $0x6e0] sm:$0xff]
          %v5515 = vld [vmem:[#allocation11 + $0x6e8] sm:$0xff]
          %v5516 = vld [vmem:[#allocation11 + $0x6f0] sm:$0xff]
          %v5517 = vld [vmem:[#allocation11 + $0x6f8] sm:$0xff]
          %v5518 = vld [vmem:[#allocation11 + $0x700] sm:$0xff]
          %v5519 = vld [vmem:[#allocation11 + $0x708] sm:$0xff]
          %v5520 = vld [vmem:[#allocation11 + $0x710] sm:$0xff]
          %v5521 = vld [vmem:[#allocation11 + $0x718] sm:$0xff]
          %v5522 = vld [vmem:[#allocation11 + $0x720] sm:$0xff]
          %v5523 = vld [vmem:[#allocation11 + $0x728] sm:$0xff]
          %v5524 = vld [vmem:[#allocation11 + $0x730] sm:$0xff]
          %v5525 = vld [vmem:[#allocation11 + $0x738] sm:$0xff]
          %v5526 = vld [vmem:[#allocation11 + $0x740] sm:$0xff]
          %v5527 = vld [vmem:[#allocation11 + $0x748] sm:$0xff]
          %v5528 = vld [vmem:[#allocation11 + $0x750] sm:$0xff]
          %v5529 = vld [vmem:[#allocation11 + $0x758] sm:$0xff]
          %v5530 = vld [vmem:[#allocation11 + $0x760] sm:$0xff]
          %v5531 = vld [vmem:[#allocation11 + $0x768] sm:$0xff]
          %v5532 = vld [vmem:[#allocation11 + $0x770] sm:$0xff]
          %v5533 = vld [vmem:[#allocation11 + $0x778] sm:$0xff]
          %v5534 = vld [vmem:[#allocation11 + $0x780] sm:$0xff]
          %v5535 = vld [vmem:[#allocation11 + $0x788] sm:$0xff]
          %v5536 = vld [vmem:[#allocation11 + $0x790] sm:$0xff]
          %v5537 = vld [vmem:[#allocation11 + $0x798] sm:$0xff]
          %v5538 = vld [vmem:[#allocation11 + $0x7a0] sm:$0xff]
          %v5539 = vld [vmem:[#allocation11 + $0x7a8] sm:$0xff]
          %v5540 = vld [vmem:[#allocation11 + $0x7b0] sm:$0xff]
          %v5541 = vld [vmem:[#allocation11 + $0x7b8] sm:$0xff]
          %v5542 = vld [vmem:[#allocation11 + $0x7c0] sm:$0xff]
          %v5543 = vld [vmem:[#allocation11 + $0x7c8] sm:$0xff]
          %v5544 = vld [vmem:[#allocation11 + $0x7d0] sm:$0xff]
          %v5545 = vld [vmem:[#allocation11 + $0x7d8] sm:$0xff]
          %v5546 = vld [vmem:[#allocation11 + $0x7e0] sm:$0xff]
          %v5547 = vld [vmem:[#allocation11 + $0x7e8] sm:$0xff]
          %v5548 = vld [vmem:[#allocation11 + $0x7f0] sm:$0xff]
          %v5549 = vld [vmem:[#allocation11 + $0x7f8] sm:$0xff]
          %v5806 = vunpack.c.l.b16 %v5294
          %v5807 = vunpack.c.h.b16 %v5294
          %v5808 = vunpack.c.l.b16 %v5295
          %v5809 = vunpack.c.h.b16 %v5295
          %v5810 = vunpack.c.l.b16 %v5296
          %v5811 = vunpack.c.h.b16 %v5296
          %v5812 = vunpack.c.l.b16 %v5297
          %v5813 = vunpack.c.h.b16 %v5297
          %v5814 = vunpack.c.l.b16 %v5298
          %v5815 = vunpack.c.h.b16 %v5298
          %v5816 = vunpack.c.l.b16 %v5299
          %v5817 = vunpack.c.h.b16 %v5299
          %v5818 = vunpack.c.l.b16 %v5300
          %v5819 = vunpack.c.h.b16 %v5300
          %v5820 = vunpack.c.l.b16 %v5301
          %v5821 = vunpack.c.h.b16 %v5301
          %v5822 = vunpack.c.l.b16 %v5302
          %v5823 = vunpack.c.h.b16 %v5302
          %v5824 = vunpack.c.l.b16 %v5303
          %v5825 = vunpack.c.h.b16 %v5303
          %v5826 = vunpack.c.l.b16 %v5304
          %v5827 = vunpack.c.h.b16 %v5304
          %v5828 = vunpack.c.l.b16 %v5305
          %v5829 = vunpack.c.h.b16 %v5305
          %v5830 = vunpack.c.l.b16 %v5306
          %v5831 = vunpack.c.h.b16 %v5306
          %v5832 = vunpack.c.l.b16 %v5307
          %v5833 = vunpack.c.h.b16 %v5307
          %v5834 = vunpack.c.l.b16 %v5308
          %v5835 = vunpack.c.h.b16 %v5308
          %v5836 = vunpack.c.l.b16 %v5309
          %v5837 = vunpack.c.h.b16 %v5309
          %v5838 = vunpack.c.l.b16 %v5310
          %v5839 = vunpack.c.h.b16 %v5310
          %v5840 = vunpack.c.l.b16 %v5311
          %v5841 = vunpack.c.h.b16 %v5311
          %v5842 = vunpack.c.l.b16 %v5312
          %v5843 = vunpack.c.h.b16 %v5312
          %v5844 = vunpack.c.l.b16 %v5313
          %v5845 = vunpack.c.h.b16 %v5313
          %v5846 = vunpack.c.l.b16 %v5314
          %v5847 = vunpack.c.h.b16 %v5314
          %v5848 = vunpack.c.l.b16 %v5315
          %v5849 = vunpack.c.h.b16 %v5315
          %v5850 = vunpack.c.l.b16 %v5316
          %v5851 = vunpack.c.h.b16 %v5316
          %v5852 = vunpack.c.l.b16 %v5317
          %v5853 = vunpack.c.h.b16 %v5317
          %v5854 = vunpack.c.l.b16 %v5318
          %v5855 = vunpack.c.h.b16 %v5318
          %v5856 = vunpack.c.l.b16 %v5319
          %v5857 = vunpack.c.h.b16 %v5319
          %v5858 = vunpack.c.l.b16 %v5320
          %v5859 = vunpack.c.h.b16 %v5320
          %v5860 = vunpack.c.l.b16 %v5321
          %v5861 = vunpack.c.h.b16 %v5321
          %v5862 = vunpack.c.l.b16 %v5322
          %v5863 = vunpack.c.h.b16 %v5322
          %v5864 = vunpack.c.l.b16 %v5323
          %v5865 = vunpack.c.h.b16 %v5323
          %v5866 = vunpack.c.l.b16 %v5324
          %v5867 = vunpack.c.h.b16 %v5324
          %v5868 = vunpack.c.l.b16 %v5325
          %v5869 = vunpack.c.h.b16 %v5325
          %v5870 = vunpack.c.l.b16 %v5326
          %v5871 = vunpack.c.h.b16 %v5326
          %v5872 = vunpack.c.l.b16 %v5327
          %v5873 = vunpack.c.h.b16 %v5327
          %v5874 = vunpack.c.l.b16 %v5328
          %v5875 = vunpack.c.h.b16 %v5328
          %v5876 = vunpack.c.l.b16 %v5329
          %v5877 = vunpack.c.h.b16 %v5329
          %v5878 = vunpack.c.l.b16 %v5330
          %v5879 = vunpack.c.h.b16 %v5330
          %v5880 = vunpack.c.l.b16 %v5331
          %v5881 = vunpack.c.h.b16 %v5331
          %v5882 = vunpack.c.l.b16 %v5332
          %v5883 = vunpack.c.h.b16 %v5332
          %v5884 = vunpack.c.l.b16 %v5333
          %v5885 = vunpack.c.h.b16 %v5333
          %v5886 = vunpack.c.l.b16 %v5334
          %v5887 = vunpack.c.h.b16 %v5334
          %v5888 = vunpack.c.l.b16 %v5335
          %v5889 = vunpack.c.h.b16 %v5335
          %v5890 = vunpack.c.l.b16 %v5336
          %v5891 = vunpack.c.h.b16 %v5336
          %v5892 = vunpack.c.l.b16 %v5337
          %v5893 = vunpack.c.h.b16 %v5337
          %v5894 = vunpack.c.l.b16 %v5338
          %v5895 = vunpack.c.h.b16 %v5338
          %v5896 = vunpack.c.l.b16 %v5339
          %v5897 = vunpack.c.h.b16 %v5339
          %v5898 = vunpack.c.l.b16 %v5340
          %v5899 = vunpack.c.h.b16 %v5340
          %v5900 = vunpack.c.l.b16 %v5341
          %v5901 = vunpack.c.h.b16 %v5341
          %v5902 = vunpack.c.l.b16 %v5342
          %v5903 = vunpack.c.h.b16 %v5342
          %v5904 = vunpack.c.l.b16 %v5343
          %v5905 = vunpack.c.h.b16 %v5343
          %v5906 = vunpack.c.l.b16 %v5344
          %v5907 = vunpack.c.h.b16 %v5344
          %v5908 = vunpack.c.l.b16 %v5345
          %v5909 = vunpack.c.h.b16 %v5345
          %v5910 = vunpack.c.l.b16 %v5346
          %v5911 = vunpack.c.h.b16 %v5346
          %v5912 = vunpack.c.l.b16 %v5347
          %v5913 = vunpack.c.h.b16 %v5347
          %v5914 = vunpack.c.l.b16 %v5348
          %v5915 = vunpack.c.h.b16 %v5348
          %v5916 = vunpack.c.l.b16 %v5349
          %v5917 = vunpack.c.h.b16 %v5349
          %v5918 = vunpack.c.l.b16 %v5350
          %v5919 = vunpack.c.h.b16 %v5350
          %v5920 = vunpack.c.l.b16 %v5351
          %v5921 = vunpack.c.h.b16 %v5351
          %v5922 = vunpack.c.l.b16 %v5352
          %v5923 = vunpack.c.h.b16 %v5352
          %v5924 = vunpack.c.l.b16 %v5353
          %v5925 = vunpack.c.h.b16 %v5353
          %v5926 = vunpack.c.l.b16 %v5354
          %v5927 = vunpack.c.h.b16 %v5354
          %v5928 = vunpack.c.l.b16 %v5355
          %v5929 = vunpack.c.h.b16 %v5355
          %v5930 = vunpack.c.l.b16 %v5356
          %v5931 = vunpack.c.h.b16 %v5356
          %v5932 = vunpack.c.l.b16 %v5357
          %v5933 = vunpack.c.h.b16 %v5357
          %v5934 = vunpack.c.l.b16 %v5358
          %v5935 = vunpack.c.h.b16 %v5358
          %v5936 = vunpack.c.l.b16 %v5359
          %v5937 = vunpack.c.h.b16 %v5359
          %v5938 = vunpack.c.l.b16 %v5360
          %v5939 = vunpack.c.h.b16 %v5360
          %v5940 = vunpack.c.l.b16 %v5361
          %v5941 = vunpack.c.h.b16 %v5361
          %v5942 = vunpack.c.l.b16 %v5362
          %v5943 = vunpack.c.h.b16 %v5362
          %v5944 = vunpack.c.l.b16 %v5363
          %v5945 = vunpack.c.h.b16 %v5363
          %v5946 = vunpack.c.l.b16 %v5364
          %v5947 = vunpack.c.h.b16 %v5364
          %v5948 = vunpack.c.l.b16 %v5365
          %v5949 = vunpack.c.h.b16 %v5365
          %v5950 = vunpack.c.l.b16 %v5366
          %v5951 = vunpack.c.h.b16 %v5366
          %v5952 = vunpack.c.l.b16 %v5367
          %v5953 = vunpack.c.h.b16 %v5367
          %v5954 = vunpack.c.l.b16 %v5368
          %v5955 = vunpack.c.h.b16 %v5368
          %v5956 = vunpack.c.l.b16 %v5369
          %v5957 = vunpack.c.h.b16 %v5369
          %v5958 = vunpack.c.l.b16 %v5370
          %v5959 = vunpack.c.h.b16 %v5370
          %v5960 = vunpack.c.l.b16 %v5371
          %v5961 = vunpack.c.h.b16 %v5371
          %v5962 = vunpack.c.l.b16 %v5372
          %v5963 = vunpack.c.h.b16 %v5372
          %v5964 = vunpack.c.l.b16 %v5373
          %v5965 = vunpack.c.h.b16 %v5373
          %v5966 = vunpack.c.l.b16 %v5374
          %v5967 = vunpack.c.h.b16 %v5374
          %v5968 = vunpack.c.l.b16 %v5375
          %v5969 = vunpack.c.h.b16 %v5375
          %v5970 = vunpack.c.l.b16 %v5376
          %v5971 = vunpack.c.h.b16 %v5376
          %v5972 = vunpack.c.l.b16 %v5377
          %v5973 = vunpack.c.h.b16 %v5377
          %v5974 = vunpack.c.l.b16 %v5378
          %v5975 = vunpack.c.h.b16 %v5378
          %v5976 = vunpack.c.l.b16 %v5379
          %v5977 = vunpack.c.h.b16 %v5379
          %v5978 = vunpack.c.l.b16 %v5380
          %v5979 = vunpack.c.h.b16 %v5380
          %v5980 = vunpack.c.l.b16 %v5381
          %v5981 = vunpack.c.h.b16 %v5381
          %v5982 = vunpack.c.l.b16 %v5382
          %v5983 = vunpack.c.h.b16 %v5382
          %v5984 = vunpack.c.l.b16 %v5383
          %v5985 = vunpack.c.h.b16 %v5383
          %v5986 = vunpack.c.l.b16 %v5384
          %v5987 = vunpack.c.h.b16 %v5384
          %v5988 = vunpack.c.l.b16 %v5385
          %v5989 = vunpack.c.h.b16 %v5385
          %v5990 = vunpack.c.l.b16 %v5386
          %v5991 = vunpack.c.h.b16 %v5386
          %v5992 = vunpack.c.l.b16 %v5387
          %v5993 = vunpack.c.h.b16 %v5387
          %v5994 = vunpack.c.l.b16 %v5388
          %v5995 = vunpack.c.h.b16 %v5388
          %v5996 = vunpack.c.l.b16 %v5389
          %v5997 = vunpack.c.h.b16 %v5389
          %v5998 = vunpack.c.l.b16 %v5390
          %v5999 = vunpack.c.h.b16 %v5390
          %v6000 = vunpack.c.l.b16 %v5391
          %v6001 = vunpack.c.h.b16 %v5391
          %v6002 = vunpack.c.l.b16 %v5392
          %v6003 = vunpack.c.h.b16 %v5392
          %v6004 = vunpack.c.l.b16 %v5393
          %v6005 = vunpack.c.h.b16 %v5393
          %v6006 = vunpack.c.l.b16 %v5394
          %v6007 = vunpack.c.h.b16 %v5394
          %v6008 = vunpack.c.l.b16 %v5395
          %v6009 = vunpack.c.h.b16 %v5395
          %v6010 = vunpack.c.l.b16 %v5396
          %v6011 = vunpack.c.h.b16 %v5396
          %v6012 = vunpack.c.l.b16 %v5397
          %v6013 = vunpack.c.h.b16 %v5397
          %v6014 = vunpack.c.l.b16 %v5398
          %v6015 = vunpack.c.h.b16 %v5398
          %v6016 = vunpack.c.l.b16 %v5399
          %v6017 = vunpack.c.h.b16 %v5399
          %v6018 = vunpack.c.l.b16 %v5400
          %v6019 = vunpack.c.h.b16 %v5400
          %v6020 = vunpack.c.l.b16 %v5401
          %v6021 = vunpack.c.h.b16 %v5401
          %v6022 = vunpack.c.l.b16 %v5402
          %v6023 = vunpack.c.h.b16 %v5402
          %v6024 = vunpack.c.l.b16 %v5403
          %v6025 = vunpack.c.h.b16 %v5403
          %v6026 = vunpack.c.l.b16 %v5404
          %v6027 = vunpack.c.h.b16 %v5404
          %v6028 = vunpack.c.l.b16 %v5405
          %v6029 = vunpack.c.h.b16 %v5405
          %v6030 = vunpack.c.l.b16 %v5406
          %v6031 = vunpack.c.h.b16 %v5406
          %v6032 = vunpack.c.l.b16 %v5407
          %v6033 = vunpack.c.h.b16 %v5407
          %v6034 = vunpack.c.l.b16 %v5408
          %v6035 = vunpack.c.h.b16 %v5408
          %v6036 = vunpack.c.l.b16 %v5409
          %v6037 = vunpack.c.h.b16 %v5409
          %v6038 = vunpack.c.l.b16 %v5410
          %v6039 = vunpack.c.h.b16 %v5410
          %v6040 = vunpack.c.l.b16 %v5411
          %v6041 = vunpack.c.h.b16 %v5411
          %v6042 = vunpack.c.l.b16 %v5412
          %v6043 = vunpack.c.h.b16 %v5412
          %v6044 = vunpack.c.l.b16 %v5413
          %v6045 = vunpack.c.h.b16 %v5413
          %v6046 = vunpack.c.l.b16 %v5414
          %v6047 = vunpack.c.h.b16 %v5414
          %v6048 = vunpack.c.l.b16 %v5415
          %v6049 = vunpack.c.h.b16 %v5415
          %v6050 = vunpack.c.l.b16 %v5416
          %v6051 = vunpack.c.h.b16 %v5416
          %v6052 = vunpack.c.l.b16 %v5417
          %v6053 = vunpack.c.h.b16 %v5417
          %v6054 = vunpack.c.l.b16 %v5418
          %v6055 = vunpack.c.h.b16 %v5418
          %v6056 = vunpack.c.l.b16 %v5419
          %v6057 = vunpack.c.h.b16 %v5419
          %v6058 = vunpack.c.l.b16 %v5420
          %v6059 = vunpack.c.h.b16 %v5420
          %v6060 = vunpack.c.l.b16 %v5421
          %v6061 = vunpack.c.h.b16 %v5421
          %v6062 = vunpack.c.l.b16 %v5422
          %v6063 = vunpack.c.h.b16 %v5422
          %v6064 = vunpack.c.l.b16 %v5423
          %v6065 = vunpack.c.h.b16 %v5423
          %v6066 = vunpack.c.l.b16 %v5424
          %v6067 = vunpack.c.h.b16 %v5424
          %v6068 = vunpack.c.l.b16 %v5425
          %v6069 = vunpack.c.h.b16 %v5425
          %v6070 = vunpack.c.l.b16 %v5426
          %v6071 = vunpack.c.h.b16 %v5426
          %v6072 = vunpack.c.l.b16 %v5427
          %v6073 = vunpack.c.h.b16 %v5427
          %v6074 = vunpack.c.l.b16 %v5428
          %v6075 = vunpack.c.h.b16 %v5428
          %v6076 = vunpack.c.l.b16 %v5429
          %v6077 = vunpack.c.h.b16 %v5429
          %v6078 = vunpack.c.l.b16 %v5430
          %v6079 = vunpack.c.h.b16 %v5430
          %v6080 = vunpack.c.l.b16 %v5431
          %v6081 = vunpack.c.h.b16 %v5431
          %v6082 = vunpack.c.l.b16 %v5432
          %v6083 = vunpack.c.h.b16 %v5432
          %v6084 = vunpack.c.l.b16 %v5433
          %v6085 = vunpack.c.h.b16 %v5433
          %v6086 = vunpack.c.l.b16 %v5434
          %v6087 = vunpack.c.h.b16 %v5434
          %v6088 = vunpack.c.l.b16 %v5435
          %v6089 = vunpack.c.h.b16 %v5435
          %v6090 = vunpack.c.l.b16 %v5436
          %v6091 = vunpack.c.h.b16 %v5436
          %v6092 = vunpack.c.l.b16 %v5437
          %v6093 = vunpack.c.h.b16 %v5437
          %v6094 = vunpack.c.l.b16 %v5438
          %v6095 = vunpack.c.h.b16 %v5438
          %v6096 = vunpack.c.l.b16 %v5439
          %v6097 = vunpack.c.h.b16 %v5439
          %v6098 = vunpack.c.l.b16 %v5440
          %v6099 = vunpack.c.h.b16 %v5440
          %v6100 = vunpack.c.l.b16 %v5441
          %v6101 = vunpack.c.h.b16 %v5441
          %v6102 = vunpack.c.l.b16 %v5442
          %v6103 = vunpack.c.h.b16 %v5442
          %v6104 = vunpack.c.l.b16 %v5443
          %v6105 = vunpack.c.h.b16 %v5443
          %v6106 = vunpack.c.l.b16 %v5444
          %v6107 = vunpack.c.h.b16 %v5444
          %v6108 = vunpack.c.l.b16 %v5445
          %v6109 = vunpack.c.h.b16 %v5445
          %v6110 = vunpack.c.l.b16 %v5446
          %v6111 = vunpack.c.h.b16 %v5446
          %v6112 = vunpack.c.l.b16 %v5447
          %v6113 = vunpack.c.h.b16 %v5447
          %v6114 = vunpack.c.l.b16 %v5448
          %v6115 = vunpack.c.h.b16 %v5448
          %v6116 = vunpack.c.l.b16 %v5449
          %v6117 = vunpack.c.h.b16 %v5449
          %v6118 = vunpack.c.l.b16 %v5450
          %v6119 = vunpack.c.h.b16 %v5450
          %v6120 = vunpack.c.l.b16 %v5451
          %v6121 = vunpack.c.h.b16 %v5451
          %v6122 = vunpack.c.l.b16 %v5452
          %v6123 = vunpack.c.h.b16 %v5452
          %v6124 = vunpack.c.l.b16 %v5453
          %v6125 = vunpack.c.h.b16 %v5453
          %v6126 = vunpack.c.l.b16 %v5454
          %v6127 = vunpack.c.h.b16 %v5454
          %v6128 = vunpack.c.l.b16 %v5455
          %v6129 = vunpack.c.h.b16 %v5455
          %v6130 = vunpack.c.l.b16 %v5456
          %v6131 = vunpack.c.h.b16 %v5456
          %v6132 = vunpack.c.l.b16 %v5457
          %v6133 = vunpack.c.h.b16 %v5457
          %v6134 = vunpack.c.l.b16 %v5458
          %v6135 = vunpack.c.h.b16 %v5458
          %v6136 = vunpack.c.l.b16 %v5459
          %v6137 = vunpack.c.h.b16 %v5459
          %v6138 = vunpack.c.l.b16 %v5460
          %v6139 = vunpack.c.h.b16 %v5460
          %v6140 = vunpack.c.l.b16 %v5461
          %v6141 = vunpack.c.h.b16 %v5461
          %v6142 = vunpack.c.l.b16 %v5462
          %v6143 = vunpack.c.h.b16 %v5462
          %v6144 = vunpack.c.l.b16 %v5463
          %v6145 = vunpack.c.h.b16 %v5463
          %v6146 = vunpack.c.l.b16 %v5464
          %v6147 = vunpack.c.h.b16 %v5464
          %v6148 = vunpack.c.l.b16 %v5465
          %v6149 = vunpack.c.h.b16 %v5465
          %v6150 = vunpack.c.l.b16 %v5466
          %v6151 = vunpack.c.h.b16 %v5466
          %v6152 = vunpack.c.l.b16 %v5467
          %v6153 = vunpack.c.h.b16 %v5467
          %v6154 = vunpack.c.l.b16 %v5468
          %v6155 = vunpack.c.h.b16 %v5468
          %v6156 = vunpack.c.l.b16 %v5469
          %v6157 = vunpack.c.h.b16 %v5469
          %v6158 = vunpack.c.l.b16 %v5470
          %v6159 = vunpack.c.h.b16 %v5470
          %v6160 = vunpack.c.l.b16 %v5471
          %v6161 = vunpack.c.h.b16 %v5471
          %v6162 = vunpack.c.l.b16 %v5472
          %v6163 = vunpack.c.h.b16 %v5472
          %v6164 = vunpack.c.l.b16 %v5473
          %v6165 = vunpack.c.h.b16 %v5473
          %v6166 = vunpack.c.l.b16 %v5474
          %v6167 = vunpack.c.h.b16 %v5474
          %v6168 = vunpack.c.l.b16 %v5475
          %v6169 = vunpack.c.h.b16 %v5475
          %v6170 = vunpack.c.l.b16 %v5476
          %v6171 = vunpack.c.h.b16 %v5476
          %v6172 = vunpack.c.l.b16 %v5477
          %v6173 = vunpack.c.h.b16 %v5477
          %v6174 = vunpack.c.l.b16 %v5478
          %v6175 = vunpack.c.h.b16 %v5478
          %v6176 = vunpack.c.l.b16 %v5479
          %v6177 = vunpack.c.h.b16 %v5479
          %v6178 = vunpack.c.l.b16 %v5480
          %v6179 = vunpack.c.h.b16 %v5480
          %v6180 = vunpack.c.l.b16 %v5481
          %v6181 = vunpack.c.h.b16 %v5481
          %v6182 = vunpack.c.l.b16 %v5482
          %v6183 = vunpack.c.h.b16 %v5482
          %v6184 = vunpack.c.l.b16 %v5483
          %v6185 = vunpack.c.h.b16 %v5483
          %v6186 = vunpack.c.l.b16 %v5484
          %v6187 = vunpack.c.h.b16 %v5484
          %v6188 = vunpack.c.l.b16 %v5485
          %v6189 = vunpack.c.h.b16 %v5485
          %v6190 = vunpack.c.l.b16 %v5486
          %v6191 = vunpack.c.h.b16 %v5486
          %v6192 = vunpack.c.l.b16 %v5487
          %v6193 = vunpack.c.h.b16 %v5487
          %v6194 = vunpack.c.l.b16 %v5488
          %v6195 = vunpack.c.h.b16 %v5488
          %v6196 = vunpack.c.l.b16 %v5489
          %v6197 = vunpack.c.h.b16 %v5489
          %v6198 = vunpack.c.l.b16 %v5490
          %v6199 = vunpack.c.h.b16 %v5490
          %v6200 = vunpack.c.l.b16 %v5491
          %v6201 = vunpack.c.h.b16 %v5491
          %v6202 = vunpack.c.l.b16 %v5492
          %v6203 = vunpack.c.h.b16 %v5492
          %v6204 = vunpack.c.l.b16 %v5493
          %v6205 = vunpack.c.h.b16 %v5493
          %v6206 = vunpack.c.l.b16 %v5494
          %v6207 = vunpack.c.h.b16 %v5494
          %v6208 = vunpack.c.l.b16 %v5495
          %v6209 = vunpack.c.h.b16 %v5495
          %v6210 = vunpack.c.l.b16 %v5496
          %v6211 = vunpack.c.h.b16 %v5496
          %v6212 = vunpack.c.l.b16 %v5497
          %v6213 = vunpack.c.h.b16 %v5497
          %v6214 = vunpack.c.l.b16 %v5498
          %v6215 = vunpack.c.h.b16 %v5498
          %v6216 = vunpack.c.l.b16 %v5499
          %v6217 = vunpack.c.h.b16 %v5499
          %v6218 = vunpack.c.l.b16 %v5500
          %v6219 = vunpack.c.h.b16 %v5500
          %v6220 = vunpack.c.l.b16 %v5501
          %v6221 = vunpack.c.h.b16 %v5501
          %v6222 = vunpack.c.l.b16 %v5502
          %v6223 = vunpack.c.h.b16 %v5502
          %v6224 = vunpack.c.l.b16 %v5503
          %v6225 = vunpack.c.h.b16 %v5503
          %v6226 = vunpack.c.l.b16 %v5504
          %v6227 = vunpack.c.h.b16 %v5504
          %v6228 = vunpack.c.l.b16 %v5505
          %v6229 = vunpack.c.h.b16 %v5505
          %v6230 = vunpack.c.l.b16 %v5506
          %v6231 = vunpack.c.h.b16 %v5506
          %v6232 = vunpack.c.l.b16 %v5507
          %v6233 = vunpack.c.h.b16 %v5507
          %v6234 = vunpack.c.l.b16 %v5508
          %v6235 = vunpack.c.h.b16 %v5508
          %v6236 = vunpack.c.l.b16 %v5509
          %v6237 = vunpack.c.h.b16 %v5509
          %v6238 = vunpack.c.l.b16 %v5510
          %v6239 = vunpack.c.h.b16 %v5510
          %v6240 = vunpack.c.l.b16 %v5511
          %v6241 = vunpack.c.h.b16 %v5511
          %v6242 = vunpack.c.l.b16 %v5512
          %v6243 = vunpack.c.h.b16 %v5512
          %v6244 = vunpack.c.l.b16 %v5513
          %v6245 = vunpack.c.h.b16 %v5513
          %v6246 = vunpack.c.l.b16 %v5514
          %v6247 = vunpack.c.h.b16 %v5514
          %v6248 = vunpack.c.l.b16 %v5515
          %v6249 = vunpack.c.h.b16 %v5515
          %v6250 = vunpack.c.l.b16 %v5516
          %v6251 = vunpack.c.h.b16 %v5516
          %v6252 = vunpack.c.l.b16 %v5517
          %v6253 = vunpack.c.h.b16 %v5517
          %v6254 = vunpack.c.l.b16 %v5518
          %v6255 = vunpack.c.h.b16 %v5518
          %v6256 = vunpack.c.l.b16 %v5519
          %v6257 = vunpack.c.h.b16 %v5519
          %v6258 = vunpack.c.l.b16 %v5520
          %v6259 = vunpack.c.h.b16 %v5520
          %v6260 = vunpack.c.l.b16 %v5521
          %v6261 = vunpack.c.h.b16 %v5521
          %v6262 = vunpack.c.l.b16 %v5522
          %v6263 = vunpack.c.h.b16 %v5522
          %v6264 = vunpack.c.l.b16 %v5523
          %v6265 = vunpack.c.h.b16 %v5523
          %v6266 = vunpack.c.l.b16 %v5524
          %v6267 = vunpack.c.h.b16 %v5524
          %v6268 = vunpack.c.l.b16 %v5525
          %v6269 = vunpack.c.h.b16 %v5525
          %v6270 = vunpack.c.l.b16 %v5526
          %v6271 = vunpack.c.h.b16 %v5526
          %v6272 = vunpack.c.l.b16 %v5527
          %v6273 = vunpack.c.h.b16 %v5527
          %v6274 = vunpack.c.l.b16 %v5528
          %v6275 = vunpack.c.h.b16 %v5528
          %v6276 = vunpack.c.l.b16 %v5529
          %v6277 = vunpack.c.h.b16 %v5529
          %v6278 = vunpack.c.l.b16 %v5530
          %v6279 = vunpack.c.h.b16 %v5530
          %v6280 = vunpack.c.l.b16 %v5531
          %v6281 = vunpack.c.h.b16 %v5531
          %v6282 = vunpack.c.l.b16 %v5532
          %v6283 = vunpack.c.h.b16 %v5532
          %v6284 = vunpack.c.l.b16 %v5533
          %v6285 = vunpack.c.h.b16 %v5533
          %v6286 = vunpack.c.l.b16 %v5534
          %v6287 = vunpack.c.h.b16 %v5534
          %v6288 = vunpack.c.l.b16 %v5535
          %v6289 = vunpack.c.h.b16 %v5535
          %v6290 = vunpack.c.l.b16 %v5536
          %v6291 = vunpack.c.h.b16 %v5536
          %v6292 = vunpack.c.l.b16 %v5537
          %v6293 = vunpack.c.h.b16 %v5537
          %v6294 = vunpack.c.l.b16 %v5538
          %v6295 = vunpack.c.h.b16 %v5538
          %v6296 = vunpack.c.l.b16 %v5539
          %v6297 = vunpack.c.h.b16 %v5539
          %v6298 = vunpack.c.l.b16 %v5540
          %v6299 = vunpack.c.h.b16 %v5540
          %v6300 = vunpack.c.l.b16 %v5541
          %v6301 = vunpack.c.h.b16 %v5541
          %v6302 = vunpack.c.l.b16 %v5542
          %v6303 = vunpack.c.h.b16 %v5542
          %v6304 = vunpack.c.l.b16 %v5543
          %v6305 = vunpack.c.h.b16 %v5543
          %v6306 = vunpack.c.l.b16 %v5544
          %v6307 = vunpack.c.h.b16 %v5544
          %v6308 = vunpack.c.l.b16 %v5545
          %v6309 = vunpack.c.h.b16 %v5545
          %v6310 = vunpack.c.l.b16 %v5546
          %v6311 = vunpack.c.h.b16 %v5546
          %v6312 = vunpack.c.l.b16 %v5547
          %v6313 = vunpack.c.h.b16 %v5547
          %v6314 = vunpack.c.l.b16 %v5548
          %v6315 = vunpack.c.h.b16 %v5548
          %v6316 = vunpack.c.l.b16 %v5549
          %v6317 = vunpack.c.h.b16 %v5549
          %v6318 = vpack.c.b16 %v5810, %v5806
          %v6319 = vpack.c.b16 %v5811, %v5807
          %v6320 = vpack.c.b16 %v5812, %v5808
          %v6321 = vpack.c.b16 %v5813, %v5809
          %v6322 = vpack.c.b16 %v5818, %v5814
          %v6323 = vpack.c.b16 %v5819, %v5815
          %v6324 = vpack.c.b16 %v5820, %v5816
          %v6325 = vpack.c.b16 %v5821, %v5817
          %v6326 = vpack.c.b16 %v5826, %v5822
          %v6327 = vpack.c.b16 %v5827, %v5823
          %v6328 = vpack.c.b16 %v5828, %v5824
          %v6329 = vpack.c.b16 %v5829, %v5825
          %v6330 = vpack.c.b16 %v5834, %v5830
          %v6331 = vpack.c.b16 %v5835, %v5831
          %v6332 = vpack.c.b16 %v5836, %v5832
          %v6333 = vpack.c.b16 %v5837, %v5833
          %v6334 = vpack.c.b16 %v5842, %v5838
          %v6335 = vpack.c.b16 %v5843, %v5839
          %v6336 = vpack.c.b16 %v5844, %v5840
          %v6337 = vpack.c.b16 %v5845, %v5841
          %v6338 = vpack.c.b16 %v5850, %v5846
          %v6339 = vpack.c.b16 %v5851, %v5847
          %v6340 = vpack.c.b16 %v5852, %v5848
          %v6341 = vpack.c.b16 %v5853, %v5849
          %v6342 = vpack.c.b16 %v5858, %v5854
          %v6343 = vpack.c.b16 %v5859, %v5855
          %v6344 = vpack.c.b16 %v5860, %v5856
          %v6345 = vpack.c.b16 %v5861, %v5857
          %v6346 = vpack.c.b16 %v5866, %v5862
          %v6347 = vpack.c.b16 %v5867, %v5863
          %v6348 = vpack.c.b16 %v5868, %v5864
          %v6349 = vpack.c.b16 %v5869, %v5865
          %v6350 = vpack.c.b16 %v5874, %v5870
          %v6351 = vpack.c.b16 %v5875, %v5871
          %v6352 = vpack.c.b16 %v5876, %v5872
          %v6353 = vpack.c.b16 %v5877, %v5873
          %v6354 = vpack.c.b16 %v5882, %v5878
          %v6355 = vpack.c.b16 %v5883, %v5879
          %v6356 = vpack.c.b16 %v5884, %v5880
          %v6357 = vpack.c.b16 %v5885, %v5881
          %v6358 = vpack.c.b16 %v5890, %v5886
          %v6359 = vpack.c.b16 %v5891, %v5887
          %v6360 = vpack.c.b16 %v5892, %v5888
          %v6361 = vpack.c.b16 %v5893, %v5889
          %v6362 = vpack.c.b16 %v5898, %v5894
          %v6363 = vpack.c.b16 %v5899, %v5895
          %v6364 = vpack.c.b16 %v5900, %v5896
          %v6365 = vpack.c.b16 %v5901, %v5897
          %v6366 = vpack.c.b16 %v5906, %v5902
          %v6367 = vpack.c.b16 %v5907, %v5903
          %v6368 = vpack.c.b16 %v5908, %v5904
          %v6369 = vpack.c.b16 %v5909, %v5905
          %v6370 = vpack.c.b16 %v5914, %v5910
          %v6371 = vpack.c.b16 %v5915, %v5911
          %v6372 = vpack.c.b16 %v5916, %v5912
          %v6373 = vpack.c.b16 %v5917, %v5913
          %v6374 = vpack.c.b16 %v5922, %v5918
          %v6375 = vpack.c.b16 %v5923, %v5919
          %v6376 = vpack.c.b16 %v5924, %v5920
          %v6377 = vpack.c.b16 %v5925, %v5921
          %v6378 = vpack.c.b16 %v5930, %v5926
          %v6379 = vpack.c.b16 %v5931, %v5927
          %v6380 = vpack.c.b16 %v5932, %v5928
          %v6381 = vpack.c.b16 %v5933, %v5929
          %v6382 = vpack.c.b16 %v5938, %v5934
          %v6383 = vpack.c.b16 %v5939, %v5935
          %v6384 = vpack.c.b16 %v5940, %v5936
          %v6385 = vpack.c.b16 %v5941, %v5937
          %v6386 = vpack.c.b16 %v5946, %v5942
          %v6387 = vpack.c.b16 %v5947, %v5943
          %v6388 = vpack.c.b16 %v5948, %v5944
          %v6389 = vpack.c.b16 %v5949, %v5945
          %v6390 = vpack.c.b16 %v5954, %v5950
          %v6391 = vpack.c.b16 %v5955, %v5951
          %v6392 = vpack.c.b16 %v5956, %v5952
          %v6393 = vpack.c.b16 %v5957, %v5953
          %v6394 = vpack.c.b16 %v5962, %v5958
          %v6395 = vpack.c.b16 %v5963, %v5959
          %v6396 = vpack.c.b16 %v5964, %v5960
          %v6397 = vpack.c.b16 %v5965, %v5961
          %v6398 = vpack.c.b16 %v5970, %v5966
          %v6399 = vpack.c.b16 %v5971, %v5967
          %v6400 = vpack.c.b16 %v5972, %v5968
          %v6401 = vpack.c.b16 %v5973, %v5969
          %v6402 = vpack.c.b16 %v5978, %v5974
          %v6403 = vpack.c.b16 %v5979, %v5975
          %v6404 = vpack.c.b16 %v5980, %v5976
          %v6405 = vpack.c.b16 %v5981, %v5977
          %v6406 = vpack.c.b16 %v5986, %v5982
          %v6407 = vpack.c.b16 %v5987, %v5983
          %v6408 = vpack.c.b16 %v5988, %v5984
          %v6409 = vpack.c.b16 %v5989, %v5985
          %v6410 = vpack.c.b16 %v5994, %v5990
          %v6411 = vpack.c.b16 %v5995, %v5991
          %v6412 = vpack.c.b16 %v5996, %v5992
          %v6413 = vpack.c.b16 %v5997, %v5993
          %v6414 = vpack.c.b16 %v6002, %v5998
          %v6415 = vpack.c.b16 %v6003, %v5999
          %v6416 = vpack.c.b16 %v6004, %v6000
          %v6417 = vpack.c.b16 %v6005, %v6001
          %v6418 = vpack.c.b16 %v6010, %v6006
          %v6419 = vpack.c.b16 %v6011, %v6007
          %v6420 = vpack.c.b16 %v6012, %v6008
          %v6421 = vpack.c.b16 %v6013, %v6009
          %v6422 = vpack.c.b16 %v6018, %v6014
          %v6423 = vpack.c.b16 %v6019, %v6015
          %v6424 = vpack.c.b16 %v6020, %v6016
          %v6425 = vpack.c.b16 %v6021, %v6017
          %v6426 = vpack.c.b16 %v6026, %v6022
          %v6427 = vpack.c.b16 %v6027, %v6023
          %v6428 = vpack.c.b16 %v6028, %v6024
          %v6429 = vpack.c.b16 %v6029, %v6025
          %v6430 = vpack.c.b16 %v6034, %v6030
          %v6431 = vpack.c.b16 %v6035, %v6031
          %v6432 = vpack.c.b16 %v6036, %v6032
          %v6433 = vpack.c.b16 %v6037, %v6033
          %v6434 = vpack.c.b16 %v6042, %v6038
          %v6435 = vpack.c.b16 %v6043, %v6039
          %v6436 = vpack.c.b16 %v6044, %v6040
          %v6437 = vpack.c.b16 %v6045, %v6041
          %v6438 = vpack.c.b16 %v6050, %v6046
          %v6439 = vpack.c.b16 %v6051, %v6047
          %v6440 = vpack.c.b16 %v6052, %v6048
          %v6441 = vpack.c.b16 %v6053, %v6049
          %v6442 = vpack.c.b16 %v6058, %v6054
          %v6443 = vpack.c.b16 %v6059, %v6055
          %v6444 = vpack.c.b16 %v6060, %v6056
          %v6445 = vpack.c.b16 %v6061, %v6057
          %v6446 = vpack.c.b16 %v6066, %v6062
          %v6447 = vpack.c.b16 %v6067, %v6063
          %v6448 = vpack.c.b16 %v6068, %v6064
          %v6449 = vpack.c.b16 %v6069, %v6065
          %v6450 = vpack.c.b16 %v6074, %v6070
          %v6451 = vpack.c.b16 %v6075, %v6071
          %v6452 = vpack.c.b16 %v6076, %v6072
          %v6453 = vpack.c.b16 %v6077, %v6073
          %v6454 = vpack.c.b16 %v6082, %v6078
          %v6455 = vpack.c.b16 %v6083, %v6079
          %v6456 = vpack.c.b16 %v6084, %v6080
          %v6457 = vpack.c.b16 %v6085, %v6081
          %v6458 = vpack.c.b16 %v6090, %v6086
          %v6459 = vpack.c.b16 %v6091, %v6087
          %v6460 = vpack.c.b16 %v6092, %v6088
          %v6461 = vpack.c.b16 %v6093, %v6089
          %v6462 = vpack.c.b16 %v6098, %v6094
          %v6463 = vpack.c.b16 %v6099, %v6095
          %v6464 = vpack.c.b16 %v6100, %v6096
          %v6465 = vpack.c.b16 %v6101, %v6097
          %v6466 = vpack.c.b16 %v6106, %v6102
          %v6467 = vpack.c.b16 %v6107, %v6103
          %v6468 = vpack.c.b16 %v6108, %v6104
          %v6469 = vpack.c.b16 %v6109, %v6105
          %v6470 = vpack.c.b16 %v6114, %v6110
          %v6471 = vpack.c.b16 %v6115, %v6111
          %v6472 = vpack.c.b16 %v6116, %v6112
          %v6473 = vpack.c.b16 %v6117, %v6113
          %v6474 = vpack.c.b16 %v6122, %v6118
          %v6475 = vpack.c.b16 %v6123, %v6119
          %v6476 = vpack.c.b16 %v6124, %v6120
          %v6477 = vpack.c.b16 %v6125, %v6121
          %v6478 = vpack.c.b16 %v6130, %v6126
          %v6479 = vpack.c.b16 %v6131, %v6127
          %v6480 = vpack.c.b16 %v6132, %v6128
          %v6481 = vpack.c.b16 %v6133, %v6129
          %v6482 = vpack.c.b16 %v6138, %v6134
          %v6483 = vpack.c.b16 %v6139, %v6135
          %v6484 = vpack.c.b16 %v6140, %v6136
          %v6485 = vpack.c.b16 %v6141, %v6137
          %v6486 = vpack.c.b16 %v6146, %v6142
          %v6487 = vpack.c.b16 %v6147, %v6143
          %v6488 = vpack.c.b16 %v6148, %v6144
          %v6489 = vpack.c.b16 %v6149, %v6145
          %v6490 = vpack.c.b16 %v6154, %v6150
          %v6491 = vpack.c.b16 %v6155, %v6151
          %v6492 = vpack.c.b16 %v6156, %v6152
          %v6493 = vpack.c.b16 %v6157, %v6153
          %v6494 = vpack.c.b16 %v6162, %v6158
          %v6495 = vpack.c.b16 %v6163, %v6159
          %v6496 = vpack.c.b16 %v6164, %v6160
          %v6497 = vpack.c.b16 %v6165, %v6161
          %v6498 = vpack.c.b16 %v6170, %v6166
          %v6499 = vpack.c.b16 %v6171, %v6167
          %v6500 = vpack.c.b16 %v6172, %v6168
          %v6501 = vpack.c.b16 %v6173, %v6169
          %v6502 = vpack.c.b16 %v6178, %v6174
          %v6503 = vpack.c.b16 %v6179, %v6175
          %v6504 = vpack.c.b16 %v6180, %v6176
          %v6505 = vpack.c.b16 %v6181, %v6177
          %v6506 = vpack.c.b16 %v6186, %v6182
          %v6507 = vpack.c.b16 %v6187, %v6183
          %v6508 = vpack.c.b16 %v6188, %v6184
          %v6509 = vpack.c.b16 %v6189, %v6185
          %v6510 = vpack.c.b16 %v6194, %v6190
          %v6511 = vpack.c.b16 %v6195, %v6191
          %v6512 = vpack.c.b16 %v6196, %v6192
          %v6513 = vpack.c.b16 %v6197, %v6193
          %v6514 = vpack.c.b16 %v6202, %v6198
          %v6515 = vpack.c.b16 %v6203, %v6199
          %v6516 = vpack.c.b16 %v6204, %v6200
          %v6517 = vpack.c.b16 %v6205, %v6201
          %v6518 = vpack.c.b16 %v6210, %v6206
          %v6519 = vpack.c.b16 %v6211, %v6207
          %v6520 = vpack.c.b16 %v6212, %v6208
          %v6521 = vpack.c.b16 %v6213, %v6209
          %v6522 = vpack.c.b16 %v6218, %v6214
          %v6523 = vpack.c.b16 %v6219, %v6215
          %v6524 = vpack.c.b16 %v6220, %v6216
          %v6525 = vpack.c.b16 %v6221, %v6217
          %v6526 = vpack.c.b16 %v6226, %v6222
          %v6527 = vpack.c.b16 %v6227, %v6223
          %v6528 = vpack.c.b16 %v6228, %v6224
          %v6529 = vpack.c.b16 %v6229, %v6225
          %v6530 = vpack.c.b16 %v6234, %v6230
          %v6531 = vpack.c.b16 %v6235, %v6231
          %v6532 = vpack.c.b16 %v6236, %v6232
          %v6533 = vpack.c.b16 %v6237, %v6233
          %v6534 = vpack.c.b16 %v6242, %v6238
          %v6535 = vpack.c.b16 %v6243, %v6239
          %v6536 = vpack.c.b16 %v6244, %v6240
          %v6537 = vpack.c.b16 %v6245, %v6241
          %v6538 = vpack.c.b16 %v6250, %v6246
          %v6539 = vpack.c.b16 %v6251, %v6247
          %v6540 = vpack.c.b16 %v6252, %v6248
          %v6541 = vpack.c.b16 %v6253, %v6249
          %v6542 = vpack.c.b16 %v6258, %v6254
          %v6543 = vpack.c.b16 %v6259, %v6255
          %v6544 = vpack.c.b16 %v6260, %v6256
          %v6545 = vpack.c.b16 %v6261, %v6257
          %v6546 = vpack.c.b16 %v6266, %v6262
          %v6547 = vpack.c.b16 %v6267, %v6263
          %v6548 = vpack.c.b16 %v6268, %v6264
          %v6549 = vpack.c.b16 %v6269, %v6265
          %v6550 = vpack.c.b16 %v6274, %v6270
          %v6551 = vpack.c.b16 %v6275, %v6271
          %v6552 = vpack.c.b16 %v6276, %v6272
          %v6553 = vpack.c.b16 %v6277, %v6273
          %v6554 = vpack.c.b16 %v6282, %v6278
          %v6555 = vpack.c.b16 %v6283, %v6279
          %v6556 = vpack.c.b16 %v6284, %v6280
          %v6557 = vpack.c.b16 %v6285, %v6281
          %v6558 = vpack.c.b16 %v6290, %v6286
          %v6559 = vpack.c.b16 %v6291, %v6287
          %v6560 = vpack.c.b16 %v6292, %v6288
          %v6561 = vpack.c.b16 %v6293, %v6289
          %v6562 = vpack.c.b16 %v6298, %v6294
          %v6563 = vpack.c.b16 %v6299, %v6295
          %v6564 = vpack.c.b16 %v6300, %v6296
          %v6565 = vpack.c.b16 %v6301, %v6297
          %v6566 = vpack.c.b16 %v6306, %v6302
          %v6567 = vpack.c.b16 %v6307, %v6303
          %v6568 = vpack.c.b16 %v6308, %v6304
          %v6569 = vpack.c.b16 %v6309, %v6305
          %v6570 = vpack.c.b16 %v6314, %v6310
          %v6571 = vpack.c.b16 %v6315, %v6311
          %v6572 = vpack.c.b16 %v6316, %v6312
          %v6573 = vpack.c.b16 %v6317, %v6313
          %6830 = vmatprep.subr.bf16.mxu0 %v6319
          %6831 = vmatpush1.bf16.msra.mxu0 %v6318
          %6832 = vmatprep.subr.bf16.mxu0 %v6323
          %6833 = vmatpush1.bf16.msra.mxu0 %v6322
          %6834 = vmatprep.subr.bf16.mxu0 %v6327
          %6835 = vmatpush1.bf16.msra.mxu0 %v6326
          %6836 = vmatprep.subr.bf16.mxu0 %v6331
          %6837 = vmatpush1.bf16.msra.mxu0 %v6330
          %6838 = vmatprep.subr.bf16.mxu0 %v6335
          %6839 = vmatpush1.bf16.msra.mxu0 %v6334
          %6840 = vmatprep.subr.bf16.mxu0 %v6339
          %6841 = vmatpush1.bf16.msra.mxu0 %v6338
          %6842 = vmatprep.subr.bf16.mxu0 %v6343
          %6843 = vmatpush1.bf16.msra.mxu0 %v6342
          %6844 = vmatprep.subr.bf16.mxu0 %v6347
          %6845 = vmatpush1.bf16.msra.mxu0 %v6346
          %6846 = vmatprep.subr.bf16.mxu0 %v6351
          %6847 = vmatpush1.bf16.msra.mxu0 %v6350
          %6848 = vmatprep.subr.bf16.mxu0 %v6355
          %6849 = vmatpush1.bf16.msra.mxu0 %v6354
          %6850 = vmatprep.subr.bf16.mxu0 %v6359
          %6851 = vmatpush1.bf16.msra.mxu0 %v6358
          %6852 = vmatprep.subr.bf16.mxu0 %v6363
          %6853 = vmatpush1.bf16.msra.mxu0 %v6362
          %6854 = vmatprep.subr.bf16.mxu0 %v6367
          %6855 = vmatpush1.bf16.msra.mxu0 %v6366
          %6856 = vmatprep.subr.bf16.mxu0 %v6371
          %6857 = vmatpush1.bf16.msra.mxu0 %v6370
          %6858 = vmatprep.subr.bf16.mxu0 %v6375
          %6859 = vmatpush1.bf16.msra.mxu0 %v6374
          %6860 = vmatprep.subr.bf16.mxu0 %v6379
          %6861 = vmatpush1.bf16.msra.mxu0 %v6378
          %6862 = vmatprep.mubr.bf16.mxu0 %v5287
          %6863 = vmatmul.mubr.bf16.gmra.mrb[0].mxu0 %v5286
          %v6864 = vpop.f32.mrb[0].mxu0
          %v6865 = vadd.f32 0.0, %v6864
          %v6866 = vpop.f32.mrb[0].mxu0
          %v6867 = vadd.f32 0.0, %v6866
          %v6868 = vpop.f32.mrb[0].mxu0
          %v6869 = vpop.f32.mrb[0].mxu0
          %6870 = vdwg.mxu0
          %6871 = vmatprep.subr.bf16.mxu0 %v6383
          %6872 = vmatpush1.bf16.msra.mxu0 %v6382
          %6873 = vmatprep.subr.bf16.mxu0 %v6387
          %6874 = vmatpush1.bf16.msra.mxu0 %v6386
          %6875 = vmatprep.subr.bf16.mxu0 %v6391
          %6876 = vmatpush1.bf16.msra.mxu0 %v6390
          %6877 = vmatprep.subr.bf16.mxu0 %v6395
          %6878 = vmatpush1.bf16.msra.mxu0 %v6394
          %6879 = vmatprep.subr.bf16.mxu0 %v6399
          %6880 = vmatpush1.bf16.msra.mxu0 %v6398
          %6881 = vmatprep.subr.bf16.mxu0 %v6403
          %6882 = vmatpush1.bf16.msra.mxu0 %v6402
          %6883 = vmatprep.subr.bf16.mxu0 %v6407
          %6884 = vmatpush1.bf16.msra.mxu0 %v6406
          %6885 = vmatprep.subr.bf16.mxu0 %v6411
          %6886 = vmatpush1.bf16.msra.mxu0 %v6410
          %6887 = vmatprep.subr.bf16.mxu0 %v6415
          %6888 = vmatpush1.bf16.msra.mxu0 %v6414
          %6889 = vmatprep.subr.bf16.mxu0 %v6419
          %6890 = vmatpush1.bf16.msra.mxu0 %v6418
          %6891 = vmatprep.subr.bf16.mxu0 %v6423
          %6892 = vmatpush1.bf16.msra.mxu0 %v6422
          %6893 = vmatprep.subr.bf16.mxu0 %v6427
          %6894 = vmatpush1.bf16.msra.mxu0 %v6426
          %6895 = vmatprep.subr.bf16.mxu0 %v6431
          %6896 = vmatpush1.bf16.msra.mxu0 %v6430
          %6897 = vmatprep.subr.bf16.mxu0 %v6435
          %6898 = vmatpush1.bf16.msra.mxu0 %v6434
          %6899 = vmatprep.subr.bf16.mxu0 %v6439
          %6900 = vmatpush1.bf16.msra.mxu0 %v6438
          %6901 = vmatprep.subr.bf16.mxu0 %v6443
          %6902 = vmatpush1.bf16.msra.mxu0 %v6442
          %6903 = vmatprep.mubr.bf16.mxu0 %v5289
          %6904 = vmatmul.mubr.bf16.gmra.mrb[0].mxu0 %v5288
          %v6905 = vpop.f32.mrb[0].mxu0
          %v6906 = vadd.f32 %v6865, %v6905
          %v6907 = vpop.f32.mrb[0].mxu0
          %v6908 = vadd.f32 %v6867, %v6907
          %v6909 = vpop.f32.mrb[0].mxu0
          %v6910 = vpop.f32.mrb[0].mxu0
          %6911 = vdwg.mxu0
          %6912 = vmatprep.subr.bf16.mxu0 %v6447
          %6913 = vmatpush1.bf16.msra.mxu0 %v6446
          %6914 = vmatprep.subr.bf16.mxu0 %v6451
          %6915 = vmatpush1.bf16.msra.mxu0 %v6450
          %6916 = vmatprep.subr.bf16.mxu0 %v6455
          %6917 = vmatpush1.bf16.msra.mxu0 %v6454
          %6918 = vmatprep.subr.bf16.mxu0 %v6459
          %6919 = vmatpush1.bf16.msra.mxu0 %v6458
          %6920 = vmatprep.subr.bf16.mxu0 %v6463
          %6921 = vmatpush1.bf16.msra.mxu0 %v6462
          %6922 = vmatprep.subr.bf16.mxu0 %v6467
          %6923 = vmatpush1.bf16.msra.mxu0 %v6466
          %6924 = vmatprep.subr.bf16.mxu0 %v6471
          %6925 = vmatpush1.bf16.msra.mxu0 %v6470
          %6926 = vmatprep.subr.bf16.mxu0 %v6475
          %6927 = vmatpush1.bf16.msra.mxu0 %v6474
          %6928 = vmatprep.subr.bf16.mxu0 %v6479
          %6929 = vmatpush1.bf16.msra.mxu0 %v6478
          %6930 = vmatprep.subr.bf16.mxu0 %v6483
          %6931 = vmatpush1.bf16.msra.mxu0 %v6482
          %6932 = vmatprep.subr.bf16.mxu0 %v6487
          %6933 = vmatpush1.bf16.msra.mxu0 %v6486
          %6934 = vmatprep.subr.bf16.mxu0 %v6491
          %6935 = vmatpush1.bf16.msra.mxu0 %v6490
          %6936 = vmatprep.subr.bf16.mxu0 %v6495
          %6937 = vmatpush1.bf16.msra.mxu0 %v6494
          %6938 = vmatprep.subr.bf16.mxu0 %v6499
          %6939 = vmatpush1.bf16.msra.mxu0 %v6498
          %6940 = vmatprep.subr.bf16.mxu0 %v6503
          %6941 = vmatpush1.bf16.msra.mxu0 %v6502
          %6942 = vmatprep.subr.bf16.mxu0 %v6507
          %6943 = vmatpush1.bf16.msra.mxu0 %v6506
          %6944 = vmatprep.mubr.bf16.mxu0 %v5291
          %6945 = vmatmul.mubr.bf16.gmra.mrb[0].mxu0 %v5290
          %v6946 = vpop.f32.mrb[0].mxu0
          %v6947 = vadd.f32 %v6906, %v6946
          %v6948 = vpop.f32.mrb[0].mxu0
          %v6949 = vadd.f32 %v6908, %v6948
          %v6950 = vpop.f32.mrb[0].mxu0
          %v6951 = vpop.f32.mrb[0].mxu0
          %6952 = vdwg.mxu0
          %6953 = vmatprep.subr.bf16.mxu0 %v6511
          %6954 = vmatpush1.bf16.msra.mxu0 %v6510
          %6955 = vmatprep.subr.bf16.mxu0 %v6515
          %6956 = vmatpush1.bf16.msra.mxu0 %v6514
          %6957 = vmatprep.subr.bf16.mxu0 %v6519
          %6958 = vmatpush1.bf16.msra.mxu0 %v6518
          %6959 = vmatprep.subr.bf16.mxu0 %v6523
          %6960 = vmatpush1.bf16.msra.mxu0 %v6522
          %6961 = vmatprep.subr.bf16.mxu0 %v6527
          %6962 = vmatpush1.bf16.msra.mxu0 %v6526
          %6963 = vmatprep.subr.bf16.mxu0 %v6531
          %6964 = vmatpush1.bf16.msra.mxu0 %v6530
          %6965 = vmatprep.subr.bf16.mxu0 %v6535
          %6966 = vmatpush1.bf16.msra.mxu0 %v6534
          %6967 = vmatprep.subr.bf16.mxu0 %v6539
          %6968 = vmatpush1.bf16.msra.mxu0 %v6538
          %6969 = vmatprep.subr.bf16.mxu0 %v6543
          %6970 = vmatpush1.bf16.msra.mxu0 %v6542
          %6971 = vmatprep.subr.bf16.mxu0 %v6547
          %6972 = vmatpush1.bf16.msra.mxu0 %v6546
          %6973 = vmatprep.subr.bf16.mxu0 %v6551
          %6974 = vmatpush1.bf16.msra.mxu0 %v6550
          %6975 = vmatprep.subr.bf16.mxu0 %v6555
          %6976 = vmatpush1.bf16.msra.mxu0 %v6554
          %6977 = vmatprep.subr.bf16.mxu0 %v6559
          %6978 = vmatpush1.bf16.msra.mxu0 %v6558
          %6979 = vmatprep.subr.bf16.mxu0 %v6563
          %6980 = vmatpush1.bf16.msra.mxu0 %v6562
          %6981 = vmatprep.subr.bf16.mxu0 %v6567
          %6982 = vmatpush1.bf16.msra.mxu0 %v6566
          %6983 = vmatprep.subr.bf16.mxu0 %v6571
          %6984 = vmatpush1.bf16.msra.mxu0 %v6570
          %6985 = vmatprep.mubr.bf16.mxu0 %v5293
          %6986 = vmatmul.mubr.bf16.gmra.mrb[0].mxu0 %v5292
          %v6987 = vpop.f32.mrb[0].mxu0
          %v6988 = vadd.f32 %v6947, %v6987
          %v6989 = vpop.f32.mrb[0].mxu0
          %v6990 = vadd.f32 %v6949, %v6989
          %v6991 = vpop.f32.mrb[0].mxu0
          %v6992 = vpop.f32.mrb[0].mxu0
          %6993 = vdwg.mxu0
          %6994 = vmatprep.subr.bf16.mxu0 %v6321
          %6995 = vmatpush1.bf16.msra.mxu0 %v6320
          %6996 = vmatprep.subr.bf16.mxu0 %v6325
          %6997 = vmatpush1.bf16.msra.mxu0 %v6324
          %6998 = vmatprep.subr.bf16.mxu0 %v6329
          %6999 = vmatpush1.bf16.msra.mxu0 %v6328
          %7000 = vmatprep.subr.bf16.mxu0 %v6333
          %7001 = vmatpush1.bf16.msra.mxu0 %v6332
          %7002 = vmatprep.subr.bf16.mxu0 %v6337
          %7003 = vmatpush1.bf16.msra.mxu0 %v6336
          %7004 = vmatprep.subr.bf16.mxu0 %v6341
          %7005 = vmatpush1.bf16.msra.mxu0 %v6340
          %7006 = vmatprep.subr.bf16.mxu0 %v6345
          %7007 = vmatpush1.bf16.msra.mxu0 %v6344
          %7008 = vmatprep.subr.bf16.mxu0 %v6349
          %7009 = vmatpush1.bf16.msra.mxu0 %v6348
          %7010 = vmatprep.subr.bf16.mxu0 %v6353
          %7011 = vmatpush1.bf16.msra.mxu0 %v6352
          %7012 = vmatprep.subr.bf16.mxu0 %v6357
          %7013 = vmatpush1.bf16.msra.mxu0 %v6356
          %7014 = vmatprep.subr.bf16.mxu0 %v6361
          %7015 = vmatpush1.bf16.msra.mxu0 %v6360
          %7016 = vmatprep.subr.bf16.mxu0 %v6365
          %7017 = vmatpush1.bf16.msra.mxu0 %v6364
          %7018 = vmatprep.subr.bf16.mxu0 %v6369
          %7019 = vmatpush1.bf16.msra.mxu0 %v6368
          %7020 = vmatprep.subr.bf16.mxu0 %v6373
          %7021 = vmatpush1.bf16.msra.mxu0 %v6372
          %7022 = vmatprep.subr.bf16.mxu0 %v6377
          %7023 = vmatpush1.bf16.msra.mxu0 %v6376
          %7024 = vmatprep.subr.bf16.mxu0 %v6381
          %7025 = vmatpush1.bf16.msra.mxu0 %v6380
          %7026 = vmatprep.mubr.bf16.mxu0 %v5287
          %7027 = vmatmul.mubr.bf16.gmra.mrb[0].mxu0 %v5286
          %v7028 = vpop.f32.mrb[0].mxu0
          %v7029 = vadd.f32 0.0, %v7028
          %v7030 = vpop.f32.mrb[0].mxu0
          %v7031 = vadd.f32 0.0, %v7030
          %v7032 = vpop.f32.mrb[0].mxu0
          %v7033 = vpop.f32.mrb[0].mxu0
          %7034 = vdwg.mxu0
          %7035 = vmatprep.subr.bf16.mxu0 %v6385
          %7036 = vmatpush1.bf16.msra.mxu0 %v6384
          %7037 = vmatprep.subr.bf16.mxu0 %v6389
          %7038 = vmatpush1.bf16.msra.mxu0 %v6388
          %7039 = vmatprep.subr.bf16.mxu0 %v6393
          %7040 = vmatpush1.bf16.msra.mxu0 %v6392
          %7041 = vmatprep.subr.bf16.mxu0 %v6397
          %7042 = vmatpush1.bf16.msra.mxu0 %v6396
          %7043 = vmatprep.subr.bf16.mxu0 %v6401
          %7044 = vmatpush1.bf16.msra.mxu0 %v6400
          %7045 = vmatprep.subr.bf16.mxu0 %v6405
          %7046 = vmatpush1.bf16.msra.mxu0 %v6404
          %7047 = vmatprep.subr.bf16.mxu0 %v6409
          %7048 = vmatpush1.bf16.msra.mxu0 %v6408
          %7049 = vmatprep.subr.bf16.mxu0 %v6413
          %7050 = vmatpush1.bf16.msra.mxu0 %v6412
          %7051 = vmatprep.subr.bf16.mxu0 %v6417
          %7052 = vmatpush1.bf16.msra.mxu0 %v6416
          %7053 = vmatprep.subr.bf16.mxu0 %v6421
          %7054 = vmatpush1.bf16.msra.mxu0 %v6420
          %7055 = vmatprep.subr.bf16.mxu0 %v6425
          %7056 = vmatpush1.bf16.msra.mxu0 %v6424
          %7057 = vmatprep.subr.bf16.mxu0 %v6429
          %7058 = vmatpush1.bf16.msra.mxu0 %v6428
          %7059 = vmatprep.subr.bf16.mxu0 %v6433
          %7060 = vmatpush1.bf16.msra.mxu0 %v6432
          %7061 = vmatprep.subr.bf16.mxu0 %v6437
          %7062 = vmatpush1.bf16.msra.mxu0 %v6436
          %7063 = vmatprep.subr.bf16.mxu0 %v6441
          %7064 = vmatpush1.bf16.msra.mxu0 %v6440
          %7065 = vmatprep.subr.bf16.mxu0 %v6445
          %7066 = vmatpush1.bf16.msra.mxu0 %v6444
          %7067 = vmatprep.mubr.bf16.mxu0 %v5289
          %7068 = vmatmul.mubr.bf16.gmra.mrb[0].mxu0 %v5288
          %v7069 = vpop.f32.mrb[0].mxu0
          %v7070 = vadd.f32 %v7029, %v7069
          %v7071 = vpop.f32.mrb[0].mxu0
          %v7072 = vadd.f32 %v7031, %v7071
          %v7073 = vpop.f32.mrb[0].mxu0
          %v7074 = vpop.f32.mrb[0].mxu0
          %7075 = vdwg.mxu0
          %7076 = vmatprep.subr.bf16.mxu0 %v6449
          %7077 = vmatpush1.bf16.msra.mxu0 %v6448
          %7078 = vmatprep.subr.bf16.mxu0 %v6453
          %7079 = vmatpush1.bf16.msra.mxu0 %v6452
          %7080 = vmatprep.subr.bf16.mxu0 %v6457
          %7081 = vmatpush1.bf16.msra.mxu0 %v6456
          %7082 = vmatprep.subr.bf16.mxu0 %v6461
          %7083 = vmatpush1.bf16.msra.mxu0 %v6460
          %7084 = vmatprep.subr.bf16.mxu0 %v6465
          %7085 = vmatpush1.bf16.msra.mxu0 %v6464
          %7086 = vmatprep.subr.bf16.mxu0 %v6469
          %7087 = vmatpush1.bf16.msra.mxu0 %v6468
          %7088 = vmatprep.subr.bf16.mxu0 %v6473
          %7089 = vmatpush1.bf16.msra.mxu0 %v6472
          %7090 = vmatprep.subr.bf16.mxu0 %v6477
          %7091 = vmatpush1.bf16.msra.mxu0 %v6476
          %7092 = vmatprep.subr.bf16.mxu0 %v6481
          %7093 = vmatpush1.bf16.msra.mxu0 %v6480
          %7094 = vmatprep.subr.bf16.mxu0 %v6485
          %7095 = vmatpush1.bf16.msra.mxu0 %v6484
          %7096 = vmatprep.subr.bf16.mxu0 %v6489
          %7097 = vmatpush1.bf16.msra.mxu0 %v6488
          %7098 = vmatprep.subr.bf16.mxu0 %v6493
          %7099 = vmatpush1.bf16.msra.mxu0 %v6492
          %7100 = vmatprep.subr.bf16.mxu0 %v6497
          %7101 = vmatpush1.bf16.msra.mxu0 %v6496
          %7102 = vmatprep.subr.bf16.mxu0 %v6501
          %7103 = vmatpush1.bf16.msra.mxu0 %v6500
          %7104 = vmatprep.subr.bf16.mxu0 %v6505
          %7105 = vmatpush1.bf16.msra.mxu0 %v6504
          %7106 = vmatprep.subr.bf16.mxu0 %v6509
          %7107 = vmatpush1.bf16.msra.mxu0 %v6508
          %7108 = vmatprep.mubr.bf16.mxu0 %v5291
          %7109 = vmatmul.mubr.bf16.gmra.mrb[0].mxu0 %v5290
          %v7110 = vpop.f32.mrb[0].mxu0
          %v7111 = vadd.f32 %v7070, %v7110
          %v7112 = vpop.f32.mrb[0].mxu0
          %v7113 = vadd.f32 %v7072, %v7112
          %v7114 = vpop.f32.mrb[0].mxu0
          %v7115 = vpop.f32.mrb[0].mxu0
          %7116 = vdwg.mxu0
          %7117 = vmatprep.subr.bf16.mxu0 %v6513
          %7118 = vmatpush1.bf16.msra.mxu0 %v6512
          %7119 = vmatprep.subr.bf16.mxu0 %v6517
          %7120 = vmatpush1.bf16.msra.mxu0 %v6516
          %7121 = vmatprep.subr.bf16.mxu0 %v6521
          %7122 = vmatpush1.bf16.msra.mxu0 %v6520
          %7123 = vmatprep.subr.bf16.mxu0 %v6525
          %7124 = vmatpush1.bf16.msra.mxu0 %v6524
          %7125 = vmatprep.subr.bf16.mxu0 %v6529
          %7126 = vmatpush1.bf16.msra.mxu0 %v6528
          %7127 = vmatprep.subr.bf16.mxu0 %v6533
          %7128 = vmatpush1.bf16.msra.mxu0 %v6532
          %7129 = vmatprep.subr.bf16.mxu0 %v6537
          %7130 = vmatpush1.bf16.msra.mxu0 %v6536
          %7131 = vmatprep.subr.bf16.mxu0 %v6541
          %7132 = vmatpush1.bf16.msra.mxu0 %v6540
          %7133 = vmatprep.subr.bf16.mxu0 %v6545
          %7134 = vmatpush1.bf16.msra.mxu0 %v6544
          %7135 = vmatprep.subr.bf16.mxu0 %v6549
          %7136 = vmatpush1.bf16.msra.mxu0 %v6548
          %7137 = vmatprep.subr.bf16.mxu0 %v6553
          %7138 = vmatpush1.bf16.msra.mxu0 %v6552
          %7139 = vmatprep.subr.bf16.mxu0 %v6557
          %7140 = vmatpush1.bf16.msra.mxu0 %v6556
          %7141 = vmatprep.subr.bf16.mxu0 %v6561
          %7142 = vmatpush1.bf16.msra.mxu0 %v6560
          %7143 = vmatprep.subr.bf16.mxu0 %v6565
          %7144 = vmatpush1.bf16.msra.mxu0 %v6564
          %7145 = vmatprep.subr.bf16.mxu0 %v6569
          %7146 = vmatpush1.bf16.msra.mxu0 %v6568
          %7147 = vmatprep.subr.bf16.mxu0 %v6573
          %7148 = vmatpush1.bf16.msra.mxu0 %v6572
          %7149 = vmatprep.mubr.bf16.mxu0 %v5293
          %7150 = vmatmul.mubr.bf16.gmra.mrb[0].mxu0 %v5292
          %v7151 = vpop.f32.mrb[0].mxu0
          %v7152 = vadd.f32 %v7111, %v7151
          %v7153 = vpop.f32.mrb[0].mxu0
          %v7154 = vadd.f32 %v7113, %v7153
          %v7155 = vpop.f32.mrb[0].mxu0
          %v7156 = vpop.f32.mrb[0].mxu0
          %7157 = vdwg.mxu0
          %v7158 = vld [vmem:[#allocation12] sm:$0xf]
          %v7159 = vld [vmem:[#allocation14] sm:$0xf]
          %v7160 = vrot.slane %v6988, 4
          %v7161 = vadd.f32 %v6988, %v7160
          %v7162 = vrot.slane %v7161, 2
          %v7163 = vadd.f32 %v7161, %v7162
          %v7164 = vrot.slane %v7163, 1
          %v7165 = vadd.f32 %v7163, %v7164
          %v7166 = vrot.slane %v6990, 4
          %v7167 = vadd.f32 %v6990, %v7166
          %v7168 = vrot.slane %v7167, 2
          %v7169 = vadd.f32 %v7167, %v7168
          %v7170 = vrot.slane %v7169, 1
          %v7171 = vadd.f32 %v7169, %v7170
          %v7172 = vrot.slane %v7152, 4
          %v7173 = vadd.f32 %v7152, %v7172
          %v7174 = vrot.slane %v7173, 2
          %v7175 = vadd.f32 %v7173, %v7174
          %v7176 = vrot.slane %v7175, 1
          %v7177 = vadd.f32 %v7175, %v7176
          %v7178 = vrot.slane %v7154, 4
          %v7179 = vadd.f32 %v7154, %v7178
          %v7180 = vrot.slane %v7179, 2
          %v7181 = vadd.f32 %v7179, %v7180
          %v7182 = vrot.slane %v7181, 1
          %v7183 = vadd.f32 %v7181, %v7182
          %v7184 = vmul.f32 %v7165, %v5075
          %v7185 = vmul.f32 %v7171, %v5075
          %v7186 = vmul.f32 %v7177, %v5075
          %v7187 = vmul.f32 %v7183, %v5075
          %v7188 = vsub.f32 %v6988, %v7184
          %v7189 = vsub.f32 %v6990, %v7185
          %v7190 = vsub.f32 %v7152, %v7186
          %v7191 = vsub.f32 %v7154, %v7187
          %v7192 = vmul.f32 %v7188, %v7188
          %v7193 = vmul.f32 %v7189, %v7189
          %v7194 = vmul.f32 %v7190, %v7190
          %v7195 = vmul.f32 %v7191, %v7191
          %v7196 = vrot.slane %v7192, 4
          %v7197 = vadd.f32 %v7192, %v7196
          %v7198 = vrot.slane %v7197, 2
          %v7199 = vadd.f32 %v7197, %v7198
          %v7200 = vrot.slane %v7199, 1
          %v7201 = vadd.f32 %v7199, %v7200
          %v7202 = vrot.slane %v7193, 4
          %v7203 = vadd.f32 %v7193, %v7202
          %v7204 = vrot.slane %v7203, 2
          %v7205 = vadd.f32 %v7203, %v7204
          %v7206 = vrot.slane %v7205, 1
          %v7207 = vadd.f32 %v7205, %v7206
          %v7208 = vrot.slane %v7194, 4
          %v7209 = vadd.f32 %v7194, %v7208
          %v7210 = vrot.slane %v7209, 2
          %v7211 = vadd.f32 %v7209, %v7210
          %v7212 = vrot.slane %v7211, 1
          %v7213 = vadd.f32 %v7211, %v7212
          %v7214 = vrot.slane %v7195, 4
          %v7215 = vadd.f32 %v7195, %v7214
          %v7216 = vrot.slane %v7215, 2
          %v7217 = vadd.f32 %v7215, %v7216
          %v7218 = vrot.slane %v7217, 1
          %v7219 = vadd.f32 %v7217, %v7218
          %v7220 = vmul.f32 %v7201, %v5075
          %v7221 = vmul.f32 %v7207, %v5075
          %v7222 = vmul.f32 %v7213, %v5075
          %v7223 = vmul.f32 %v7219, %v5075
          %v7224 = vadd.f32 %v7220, 1e-05
          %v7225 = vadd.f32 %v7221, 1e-05
          %v7226 = vadd.f32 %v7222, 1e-05
          %v7227 = vadd.f32 %v7223, 1e-05
          %v7228 = vrsqrt.pop %v7224
          %v7229 = vrsqrt.pop %v7225
          %v7230 = vrsqrt.pop %v7226
          %v7231 = vrsqrt.pop %v7227
          %v7232 = vmul.f32 %v7188, %v7228
          %v7233 = vmul.f32 %v7189, %v7229
          %v7234 = vmul.f32 %v7190, %v7230
          %v7235 = vmul.f32 %v7191, %v7231
          %v7237 = vlaneseq
          %v7238 = vshrl.u32 %v7237, 7
          %v7239 = vsub.s32 0, %v7238
          %v7240 = vrot.slane %v7158, %v7239
          %v7241 = vlaneseq
          %v7242 = vshrl.u32 %v7241, 7
          %v7243 = vsub.s32 1, %v7242
          %v7244 = vrot.slane %v7158, %v7243
          %v7245 = vlaneseq
          %v7246 = vshrl.u32 %v7245, 7
          %v7247 = vsub.s32 2, %v7246
          %v7248 = vrot.slane %v7158, %v7247
          %v7249 = vlaneseq
          %v7250 = vshrl.u32 %v7249, 7
          %v7251 = vsub.s32 3, %v7250
          %v7252 = vrot.slane %v7158, %v7251
          %v7257 = vmul.f32 %v7232, %v7240
          %v7258 = vmul.f32 %v7233, %v7244
          %v7259 = vmul.f32 %v7234, %v7248
          %v7260 = vmul.f32 %v7235, %v7252
          %v7262 = vlaneseq
          %v7263 = vshrl.u32 %v7262, 7
          %v7264 = vsub.s32 0, %v7263
          %v7265 = vrot.slane %v7159, %v7264
          %v7266 = vlaneseq
          %v7267 = vshrl.u32 %v7266, 7
          %v7268 = vsub.s32 1, %v7267
          %v7269 = vrot.slane %v7159, %v7268
          %v7270 = vlaneseq
          %v7271 = vshrl.u32 %v7270, 7
          %v7272 = vsub.s32 2, %v7271
          %v7273 = vrot.slane %v7159, %v7272
          %v7274 = vlaneseq
          %v7275 = vshrl.u32 %v7274, 7
          %v7276 = vsub.s32 3, %v7275
          %v7277 = vrot.slane %v7159, %v7276
          %v7282 = vadd.f32 %v7257, %v7265
          %v7283 = vadd.f32 %v7258, %v7269
          %v7284 = vadd.f32 %v7259, %v7273
          %v7285 = vadd.f32 %v7260, %v7277
          %v7286 = vmax.f32 %v7282, 0.0
          %v7287 = vmax.f32 %v7283, 0.0
          %v7288 = vmax.f32 %v7284, 0.0
          %v7289 = vmax.f32 %v7285, 0.0
          %v7290 = vpack.c.bf16 %v7286, %v7286
          %v7291 = vpack.c.bf16 %v7287, %v7287
          %v7292 = vpack.c.bf16 %v7288, %v7288
          %v7293 = vpack.c.bf16 %v7289, %v7289
          %v7294 = vld [vmem:[#allocation15] sm:$0xff]
          %v7295 = vld [vmem:[#allocation15 + $0x8] sm:$0xff]
          %v7296 = vld [vmem:[#allocation15 + $0x10] sm:$0xff]
          %v7297 = vld [vmem:[#allocation15 + $0x18] sm:$0xff]
          %v7298 = vld [vmem:[#allocation15 + $0x20] sm:$0xff]
          %v7299 = vld [vmem:[#allocation15 + $0x28] sm:$0xff]
          %v7300 = vld [vmem:[#allocation15 + $0x30] sm:$0xff]
          %v7301 = vld [vmem:[#allocation15 + $0x38] sm:$0xff]
          %v7302 = vld [vmem:[#allocation15 + $0x40] sm:$0xff]
          %v7303 = vld [vmem:[#allocation15 + $0x48] sm:$0xff]
          %v7304 = vld [vmem:[#allocation15 + $0x50] sm:$0xff]
          %v7305 = vld [vmem:[#allocation15 + $0x58] sm:$0xff]
          %v7306 = vld [vmem:[#allocation15 + $0x60] sm:$0xff]
          %v7307 = vld [vmem:[#allocation15 + $0x68] sm:$0xff]
          %v7308 = vld [vmem:[#allocation15 + $0x70] sm:$0xff]
          %v7309 = vld [vmem:[#allocation15 + $0x78] sm:$0xff]
          %v7310 = vld [vmem:[#allocation15 + $0x80] sm:$0xff]
          %v7311 = vld [vmem:[#allocation15 + $0x88] sm:$0xff]
          %v7312 = vld [vmem:[#allocation15 + $0x90] sm:$0xff]
          %v7313 = vld [vmem:[#allocation15 + $0x98] sm:$0xff]
          %v7314 = vld [vmem:[#allocation15 + $0xa0] sm:$0xff]
          %v7315 = vld [vmem:[#allocation15 + $0xa8] sm:$0xff]
          %v7316 = vld [vmem:[#allocation15 + $0xb0] sm:$0xff]
          %v7317 = vld [vmem:[#allocation15 + $0xb8] sm:$0xff]
          %v7318 = vld [vmem:[#allocation15 + $0xc0] sm:$0xff]
          %v7319 = vld [vmem:[#allocation15 + $0xc8] sm:$0xff]
          %v7320 = vld [vmem:[#allocation15 + $0xd0] sm:$0xff]
          %v7321 = vld [vmem:[#allocation15 + $0xd8] sm:$0xff]
          %v7322 = vld [vmem:[#allocation15 + $0xe0] sm:$0xff]
          %v7323 = vld [vmem:[#allocation15 + $0xe8] sm:$0xff]
          %v7324 = vld [vmem:[#allocation15 + $0xf0] sm:$0xff]
          %v7325 = vld [vmem:[#allocation15 + $0xf8] sm:$0xff]
          %v7326 = vld [vmem:[#allocation15 + $0x100] sm:$0xff]
          %v7327 = vld [vmem:[#allocation15 + $0x108] sm:$0xff]
          %v7328 = vld [vmem:[#allocation15 + $0x110] sm:$0xff]
          %v7329 = vld [vmem:[#allocation15 + $0x118] sm:$0xff]
          %v7330 = vld [vmem:[#allocation15 + $0x120] sm:$0xff]
          %v7331 = vld [vmem:[#allocation15 + $0x128] sm:$0xff]
          %v7332 = vld [vmem:[#allocation15 + $0x130] sm:$0xff]
          %v7333 = vld [vmem:[#allocation15 + $0x138] sm:$0xff]
          %v7334 = vld [vmem:[#allocation15 + $0x140] sm:$0xff]
          %v7335 = vld [vmem:[#allocation15 + $0x148] sm:$0xff]
          %v7336 = vld [vmem:[#allocation15 + $0x150] sm:$0xff]
          %v7337 = vld [vmem:[#allocation15 + $0x158] sm:$0xff]
          %v7338 = vld [vmem:[#allocation15 + $0x160] sm:$0xff]
          %v7339 = vld [vmem:[#allocation15 + $0x168] sm:$0xff]
          %v7340 = vld [vmem:[#allocation15 + $0x170] sm:$0xff]
          %v7341 = vld [vmem:[#allocation15 + $0x178] sm:$0xff]
          %v7342 = vld [vmem:[#allocation15 + $0x180] sm:$0xff]
          %v7343 = vld [vmem:[#allocation15 + $0x188] sm:$0xff]
          %v7344 = vld [vmem:[#allocation15 + $0x190] sm:$0xff]
          %v7345 = vld [vmem:[#allocation15 + $0x198] sm:$0xff]
          %v7346 = vld [vmem:[#allocation15 + $0x1a0] sm:$0xff]
          %v7347 = vld [vmem:[#allocation15 + $0x1a8] sm:$0xff]
          %v7348 = vld [vmem:[#allocation15 + $0x1b0] sm:$0xff]
          %v7349 = vld [vmem:[#allocation15 + $0x1b8] sm:$0xff]
          %v7350 = vld [vmem:[#allocation15 + $0x1c0] sm:$0xff]
          %v7351 = vld [vmem:[#allocation15 + $0x1c8] sm:$0xff]
          %v7352 = vld [vmem:[#allocation15 + $0x1d0] sm:$0xff]
          %v7353 = vld [vmem:[#allocation15 + $0x1d8] sm:$0xff]
          %v7354 = vld [vmem:[#allocation15 + $0x1e0] sm:$0xff]
          %v7355 = vld [vmem:[#allocation15 + $0x1e8] sm:$0xff]
          %v7356 = vld [vmem:[#allocation15 + $0x1f0] sm:$0xff]
          %v7357 = vld [vmem:[#allocation15 + $0x1f8] sm:$0xff]
          %v7422 = vunpack.c.l.b16 %v7294
          %v7423 = vunpack.c.h.b16 %v7294
          %v7424 = vunpack.c.l.b16 %v7295
          %v7425 = vunpack.c.h.b16 %v7295
          %v7426 = vunpack.c.l.b16 %v7296
          %v7427 = vunpack.c.h.b16 %v7296
          %v7428 = vunpack.c.l.b16 %v7297
          %v7429 = vunpack.c.h.b16 %v7297
          %v7430 = vunpack.c.l.b16 %v7298
          %v7431 = vunpack.c.h.b16 %v7298
          %v7432 = vunpack.c.l.b16 %v7299
          %v7433 = vunpack.c.h.b16 %v7299
          %v7434 = vunpack.c.l.b16 %v7300
          %v7435 = vunpack.c.h.b16 %v7300
          %v7436 = vunpack.c.l.b16 %v7301
          %v7437 = vunpack.c.h.b16 %v7301
          %v7438 = vunpack.c.l.b16 %v7302
          %v7439 = vunpack.c.h.b16 %v7302
          %v7440 = vunpack.c.l.b16 %v7303
          %v7441 = vunpack.c.h.b16 %v7303
          %v7442 = vunpack.c.l.b16 %v7304
          %v7443 = vunpack.c.h.b16 %v7304
          %v7444 = vunpack.c.l.b16 %v7305
          %v7445 = vunpack.c.h.b16 %v7305
          %v7446 = vunpack.c.l.b16 %v7306
          %v7447 = vunpack.c.h.b16 %v7306
          %v7448 = vunpack.c.l.b16 %v7307
          %v7449 = vunpack.c.h.b16 %v7307
          %v7450 = vunpack.c.l.b16 %v7308
          %v7451 = vunpack.c.h.b16 %v7308
          %v7452 = vunpack.c.l.b16 %v7309
          %v7453 = vunpack.c.h.b16 %v7309
          %v7454 = vunpack.c.l.b16 %v7310
          %v7455 = vunpack.c.h.b16 %v7310
          %v7456 = vunpack.c.l.b16 %v7311
          %v7457 = vunpack.c.h.b16 %v7311
          %v7458 = vunpack.c.l.b16 %v7312
          %v7459 = vunpack.c.h.b16 %v7312
          %v7460 = vunpack.c.l.b16 %v7313
          %v7461 = vunpack.c.h.b16 %v7313
          %v7462 = vunpack.c.l.b16 %v7314
          %v7463 = vunpack.c.h.b16 %v7314
          %v7464 = vunpack.c.l.b16 %v7315
          %v7465 = vunpack.c.h.b16 %v7315
          %v7466 = vunpack.c.l.b16 %v7316
          %v7467 = vunpack.c.h.b16 %v7316
          %v7468 = vunpack.c.l.b16 %v7317
          %v7469 = vunpack.c.h.b16 %v7317
          %v7470 = vunpack.c.l.b16 %v7318
          %v7471 = vunpack.c.h.b16 %v7318
          %v7472 = vunpack.c.l.b16 %v7319
          %v7473 = vunpack.c.h.b16 %v7319
          %v7474 = vunpack.c.l.b16 %v7320
          %v7475 = vunpack.c.h.b16 %v7320
          %v7476 = vunpack.c.l.b16 %v7321
          %v7477 = vunpack.c.h.b16 %v7321
          %v7478 = vunpack.c.l.b16 %v7322
          %v7479 = vunpack.c.h.b16 %v7322
          %v7480 = vunpack.c.l.b16 %v7323
          %v7481 = vunpack.c.h.b16 %v7323
          %v7482 = vunpack.c.l.b16 %v7324
          %v7483 = vunpack.c.h.b16 %v7324
          %v7484 = vunpack.c.l.b16 %v7325
          %v7485 = vunpack.c.h.b16 %v7325
          %v7486 = vunpack.c.l.b16 %v7326
          %v7487 = vunpack.c.h.b16 %v7326
          %v7488 = vunpack.c.l.b16 %v7327
          %v7489 = vunpack.c.h.b16 %v7327
          %v7490 = vunpack.c.l.b16 %v7328
          %v7491 = vunpack.c.h.b16 %v7328
          %v7492 = vunpack.c.l.b16 %v7329
          %v7493 = vunpack.c.h.b16 %v7329
          %v7494 = vunpack.c.l.b16 %v7330
          %v7495 = vunpack.c.h.b16 %v7330
          %v7496 = vunpack.c.l.b16 %v7331
          %v7497 = vunpack.c.h.b16 %v7331
          %v7498 = vunpack.c.l.b16 %v7332
          %v7499 = vunpack.c.h.b16 %v7332
          %v7500 = vunpack.c.l.b16 %v7333
          %v7501 = vunpack.c.h.b16 %v7333
          %v7502 = vunpack.c.l.b16 %v7334
          %v7503 = vunpack.c.h.b16 %v7334
          %v7504 = vunpack.c.l.b16 %v7335
          %v7505 = vunpack.c.h.b16 %v7335
          %v7506 = vunpack.c.l.b16 %v7336
          %v7507 = vunpack.c.h.b16 %v7336
          %v7508 = vunpack.c.l.b16 %v7337
          %v7509 = vunpack.c.h.b16 %v7337
          %v7510 = vunpack.c.l.b16 %v7338
          %v7511 = vunpack.c.h.b16 %v7338
          %v7512 = vunpack.c.l.b16 %v7339
          %v7513 = vunpack.c.h.b16 %v7339
          %v7514 = vunpack.c.l.b16 %v7340
          %v7515 = vunpack.c.h.b16 %v7340
          %v7516 = vunpack.c.l.b16 %v7341
          %v7517 = vunpack.c.h.b16 %v7341
          %v7518 = vunpack.c.l.b16 %v7342
          %v7519 = vunpack.c.h.b16 %v7342
          %v7520 = vunpack.c.l.b16 %v7343
          %v7521 = vunpack.c.h.b16 %v7343
          %v7522 = vunpack.c.l.b16 %v7344
          %v7523 = vunpack.c.h.b16 %v7344
          %v7524 = vunpack.c.l.b16 %v7345
          %v7525 = vunpack.c.h.b16 %v7345
          %v7526 = vunpack.c.l.b16 %v7346
          %v7527 = vunpack.c.h.b16 %v7346
          %v7528 = vunpack.c.l.b16 %v7347
          %v7529 = vunpack.c.h.b16 %v7347
          %v7530 = vunpack.c.l.b16 %v7348
          %v7531 = vunpack.c.h.b16 %v7348
          %v7532 = vunpack.c.l.b16 %v7349
          %v7533 = vunpack.c.h.b16 %v7349
          %v7534 = vunpack.c.l.b16 %v7350
          %v7535 = vunpack.c.h.b16 %v7350
          %v7536 = vunpack.c.l.b16 %v7351
          %v7537 = vunpack.c.h.b16 %v7351
          %v7538 = vunpack.c.l.b16 %v7352
          %v7539 = vunpack.c.h.b16 %v7352
          %v7540 = vunpack.c.l.b16 %v7353
          %v7541 = vunpack.c.h.b16 %v7353
          %v7542 = vunpack.c.l.b16 %v7354
          %v7543 = vunpack.c.h.b16 %v7354
          %v7544 = vunpack.c.l.b16 %v7355
          %v7545 = vunpack.c.h.b16 %v7355
          %v7546 = vunpack.c.l.b16 %v7356
          %v7547 = vunpack.c.h.b16 %v7356
          %v7548 = vunpack.c.l.b16 %v7357
          %v7549 = vunpack.c.h.b16 %v7357
          %v7550 = vpack.c.b16 %v7424, %v7422
          %v7551 = vpack.c.b16 %v7425, %v7423
          %v7552 = vpack.c.b16 %v7428, %v7426
          %v7553 = vpack.c.b16 %v7429, %v7427
          %v7554 = vpack.c.b16 %v7432, %v7430
          %v7555 = vpack.c.b16 %v7433, %v7431
          %v7556 = vpack.c.b16 %v7436, %v7434
          %v7557 = vpack.c.b16 %v7437, %v7435
          %v7558 = vpack.c.b16 %v7440, %v7438
          %v7559 = vpack.c.b16 %v7441, %v7439
          %v7560 = vpack.c.b16 %v7444, %v7442
          %v7561 = vpack.c.b16 %v7445, %v7443
          %v7562 = vpack.c.b16 %v7448, %v7446
          %v7563 = vpack.c.b16 %v7449, %v7447
          %v7564 = vpack.c.b16 %v7452, %v7450
          %v7565 = vpack.c.b16 %v7453, %v7451
          %v7566 = vpack.c.b16 %v7456, %v7454
          %v7567 = vpack.c.b16 %v7457, %v7455
          %v7568 = vpack.c.b16 %v7460, %v7458
          %v7569 = vpack.c.b16 %v7461, %v7459
          %v7570 = vpack.c.b16 %v7464, %v7462
          %v7571 = vpack.c.b16 %v7465, %v7463
          %v7572 = vpack.c.b16 %v7468, %v7466
          %v7573 = vpack.c.b16 %v7469, %v7467
          %v7574 = vpack.c.b16 %v7472, %v7470
          %v7575 = vpack.c.b16 %v7473, %v7471
          %v7576 = vpack.c.b16 %v7476, %v7474
          %v7577 = vpack.c.b16 %v7477, %v7475
          %v7578 = vpack.c.b16 %v7480, %v7478
          %v7579 = vpack.c.b16 %v7481, %v7479
          %v7580 = vpack.c.b16 %v7484, %v7482
          %v7581 = vpack.c.b16 %v7485, %v7483
          %v7582 = vpack.c.b16 %v7488, %v7486
          %v7583 = vpack.c.b16 %v7489, %v7487
          %v7584 = vpack.c.b16 %v7492, %v7490
          %v7585 = vpack.c.b16 %v7493, %v7491
          %v7586 = vpack.c.b16 %v7496, %v7494
          %v7587 = vpack.c.b16 %v7497, %v7495
          %v7588 = vpack.c.b16 %v7500, %v7498
          %v7589 = vpack.c.b16 %v7501, %v7499
          %v7590 = vpack.c.b16 %v7504, %v7502
          %v7591 = vpack.c.b16 %v7505, %v7503
          %v7592 = vpack.c.b16 %v7508, %v7506
          %v7593 = vpack.c.b16 %v7509, %v7507
          %v7594 = vpack.c.b16 %v7512, %v7510
          %v7595 = vpack.c.b16 %v7513, %v7511
          %v7596 = vpack.c.b16 %v7516, %v7514
          %v7597 = vpack.c.b16 %v7517, %v7515
          %v7598 = vpack.c.b16 %v7520, %v7518
          %v7599 = vpack.c.b16 %v7521, %v7519
          %v7600 = vpack.c.b16 %v7524, %v7522
          %v7601 = vpack.c.b16 %v7525, %v7523
          %v7602 = vpack.c.b16 %v7528, %v7526
          %v7603 = vpack.c.b16 %v7529, %v7527
          %v7604 = vpack.c.b16 %v7532, %v7530
          %v7605 = vpack.c.b16 %v7533, %v7531
          %v7606 = vpack.c.b16 %v7536, %v7534
          %v7607 = vpack.c.b16 %v7537, %v7535
          %v7608 = vpack.c.b16 %v7540, %v7538
          %v7609 = vpack.c.b16 %v7541, %v7539
          %v7610 = vpack.c.b16 %v7544, %v7542
          %v7611 = vpack.c.b16 %v7545, %v7543
          %v7612 = vpack.c.b16 %v7548, %v7546
          %v7613 = vpack.c.b16 %v7549, %v7547
          %7678 = vmatprep.subr.bf16.mxu0 %v7551
          %7679 = vmatpush1.bf16.msra.mxu0 %v7550
          %7680 = vmatprep.subr.bf16.mxu0 %v7553
          %7681 = vmatpush1.bf16.msra.mxu0 %v7552
          %7682 = vmatprep.subr.bf16.mxu0 %v7555
          %7683 = vmatpush1.bf16.msra.mxu0 %v7554
          %7684 = vmatprep.subr.bf16.mxu0 %v7557
          %7685 = vmatpush1.bf16.msra.mxu0 %v7556
          %7686 = vmatprep.subr.bf16.mxu0 %v7559
          %7687 = vmatpush1.bf16.msra.mxu0 %v7558
          %7688 = vmatprep.subr.bf16.mxu0 %v7561
          %7689 = vmatpush1.bf16.msra.mxu0 %v7560
          %7690 = vmatprep.subr.bf16.mxu0 %v7563
          %7691 = vmatpush1.bf16.msra.mxu0 %v7562
          %7692 = vmatprep.subr.bf16.mxu0 %v7565
          %7693 = vmatpush1.bf16.msra.mxu0 %v7564
          %7694 = vmatprep.subr.bf16.mxu0 %v7567
          %7695 = vmatpush1.bf16.msra.mxu0 %v7566
          %7696 = vmatprep.subr.bf16.mxu0 %v7569
          %7697 = vmatpush1.bf16.msra.mxu0 %v7568
          %7698 = vmatprep.subr.bf16.mxu0 %v7571
          %7699 = vmatpush1.bf16.msra.mxu0 %v7570
          %7700 = vmatprep.subr.bf16.mxu0 %v7573
          %7701 = vmatpush1.bf16.msra.mxu0 %v7572
          %7702 = vmatprep.subr.bf16.mxu0 %v7575
          %7703 = vmatpush1.bf16.msra.mxu0 %v7574
          %7704 = vmatprep.subr.bf16.mxu0 %v7577
          %7705 = vmatpush1.bf16.msra.mxu0 %v7576
          %7706 = vmatprep.subr.bf16.mxu0 %v7579
          %7707 = vmatpush1.bf16.msra.mxu0 %v7578
          %7708 = vmatprep.subr.bf16.mxu0 %v7581
          %7709 = vmatpush1.bf16.msra.mxu0 %v7580
          %7710 = vmatprep.mubr.bf16.mxu0 %v7291
          %7711 = vmatmul.mubr.bf16.gmra.mrb[0].mxu0 %v7290
          %v7712 = vpop.f32.mrb[0].mxu0
          %v7713 = vadd.f32 0.0, %v7712
          %v7714 = vpop.f32.mrb[0].mxu0
          %v7715 = vadd.f32 0.0, %v7714
          %v7716 = vpop.f32.mrb[0].mxu0
          %v7717 = vpop.f32.mrb[0].mxu0
          %7718 = vdwg.mxu0
          %7719 = vmatprep.subr.bf16.mxu0 %v7583
          %7720 = vmatpush1.bf16.msra.mxu0 %v7582
          %7721 = vmatprep.subr.bf16.mxu0 %v7585
          %7722 = vmatpush1.bf16.msra.mxu0 %v7584
          %7723 = vmatprep.subr.bf16.mxu0 %v7587
          %7724 = vmatpush1.bf16.msra.mxu0 %v7586
          %7725 = vmatprep.subr.bf16.mxu0 %v7589
          %7726 = vmatpush1.bf16.msra.mxu0 %v7588
          %7727 = vmatprep.subr.bf16.mxu0 %v7591
          %7728 = vmatpush1.bf16.msra.mxu0 %v7590
          %7729 = vmatprep.subr.bf16.mxu0 %v7593
          %7730 = vmatpush1.bf16.msra.mxu0 %v7592
          %7731 = vmatprep.subr.bf16.mxu0 %v7595
          %7732 = vmatpush1.bf16.msra.mxu0 %v7594
          %7733 = vmatprep.subr.bf16.mxu0 %v7597
          %7734 = vmatpush1.bf16.msra.mxu0 %v7596
          %7735 = vmatprep.subr.bf16.mxu0 %v7599
          %7736 = vmatpush1.bf16.msra.mxu0 %v7598
          %7737 = vmatprep.subr.bf16.mxu0 %v7601
          %7738 = vmatpush1.bf16.msra.mxu0 %v7600
          %7739 = vmatprep.subr.bf16.mxu0 %v7603
          %7740 = vmatpush1.bf16.msra.mxu0 %v7602
          %7741 = vmatprep.subr.bf16.mxu0 %v7605
          %7742 = vmatpush1.bf16.msra.mxu0 %v7604
          %7743 = vmatprep.subr.bf16.mxu0 %v7607
          %7744 = vmatpush1.bf16.msra.mxu0 %v7606
          %7745 = vmatprep.subr.bf16.mxu0 %v7609
          %7746 = vmatpush1.bf16.msra.mxu0 %v7608
          %7747 = vmatprep.subr.bf16.mxu0 %v7611
          %7748 = vmatpush1.bf16.msra.mxu0 %v7610
          %7749 = vmatprep.subr.bf16.mxu0 %v7613
          %7750 = vmatpush1.bf16.msra.mxu0 %v7612
          %7751 = vmatprep.mubr.bf16.mxu0 %v7293
          %7752 = vmatmul.mubr.bf16.gmra.mrb[0].mxu0 %v7292
          %v7753 = vpop.f32.mrb[0].mxu0
          %v7754 = vadd.f32 %v7713, %v7753
          %v7755 = vpop.f32.mrb[0].mxu0
          %v7756 = vadd.f32 %v7715, %v7755
          %v7757 = vpop.f32.mrb[0].mxu0
          %v7758 = vpop.f32.mrb[0].mxu0
          %7759 = vdwg.mxu0
          %v7760 = vld [vmem:[#allocation17] sm:$0x3]
          %v7761 = vld [vmem:[#allocation18] sm:$0x3]
          %v7762 = vrot.slane %v7754, 4
          %v7763 = vadd.f32 %v7754, %v7762
          %v7764 = vrot.slane %v7763, 2
          %v7765 = vadd.f32 %v7763, %v7764
          %v7766 = vrot.slane %v7765, 1
          %v7767 = vadd.f32 %v7765, %v7766
          %v7768 = vrot.slane %v7756, 4
          %v7769 = vadd.f32 %v7756, %v7768
          %v7770 = vrot.slane %v7769, 2
          %v7771 = vadd.f32 %v7769, %v7770
          %v7772 = vrot.slane %v7771, 1
          %v7773 = vadd.f32 %v7771, %v7772
          %v7774 = vmul.f32 %v7767, %v5075
          %v7775 = vmul.f32 %v7773, %v5075
          %v7776 = vsub.f32 %v7754, %v7774
          %v7777 = vsub.f32 %v7756, %v7775
          %v7778 = vmul.f32 %v7776, %v7776
          %v7779 = vmul.f32 %v7777, %v7777
          %v7780 = vrot.slane %v7778, 4
          %v7781 = vadd.f32 %v7778, %v7780
          %v7782 = vrot.slane %v7781, 2
          %v7783 = vadd.f32 %v7781, %v7782
          %v7784 = vrot.slane %v7783, 1
          %v7785 = vadd.f32 %v7783, %v7784
          %v7786 = vrot.slane %v7779, 4
          %v7787 = vadd.f32 %v7779, %v7786
          %v7788 = vrot.slane %v7787, 2
          %v7789 = vadd.f32 %v7787, %v7788
          %v7790 = vrot.slane %v7789, 1
          %v7791 = vadd.f32 %v7789, %v7790
          %v7792 = vmul.f32 %v7785, %v5075
          %v7793 = vmul.f32 %v7791, %v5075
          %v7794 = vadd.f32 %v7792, 1e-05
          %v7795 = vadd.f32 %v7793, 1e-05
          %v7796 = vrsqrt.pop %v7794
          %v7797 = vrsqrt.pop %v7795
          %v7798 = vmul.f32 %v7776, %v7796
          %v7799 = vmul.f32 %v7777, %v7797
          %v7801 = vlaneseq
          %v7802 = vshrl.u32 %v7801, 7
          %v7803 = vsub.s32 0, %v7802
          %v7804 = vrot.slane %v7760, %v7803
          %v7805 = vlaneseq
          %v7806 = vshrl.u32 %v7805, 7
          %v7807 = vsub.s32 1, %v7806
          %v7808 = vrot.slane %v7760, %v7807
          %v7811 = vmul.f32 %v7798, %v7804
          %v7812 = vmul.f32 %v7799, %v7808
          %v7814 = vlaneseq
          %v7815 = vshrl.u32 %v7814, 7
          %v7816 = vsub.s32 0, %v7815
          %v7817 = vrot.slane %v7761, %v7816
          %v7818 = vlaneseq
          %v7819 = vshrl.u32 %v7818, 7
          %v7820 = vsub.s32 1, %v7819
          %v7821 = vrot.slane %v7761, %v7820
          %v7824 = vadd.f32 %v7811, %v7817
          %v7825 = vadd.f32 %v7812, %v7821
          %v7826 = vmax.f32 %v7824, 0.0
          %v7827 = vmax.f32 %v7825, 0.0
          %v7828 = vpack.c.bf16 %v7826, %v7826
          %v7829 = vpack.c.bf16 %v7827, %v7827
          %v7830 = vld [vmem:[#allocation20] sm:$0xf]
          %v7831 = vld [vmem:[#allocation20 + $0x4] sm:$0xf]
          %v7832 = vld [vmem:[#allocation20 + $0x8] sm:$0xf]
          %v7833 = vld [vmem:[#allocation20 + $0xc] sm:$0xf]
          %v7834 = vld [vmem:[#allocation20 + $0x10] sm:$0xf]
          %v7835 = vld [vmem:[#allocation20 + $0x14] sm:$0xf]
          %v7836 = vld [vmem:[#allocation20 + $0x18] sm:$0xf]
          %v7837 = vld [vmem:[#allocation20 + $0x1c] sm:$0xf]
          %v7838 = vld [vmem:[#allocation20 + $0x20] sm:$0xf]
          %v7839 = vld [vmem:[#allocation20 + $0x24] sm:$0xf]
          %v7840 = vld [vmem:[#allocation20 + $0x28] sm:$0xf]
          %v7841 = vld [vmem:[#allocation20 + $0x2c] sm:$0xf]
          %v7842 = vld [vmem:[#allocation20 + $0x30] sm:$0xf]
          %v7843 = vld [vmem:[#allocation20 + $0x34] sm:$0xf]
          %v7844 = vld [vmem:[#allocation20 + $0x38] sm:$0xf]
          %v7845 = vld [vmem:[#allocation20 + $0x3c] sm:$0xf]
          %v7846 = vld [vmem:[#allocation20 + $0x40] sm:$0xf]
          %v7847 = vld [vmem:[#allocation20 + $0x44] sm:$0xf]
          %v7848 = vld [vmem:[#allocation20 + $0x48] sm:$0xf]
          %v7849 = vld [vmem:[#allocation20 + $0x4c] sm:$0xf]
          %v7850 = vld [vmem:[#allocation20 + $0x50] sm:$0xf]
          %v7851 = vld [vmem:[#allocation20 + $0x54] sm:$0xf]
          %v7852 = vld [vmem:[#allocation20 + $0x58] sm:$0xf]
          %v7853 = vld [vmem:[#allocation20 + $0x5c] sm:$0xf]
          %v7854 = vld [vmem:[#allocation20 + $0x60] sm:$0xf]
          %v7855 = vld [vmem:[#allocation20 + $0x64] sm:$0xf]
          %v7856 = vld [vmem:[#allocation20 + $0x68] sm:$0xf]
          %v7857 = vld [vmem:[#allocation20 + $0x6c] sm:$0xf]
          %v7858 = vld [vmem:[#allocation20 + $0x70] sm:$0xf]
          %v7859 = vld [vmem:[#allocation20 + $0x74] sm:$0xf]
          %v7860 = vld [vmem:[#allocation20 + $0x78] sm:$0xf]
          %v7861 = vld [vmem:[#allocation20 + $0x7c] sm:$0xf]
          %v7862 = vld [vmem:[#allocation21] sm:$0x1]
          %v7864 = vlaneseq
          %v7865 = vshrl.u32 %v7864, 7
          %v7866 = vsub.s32 0, %v7865
          %v7867 = vrot.slane %v7862, %v7866
          %v7901 = vunpack.c.l.b16 %v7830
          %v7902 = vunpack.c.l.b16 %v7831
          %v7903 = vunpack.c.l.b16 %v7832
          %v7904 = vunpack.c.l.b16 %v7833
          %v7905 = vunpack.c.l.b16 %v7834
          %v7906 = vunpack.c.l.b16 %v7835
          %v7907 = vunpack.c.l.b16 %v7836
          %v7908 = vunpack.c.l.b16 %v7837
          %v7909 = vunpack.c.l.b16 %v7838
          %v7910 = vunpack.c.l.b16 %v7839
          %v7911 = vunpack.c.l.b16 %v7840
          %v7912 = vunpack.c.l.b16 %v7841
          %v7913 = vunpack.c.l.b16 %v7842
          %v7914 = vunpack.c.l.b16 %v7843
          %v7915 = vunpack.c.l.b16 %v7844
          %v7916 = vunpack.c.l.b16 %v7845
          %v7917 = vunpack.c.l.b16 %v7846
          %v7918 = vunpack.c.l.b16 %v7847
          %v7919 = vunpack.c.l.b16 %v7848
          %v7920 = vunpack.c.l.b16 %v7849
          %v7921 = vunpack.c.l.b16 %v7850
          %v7922 = vunpack.c.l.b16 %v7851
          %v7923 = vunpack.c.l.b16 %v7852
          %v7924 = vunpack.c.l.b16 %v7853
          %v7925 = vunpack.c.l.b16 %v7854
          %v7926 = vunpack.c.l.b16 %v7855
          %v7927 = vunpack.c.l.b16 %v7856
          %v7928 = vunpack.c.l.b16 %v7857
          %v7929 = vunpack.c.l.b16 %v7858
          %v7930 = vunpack.c.l.b16 %v7859
          %v7931 = vunpack.c.l.b16 %v7860
          %v7932 = vunpack.c.l.b16 %v7861
          %v7933 = vpack.c.b16 %v7902, %v7901
          %v7934 = vpack.c.b16 %v7904, %v7903
          %v7935 = vpack.c.b16 %v7906, %v7905
          %v7936 = vpack.c.b16 %v7908, %v7907
          %v7937 = vpack.c.b16 %v7910, %v7909
          %v7938 = vpack.c.b16 %v7912, %v7911
          %v7939 = vpack.c.b16 %v7914, %v7913
          %v7940 = vpack.c.b16 %v7916, %v7915
          %v7941 = vpack.c.b16 %v7918, %v7917
          %v7942 = vpack.c.b16 %v7920, %v7919
          %v7943 = vpack.c.b16 %v7922, %v7921
          %v7944 = vpack.c.b16 %v7924, %v7923
          %v7945 = vpack.c.b16 %v7926, %v7925
          %v7946 = vpack.c.b16 %v7928, %v7927
          %v7947 = vpack.c.b16 %v7930, %v7929
          %v7948 = vpack.c.b16 %v7932, %v7931
          %7965 = vmatprep.subr.bf16.mxu0 0
          %7966 = vmatpush1.bf16.msra.mxu0 %v7933
          %7967 = vmatprep.subr.bf16.mxu0 0
          %7968 = vmatpush1.bf16.msra.mxu0 %v7934
          %7969 = vmatprep.subr.bf16.mxu0 0
          %7970 = vmatpush1.bf16.msra.mxu0 %v7935
          %7971 = vmatprep.subr.bf16.mxu0 0
          %7972 = vmatpush1.bf16.msra.mxu0 %v7936
          %7973 = vmatprep.subr.bf16.mxu0 0
          %7974 = vmatpush1.bf16.msra.mxu0 %v7937
          %7975 = vmatprep.subr.bf16.mxu0 0
          %7976 = vmatpush1.bf16.msra.mxu0 %v7938
          %7977 = vmatprep.subr.bf16.mxu0 0
          %7978 = vmatpush1.bf16.msra.mxu0 %v7939
          %7979 = vmatprep.subr.bf16.mxu0 0
          %7980 = vmatpush1.bf16.msra.mxu0 %v7940
          %7981 = vmatprep.subr.bf16.mxu0 0
          %7982 = vmatpush1.bf16.msra.mxu0 %v7941
          %7983 = vmatprep.subr.bf16.mxu0 0
          %7984 = vmatpush1.bf16.msra.mxu0 %v7942
          %7985 = vmatprep.subr.bf16.mxu0 0
          %7986 = vmatpush1.bf16.msra.mxu0 %v7943
          %7987 = vmatprep.subr.bf16.mxu0 0
          %7988 = vmatpush1.bf16.msra.mxu0 %v7944
          %7989 = vmatprep.subr.bf16.mxu0 0
          %7990 = vmatpush1.bf16.msra.mxu0 %v7945
          %7991 = vmatprep.subr.bf16.mxu0 0
          %7992 = vmatpush1.bf16.msra.mxu0 %v7946
          %7993 = vmatprep.subr.bf16.mxu0 0
          %7994 = vmatpush1.bf16.msra.mxu0 %v7947
          %7995 = vmatprep.subr.bf16.mxu0 0
          %7996 = vmatpush1.bf16.msra.mxu0 %v7948
          %7997 = vmatprep.mubr.bf16.mxu0 %v7829
          %7998 = vmatmul.mubr.bf16.gmra.mrb[0].mxu0 %v7828
          %v7999 = vpop.f32.mrb[0].mxu0
          %v8000 = vadd.f32 %v7867, %v7999
          %v8001 = vpop.f32.mrb[0].mxu0
          %v8002 = vpop.f32.mrb[0].mxu0
          %v8003 = vpop.f32.mrb[0].mxu0
          %8004 = vdwg.mxu0
          %v8005 = vld [vmem:[#allocation6] sm:$0xff]
          %v8006 = vld [vmem:[#allocation6 + $0x8] sm:$0xff]
          %v8007 = vld [vmem:[#allocation6 + $0x10] sm:$0xff]
          %v8008 = vld [vmem:[#allocation6 + $0x18] sm:$0xff]
          %v8009 = vld [vmem:[#allocation6 + $0x20] sm:$0xff]
          %v8010 = vld [vmem:[#allocation6 + $0x28] sm:$0xff]
          %v8011 = vpack.c.bf16 %v8005, %v8005
          %v8012 = vpack.c.bf16 %v8006, %v8006
          %v8013 = vpack.c.bf16 %v8007, %v8007
          %v8014 = vpack.c.bf16 %v8008, %v8008
          %v8015 = vpack.c.bf16 %v8009, %v8009
          %v8016 = vpack.c.bf16 %v8010, %v8010
          %v8017 = vld [vmem:[#allocation23] sm:$0xff]
          %v8018 = vld [vmem:[#allocation23 + $0x8] sm:$0xff]
          %v8019 = vld [vmem:[#allocation23 + $0x10] sm:$0xff]
          %v8020 = vld [vmem:[#allocation23 + $0x18] sm:$0xff]
          %v8021 = vld [vmem:[#allocation23 + $0x20] sm:$0xff]
          %v8022 = vld [vmem:[#allocation23 + $0x28] sm:$0xff]
          %v8023 = vld [vmem:[#allocation23 + $0x30] sm:$0xff]
          %v8024 = vld [vmem:[#allocation23 + $0x38] sm:$0xff]
          %v8025 = vld [vmem:[#allocation23 + $0x40] sm:$0xff]
          %v8026 = vld [vmem:[#allocation23 + $0x48] sm:$0xff]
          %v8027 = vld [vmem:[#allocation23 + $0x50] sm:$0xff]
          %v8028 = vld [vmem:[#allocation23 + $0x58] sm:$0xff]
          %v8029 = vld [vmem:[#allocation23 + $0x60] sm:$0xff]
          %v8030 = vld [vmem:[#allocation23 + $0x68] sm:$0xff]
          %v8031 = vld [vmem:[#allocation23 + $0x70] sm:$0xff]
          %v8032 = vld [vmem:[#allocation23 + $0x78] sm:$0xff]
          %v8033 = vld [vmem:[#allocation23 + $0x80] sm:$0xff]
          %v8034 = vld [vmem:[#allocation23 + $0x88] sm:$0xff]
          %v8035 = vld [vmem:[#allocation23 + $0x90] sm:$0xff]
          %v8036 = vld [vmem:[#allocation23 + $0x98] sm:$0xff]
          %v8037 = vld [vmem:[#allocation23 + $0xa0] sm:$0xff]
          %v8038 = vld [vmem:[#allocation23 + $0xa8] sm:$0xff]
          %v8039 = vld [vmem:[#allocation23 + $0xb0] sm:$0xff]
          %v8040 = vld [vmem:[#allocation23 + $0xb8] sm:$0xff]
          %v8041 = vld [vmem:[#allocation23 + $0xc0] sm:$0xff]
          %v8042 = vld [vmem:[#allocation23 + $0xc8] sm:$0xff]
          %v8043 = vld [vmem:[#allocation23 + $0xd0] sm:$0xff]
          %v8044 = vld [vmem:[#allocation23 + $0xd8] sm:$0xff]
          %v8045 = vld [vmem:[#allocation23 + $0xe0] sm:$0xff]
          %v8046 = vld [vmem:[#allocation23 + $0xe8] sm:$0xff]
          %v8047 = vld [vmem:[#allocation23 + $0xf0] sm:$0xff]
          %v8048 = vld [vmem:[#allocation23 + $0xf8] sm:$0xff]
          %v8049 = vld [vmem:[#allocation23 + $0x100] sm:$0xff]
          %v8050 = vld [vmem:[#allocation23 + $0x108] sm:$0xff]
          %v8051 = vld [vmem:[#allocation23 + $0x110] sm:$0xff]
          %v8052 = vld [vmem:[#allocation23 + $0x118] sm:$0xff]
          %v8053 = vld [vmem:[#allocation23 + $0x120] sm:$0xff]
          %v8054 = vld [vmem:[#allocation23 + $0x128] sm:$0xff]
          %v8055 = vld [vmem:[#allocation23 + $0x130] sm:$0xff]
          %v8056 = vld [vmem:[#allocation23 + $0x138] sm:$0xff]
          %v8057 = vld [vmem:[#allocation23 + $0x140] sm:$0xff]
          %v8058 = vld [vmem:[#allocation23 + $0x148] sm:$0xff]
          %v8059 = vld [vmem:[#allocation23 + $0x150] sm:$0xff]
          %v8060 = vld [vmem:[#allocation23 + $0x158] sm:$0xff]
          %v8061 = vld [vmem:[#allocation23 + $0x160] sm:$0xff]
          %v8062 = vld [vmem:[#allocation23 + $0x168] sm:$0xff]
          %v8063 = vld [vmem:[#allocation23 + $0x170] sm:$0xff]
          %v8064 = vld [vmem:[#allocation23 + $0x178] sm:$0xff]
          %v8065 = vld [vmem:[#allocation23 + $0x180] sm:$0xff]
          %v8066 = vld [vmem:[#allocation23 + $0x188] sm:$0xff]
          %v8067 = vld [vmem:[#allocation23 + $0x190] sm:$0xff]
          %v8068 = vld [vmem:[#allocation23 + $0x198] sm:$0xff]
          %v8069 = vld [vmem:[#allocation23 + $0x1a0] sm:$0xff]
          %v8070 = vld [vmem:[#allocation23 + $0x1a8] sm:$0xff]
          %v8071 = vld [vmem:[#allocation23 + $0x1b0] sm:$0xff]
          %v8072 = vld [vmem:[#allocation23 + $0x1b8] sm:$0xff]
          %v8073 = vld [vmem:[#allocation23 + $0x1c0] sm:$0xff]
          %v8074 = vld [vmem:[#allocation23 + $0x1c8] sm:$0xff]
          %v8075 = vld [vmem:[#allocation23 + $0x1d0] sm:$0xff]
          %v8076 = vld [vmem:[#allocation23 + $0x1d8] sm:$0xff]
          %v8077 = vld [vmem:[#allocation23 + $0x1e0] sm:$0xff]
          %v8078 = vld [vmem:[#allocation23 + $0x1e8] sm:$0xff]
          %v8079 = vld [vmem:[#allocation23 + $0x1f0] sm:$0xff]
          %v8080 = vld [vmem:[#allocation23 + $0x1f8] sm:$0xff]
          %v8081 = vld [vmem:[#allocation23 + $0x200] sm:$0xff]
          %v8082 = vld [vmem:[#allocation23 + $0x208] sm:$0xff]
          %v8083 = vld [vmem:[#allocation23 + $0x210] sm:$0xff]
          %v8084 = vld [vmem:[#allocation23 + $0x218] sm:$0xff]
          %v8085 = vld [vmem:[#allocation23 + $0x220] sm:$0xff]
          %v8086 = vld [vmem:[#allocation23 + $0x228] sm:$0xff]
          %v8087 = vld [vmem:[#allocation23 + $0x230] sm:$0xff]
          %v8088 = vld [vmem:[#allocation23 + $0x238] sm:$0xff]
          %v8089 = vld [vmem:[#allocation23 + $0x240] sm:$0xff]
          %v8090 = vld [vmem:[#allocation23 + $0x248] sm:$0xff]
          %v8091 = vld [vmem:[#allocation23 + $0x250] sm:$0xff]
          %v8092 = vld [vmem:[#allocation23 + $0x258] sm:$0xff]
          %v8093 = vld [vmem:[#allocation23 + $0x260] sm:$0xff]
          %v8094 = vld [vmem:[#allocation23 + $0x268] sm:$0xff]
          %v8095 = vld [vmem:[#allocation23 + $0x270] sm:$0xff]
          %v8096 = vld [vmem:[#allocation23 + $0x278] sm:$0xff]
          %v8097 = vld [vmem:[#allocation23 + $0x280] sm:$0xff]
          %v8098 = vld [vmem:[#allocation23 + $0x288] sm:$0xff]
          %v8099 = vld [vmem:[#allocation23 + $0x290] sm:$0xff]
          %v8100 = vld [vmem:[#allocation23 + $0x298] sm:$0xff]
          %v8101 = vld [vmem:[#allocation23 + $0x2a0] sm:$0xff]
          %v8102 = vld [vmem:[#allocation23 + $0x2a8] sm:$0xff]
          %v8103 = vld [vmem:[#allocation23 + $0x2b0] sm:$0xff]
          %v8104 = vld [vmem:[#allocation23 + $0x2b8] sm:$0xff]
          %v8105 = vld [vmem:[#allocation23 + $0x2c0] sm:$0xff]
          %v8106 = vld [vmem:[#allocation23 + $0x2c8] sm:$0xff]
          %v8107 = vld [vmem:[#allocation23 + $0x2d0] sm:$0xff]
          %v8108 = vld [vmem:[#allocation23 + $0x2d8] sm:$0xff]
          %v8109 = vld [vmem:[#allocation23 + $0x2e0] sm:$0xff]
          %v8110 = vld [vmem:[#allocation23 + $0x2e8] sm:$0xff]
          %v8111 = vld [vmem:[#allocation23 + $0x2f0] sm:$0xff]
          %v8112 = vld [vmem:[#allocation23 + $0x2f8] sm:$0xff]
          %v8113 = vld [vmem:[#allocation23 + $0x300] sm:$0xff]
          %v8114 = vld [vmem:[#allocation23 + $0x308] sm:$0xff]
          %v8115 = vld [vmem:[#allocation23 + $0x310] sm:$0xff]
          %v8116 = vld [vmem:[#allocation23 + $0x318] sm:$0xff]
          %v8117 = vld [vmem:[#allocation23 + $0x320] sm:$0xff]
          %v8118 = vld [vmem:[#allocation23 + $0x328] sm:$0xff]
          %v8119 = vld [vmem:[#allocation23 + $0x330] sm:$0xff]
          %v8120 = vld [vmem:[#allocation23 + $0x338] sm:$0xff]
          %v8121 = vld [vmem:[#allocation23 + $0x340] sm:$0xff]
          %v8122 = vld [vmem:[#allocation23 + $0x348] sm:$0xff]
          %v8123 = vld [vmem:[#allocation23 + $0x350] sm:$0xff]
          %v8124 = vld [vmem:[#allocation23 + $0x358] sm:$0xff]
          %v8125 = vld [vmem:[#allocation23 + $0x360] sm:$0xff]
          %v8126 = vld [vmem:[#allocation23 + $0x368] sm:$0xff]
          %v8127 = vld [vmem:[#allocation23 + $0x370] sm:$0xff]
          %v8128 = vld [vmem:[#allocation23 + $0x378] sm:$0xff]
          %v8129 = vld [vmem:[#allocation23 + $0x380] sm:$0xff]
          %v8130 = vld [vmem:[#allocation23 + $0x388] sm:$0xff]
          %v8131 = vld [vmem:[#allocation23 + $0x390] sm:$0xff]
          %v8132 = vld [vmem:[#allocation23 + $0x398] sm:$0xff]
          %v8133 = vld [vmem:[#allocation23 + $0x3a0] sm:$0xff]
          %v8134 = vld [vmem:[#allocation23 + $0x3a8] sm:$0xff]
          %v8135 = vld [vmem:[#allocation23 + $0x3b0] sm:$0xff]
          %v8136 = vld [vmem:[#allocation23 + $0x3b8] sm:$0xff]
          %v8137 = vld [vmem:[#allocation23 + $0x3c0] sm:$0xff]
          %v8138 = vld [vmem:[#allocation23 + $0x3c8] sm:$0xff]
          %v8139 = vld [vmem:[#allocation23 + $0x3d0] sm:$0xff]
          %v8140 = vld [vmem:[#allocation23 + $0x3d8] sm:$0xff]
          %v8141 = vld [vmem:[#allocation23 + $0x3e0] sm:$0xff]
          %v8142 = vld [vmem:[#allocation23 + $0x3e8] sm:$0xff]
          %v8143 = vld [vmem:[#allocation23 + $0x3f0] sm:$0xff]
          %v8144 = vld [vmem:[#allocation23 + $0x3f8] sm:$0xff]
          %v8145 = vld [vmem:[#allocation23 + $0x400] sm:$0xff]
          %v8146 = vld [vmem:[#allocation23 + $0x408] sm:$0xff]
          %v8147 = vld [vmem:[#allocation23 + $0x410] sm:$0xff]
          %v8148 = vld [vmem:[#allocation23 + $0x418] sm:$0xff]
          %v8149 = vld [vmem:[#allocation23 + $0x420] sm:$0xff]
          %v8150 = vld [vmem:[#allocation23 + $0x428] sm:$0xff]
          %v8151 = vld [vmem:[#allocation23 + $0x430] sm:$0xff]
          %v8152 = vld [vmem:[#allocation23 + $0x438] sm:$0xff]
          %v8153 = vld [vmem:[#allocation23 + $0x440] sm:$0xff]
          %v8154 = vld [vmem:[#allocation23 + $0x448] sm:$0xff]
          %v8155 = vld [vmem:[#allocation23 + $0x450] sm:$0xff]
          %v8156 = vld [vmem:[#allocation23 + $0x458] sm:$0xff]
          %v8157 = vld [vmem:[#allocation23 + $0x460] sm:$0xff]
          %v8158 = vld [vmem:[#allocation23 + $0x468] sm:$0xff]
          %v8159 = vld [vmem:[#allocation23 + $0x470] sm:$0xff]
          %v8160 = vld [vmem:[#allocation23 + $0x478] sm:$0xff]
          %v8161 = vld [vmem:[#allocation23 + $0x480] sm:$0xff]
          %v8162 = vld [vmem:[#allocation23 + $0x488] sm:$0xff]
          %v8163 = vld [vmem:[#allocation23 + $0x490] sm:$0xff]
          %v8164 = vld [vmem:[#allocation23 + $0x498] sm:$0xff]
          %v8165 = vld [vmem:[#allocation23 + $0x4a0] sm:$0xff]
          %v8166 = vld [vmem:[#allocation23 + $0x4a8] sm:$0xff]
          %v8167 = vld [vmem:[#allocation23 + $0x4b0] sm:$0xff]
          %v8168 = vld [vmem:[#allocation23 + $0x4b8] sm:$0xff]
          %v8169 = vld [vmem:[#allocation23 + $0x4c0] sm:$0xff]
          %v8170 = vld [vmem:[#allocation23 + $0x4c8] sm:$0xff]
          %v8171 = vld [vmem:[#allocation23 + $0x4d0] sm:$0xff]
          %v8172 = vld [vmem:[#allocation23 + $0x4d8] sm:$0xff]
          %v8173 = vld [vmem:[#allocation23 + $0x4e0] sm:$0xff]
          %v8174 = vld [vmem:[#allocation23 + $0x4e8] sm:$0xff]
          %v8175 = vld [vmem:[#allocation23 + $0x4f0] sm:$0xff]
          %v8176 = vld [vmem:[#allocation23 + $0x4f8] sm:$0xff]
          %v8177 = vld [vmem:[#allocation23 + $0x500] sm:$0xff]
          %v8178 = vld [vmem:[#allocation23 + $0x508] sm:$0xff]
          %v8179 = vld [vmem:[#allocation23 + $0x510] sm:$0xff]
          %v8180 = vld [vmem:[#allocation23 + $0x518] sm:$0xff]
          %v8181 = vld [vmem:[#allocation23 + $0x520] sm:$0xff]
          %v8182 = vld [vmem:[#allocation23 + $0x528] sm:$0xff]
          %v8183 = vld [vmem:[#allocation23 + $0x530] sm:$0xff]
          %v8184 = vld [vmem:[#allocation23 + $0x538] sm:$0xff]
          %v8185 = vld [vmem:[#allocation23 + $0x540] sm:$0xff]
          %v8186 = vld [vmem:[#allocation23 + $0x548] sm:$0xff]
          %v8357 = vunpack.c.l.b16 %v8017
          %v8358 = vunpack.c.h.b16 %v8017
          %v8359 = vunpack.c.l.b16 %v8018
          %v8360 = vunpack.c.h.b16 %v8018
          %v8361 = vunpack.c.l.b16 %v8019
          %v8362 = vunpack.c.h.b16 %v8019
          %v8363 = vunpack.c.l.b16 %v8020
          %v8364 = vunpack.c.h.b16 %v8020
          %v8365 = vunpack.c.l.b16 %v8021
          %v8366 = vunpack.c.h.b16 %v8021
          %v8367 = vunpack.c.l.b16 %v8022
          %v8368 = vunpack.c.h.b16 %v8022
          %v8369 = vunpack.c.l.b16 %v8023
          %v8370 = vunpack.c.h.b16 %v8023
          %v8371 = vunpack.c.l.b16 %v8024
          %v8372 = vunpack.c.h.b16 %v8024
          %v8373 = vunpack.c.l.b16 %v8025
          %v8374 = vunpack.c.h.b16 %v8025
          %v8375 = vunpack.c.l.b16 %v8026
          %v8376 = vunpack.c.h.b16 %v8026
          %v8377 = vunpack.c.l.b16 %v8027
          %v8378 = vunpack.c.h.b16 %v8027
          %v8379 = vunpack.c.l.b16 %v8028
          %v8380 = vunpack.c.h.b16 %v8028
          %v8381 = vunpack.c.l.b16 %v8029
          %v8382 = vunpack.c.h.b16 %v8029
          %v8383 = vunpack.c.l.b16 %v8030
          %v8384 = vunpack.c.h.b16 %v8030
          %v8385 = vunpack.c.l.b16 %v8031
          %v8386 = vunpack.c.h.b16 %v8031
          %v8387 = vunpack.c.l.b16 %v8032
          %v8388 = vunpack.c.h.b16 %v8032
          %v8389 = vunpack.c.l.b16 %v8033
          %v8390 = vunpack.c.h.b16 %v8033
          %v8391 = vunpack.c.l.b16 %v8034
          %v8392 = vunpack.c.h.b16 %v8034
          %v8393 = vunpack.c.l.b16 %v8035
          %v8394 = vunpack.c.h.b16 %v8035
          %v8395 = vunpack.c.l.b16 %v8036
          %v8396 = vunpack.c.h.b16 %v8036
          %v8397 = vunpack.c.l.b16 %v8037
          %v8398 = vunpack.c.h.b16 %v8037
          %v8399 = vunpack.c.l.b16 %v8038
          %v8400 = vunpack.c.h.b16 %v8038
          %v8401 = vunpack.c.l.b16 %v8039
          %v8402 = vunpack.c.h.b16 %v8039
          %v8403 = vunpack.c.l.b16 %v8040
          %v8404 = vunpack.c.h.b16 %v8040
          %v8405 = vunpack.c.l.b16 %v8041
          %v8406 = vunpack.c.h.b16 %v8041
          %v8407 = vunpack.c.l.b16 %v8042
          %v8408 = vunpack.c.h.b16 %v8042
          %v8409 = vunpack.c.l.b16 %v8043
          %v8410 = vunpack.c.h.b16 %v8043
          %v8411 = vunpack.c.l.b16 %v8044
          %v8412 = vunpack.c.h.b16 %v8044
          %v8413 = vunpack.c.l.b16 %v8045
          %v8414 = vunpack.c.h.b16 %v8045
          %v8415 = vunpack.c.l.b16 %v8046
          %v8416 = vunpack.c.h.b16 %v8046
          %v8417 = vunpack.c.l.b16 %v8047
          %v8418 = vunpack.c.h.b16 %v8047
          %v8419 = vunpack.c.l.b16 %v8048
          %v8420 = vunpack.c.h.b16 %v8048
          %v8421 = vunpack.c.l.b16 %v8049
          %v8422 = vunpack.c.h.b16 %v8049
          %v8423 = vunpack.c.l.b16 %v8050
          %v8424 = vunpack.c.h.b16 %v8050
          %v8425 = vunpack.c.l.b16 %v8051
          %v8426 = vunpack.c.h.b16 %v8051
          %v8427 = vunpack.c.l.b16 %v8052
          %v8428 = vunpack.c.h.b16 %v8052
          %v8429 = vunpack.c.l.b16 %v8053
          %v8430 = vunpack.c.h.b16 %v8053
          %v8431 = vunpack.c.l.b16 %v8054
          %v8432 = vunpack.c.h.b16 %v8054
          %v8433 = vunpack.c.l.b16 %v8055
          %v8434 = vunpack.c.h.b16 %v8055
          %v8435 = vunpack.c.l.b16 %v8056
          %v8436 = vunpack.c.h.b16 %v8056
          %v8437 = vunpack.c.l.b16 %v8057
          %v8438 = vunpack.c.h.b16 %v8057
          %v8439 = vunpack.c.l.b16 %v8058
          %v8440 = vunpack.c.h.b16 %v8058
          %v8441 = vunpack.c.l.b16 %v8059
          %v8442 = vunpack.c.h.b16 %v8059
          %v8443 = vunpack.c.l.b16 %v8060
          %v8444 = vunpack.c.h.b16 %v8060
          %v8445 = vunpack.c.l.b16 %v8061
          %v8446 = vunpack.c.h.b16 %v8061
          %v8447 = vunpack.c.l.b16 %v8062
          %v8448 = vunpack.c.h.b16 %v8062
          %v8449 = vunpack.c.l.b16 %v8063
          %v8450 = vunpack.c.h.b16 %v8063
          %v8451 = vunpack.c.l.b16 %v8064
          %v8452 = vunpack.c.h.b16 %v8064
          %v8453 = vunpack.c.l.b16 %v8065
          %v8454 = vunpack.c.h.b16 %v8065
          %v8455 = vunpack.c.l.b16 %v8066
          %v8456 = vunpack.c.h.b16 %v8066
          %v8457 = vunpack.c.l.b16 %v8067
          %v8458 = vunpack.c.h.b16 %v8067
          %v8459 = vunpack.c.l.b16 %v8068
          %v8460 = vunpack.c.h.b16 %v8068
          %v8461 = vunpack.c.l.b16 %v8069
          %v8462 = vunpack.c.h.b16 %v8069
          %v8463 = vunpack.c.l.b16 %v8070
          %v8464 = vunpack.c.h.b16 %v8070
          %v8465 = vunpack.c.l.b16 %v8071
          %v8466 = vunpack.c.h.b16 %v8071
          %v8467 = vunpack.c.l.b16 %v8072
          %v8468 = vunpack.c.h.b16 %v8072
          %v8469 = vunpack.c.l.b16 %v8073
          %v8470 = vunpack.c.h.b16 %v8073
          %v8471 = vunpack.c.l.b16 %v8074
          %v8472 = vunpack.c.h.b16 %v8074
          %v8473 = vunpack.c.l.b16 %v8075
          %v8474 = vunpack.c.h.b16 %v8075
          %v8475 = vunpack.c.l.b16 %v8076
          %v8476 = vunpack.c.h.b16 %v8076
          %v8477 = vunpack.c.l.b16 %v8077
          %v8478 = vunpack.c.h.b16 %v8077
          %v8479 = vunpack.c.l.b16 %v8078
          %v8480 = vunpack.c.h.b16 %v8078
          %v8481 = vunpack.c.l.b16 %v8079
          %v8482 = vunpack.c.h.b16 %v8079
          %v8483 = vunpack.c.l.b16 %v8080
          %v8484 = vunpack.c.h.b16 %v8080
          %v8485 = vunpack.c.l.b16 %v8081
          %v8486 = vunpack.c.h.b16 %v8081
          %v8487 = vunpack.c.l.b16 %v8082
          %v8488 = vunpack.c.h.b16 %v8082
          %v8489 = vunpack.c.l.b16 %v8083
          %v8490 = vunpack.c.h.b16 %v8083
          %v8491 = vunpack.c.l.b16 %v8084
          %v8492 = vunpack.c.h.b16 %v8084
          %v8493 = vunpack.c.l.b16 %v8085
          %v8494 = vunpack.c.h.b16 %v8085
          %v8495 = vunpack.c.l.b16 %v8086
          %v8496 = vunpack.c.h.b16 %v8086
          %v8497 = vunpack.c.l.b16 %v8087
          %v8498 = vunpack.c.h.b16 %v8087
          %v8499 = vunpack.c.l.b16 %v8088
          %v8500 = vunpack.c.h.b16 %v8088
          %v8501 = vunpack.c.l.b16 %v8089
          %v8502 = vunpack.c.h.b16 %v8089
          %v8503 = vunpack.c.l.b16 %v8090
          %v8504 = vunpack.c.h.b16 %v8090
          %v8505 = vunpack.c.l.b16 %v8091
          %v8506 = vunpack.c.h.b16 %v8091
          %v8507 = vunpack.c.l.b16 %v8092
          %v8508 = vunpack.c.h.b16 %v8092
          %v8509 = vunpack.c.l.b16 %v8093
          %v8510 = vunpack.c.h.b16 %v8093
          %v8511 = vunpack.c.l.b16 %v8094
          %v8512 = vunpack.c.h.b16 %v8094
          %v8513 = vunpack.c.l.b16 %v8095
          %v8514 = vunpack.c.h.b16 %v8095
          %v8515 = vunpack.c.l.b16 %v8096
          %v8516 = vunpack.c.h.b16 %v8096
          %v8517 = vunpack.c.l.b16 %v8097
          %v8518 = vunpack.c.h.b16 %v8097
          %v8519 = vunpack.c.l.b16 %v8098
          %v8520 = vunpack.c.h.b16 %v8098
          %v8521 = vunpack.c.l.b16 %v8099
          %v8522 = vunpack.c.h.b16 %v8099
          %v8523 = vunpack.c.l.b16 %v8100
          %v8524 = vunpack.c.h.b16 %v8100
          %v8525 = vunpack.c.l.b16 %v8101
          %v8526 = vunpack.c.h.b16 %v8101
          %v8527 = vunpack.c.l.b16 %v8102
          %v8528 = vunpack.c.h.b16 %v8102
          %v8529 = vunpack.c.l.b16 %v8103
          %v8530 = vunpack.c.h.b16 %v8103
          %v8531 = vunpack.c.l.b16 %v8104
          %v8532 = vunpack.c.h.b16 %v8104
          %v8533 = vunpack.c.l.b16 %v8105
          %v8534 = vunpack.c.h.b16 %v8105
          %v8535 = vunpack.c.l.b16 %v8106
          %v8536 = vunpack.c.h.b16 %v8106
          %v8537 = vunpack.c.l.b16 %v8107
          %v8538 = vunpack.c.h.b16 %v8107
          %v8539 = vunpack.c.l.b16 %v8108
          %v8540 = vunpack.c.h.b16 %v8108
          %v8541 = vunpack.c.l.b16 %v8109
          %v8542 = vunpack.c.h.b16 %v8109
          %v8543 = vunpack.c.l.b16 %v8110
          %v8544 = vunpack.c.h.b16 %v8110
          %v8545 = vunpack.c.l.b16 %v8111
          %v8546 = vunpack.c.h.b16 %v8111
          %v8547 = vunpack.c.l.b16 %v8112
          %v8548 = vunpack.c.h.b16 %v8112
          %v8549 = vunpack.c.l.b16 %v8113
          %v8550 = vunpack.c.h.b16 %v8113
          %v8551 = vunpack.c.l.b16 %v8114
          %v8552 = vunpack.c.h.b16 %v8114
          %v8553 = vunpack.c.l.b16 %v8115
          %v8554 = vunpack.c.h.b16 %v8115
          %v8555 = vunpack.c.l.b16 %v8116
          %v8556 = vunpack.c.h.b16 %v8116
          %v8557 = vunpack.c.l.b16 %v8117
          %v8558 = vunpack.c.h.b16 %v8117
          %v8559 = vunpack.c.l.b16 %v8118
          %v8560 = vunpack.c.h.b16 %v8118
          %v8561 = vunpack.c.l.b16 %v8119
          %v8562 = vunpack.c.h.b16 %v8119
          %v8563 = vunpack.c.l.b16 %v8120
          %v8564 = vunpack.c.h.b16 %v8120
          %v8565 = vunpack.c.l.b16 %v8121
          %v8566 = vunpack.c.h.b16 %v8121
          %v8567 = vunpack.c.l.b16 %v8122
          %v8568 = vunpack.c.h.b16 %v8122
          %v8569 = vunpack.c.l.b16 %v8123
          %v8570 = vunpack.c.h.b16 %v8123
          %v8571 = vunpack.c.l.b16 %v8124
          %v8572 = vunpack.c.h.b16 %v8124
          %v8573 = vunpack.c.l.b16 %v8125
          %v8574 = vunpack.c.h.b16 %v8125
          %v8575 = vunpack.c.l.b16 %v8126
          %v8576 = vunpack.c.h.b16 %v8126
          %v8577 = vunpack.c.l.b16 %v8127
          %v8578 = vunpack.c.h.b16 %v8127
          %v8579 = vunpack.c.l.b16 %v8128
          %v8580 = vunpack.c.h.b16 %v8128
          %v8581 = vunpack.c.l.b16 %v8129
          %v8582 = vunpack.c.h.b16 %v8129
          %v8583 = vunpack.c.l.b16 %v8130
          %v8584 = vunpack.c.h.b16 %v8130
          %v8585 = vunpack.c.l.b16 %v8131
          %v8586 = vunpack.c.h.b16 %v8131
          %v8587 = vunpack.c.l.b16 %v8132
          %v8588 = vunpack.c.h.b16 %v8132
          %v8589 = vunpack.c.l.b16 %v8133
          %v8590 = vunpack.c.h.b16 %v8133
          %v8591 = vunpack.c.l.b16 %v8134
          %v8592 = vunpack.c.h.b16 %v8134
          %v8593 = vunpack.c.l.b16 %v8135
          %v8594 = vunpack.c.h.b16 %v8135
          %v8595 = vunpack.c.l.b16 %v8136
          %v8596 = vunpack.c.h.b16 %v8136
          %v8597 = vunpack.c.l.b16 %v8137
          %v8598 = vunpack.c.h.b16 %v8137
          %v8599 = vunpack.c.l.b16 %v8138
          %v8600 = vunpack.c.h.b16 %v8138
          %v8601 = vunpack.c.l.b16 %v8139
          %v8602 = vunpack.c.h.b16 %v8139
          %v8603 = vunpack.c.l.b16 %v8140
          %v8604 = vunpack.c.h.b16 %v8140
          %v8605 = vunpack.c.l.b16 %v8141
          %v8606 = vunpack.c.h.b16 %v8141
          %v8607 = vunpack.c.l.b16 %v8142
          %v8608 = vunpack.c.h.b16 %v8142
          %v8609 = vunpack.c.l.b16 %v8143
          %v8610 = vunpack.c.h.b16 %v8143
          %v8611 = vunpack.c.l.b16 %v8144
          %v8612 = vunpack.c.h.b16 %v8144
          %v8613 = vunpack.c.l.b16 %v8145
          %v8614 = vunpack.c.h.b16 %v8145
          %v8615 = vunpack.c.l.b16 %v8146
          %v8616 = vunpack.c.h.b16 %v8146
          %v8617 = vunpack.c.l.b16 %v8147
          %v8618 = vunpack.c.h.b16 %v8147
          %v8619 = vunpack.c.l.b16 %v8148
          %v8620 = vunpack.c.h.b16 %v8148
          %v8621 = vunpack.c.l.b16 %v8149
          %v8622 = vunpack.c.h.b16 %v8149
          %v8623 = vunpack.c.l.b16 %v8150
          %v8624 = vunpack.c.h.b16 %v8150
          %v8625 = vunpack.c.l.b16 %v8151
          %v8626 = vunpack.c.h.b16 %v8151
          %v8627 = vunpack.c.l.b16 %v8152
          %v8628 = vunpack.c.h.b16 %v8152
          %v8629 = vunpack.c.l.b16 %v8153
          %v8630 = vunpack.c.h.b16 %v8153
          %v8631 = vunpack.c.l.b16 %v8154
          %v8632 = vunpack.c.h.b16 %v8154
          %v8633 = vunpack.c.l.b16 %v8155
          %v8634 = vunpack.c.h.b16 %v8155
          %v8635 = vunpack.c.l.b16 %v8156
          %v8636 = vunpack.c.h.b16 %v8156
          %v8637 = vunpack.c.l.b16 %v8157
          %v8638 = vunpack.c.h.b16 %v8157
          %v8639 = vunpack.c.l.b16 %v8158
          %v8640 = vunpack.c.h.b16 %v8158
          %v8641 = vunpack.c.l.b16 %v8159
          %v8642 = vunpack.c.h.b16 %v8159
          %v8643 = vunpack.c.l.b16 %v8160
          %v8644 = vunpack.c.h.b16 %v8160
          %v8645 = vunpack.c.l.b16 %v8161
          %v8646 = vunpack.c.h.b16 %v8161
          %v8647 = vunpack.c.l.b16 %v8162
          %v8648 = vunpack.c.h.b16 %v8162
          %v8649 = vunpack.c.l.b16 %v8163
          %v8650 = vunpack.c.h.b16 %v8163
          %v8651 = vunpack.c.l.b16 %v8164
          %v8652 = vunpack.c.h.b16 %v8164
          %v8653 = vunpack.c.l.b16 %v8165
          %v8654 = vunpack.c.h.b16 %v8165
          %v8655 = vunpack.c.l.b16 %v8166
          %v8656 = vunpack.c.h.b16 %v8166
          %v8657 = vunpack.c.l.b16 %v8167
          %v8658 = vunpack.c.h.b16 %v8167
          %v8659 = vunpack.c.l.b16 %v8168
          %v8660 = vunpack.c.h.b16 %v8168
          %v8661 = vunpack.c.l.b16 %v8169
          %v8662 = vunpack.c.h.b16 %v8169
          %v8663 = vunpack.c.l.b16 %v8170
          %v8664 = vunpack.c.h.b16 %v8170
          %v8665 = vunpack.c.l.b16 %v8171
          %v8666 = vunpack.c.h.b16 %v8171
          %v8667 = vunpack.c.l.b16 %v8172
          %v8668 = vunpack.c.h.b16 %v8172
          %v8669 = vunpack.c.l.b16 %v8173
          %v8670 = vunpack.c.h.b16 %v8173
          %v8671 = vunpack.c.l.b16 %v8174
          %v8672 = vunpack.c.h.b16 %v8174
          %v8673 = vunpack.c.l.b16 %v8175
          %v8674 = vunpack.c.h.b16 %v8175
          %v8675 = vunpack.c.l.b16 %v8176
          %v8676 = vunpack.c.h.b16 %v8176
          %v8677 = vunpack.c.l.b16 %v8177
          %v8678 = vunpack.c.h.b16 %v8177
          %v8679 = vunpack.c.l.b16 %v8178
          %v8680 = vunpack.c.h.b16 %v8178
          %v8681 = vunpack.c.l.b16 %v8179
          %v8682 = vunpack.c.h.b16 %v8179
          %v8683 = vunpack.c.l.b16 %v8180
          %v8684 = vunpack.c.h.b16 %v8180
          %v8685 = vunpack.c.l.b16 %v8181
          %v8686 = vunpack.c.h.b16 %v8181
          %v8687 = vunpack.c.l.b16 %v8182
          %v8688 = vunpack.c.h.b16 %v8182
          %v8689 = vunpack.c.l.b16 %v8183
          %v8690 = vunpack.c.h.b16 %v8183
          %v8691 = vunpack.c.l.b16 %v8184
          %v8692 = vunpack.c.h.b16 %v8184
          %v8693 = vunpack.c.l.b16 %v8185
          %v8694 = vunpack.c.h.b16 %v8185
          %v8695 = vunpack.c.l.b16 %v8186
          %v8696 = vunpack.c.h.b16 %v8186
          %v8697 = vpack.c.b16 %v8361, %v8357
          %v8698 = vpack.c.b16 %v8362, %v8358
          %v8699 = vpack.c.b16 %v8363, %v8359
          %v8700 = vpack.c.b16 %v8364, %v8360
          %v8701 = vpack.c.b16 %v8369, %v8365
          %v8702 = vpack.c.b16 %v8370, %v8366
          %v8703 = vpack.c.b16 %v8371, %v8367
          %v8704 = vpack.c.b16 %v8372, %v8368
          %v8705 = vpack.c.b16 %v8377, %v8373
          %v8706 = vpack.c.b16 %v8378, %v8374
          %v8707 = vpack.c.b16 %v8379, %v8375
          %v8708 = vpack.c.b16 %v8380, %v8376
          %v8709 = vpack.c.b16 %v8385, %v8381
          %v8710 = vpack.c.b16 %v8386, %v8382
          %v8711 = vpack.c.b16 %v8387, %v8383
          %v8712 = vpack.c.b16 %v8388, %v8384
          %v8713 = vpack.c.b16 %v8393, %v8389
          %v8714 = vpack.c.b16 %v8394, %v8390
          %v8715 = vpack.c.b16 %v8395, %v8391
          %v8716 = vpack.c.b16 %v8396, %v8392
          %v8717 = vpack.c.b16 %v8401, %v8397
          %v8718 = vpack.c.b16 %v8402, %v8398
          %v8719 = vpack.c.b16 %v8403, %v8399
          %v8720 = vpack.c.b16 %v8404, %v8400
          %v8721 = vpack.c.b16 %v8409, %v8405
          %v8722 = vpack.c.b16 %v8410, %v8406
          %v8723 = vpack.c.b16 %v8411, %v8407
          %v8724 = vpack.c.b16 %v8412, %v8408
          %v8725 = vpack.c.b16 %v8417, %v8413
          %v8726 = vpack.c.b16 %v8418, %v8414
          %v8727 = vpack.c.b16 %v8419, %v8415
          %v8728 = vpack.c.b16 %v8420, %v8416
          %v8729 = vpack.c.b16 %v8425, %v8421
          %v8730 = vpack.c.b16 %v8426, %v8422
          %v8731 = vpack.c.b16 %v8427, %v8423
          %v8732 = vpack.c.b16 %v8428, %v8424
          %v8733 = vpack.c.b16 %v8433, %v8429
          %v8734 = vpack.c.b16 %v8434, %v8430
          %v8735 = vpack.c.b16 %v8435, %v8431
          %v8736 = vpack.c.b16 %v8436, %v8432
          %v8737 = vpack.c.b16 %v8441, %v8437
          %v8738 = vpack.c.b16 %v8442, %v8438
          %v8739 = vpack.c.b16 %v8443, %v8439
          %v8740 = vpack.c.b16 %v8444, %v8440
          %v8741 = vpack.c.b16 %v8449, %v8445
          %v8742 = vpack.c.b16 %v8450, %v8446
          %v8743 = vpack.c.b16 %v8451, %v8447
          %v8744 = vpack.c.b16 %v8452, %v8448
          %v8745 = vpack.c.b16 %v8457, %v8453
          %v8746 = vpack.c.b16 %v8458, %v8454
          %v8747 = vpack.c.b16 %v8459, %v8455
          %v8748 = vpack.c.b16 %v8460, %v8456
          %v8749 = vpack.c.b16 %v8465, %v8461
          %v8750 = vpack.c.b16 %v8466, %v8462
          %v8751 = vpack.c.b16 %v8467, %v8463
          %v8752 = vpack.c.b16 %v8468, %v8464
          %v8753 = vpack.c.b16 %v8473, %v8469
          %v8754 = vpack.c.b16 %v8474, %v8470
          %v8755 = vpack.c.b16 %v8475, %v8471
          %v8756 = vpack.c.b16 %v8476, %v8472
          %v8757 = vpack.c.b16 %v8481, %v8477
          %v8758 = vpack.c.b16 %v8482, %v8478
          %v8759 = vpack.c.b16 %v8483, %v8479
          %v8760 = vpack.c.b16 %v8484, %v8480
          %v8761 = vpack.c.b16 %v8489, %v8485
          %v8762 = vpack.c.b16 %v8490, %v8486
          %v8763 = vpack.c.b16 %v8491, %v8487
          %v8764 = vpack.c.b16 %v8492, %v8488
          %v8765 = vpack.c.b16 %v8497, %v8493
          %v8766 = vpack.c.b16 %v8498, %v8494
          %v8767 = vpack.c.b16 %v8499, %v8495
          %v8768 = vpack.c.b16 %v8500, %v8496
          %v8769 = vpack.c.b16 %v8505, %v8501
          %v8770 = vpack.c.b16 %v8506, %v8502
          %v8771 = vpack.c.b16 %v8507, %v8503
          %v8772 = vpack.c.b16 %v8508, %v8504
          %v8773 = vpack.c.b16 %v8513, %v8509
          %v8774 = vpack.c.b16 %v8514, %v8510
          %v8775 = vpack.c.b16 %v8515, %v8511
          %v8776 = vpack.c.b16 %v8516, %v8512
          %v8777 = vpack.c.b16 %v8521, %v8517
          %v8778 = vpack.c.b16 %v8522, %v8518
          %v8779 = vpack.c.b16 %v8523, %v8519
          %v8780 = vpack.c.b16 %v8524, %v8520
          %v8781 = vpack.c.b16 %v8529, %v8525
          %v8782 = vpack.c.b16 %v8530, %v8526
          %v8783 = vpack.c.b16 %v8531, %v8527
          %v8784 = vpack.c.b16 %v8532, %v8528
          %v8785 = vpack.c.b16 %v8537, %v8533
          %v8786 = vpack.c.b16 %v8538, %v8534
          %v8787 = vpack.c.b16 %v8539, %v8535
          %v8788 = vpack.c.b16 %v8540, %v8536
          %v8789 = vpack.c.b16 %v8545, %v8541
          %v8790 = vpack.c.b16 %v8546, %v8542
          %v8791 = vpack.c.b16 %v8547, %v8543
          %v8792 = vpack.c.b16 %v8548, %v8544
          %v8793 = vpack.c.b16 %v8553, %v8549
          %v8794 = vpack.c.b16 %v8554, %v8550
          %v8795 = vpack.c.b16 %v8555, %v8551
          %v8796 = vpack.c.b16 %v8556, %v8552
          %v8797 = vpack.c.b16 %v8561, %v8557
          %v8798 = vpack.c.b16 %v8562, %v8558
          %v8799 = vpack.c.b16 %v8563, %v8559
          %v8800 = vpack.c.b16 %v8564, %v8560
          %v8801 = vpack.c.b16 %v8569, %v8565
          %v8802 = vpack.c.b16 %v8570, %v8566
          %v8803 = vpack.c.b16 %v8571, %v8567
          %v8804 = vpack.c.b16 %v8572, %v8568
          %v8805 = vpack.c.b16 %v8577, %v8573
          %v8806 = vpack.c.b16 %v8578, %v8574
          %v8807 = vpack.c.b16 %v8579, %v8575
          %v8808 = vpack.c.b16 %v8580, %v8576
          %v8809 = vpack.c.b16 %v8585, %v8581
          %v8810 = vpack.c.b16 %v8586, %v8582
          %v8811 = vpack.c.b16 %v8587, %v8583
          %v8812 = vpack.c.b16 %v8588, %v8584
          %v8813 = vpack.c.b16 %v8593, %v8589
          %v8814 = vpack.c.b16 %v8594, %v8590
          %v8815 = vpack.c.b16 %v8595, %v8591
          %v8816 = vpack.c.b16 %v8596, %v8592
          %v8817 = vpack.c.b16 %v8601, %v8597
          %v8818 = vpack.c.b16 %v8602, %v8598
          %v8819 = vpack.c.b16 %v8603, %v8599
          %v8820 = vpack.c.b16 %v8604, %v8600
          %v8821 = vpack.c.b16 %v8609, %v8605
          %v8822 = vpack.c.b16 %v8610, %v8606
          %v8823 = vpack.c.b16 %v8611, %v8607
          %v8824 = vpack.c.b16 %v8612, %v8608
          %v8825 = vpack.c.b16 %v8617, %v8613
          %v8826 = vpack.c.b16 %v8618, %v8614
          %v8827 = vpack.c.b16 %v8619, %v8615
          %v8828 = vpack.c.b16 %v8620, %v8616
          %v8829 = vpack.c.b16 %v8625, %v8621
          %v8830 = vpack.c.b16 %v8626, %v8622
          %v8831 = vpack.c.b16 %v8627, %v8623
          %v8832 = vpack.c.b16 %v8628, %v8624
          %v8833 = vpack.c.b16 %v8633, %v8629
          %v8834 = vpack.c.b16 %v8634, %v8630
          %v8835 = vpack.c.b16 %v8635, %v8631
          %v8836 = vpack.c.b16 %v8636, %v8632
          %v8837 = vpack.c.b16 %v8641, %v8637
          %v8838 = vpack.c.b16 %v8642, %v8638
          %v8839 = vpack.c.b16 %v8643, %v8639
          %v8840 = vpack.c.b16 %v8644, %v8640
          %v8841 = vpack.c.b16 %v8649, %v8645
          %v8842 = vpack.c.b16 %v8650, %v8646
          %v8843 = vpack.c.b16 %v8651, %v8647
          %v8844 = vpack.c.b16 %v8652, %v8648
          %v8845 = vpack.c.b16 %v8657, %v8653
          %v8846 = vpack.c.b16 %v8658, %v8654
          %v8847 = vpack.c.b16 %v8659, %v8655
          %v8848 = vpack.c.b16 %v8660, %v8656
          %v8849 = vpack.c.b16 %v8665, %v8661
          %v8850 = vpack.c.b16 %v8666, %v8662
          %v8851 = vpack.c.b16 %v8667, %v8663
          %v8852 = vpack.c.b16 %v8668, %v8664
          %v8853 = vpack.c.b16 %v8673, %v8669
          %v8854 = vpack.c.b16 %v8674, %v8670
          %v8855 = vpack.c.b16 %v8675, %v8671
          %v8856 = vpack.c.b16 %v8676, %v8672
          %v8857 = vpack.c.b16 %v8681, %v8677
          %v8858 = vpack.c.b16 %v8682, %v8678
          %v8859 = vpack.c.b16 %v8683, %v8679
          %v8860 = vpack.c.b16 %v8684, %v8680
          %v8861 = vpack.c.b16 %v8689, %v8685
          %v8862 = vpack.c.b16 %v8690, %v8686
          %v8863 = vpack.c.b16 %v8691, %v8687
          %v8864 = vpack.c.b16 %v8692, %v8688
          %v8865 = vpack.c.b16 %v8693, %v8693
          %v8866 = vpack.c.b16 %v8694, %v8694
          %v8867 = vpack.c.b16 %v8695, %v8695
          %v8868 = vpack.c.b16 %v8696, %v8696
          %vm9037 = vcmask 326656
          %v9039 = vsel %vm9037, %v8016, 0
          %v9042 = vsel %vm4316, %v8865, 0
          %v9045 = vsel %vm4316, %v8866, 0
          %v9048 = vsel %vm4316, %v8867, 0
          %v9051 = vsel %vm4316, %v8868, 0
          %9053 = vmatprep.subr.bf16.mxu0 %v8698
          %9054 = vmatpush1.bf16.msra.mxu0 %v8697
          %9055 = vmatprep.subr.bf16.mxu0 %v8702
          %9056 = vmatpush1.bf16.msra.mxu0 %v8701
          %9057 = vmatprep.subr.bf16.mxu0 %v8706
          %9058 = vmatpush1.bf16.msra.mxu0 %v8705
          %9059 = vmatprep.subr.bf16.mxu0 %v8710
          %9060 = vmatpush1.bf16.msra.mxu0 %v8709
          %9061 = vmatprep.subr.bf16.mxu0 %v8714
          %9062 = vmatpush1.bf16.msra.mxu0 %v8713
          %9063 = vmatprep.subr.bf16.mxu0 %v8718
          %9064 = vmatpush1.bf16.msra.mxu0 %v8717
          %9065 = vmatprep.subr.bf16.mxu0 %v8722
          %9066 = vmatpush1.bf16.msra.mxu0 %v8721
          %9067 = vmatprep.subr.bf16.mxu0 %v8726
          %9068 = vmatpush1.bf16.msra.mxu0 %v8725
          %9069 = vmatprep.subr.bf16.mxu0 %v8730
          %9070 = vmatpush1.bf16.msra.mxu0 %v8729
          %9071 = vmatprep.subr.bf16.mxu0 %v8734
          %9072 = vmatpush1.bf16.msra.mxu0 %v8733
          %9073 = vmatprep.subr.bf16.mxu0 %v8738
          %9074 = vmatpush1.bf16.msra.mxu0 %v8737
          %9075 = vmatprep.subr.bf16.mxu0 %v8742
          %9076 = vmatpush1.bf16.msra.mxu0 %v8741
          %9077 = vmatprep.subr.bf16.mxu0 %v8746
          %9078 = vmatpush1.bf16.msra.mxu0 %v8745
          %9079 = vmatprep.subr.bf16.mxu0 %v8750
          %9080 = vmatpush1.bf16.msra.mxu0 %v8749
          %9081 = vmatprep.subr.bf16.mxu0 %v8754
          %9082 = vmatpush1.bf16.msra.mxu0 %v8753
          %9083 = vmatprep.subr.bf16.mxu0 %v8758
          %9084 = vmatpush1.bf16.msra.mxu0 %v8757
          %9085 = vmatprep.mubr.bf16.mxu0 %v8012
          %9086 = vmatmul.mubr.bf16.gmra.mrb[0].mxu0 %v8011
          %v9087 = vpop.f32.mrb[0].mxu0
          %v9088 = vadd.f32 0.0, %v9087
          %v9089 = vpop.f32.mrb[0].mxu0
          %v9090 = vadd.f32 0.0, %v9089
          %v9091 = vpop.f32.mrb[0].mxu0
          %v9092 = vpop.f32.mrb[0].mxu0
          %9093 = vdwg.mxu0
          %9094 = vmatprep.subr.bf16.mxu0 %v8762
          %9095 = vmatpush1.bf16.msra.mxu0 %v8761
          %9096 = vmatprep.subr.bf16.mxu0 %v8766
          %9097 = vmatpush1.bf16.msra.mxu0 %v8765
          %9098 = vmatprep.subr.bf16.mxu0 %v8770
          %9099 = vmatpush1.bf16.msra.mxu0 %v8769
          %9100 = vmatprep.subr.bf16.mxu0 %v8774
          %9101 = vmatpush1.bf16.msra.mxu0 %v8773
          %9102 = vmatprep.subr.bf16.mxu0 %v8778
          %9103 = vmatpush1.bf16.msra.mxu0 %v8777
          %9104 = vmatprep.subr.bf16.mxu0 %v8782
          %9105 = vmatpush1.bf16.msra.mxu0 %v8781
          %9106 = vmatprep.subr.bf16.mxu0 %v8786
          %9107 = vmatpush1.bf16.msra.mxu0 %v8785
          %9108 = vmatprep.subr.bf16.mxu0 %v8790
          %9109 = vmatpush1.bf16.msra.mxu0 %v8789
          %9110 = vmatprep.subr.bf16.mxu0 %v8794
          %9111 = vmatpush1.bf16.msra.mxu0 %v8793
          %9112 = vmatprep.subr.bf16.mxu0 %v8798
          %9113 = vmatpush1.bf16.msra.mxu0 %v8797
          %9114 = vmatprep.subr.bf16.mxu0 %v8802
          %9115 = vmatpush1.bf16.msra.mxu0 %v8801
          %9116 = vmatprep.subr.bf16.mxu0 %v8806
          %9117 = vmatpush1.bf16.msra.mxu0 %v8805
          %9118 = vmatprep.subr.bf16.mxu0 %v8810
          %9119 = vmatpush1.bf16.msra.mxu0 %v8809
          %9120 = vmatprep.subr.bf16.mxu0 %v8814
          %9121 = vmatpush1.bf16.msra.mxu0 %v8813
          %9122 = vmatprep.subr.bf16.mxu0 %v8818
          %9123 = vmatpush1.bf16.msra.mxu0 %v8817
          %9124 = vmatprep.subr.bf16.mxu0 %v8822
          %9125 = vmatpush1.bf16.msra.mxu0 %v8821
          %9126 = vmatprep.mubr.bf16.mxu0 %v8014
          %9127 = vmatmul.mubr.bf16.gmra.mrb[0].mxu0 %v8013
          %v9128 = vpop.f32.mrb[0].mxu0
          %v9129 = vadd.f32 %v9088, %v9128
          %v9130 = vpop.f32.mrb[0].mxu0
          %v9131 = vadd.f32 %v9090, %v9130
          %v9132 = vpop.f32.mrb[0].mxu0
          %v9133 = vpop.f32.mrb[0].mxu0
          %9134 = vdwg.mxu0
          %9135 = vmatprep.subr.bf16.mxu0 %v8826
          %9136 = vmatpush1.bf16.msra.mxu0 %v8825
          %9137 = vmatprep.subr.bf16.mxu0 %v8830
          %9138 = vmatpush1.bf16.msra.mxu0 %v8829
          %9139 = vmatprep.subr.bf16.mxu0 %v8834
          %9140 = vmatpush1.bf16.msra.mxu0 %v8833
          %9141 = vmatprep.subr.bf16.mxu0 %v8838
          %9142 = vmatpush1.bf16.msra.mxu0 %v8837
          %9143 = vmatprep.subr.bf16.mxu0 %v8842
          %9144 = vmatpush1.bf16.msra.mxu0 %v8841
          %9145 = vmatprep.subr.bf16.mxu0 %v8846
          %9146 = vmatpush1.bf16.msra.mxu0 %v8845
          %9147 = vmatprep.subr.bf16.mxu0 %v8850
          %9148 = vmatpush1.bf16.msra.mxu0 %v8849
          %9149 = vmatprep.subr.bf16.mxu0 %v8854
          %9150 = vmatpush1.bf16.msra.mxu0 %v8853
          %9151 = vmatprep.subr.bf16.mxu0 %v8858
          %9152 = vmatpush1.bf16.msra.mxu0 %v8857
          %9153 = vmatprep.subr.bf16.mxu0 %v8862
          %9154 = vmatpush1.bf16.msra.mxu0 %v8861
          %9155 = vmatprep.subr.bf16.mxu0 %v9045
          %9156 = vmatpush1.bf16.msra.mxu0 %v9042
          %9157 = vmatprep.subr.bf16.mxu0 0
          %9158 = vmatpush1.bf16.msra.mxu0 0
          %9159 = vmatprep.subr.bf16.mxu0 0
          %9160 = vmatpush1.bf16.msra.mxu0 0
          %9161 = vmatprep.subr.bf16.mxu0 0
          %9162 = vmatpush1.bf16.msra.mxu0 0
          %9163 = vmatprep.subr.bf16.mxu0 0
          %9164 = vmatpush1.bf16.msra.mxu0 0
          %9165 = vmatprep.subr.bf16.mxu0 0
          %9166 = vmatpush1.bf16.msra.mxu0 0
          %9167 = vmatprep.mubr.bf16.mxu0 %v9039
          %9168 = vmatmul.mubr.bf16.gmra.mrb[0].mxu0 %v8015
          %v9169 = vpop.f32.mrb[0].mxu0
          %v9170 = vadd.f32 %v9129, %v9169
          %v9171 = vpop.f32.mrb[0].mxu0
          %v9172 = vadd.f32 %v9131, %v9171
          %v9173 = vpop.f32.mrb[0].mxu0
          %v9174 = vpop.f32.mrb[0].mxu0
          %9175 = vdwg.mxu0
          %9176 = vmatprep.subr.bf16.mxu0 %v8700
          %9177 = vmatpush1.bf16.msra.mxu0 %v8699
          %9178 = vmatprep.subr.bf16.mxu0 %v8704
          %9179 = vmatpush1.bf16.msra.mxu0 %v8703
          %9180 = vmatprep.subr.bf16.mxu0 %v8708
          %9181 = vmatpush1.bf16.msra.mxu0 %v8707
          %9182 = vmatprep.subr.bf16.mxu0 %v8712
          %9183 = vmatpush1.bf16.msra.mxu0 %v8711
          %9184 = vmatprep.subr.bf16.mxu0 %v8716
          %9185 = vmatpush1.bf16.msra.mxu0 %v8715
          %9186 = vmatprep.subr.bf16.mxu0 %v8720
          %9187 = vmatpush1.bf16.msra.mxu0 %v8719
          %9188 = vmatprep.subr.bf16.mxu0 %v8724
          %9189 = vmatpush1.bf16.msra.mxu0 %v8723
          %9190 = vmatprep.subr.bf16.mxu0 %v8728
          %9191 = vmatpush1.bf16.msra.mxu0 %v8727
          %9192 = vmatprep.subr.bf16.mxu0 %v8732
          %9193 = vmatpush1.bf16.msra.mxu0 %v8731
          %9194 = vmatprep.subr.bf16.mxu0 %v8736
          %9195 = vmatpush1.bf16.msra.mxu0 %v8735
          %9196 = vmatprep.subr.bf16.mxu0 %v8740
          %9197 = vmatpush1.bf16.msra.mxu0 %v8739
          %9198 = vmatprep.subr.bf16.mxu0 %v8744
          %9199 = vmatpush1.bf16.msra.mxu0 %v8743
          %9200 = vmatprep.subr.bf16.mxu0 %v8748
          %9201 = vmatpush1.bf16.msra.mxu0 %v8747
          %9202 = vmatprep.subr.bf16.mxu0 %v8752
          %9203 = vmatpush1.bf16.msra.mxu0 %v8751
          %9204 = vmatprep.subr.bf16.mxu0 %v8756
          %9205 = vmatpush1.bf16.msra.mxu0 %v8755
          %9206 = vmatprep.subr.bf16.mxu0 %v8760
          %9207 = vmatpush1.bf16.msra.mxu0 %v8759
          %9208 = vmatprep.mubr.bf16.mxu0 %v8012
          %9209 = vmatmul.mubr.bf16.gmra.mrb[0].mxu0 %v8011
          %v9210 = vpop.f32.mrb[0].mxu0
          %v9211 = vadd.f32 0.0, %v9210
          %v9212 = vpop.f32.mrb[0].mxu0
          %v9213 = vadd.f32 0.0, %v9212
          %v9214 = vpop.f32.mrb[0].mxu0
          %v9215 = vpop.f32.mrb[0].mxu0
          %9216 = vdwg.mxu0
          %9217 = vmatprep.subr.bf16.mxu0 %v8764
          %9218 = vmatpush1.bf16.msra.mxu0 %v8763
          %9219 = vmatprep.subr.bf16.mxu0 %v8768
          %9220 = vmatpush1.bf16.msra.mxu0 %v8767
          %9221 = vmatprep.subr.bf16.mxu0 %v8772
          %9222 = vmatpush1.bf16.msra.mxu0 %v8771
          %9223 = vmatprep.subr.bf16.mxu0 %v8776
          %9224 = vmatpush1.bf16.msra.mxu0 %v8775
          %9225 = vmatprep.subr.bf16.mxu0 %v8780
          %9226 = vmatpush1.bf16.msra.mxu0 %v8779
          %9227 = vmatprep.subr.bf16.mxu0 %v8784
          %9228 = vmatpush1.bf16.msra.mxu0 %v8783
          %9229 = vmatprep.subr.bf16.mxu0 %v8788
          %9230 = vmatpush1.bf16.msra.mxu0 %v8787
          %9231 = vmatprep.subr.bf16.mxu0 %v8792
          %9232 = vmatpush1.bf16.msra.mxu0 %v8791
          %9233 = vmatprep.subr.bf16.mxu0 %v8796
          %9234 = vmatpush1.bf16.msra.mxu0 %v8795
          %9235 = vmatprep.subr.bf16.mxu0 %v8800
          %9236 = vmatpush1.bf16.msra.mxu0 %v8799
          %9237 = vmatprep.subr.bf16.mxu0 %v8804
          %9238 = vmatpush1.bf16.msra.mxu0 %v8803
          %9239 = vmatprep.subr.bf16.mxu0 %v8808
          %9240 = vmatpush1.bf16.msra.mxu0 %v8807
          %9241 = vmatprep.subr.bf16.mxu0 %v8812
          %9242 = vmatpush1.bf16.msra.mxu0 %v8811
          %9243 = vmatprep.subr.bf16.mxu0 %v8816
          %9244 = vmatpush1.bf16.msra.mxu0 %v8815
          %9245 = vmatprep.subr.bf16.mxu0 %v8820
          %9246 = vmatpush1.bf16.msra.mxu0 %v8819
          %9247 = vmatprep.subr.bf16.mxu0 %v8824
          %9248 = vmatpush1.bf16.msra.mxu0 %v8823
          %9249 = vmatprep.mubr.bf16.mxu0 %v8014
          %9250 = vmatmul.mubr.bf16.gmra.mrb[0].mxu0 %v8013
          %v9251 = vpop.f32.mrb[0].mxu0
          %v9252 = vadd.f32 %v9211, %v9251
          %v9253 = vpop.f32.mrb[0].mxu0
          %v9254 = vadd.f32 %v9213, %v9253
          %v9255 = vpop.f32.mrb[0].mxu0
          %v9256 = vpop.f32.mrb[0].mxu0
          %9257 = vdwg.mxu0
          %9258 = vmatprep.subr.bf16.mxu0 %v8828
          %9259 = vmatpush1.bf16.msra.mxu0 %v8827
          %9260 = vmatprep.subr.bf16.mxu0 %v8832
          %9261 = vmatpush1.bf16.msra.mxu0 %v8831
          %9262 = vmatprep.subr.bf16.mxu0 %v8836
          %9263 = vmatpush1.bf16.msra.mxu0 %v8835
          %9264 = vmatprep.subr.bf16.mxu0 %v8840
          %9265 = vmatpush1.bf16.msra.mxu0 %v8839
          %9266 = vmatprep.subr.bf16.mxu0 %v8844
          %9267 = vmatpush1.bf16.msra.mxu0 %v8843
          %9268 = vmatprep.subr.bf16.mxu0 %v8848
          %9269 = vmatpush1.bf16.msra.mxu0 %v8847
          %9270 = vmatprep.subr.bf16.mxu0 %v8852
          %9271 = vmatpush1.bf16.msra.mxu0 %v8851
          %9272 = vmatprep.subr.bf16.mxu0 %v8856
          %9273 = vmatpush1.bf16.msra.mxu0 %v8855
          %9274 = vmatprep.subr.bf16.mxu0 %v8860
          %9275 = vmatpush1.bf16.msra.mxu0 %v8859
          %9276 = vmatprep.subr.bf16.mxu0 %v8864
          %9277 = vmatpush1.bf16.msra.mxu0 %v8863
          %9278 = vmatprep.subr.bf16.mxu0 %v9051
          %9279 = vmatpush1.bf16.msra.mxu0 %v9048
          %9280 = vmatprep.subr.bf16.mxu0 0
          %9281 = vmatpush1.bf16.msra.mxu0 0
          %9282 = vmatprep.subr.bf16.mxu0 0
          %9283 = vmatpush1.bf16.msra.mxu0 0
          %9284 = vmatprep.subr.bf16.mxu0 0
          %9285 = vmatpush1.bf16.msra.mxu0 0
          %9286 = vmatprep.subr.bf16.mxu0 0
          %9287 = vmatpush1.bf16.msra.mxu0 0
          %9288 = vmatprep.subr.bf16.mxu0 0
          %9289 = vmatpush1.bf16.msra.mxu0 0
          %9290 = vmatprep.mubr.bf16.mxu0 %v9039
          %9291 = vmatmul.mubr.bf16.gmra.mrb[0].mxu0 %v8015
          %v9292 = vpop.f32.mrb[0].mxu0
          %v9293 = vadd.f32 %v9252, %v9292
          %v9294 = vpop.f32.mrb[0].mxu0
          %v9295 = vadd.f32 %v9254, %v9294
          %v9296 = vpop.f32.mrb[0].mxu0
          %v9297 = vpop.f32.mrb[0].mxu0
          %9298 = vdwg.mxu0
          %v9299 = vld [vmem:[#allocation24] sm:$0xf]
          %v9300 = vld [vmem:[#allocation26] sm:$0xf]
          %v9301 = vrot.slane %v9170, 4
          %v9302 = vadd.f32 %v9170, %v9301
          %v9303 = vrot.slane %v9302, 2
          %v9304 = vadd.f32 %v9302, %v9303
          %v9305 = vrot.slane %v9304, 1
          %v9306 = vadd.f32 %v9304, %v9305
          %v9307 = vrot.slane %v9172, 4
          %v9308 = vadd.f32 %v9172, %v9307
          %v9309 = vrot.slane %v9308, 2
          %v9310 = vadd.f32 %v9308, %v9309
          %v9311 = vrot.slane %v9310, 1
          %v9312 = vadd.f32 %v9310, %v9311
          %v9313 = vrot.slane %v9293, 4
          %v9314 = vadd.f32 %v9293, %v9313
          %v9315 = vrot.slane %v9314, 2
          %v9316 = vadd.f32 %v9314, %v9315
          %v9317 = vrot.slane %v9316, 1
          %v9318 = vadd.f32 %v9316, %v9317
          %v9319 = vrot.slane %v9295, 4
          %v9320 = vadd.f32 %v9295, %v9319
          %v9321 = vrot.slane %v9320, 2
          %v9322 = vadd.f32 %v9320, %v9321
          %v9323 = vrot.slane %v9322, 1
          %v9324 = vadd.f32 %v9322, %v9323
          %v9325 = vmul.f32 %v9306, %v5075
          %v9326 = vmul.f32 %v9312, %v5075
          %v9327 = vmul.f32 %v9318, %v5075
          %v9328 = vmul.f32 %v9324, %v5075
          %v9329 = vsub.f32 %v9170, %v9325
          %v9330 = vsub.f32 %v9172, %v9326
          %v9331 = vsub.f32 %v9293, %v9327
          %v9332 = vsub.f32 %v9295, %v9328
          %v9333 = vmul.f32 %v9329, %v9329
          %v9334 = vmul.f32 %v9330, %v9330
          %v9335 = vmul.f32 %v9331, %v9331
          %v9336 = vmul.f32 %v9332, %v9332
          %v9337 = vrot.slane %v9333, 4
          %v9338 = vadd.f32 %v9333, %v9337
          %v9339 = vrot.slane %v9338, 2
          %v9340 = vadd.f32 %v9338, %v9339
          %v9341 = vrot.slane %v9340, 1
          %v9342 = vadd.f32 %v9340, %v9341
          %v9343 = vrot.slane %v9334, 4
          %v9344 = vadd.f32 %v9334, %v9343
          %v9345 = vrot.slane %v9344, 2
          %v9346 = vadd.f32 %v9344, %v9345
          %v9347 = vrot.slane %v9346, 1
          %v9348 = vadd.f32 %v9346, %v9347
          %v9349 = vrot.slane %v9335, 4
          %v9350 = vadd.f32 %v9335, %v9349
          %v9351 = vrot.slane %v9350, 2
          %v9352 = vadd.f32 %v9350, %v9351
          %v9353 = vrot.slane %v9352, 1
          %v9354 = vadd.f32 %v9352, %v9353
          %v9355 = vrot.slane %v9336, 4
          %v9356 = vadd.f32 %v9336, %v9355
          %v9357 = vrot.slane %v9356, 2
          %v9358 = vadd.f32 %v9356, %v9357
          %v9359 = vrot.slane %v9358, 1
          %v9360 = vadd.f32 %v9358, %v9359
          %v9361 = vmul.f32 %v9342, %v5075
          %v9362 = vmul.f32 %v9348, %v5075
          %v9363 = vmul.f32 %v9354, %v5075
          %v9364 = vmul.f32 %v9360, %v5075
          %v9365 = vadd.f32 %v9361, 1e-05
          %v9366 = vadd.f32 %v9362, 1e-05
          %v9367 = vadd.f32 %v9363, 1e-05
          %v9368 = vadd.f32 %v9364, 1e-05
          %v9369 = vrsqrt.pop %v9365
          %v9370 = vrsqrt.pop %v9366
          %v9371 = vrsqrt.pop %v9367
          %v9372 = vrsqrt.pop %v9368
          %v9373 = vmul.f32 %v9329, %v9369
          %v9374 = vmul.f32 %v9330, %v9370
          %v9375 = vmul.f32 %v9331, %v9371
          %v9376 = vmul.f32 %v9332, %v9372
          %v9378 = vlaneseq
          %v9379 = vshrl.u32 %v9378, 7
          %v9380 = vsub.s32 0, %v9379
          %v9381 = vrot.slane %v9299, %v9380
          %v9382 = vlaneseq
          %v9383 = vshrl.u32 %v9382, 7
          %v9384 = vsub.s32 1, %v9383
          %v9385 = vrot.slane %v9299, %v9384
          %v9386 = vlaneseq
          %v9387 = vshrl.u32 %v9386, 7
          %v9388 = vsub.s32 2, %v9387
          %v9389 = vrot.slane %v9299, %v9388
          %v9390 = vlaneseq
          %v9391 = vshrl.u32 %v9390, 7
          %v9392 = vsub.s32 3, %v9391
          %v9393 = vrot.slane %v9299, %v9392
          %v9398 = vmul.f32 %v9373, %v9381
          %v9399 = vmul.f32 %v9374, %v9385
          %v9400 = vmul.f32 %v9375, %v9389
          %v9401 = vmul.f32 %v9376, %v9393
          %v9403 = vlaneseq
          %v9404 = vshrl.u32 %v9403, 7
          %v9405 = vsub.s32 0, %v9404
          %v9406 = vrot.slane %v9300, %v9405
          %v9407 = vlaneseq
          %v9408 = vshrl.u32 %v9407, 7
          %v9409 = vsub.s32 1, %v9408
          %v9410 = vrot.slane %v9300, %v9409
          %v9411 = vlaneseq
          %v9412 = vshrl.u32 %v9411, 7
          %v9413 = vsub.s32 2, %v9412
          %v9414 = vrot.slane %v9300, %v9413
          %v9415 = vlaneseq
          %v9416 = vshrl.u32 %v9415, 7
          %v9417 = vsub.s32 3, %v9416
          %v9418 = vrot.slane %v9300, %v9417
          %v9423 = vadd.f32 %v9398, %v9406
          %v9424 = vadd.f32 %v9399, %v9410
          %v9425 = vadd.f32 %v9400, %v9414
          %v9426 = vadd.f32 %v9401, %v9418
          %v9427 = vmax.f32 %v9423, 0.0
          %v9428 = vmax.f32 %v9424, 0.0
          %v9429 = vmax.f32 %v9425, 0.0
          %v9430 = vmax.f32 %v9426, 0.0
          %v9431 = vpack.c.bf16 %v9427, %v9427
          %v9432 = vpack.c.bf16 %v9428, %v9428
          %v9433 = vpack.c.bf16 %v9429, %v9429
          %v9434 = vpack.c.bf16 %v9430, %v9430
          %v9435 = vld [vmem:[#allocation27] sm:$0xff]
          %v9436 = vld [vmem:[#allocation27 + $0x8] sm:$0xff]
          %v9437 = vld [vmem:[#allocation27 + $0x10] sm:$0xff]
          %v9438 = vld [vmem:[#allocation27 + $0x18] sm:$0xff]
          %v9439 = vld [vmem:[#allocation27 + $0x20] sm:$0xff]
          %v9440 = vld [vmem:[#allocation27 + $0x28] sm:$0xff]
          %v9441 = vld [vmem:[#allocation27 + $0x30] sm:$0xff]
          %v9442 = vld [vmem:[#allocation27 + $0x38] sm:$0xff]
          %v9443 = vld [vmem:[#allocation27 + $0x40] sm:$0xff]
          %v9444 = vld [vmem:[#allocation27 + $0x48] sm:$0xff]
          %v9445 = vld [vmem:[#allocation27 + $0x50] sm:$0xff]
          %v9446 = vld [vmem:[#allocation27 + $0x58] sm:$0xff]
          %v9447 = vld [vmem:[#allocation27 + $0x60] sm:$0xff]
          %v9448 = vld [vmem:[#allocation27 + $0x68] sm:$0xff]
          %v9449 = vld [vmem:[#allocation27 + $0x70] sm:$0xff]
          %v9450 = vld [vmem:[#allocation27 + $0x78] sm:$0xff]
          %v9451 = vld [vmem:[#allocation27 + $0x80] sm:$0xff]
          %v9452 = vld [vmem:[#allocation27 + $0x88] sm:$0xff]
          %v9453 = vld [vmem:[#allocation27 + $0x90] sm:$0xff]
          %v9454 = vld [vmem:[#allocation27 + $0x98] sm:$0xff]
          %v9455 = vld [vmem:[#allocation27 + $0xa0] sm:$0xff]
          %v9456 = vld [vmem:[#allocation27 + $0xa8] sm:$0xff]
          %v9457 = vld [vmem:[#allocation27 + $0xb0] sm:$0xff]
          %v9458 = vld [vmem:[#allocation27 + $0xb8] sm:$0xff]
          %v9459 = vld [vmem:[#allocation27 + $0xc0] sm:$0xff]
          %v9460 = vld [vmem:[#allocation27 + $0xc8] sm:$0xff]
          %v9461 = vld [vmem:[#allocation27 + $0xd0] sm:$0xff]
          %v9462 = vld [vmem:[#allocation27 + $0xd8] sm:$0xff]
          %v9463 = vld [vmem:[#allocation27 + $0xe0] sm:$0xff]
          %v9464 = vld [vmem:[#allocation27 + $0xe8] sm:$0xff]
          %v9465 = vld [vmem:[#allocation27 + $0xf0] sm:$0xff]
          %v9466 = vld [vmem:[#allocation27 + $0xf8] sm:$0xff]
          %v9467 = vld [vmem:[#allocation27 + $0x100] sm:$0xff]
          %v9468 = vld [vmem:[#allocation27 + $0x108] sm:$0xff]
          %v9469 = vld [vmem:[#allocation27 + $0x110] sm:$0xff]
          %v9470 = vld [vmem:[#allocation27 + $0x118] sm:$0xff]
          %v9471 = vld [vmem:[#allocation27 + $0x120] sm:$0xff]
          %v9472 = vld [vmem:[#allocation27 + $0x128] sm:$0xff]
          %v9473 = vld [vmem:[#allocation27 + $0x130] sm:$0xff]
          %v9474 = vld [vmem:[#allocation27 + $0x138] sm:$0xff]
          %v9475 = vld [vmem:[#allocation27 + $0x140] sm:$0xff]
          %v9476 = vld [vmem:[#allocation27 + $0x148] sm:$0xff]
          %v9477 = vld [vmem:[#allocation27 + $0x150] sm:$0xff]
          %v9478 = vld [vmem:[#allocation27 + $0x158] sm:$0xff]
          %v9479 = vld [vmem:[#allocation27 + $0x160] sm:$0xff]
          %v9480 = vld [vmem:[#allocation27 + $0x168] sm:$0xff]
          %v9481 = vld [vmem:[#allocation27 + $0x170] sm:$0xff]
          %v9482 = vld [vmem:[#allocation27 + $0x178] sm:$0xff]
          %v9483 = vld [vmem:[#allocation27 + $0x180] sm:$0xff]
          %v9484 = vld [vmem:[#allocation27 + $0x188] sm:$0xff]
          %v9485 = vld [vmem:[#allocation27 + $0x190] sm:$0xff]
          %v9486 = vld [vmem:[#allocation27 + $0x198] sm:$0xff]
          %v9487 = vld [vmem:[#allocation27 + $0x1a0] sm:$0xff]
          %v9488 = vld [vmem:[#allocation27 + $0x1a8] sm:$0xff]
          %v9489 = vld [vmem:[#allocation27 + $0x1b0] sm:$0xff]
          %v9490 = vld [vmem:[#allocation27 + $0x1b8] sm:$0xff]
          %v9491 = vld [vmem:[#allocation27 + $0x1c0] sm:$0xff]
          %v9492 = vld [vmem:[#allocation27 + $0x1c8] sm:$0xff]
          %v9493 = vld [vmem:[#allocation27 + $0x1d0] sm:$0xff]
          %v9494 = vld [vmem:[#allocation27 + $0x1d8] sm:$0xff]
          %v9495 = vld [vmem:[#allocation27 + $0x1e0] sm:$0xff]
          %v9496 = vld [vmem:[#allocation27 + $0x1e8] sm:$0xff]
          %v9497 = vld [vmem:[#allocation27 + $0x1f0] sm:$0xff]
          %v9498 = vld [vmem:[#allocation27 + $0x1f8] sm:$0xff]
          %v9563 = vunpack.c.l.b16 %v9435
          %v9564 = vunpack.c.h.b16 %v9435
          %v9565 = vunpack.c.l.b16 %v9436
          %v9566 = vunpack.c.h.b16 %v9436
          %v9567 = vunpack.c.l.b16 %v9437
          %v9568 = vunpack.c.h.b16 %v9437
          %v9569 = vunpack.c.l.b16 %v9438
          %v9570 = vunpack.c.h.b16 %v9438
          %v9571 = vunpack.c.l.b16 %v9439
          %v9572 = vunpack.c.h.b16 %v9439
          %v9573 = vunpack.c.l.b16 %v9440
          %v9574 = vunpack.c.h.b16 %v9440
          %v9575 = vunpack.c.l.b16 %v9441
          %v9576 = vunpack.c.h.b16 %v9441
          %v9577 = vunpack.c.l.b16 %v9442
          %v9578 = vunpack.c.h.b16 %v9442
          %v9579 = vunpack.c.l.b16 %v9443
          %v9580 = vunpack.c.h.b16 %v9443
          %v9581 = vunpack.c.l.b16 %v9444
          %v9582 = vunpack.c.h.b16 %v9444
          %v9583 = vunpack.c.l.b16 %v9445
          %v9584 = vunpack.c.h.b16 %v9445
          %v9585 = vunpack.c.l.b16 %v9446
          %v9586 = vunpack.c.h.b16 %v9446
          %v9587 = vunpack.c.l.b16 %v9447
          %v9588 = vunpack.c.h.b16 %v9447
          %v9589 = vunpack.c.l.b16 %v9448
          %v9590 = vunpack.c.h.b16 %v9448
          %v9591 = vunpack.c.l.b16 %v9449
          %v9592 = vunpack.c.h.b16 %v9449
          %v9593 = vunpack.c.l.b16 %v9450
          %v9594 = vunpack.c.h.b16 %v9450
          %v9595 = vunpack.c.l.b16 %v9451
          %v9596 = vunpack.c.h.b16 %v9451
          %v9597 = vunpack.c.l.b16 %v9452
          %v9598 = vunpack.c.h.b16 %v9452
          %v9599 = vunpack.c.l.b16 %v9453
          %v9600 = vunpack.c.h.b16 %v9453
          %v9601 = vunpack.c.l.b16 %v9454
          %v9602 = vunpack.c.h.b16 %v9454
          %v9603 = vunpack.c.l.b16 %v9455
          %v9604 = vunpack.c.h.b16 %v9455
          %v9605 = vunpack.c.l.b16 %v9456
          %v9606 = vunpack.c.h.b16 %v9456
          %v9607 = vunpack.c.l.b16 %v9457
          %v9608 = vunpack.c.h.b16 %v9457
          %v9609 = vunpack.c.l.b16 %v9458
          %v9610 = vunpack.c.h.b16 %v9458
          %v9611 = vunpack.c.l.b16 %v9459
          %v9612 = vunpack.c.h.b16 %v9459
          %v9613 = vunpack.c.l.b16 %v9460
          %v9614 = vunpack.c.h.b16 %v9460
          %v9615 = vunpack.c.l.b16 %v9461
          %v9616 = vunpack.c.h.b16 %v9461
          %v9617 = vunpack.c.l.b16 %v9462
          %v9618 = vunpack.c.h.b16 %v9462
          %v9619 = vunpack.c.l.b16 %v9463
          %v9620 = vunpack.c.h.b16 %v9463
          %v9621 = vunpack.c.l.b16 %v9464
          %v9622 = vunpack.c.h.b16 %v9464
          %v9623 = vunpack.c.l.b16 %v9465
          %v9624 = vunpack.c.h.b16 %v9465
          %v9625 = vunpack.c.l.b16 %v9466
          %v9626 = vunpack.c.h.b16 %v9466
          %v9627 = vunpack.c.l.b16 %v9467
          %v9628 = vunpack.c.h.b16 %v9467
          %v9629 = vunpack.c.l.b16 %v9468
          %v9630 = vunpack.c.h.b16 %v9468
          %v9631 = vunpack.c.l.b16 %v9469
          %v9632 = vunpack.c.h.b16 %v9469
          %v9633 = vunpack.c.l.b16 %v9470
          %v9634 = vunpack.c.h.b16 %v9470
          %v9635 = vunpack.c.l.b16 %v9471
          %v9636 = vunpack.c.h.b16 %v9471
          %v9637 = vunpack.c.l.b16 %v9472
          %v9638 = vunpack.c.h.b16 %v9472
          %v9639 = vunpack.c.l.b16 %v9473
          %v9640 = vunpack.c.h.b16 %v9473
          %v9641 = vunpack.c.l.b16 %v9474
          %v9642 = vunpack.c.h.b16 %v9474
          %v9643 = vunpack.c.l.b16 %v9475
          %v9644 = vunpack.c.h.b16 %v9475
          %v9645 = vunpack.c.l.b16 %v9476
          %v9646 = vunpack.c.h.b16 %v9476
          %v9647 = vunpack.c.l.b16 %v9477
          %v9648 = vunpack.c.h.b16 %v9477
          %v9649 = vunpack.c.l.b16 %v9478
          %v9650 = vunpack.c.h.b16 %v9478
          %v9651 = vunpack.c.l.b16 %v9479
          %v9652 = vunpack.c.h.b16 %v9479
          %v9653 = vunpack.c.l.b16 %v9480
          %v9654 = vunpack.c.h.b16 %v9480
          %v9655 = vunpack.c.l.b16 %v9481
          %v9656 = vunpack.c.h.b16 %v9481
          %v9657 = vunpack.c.l.b16 %v9482
          %v9658 = vunpack.c.h.b16 %v9482
          %v9659 = vunpack.c.l.b16 %v9483
          %v9660 = vunpack.c.h.b16 %v9483
          %v9661 = vunpack.c.l.b16 %v9484
          %v9662 = vunpack.c.h.b16 %v9484
          %v9663 = vunpack.c.l.b16 %v9485
          %v9664 = vunpack.c.h.b16 %v9485
          %v9665 = vunpack.c.l.b16 %v9486
          %v9666 = vunpack.c.h.b16 %v9486
          %v9667 = vunpack.c.l.b16 %v9487
          %v9668 = vunpack.c.h.b16 %v9487
          %v9669 = vunpack.c.l.b16 %v9488
          %v9670 = vunpack.c.h.b16 %v9488
          %v9671 = vunpack.c.l.b16 %v9489
          %v9672 = vunpack.c.h.b16 %v9489
          %v9673 = vunpack.c.l.b16 %v9490
          %v9674 = vunpack.c.h.b16 %v9490
          %v9675 = vunpack.c.l.b16 %v9491
          %v9676 = vunpack.c.h.b16 %v9491
          %v9677 = vunpack.c.l.b16 %v9492
          %v9678 = vunpack.c.h.b16 %v9492
          %v9679 = vunpack.c.l.b16 %v9493
          %v9680 = vunpack.c.h.b16 %v9493
          %v9681 = vunpack.c.l.b16 %v9494
          %v9682 = vunpack.c.h.b16 %v9494
          %v9683 = vunpack.c.l.b16 %v9495
          %v9684 = vunpack.c.h.b16 %v9495
          %v9685 = vunpack.c.l.b16 %v9496
          %v9686 = vunpack.c.h.b16 %v9496
          %v9687 = vunpack.c.l.b16 %v9497
          %v9688 = vunpack.c.h.b16 %v9497
          %v9689 = vunpack.c.l.b16 %v9498
          %v9690 = vunpack.c.h.b16 %v9498
          %v9691 = vpack.c.b16 %v9565, %v9563
          %v9692 = vpack.c.b16 %v9566, %v9564
          %v9693 = vpack.c.b16 %v9569, %v9567
          %v9694 = vpack.c.b16 %v9570, %v9568
          %v9695 = vpack.c.b16 %v9573, %v9571
          %v9696 = vpack.c.b16 %v9574, %v9572
          %v9697 = vpack.c.b16 %v9577, %v9575
          %v9698 = vpack.c.b16 %v9578, %v9576
          %v9699 = vpack.c.b16 %v9581, %v9579
          %v9700 = vpack.c.b16 %v9582, %v9580
          %v9701 = vpack.c.b16 %v9585, %v9583
          %v9702 = vpack.c.b16 %v9586, %v9584
          %v9703 = vpack.c.b16 %v9589, %v9587
          %v9704 = vpack.c.b16 %v9590, %v9588
          %v9705 = vpack.c.b16 %v9593, %v9591
          %v9706 = vpack.c.b16 %v9594, %v9592
          %v9707 = vpack.c.b16 %v9597, %v9595
          %v9708 = vpack.c.b16 %v9598, %v9596
          %v9709 = vpack.c.b16 %v9601, %v9599
          %v9710 = vpack.c.b16 %v9602, %v9600
          %v9711 = vpack.c.b16 %v9605, %v9603
          %v9712 = vpack.c.b16 %v9606, %v9604
          %v9713 = vpack.c.b16 %v9609, %v9607
          %v9714 = vpack.c.b16 %v9610, %v9608
          %v9715 = vpack.c.b16 %v9613, %v9611
          %v9716 = vpack.c.b16 %v9614, %v9612
          %v9717 = vpack.c.b16 %v9617, %v9615
          %v9718 = vpack.c.b16 %v9618, %v9616
          %v9719 = vpack.c.b16 %v9621, %v9619
          %v9720 = vpack.c.b16 %v9622, %v9620
          %v9721 = vpack.c.b16 %v9625, %v9623
          %v9722 = vpack.c.b16 %v9626, %v9624
          %v9723 = vpack.c.b16 %v9629, %v9627
          %v9724 = vpack.c.b16 %v9630, %v9628
          %v9725 = vpack.c.b16 %v9633, %v9631
          %v9726 = vpack.c.b16 %v9634, %v9632
          %v9727 = vpack.c.b16 %v9637, %v9635
          %v9728 = vpack.c.b16 %v9638, %v9636
          %v9729 = vpack.c.b16 %v9641, %v9639
          %v9730 = vpack.c.b16 %v9642, %v9640
          %v9731 = vpack.c.b16 %v9645, %v9643
          %v9732 = vpack.c.b16 %v9646, %v9644
          %v9733 = vpack.c.b16 %v9649, %v9647
          %v9734 = vpack.c.b16 %v9650, %v9648
          %v9735 = vpack.c.b16 %v9653, %v9651
          %v9736 = vpack.c.b16 %v9654, %v9652
          %v9737 = vpack.c.b16 %v9657, %v9655
          %v9738 = vpack.c.b16 %v9658, %v9656
          %v9739 = vpack.c.b16 %v9661, %v9659
          %v9740 = vpack.c.b16 %v9662, %v9660
          %v9741 = vpack.c.b16 %v9665, %v9663
          %v9742 = vpack.c.b16 %v9666, %v9664
          %v9743 = vpack.c.b16 %v9669, %v9667
          %v9744 = vpack.c.b16 %v9670, %v9668
          %v9745 = vpack.c.b16 %v9673, %v9671
          %v9746 = vpack.c.b16 %v9674, %v9672
          %v9747 = vpack.c.b16 %v9677, %v9675
          %v9748 = vpack.c.b16 %v9678, %v9676
          %v9749 = vpack.c.b16 %v9681, %v9679
          %v9750 = vpack.c.b16 %v9682, %v9680
          %v9751 = vpack.c.b16 %v9685, %v9683
          %v9752 = vpack.c.b16 %v9686, %v9684
          %v9753 = vpack.c.b16 %v9689, %v9687
          %v9754 = vpack.c.b16 %v9690, %v9688
          %9819 = vmatprep.subr.bf16.mxu0 %v9692
          %9820 = vmatpush1.bf16.msra.mxu0 %v9691
          %9821 = vmatprep.subr.bf16.mxu0 %v9694
          %9822 = vmatpush1.bf16.msra.mxu0 %v9693
          %9823 = vmatprep.subr.bf16.mxu0 %v9696
          %9824 = vmatpush1.bf16.msra.mxu0 %v9695
          %9825 = vmatprep.subr.bf16.mxu0 %v9698
          %9826 = vmatpush1.bf16.msra.mxu0 %v9697
          %9827 = vmatprep.subr.bf16.mxu0 %v9700
          %9828 = vmatpush1.bf16.msra.mxu0 %v9699
          %9829 = vmatprep.subr.bf16.mxu0 %v9702
          %9830 = vmatpush1.bf16.msra.mxu0 %v9701
          %9831 = vmatprep.subr.bf16.mxu0 %v9704
          %9832 = vmatpush1.bf16.msra.mxu0 %v9703
          %9833 = vmatprep.subr.bf16.mxu0 %v9706
          %9834 = vmatpush1.bf16.msra.mxu0 %v9705
          %9835 = vmatprep.subr.bf16.mxu0 %v9708
          %9836 = vmatpush1.bf16.msra.mxu0 %v9707
          %9837 = vmatprep.subr.bf16.mxu0 %v9710
          %9838 = vmatpush1.bf16.msra.mxu0 %v9709
          %9839 = vmatprep.subr.bf16.mxu0 %v9712
          %9840 = vmatpush1.bf16.msra.mxu0 %v9711
          %9841 = vmatprep.subr.bf16.mxu0 %v9714
          %9842 = vmatpush1.bf16.msra.mxu0 %v9713
          %9843 = vmatprep.subr.bf16.mxu0 %v9716
          %9844 = vmatpush1.bf16.msra.mxu0 %v9715
          %9845 = vmatprep.subr.bf16.mxu0 %v9718
          %9846 = vmatpush1.bf16.msra.mxu0 %v9717
          %9847 = vmatprep.subr.bf16.mxu0 %v9720
          %9848 = vmatpush1.bf16.msra.mxu0 %v9719
          %9849 = vmatprep.subr.bf16.mxu0 %v9722
          %9850 = vmatpush1.bf16.msra.mxu0 %v9721
          %9851 = vmatprep.mubr.bf16.mxu0 %v9432
          %9852 = vmatmul.mubr.bf16.gmra.mrb[0].mxu0 %v9431
          %v9853 = vpop.f32.mrb[0].mxu0
          %v9854 = vadd.f32 0.0, %v9853
          %v9855 = vpop.f32.mrb[0].mxu0
          %v9856 = vadd.f32 0.0, %v9855
          %v9857 = vpop.f32.mrb[0].mxu0
          %v9858 = vpop.f32.mrb[0].mxu0
          %9859 = vdwg.mxu0
          %9860 = vmatprep.subr.bf16.mxu0 %v9724
          %9861 = vmatpush1.bf16.msra.mxu0 %v9723
          %9862 = vmatprep.subr.bf16.mxu0 %v9726
          %9863 = vmatpush1.bf16.msra.mxu0 %v9725
          %9864 = vmatprep.subr.bf16.mxu0 %v9728
          %9865 = vmatpush1.bf16.msra.mxu0 %v9727
          %9866 = vmatprep.subr.bf16.mxu0 %v9730
          %9867 = vmatpush1.bf16.msra.mxu0 %v9729
          %9868 = vmatprep.subr.bf16.mxu0 %v9732
          %9869 = vmatpush1.bf16.msra.mxu0 %v9731
          %9870 = vmatprep.subr.bf16.mxu0 %v9734
          %9871 = vmatpush1.bf16.msra.mxu0 %v9733
          %9872 = vmatprep.subr.bf16.mxu0 %v9736
          %9873 = vmatpush1.bf16.msra.mxu0 %v9735
          %9874 = vmatprep.subr.bf16.mxu0 %v9738
          %9875 = vmatpush1.bf16.msra.mxu0 %v9737
          %9876 = vmatprep.subr.bf16.mxu0 %v9740
          %9877 = vmatpush1.bf16.msra.mxu0 %v9739
          %9878 = vmatprep.subr.bf16.mxu0 %v9742
          %9879 = vmatpush1.bf16.msra.mxu0 %v9741
          %9880 = vmatprep.subr.bf16.mxu0 %v9744
          %9881 = vmatpush1.bf16.msra.mxu0 %v9743
          %9882 = vmatprep.subr.bf16.mxu0 %v9746
          %9883 = vmatpush1.bf16.msra.mxu0 %v9745
          %9884 = vmatprep.subr.bf16.mxu0 %v9748
          %9885 = vmatpush1.bf16.msra.mxu0 %v9747
          %9886 = vmatprep.subr.bf16.mxu0 %v9750
          %9887 = vmatpush1.bf16.msra.mxu0 %v9749
          %9888 = vmatprep.subr.bf16.mxu0 %v9752
          %9889 = vmatpush1.bf16.msra.mxu0 %v9751
          %9890 = vmatprep.subr.bf16.mxu0 %v9754
          %9891 = vmatpush1.bf16.msra.mxu0 %v9753
          %9892 = vmatprep.mubr.bf16.mxu0 %v9434
          %9893 = vmatmul.mubr.bf16.gmra.mrb[0].mxu0 %v9433
          %v9894 = vpop.f32.mrb[0].mxu0
          %v9895 = vadd.f32 %v9854, %v9894
          %v9896 = vpop.f32.mrb[0].mxu0
          %v9897 = vadd.f32 %v9856, %v9896
          %v9898 = vpop.f32.mrb[0].mxu0
          %v9899 = vpop.f32.mrb[0].mxu0
          %9900 = vdwg.mxu0
          %v9901 = vld [vmem:[#allocation29] sm:$0x3]
          %v9902 = vld [vmem:[#allocation30] sm:$0x3]
          %v9903 = vrot.slane %v9895, 4
          %v9904 = vadd.f32 %v9895, %v9903
          %v9905 = vrot.slane %v9904, 2
          %v9906 = vadd.f32 %v9904, %v9905
          %v9907 = vrot.slane %v9906, 1
          %v9908 = vadd.f32 %v9906, %v9907
          %v9909 = vrot.slane %v9897, 4
          %v9910 = vadd.f32 %v9897, %v9909
          %v9911 = vrot.slane %v9910, 2
          %v9912 = vadd.f32 %v9910, %v9911
          %v9913 = vrot.slane %v9912, 1
          %v9914 = vadd.f32 %v9912, %v9913
          %v9915 = vmul.f32 %v9908, %v5075
          %v9916 = vmul.f32 %v9914, %v5075
          %v9917 = vsub.f32 %v9895, %v9915
          %v9918 = vsub.f32 %v9897, %v9916
          %v9919 = vmul.f32 %v9917, %v9917
          %v9920 = vmul.f32 %v9918, %v9918
          %v9921 = vrot.slane %v9919, 4
          %v9922 = vadd.f32 %v9919, %v9921
          %v9923 = vrot.slane %v9922, 2
          %v9924 = vadd.f32 %v9922, %v9923
          %v9925 = vrot.slane %v9924, 1
          %v9926 = vadd.f32 %v9924, %v9925
          %v9927 = vrot.slane %v9920, 4
          %v9928 = vadd.f32 %v9920, %v9927
          %v9929 = vrot.slane %v9928, 2
          %v9930 = vadd.f32 %v9928, %v9929
          %v9931 = vrot.slane %v9930, 1
          %v9932 = vadd.f32 %v9930, %v9931
          %v9933 = vmul.f32 %v9926, %v5075
          %v9934 = vmul.f32 %v9932, %v5075
          %v9935 = vadd.f32 %v9933, 1e-05
          %v9936 = vadd.f32 %v9934, 1e-05
          %v9937 = vrsqrt.pop %v9935
          %v9938 = vrsqrt.pop %v9936
          %v9939 = vmul.f32 %v9917, %v9937
          %v9940 = vmul.f32 %v9918, %v9938
          %v9942 = vlaneseq
          %v9943 = vshrl.u32 %v9942, 7
          %v9944 = vsub.s32 0, %v9943
          %v9945 = vrot.slane %v9901, %v9944
          %v9946 = vlaneseq
          %v9947 = vshrl.u32 %v9946, 7
          %v9948 = vsub.s32 1, %v9947
          %v9949 = vrot.slane %v9901, %v9948
          %v9952 = vmul.f32 %v9939, %v9945
          %v9953 = vmul.f32 %v9940, %v9949
          %v9955 = vlaneseq
          %v9956 = vshrl.u32 %v9955, 7
          %v9957 = vsub.s32 0, %v9956
          %v9958 = vrot.slane %v9902, %v9957
          %v9959 = vlaneseq
          %v9960 = vshrl.u32 %v9959, 7
          %v9961 = vsub.s32 1, %v9960
          %v9962 = vrot.slane %v9902, %v9961
          %v9965 = vadd.f32 %v9952, %v9958
          %v9966 = vadd.f32 %v9953, %v9962
          %v9967 = vmax.f32 %v9965, 0.0
          %v9968 = vmax.f32 %v9966, 0.0
          %v9969 = vpack.c.bf16 %v9967, %v9967
          %v9970 = vpack.c.bf16 %v9968, %v9968
          %v9971 = vld [vmem:[#allocation32] sm:$0xf]
          %v9972 = vld [vmem:[#allocation32 + $0x4] sm:$0xf]
          %v9973 = vld [vmem:[#allocation32 + $0x8] sm:$0xf]
          %v9974 = vld [vmem:[#allocation32 + $0xc] sm:$0xf]
          %v9975 = vld [vmem:[#allocation32 + $0x10] sm:$0xf]
          %v9976 = vld [vmem:[#allocation32 + $0x14] sm:$0xf]
          %v9977 = vld [vmem:[#allocation32 + $0x18] sm:$0xf]
          %v9978 = vld [vmem:[#allocation32 + $0x1c] sm:$0xf]
          %v9979 = vld [vmem:[#allocation32 + $0x20] sm:$0xf]
          %v9980 = vld [vmem:[#allocation32 + $0x24] sm:$0xf]
          %v9981 = vld [vmem:[#allocation32 + $0x28] sm:$0xf]
          %v9982 = vld [vmem:[#allocation32 + $0x2c] sm:$0xf]
          %v9983 = vld [vmem:[#allocation32 + $0x30] sm:$0xf]
          %v9984 = vld [vmem:[#allocation32 + $0x34] sm:$0xf]
          %v9985 = vld [vmem:[#allocation32 + $0x38] sm:$0xf]
          %v9986 = vld [vmem:[#allocation32 + $0x3c] sm:$0xf]
          %v9987 = vld [vmem:[#allocation32 + $0x40] sm:$0xf]
          %v9988 = vld [vmem:[#allocation32 + $0x44] sm:$0xf]
          %v9989 = vld [vmem:[#allocation32 + $0x48] sm:$0xf]
          %v9990 = vld [vmem:[#allocation32 + $0x4c] sm:$0xf]
          %v9991 = vld [vmem:[#allocation32 + $0x50] sm:$0xf]
          %v9992 = vld [vmem:[#allocation32 + $0x54] sm:$0xf]
          %v9993 = vld [vmem:[#allocation32 + $0x58] sm:$0xf]
          %v9994 = vld [vmem:[#allocation32 + $0x5c] sm:$0xf]
          %v9995 = vld [vmem:[#allocation32 + $0x60] sm:$0xf]
          %v9996 = vld [vmem:[#allocation32 + $0x64] sm:$0xf]
          %v9997 = vld [vmem:[#allocation32 + $0x68] sm:$0xf]
          %v9998 = vld [vmem:[#allocation32 + $0x6c] sm:$0xf]
          %v9999 = vld [vmem:[#allocation32 + $0x70] sm:$0xf]
          %v10000 = vld [vmem:[#allocation32 + $0x74] sm:$0xf]
          %v10001 = vld [vmem:[#allocation32 + $0x78] sm:$0xf]
          %v10002 = vld [vmem:[#allocation32 + $0x7c] sm:$0xf]
          %v10003 = vld [vmem:[#allocation33] sm:$0x1]
          %v10005 = vlaneseq
          %v10006 = vshrl.u32 %v10005, 7
          %v10007 = vsub.s32 0, %v10006
          %v10008 = vrot.slane %v10003, %v10007
          %v10042 = vunpack.c.l.b16 %v9971
          %v10043 = vunpack.c.l.b16 %v9972
          %v10044 = vunpack.c.l.b16 %v9973
          %v10045 = vunpack.c.l.b16 %v9974
          %v10046 = vunpack.c.l.b16 %v9975
          %v10047 = vunpack.c.l.b16 %v9976
          %v10048 = vunpack.c.l.b16 %v9977
          %v10049 = vunpack.c.l.b16 %v9978
          %v10050 = vunpack.c.l.b16 %v9979
          %v10051 = vunpack.c.l.b16 %v9980
          %v10052 = vunpack.c.l.b16 %v9981
          %v10053 = vunpack.c.l.b16 %v9982
          %v10054 = vunpack.c.l.b16 %v9983
          %v10055 = vunpack.c.l.b16 %v9984
          %v10056 = vunpack.c.l.b16 %v9985
          %v10057 = vunpack.c.l.b16 %v9986
          %v10058 = vunpack.c.l.b16 %v9987
          %v10059 = vunpack.c.l.b16 %v9988
          %v10060 = vunpack.c.l.b16 %v9989
          %v10061 = vunpack.c.l.b16 %v9990
          %v10062 = vunpack.c.l.b16 %v9991
          %v10063 = vunpack.c.l.b16 %v9992
          %v10064 = vunpack.c.l.b16 %v9993
          %v10065 = vunpack.c.l.b16 %v9994
          %v10066 = vunpack.c.l.b16 %v9995
          %v10067 = vunpack.c.l.b16 %v9996
          %v10068 = vunpack.c.l.b16 %v9997
          %v10069 = vunpack.c.l.b16 %v9998
          %v10070 = vunpack.c.l.b16 %v9999
          %v10071 = vunpack.c.l.b16 %v10000
          %v10072 = vunpack.c.l.b16 %v10001
          %v10073 = vunpack.c.l.b16 %v10002
          %v10074 = vpack.c.b16 %v10043, %v10042
          %v10075 = vpack.c.b16 %v10045, %v10044
          %v10076 = vpack.c.b16 %v10047, %v10046
          %v10077 = vpack.c.b16 %v10049, %v10048
          %v10078 = vpack.c.b16 %v10051, %v10050
          %v10079 = vpack.c.b16 %v10053, %v10052
          %v10080 = vpack.c.b16 %v10055, %v10054
          %v10081 = vpack.c.b16 %v10057, %v10056
          %v10082 = vpack.c.b16 %v10059, %v10058
          %v10083 = vpack.c.b16 %v10061, %v10060
          %v10084 = vpack.c.b16 %v10063, %v10062
          %v10085 = vpack.c.b16 %v10065, %v10064
          %v10086 = vpack.c.b16 %v10067, %v10066
          %v10087 = vpack.c.b16 %v10069, %v10068
          %v10088 = vpack.c.b16 %v10071, %v10070
          %v10089 = vpack.c.b16 %v10073, %v10072
          %10106 = vmatprep.subr.bf16.mxu0 0
          %10107 = vmatpush1.bf16.msra.mxu0 %v10074
          %10108 = vmatprep.subr.bf16.mxu0 0
          %10109 = vmatpush1.bf16.msra.mxu0 %v10075
          %10110 = vmatprep.subr.bf16.mxu0 0
          %10111 = vmatpush1.bf16.msra.mxu0 %v10076
          %10112 = vmatprep.subr.bf16.mxu0 0
          %10113 = vmatpush1.bf16.msra.mxu0 %v10077
          %10114 = vmatprep.subr.bf16.mxu0 0
          %10115 = vmatpush1.bf16.msra.mxu0 %v10078
          %10116 = vmatprep.subr.bf16.mxu0 0
          %10117 = vmatpush1.bf16.msra.mxu0 %v10079
          %10118 = vmatprep.subr.bf16.mxu0 0
          %10119 = vmatpush1.bf16.msra.mxu0 %v10080
          %10120 = vmatprep.subr.bf16.mxu0 0
          %10121 = vmatpush1.bf16.msra.mxu0 %v10081
          %10122 = vmatprep.subr.bf16.mxu0 0
          %10123 = vmatpush1.bf16.msra.mxu0 %v10082
          %10124 = vmatprep.subr.bf16.mxu0 0
          %10125 = vmatpush1.bf16.msra.mxu0 %v10083
          %10126 = vmatprep.subr.bf16.mxu0 0
          %10127 = vmatpush1.bf16.msra.mxu0 %v10084
          %10128 = vmatprep.subr.bf16.mxu0 0
          %10129 = vmatpush1.bf16.msra.mxu0 %v10085
          %10130 = vmatprep.subr.bf16.mxu0 0
          %10131 = vmatpush1.bf16.msra.mxu0 %v10086
          %10132 = vmatprep.subr.bf16.mxu0 0
          %10133 = vmatpush1.bf16.msra.mxu0 %v10087
          %10134 = vmatprep.subr.bf16.mxu0 0
          %10135 = vmatpush1.bf16.msra.mxu0 %v10088
          %10136 = vmatprep.subr.bf16.mxu0 0
          %10137 = vmatpush1.bf16.msra.mxu0 %v10089
          %10138 = vmatprep.mubr.bf16.mxu0 %v9970
          %10139 = vmatmul.mubr.bf16.gmra.mrb[0].mxu0 %v9969
          %v10140 = vpop.f32.mrb[0].mxu0
          %v10141 = vadd.f32 %v10008, %v10140
          %v10142 = vpop.f32.mrb[0].mxu0
          %v10143 = vpop.f32.mrb[0].mxu0
          %v10144 = vpop.f32.mrb[0].mxu0
          %10145 = vdwg.mxu0
          %v10146 = vpack.c.bf16 %v8000, %v8000
          %v10147 = vld [vmem:[%s43] sm:$0xf]
          %v10148 = vld [vmem:[%s43 + $0x4] sm:$0xf]
          %v10149 = vld [vmem:[%s43 + $0x8] sm:$0xf]
          %v10150 = vld [vmem:[%s43 + $0xc] sm:$0xf]
          %v10151 = vld [vmem:[%s43 + $0x10] sm:$0xf]
          %v10152 = vld [vmem:[%s43 + $0x14] sm:$0xf]
          %v10153 = vld [vmem:[%s43 + $0x18] sm:$0xf]
          %v10154 = vld [vmem:[%s43 + $0x1c] sm:$0xf]
          %v10155 = vld [vmem:[%s43 + $0x20] sm:$0xf]
          %v10156 = vld [vmem:[%s43 + $0x24] sm:$0xf]
          %v10157 = vld [vmem:[%s43 + $0x28] sm:$0xf]
          %v10158 = vld [vmem:[%s43 + $0x2c] sm:$0xf]
          %v10159 = vld [vmem:[%s43 + $0x30] sm:$0xf]
          %v10160 = vld [vmem:[%s43 + $0x34] sm:$0xf]
          %v10161 = vld [vmem:[%s43 + $0x38] sm:$0xf]
          %v10162 = vld [vmem:[%s43 + $0x3c] sm:$0xf]
          %v10163 = vpack.c.bf16 %v10141, %v10141
          %v10164 = vld [vmem:[%s45] sm:$0xf]
          %v10165 = vld [vmem:[%s45 + $0x4] sm:$0xf]
          %v10166 = vld [vmem:[%s45 + $0x8] sm:$0xf]
          %v10167 = vld [vmem:[%s45 + $0xc] sm:$0xf]
          %v10168 = vld [vmem:[%s45 + $0x10] sm:$0xf]
          %v10169 = vld [vmem:[%s45 + $0x14] sm:$0xf]
          %v10170 = vld [vmem:[%s45 + $0x18] sm:$0xf]
          %v10171 = vld [vmem:[%s45 + $0x1c] sm:$0xf]
          %v10172 = vld [vmem:[%s45 + $0x20] sm:$0xf]
          %v10173 = vld [vmem:[%s45 + $0x24] sm:$0xf]
          %v10174 = vld [vmem:[%s45 + $0x28] sm:$0xf]
          %v10175 = vld [vmem:[%s45 + $0x2c] sm:$0xf]
          %v10176 = vld [vmem:[%s45 + $0x30] sm:$0xf]
          %v10177 = vld [vmem:[%s45 + $0x34] sm:$0xf]
          %v10178 = vld [vmem:[%s45 + $0x38] sm:$0xf]
          %v10179 = vld [vmem:[%s45 + $0x3c] sm:$0xf]
          %v10196 = vunpack.c.l.b16 %v10164
          %v10197 = vunpack.c.l.b16 %v10165
          %v10198 = vunpack.c.l.b16 %v10166
          %v10199 = vunpack.c.l.b16 %v10167
          %v10200 = vunpack.c.l.b16 %v10168
          %v10201 = vunpack.c.l.b16 %v10169
          %v10202 = vunpack.c.l.b16 %v10170
          %v10203 = vunpack.c.l.b16 %v10171
          %v10204 = vunpack.c.l.b16 %v10172
          %v10205 = vunpack.c.l.b16 %v10173
          %v10206 = vunpack.c.l.b16 %v10174
          %v10207 = vunpack.c.l.b16 %v10175
          %v10208 = vunpack.c.l.b16 %v10176
          %v10209 = vunpack.c.l.b16 %v10177
          %v10210 = vunpack.c.l.b16 %v10178
          %v10211 = vunpack.c.l.b16 %v10179
          %v10212 = vpack.c.b16 %v10197, %v10196
          %v10213 = vpack.c.b16 %v10199, %v10198
          %v10214 = vpack.c.b16 %v10201, %v10200
          %v10215 = vpack.c.b16 %v10203, %v10202
          %v10216 = vpack.c.b16 %v10205, %v10204
          %v10217 = vpack.c.b16 %v10207, %v10206
          %v10218 = vpack.c.b16 %v10209, %v10208
          %v10219 = vpack.c.b16 %v10211, %v10210
          %10228 = vmatprep.subr.bf16.mxu0 0
          %10229 = vmatpush1.bf16.msra.mxu0 %v10212
          %10230 = vmatprep.subr.bf16.mxu0 0
          %10231 = vmatpush1.bf16.msra.mxu0 %v10213
          %10232 = vmatprep.subr.bf16.mxu0 0
          %10233 = vmatpush1.bf16.msra.mxu0 %v10214
          %10234 = vmatprep.subr.bf16.mxu0 0
          %10235 = vmatpush1.bf16.msra.mxu0 %v10215
          %10236 = vmatprep.subr.bf16.mxu0 0
          %10237 = vmatpush1.bf16.msra.mxu0 %v10216
          %10238 = vmatprep.subr.bf16.mxu0 0
          %10239 = vmatpush1.bf16.msra.mxu0 %v10217
          %10240 = vmatprep.subr.bf16.mxu0 0
          %10241 = vmatpush1.bf16.msra.mxu0 %v10218
          %10242 = vmatprep.subr.bf16.mxu0 0
          %10243 = vmatpush1.bf16.msra.mxu0 %v10219
          %10244 = vmatprep.subr.bf16.mxu0 0
          %10245 = vmatpush1.bf16.msra.mxu0 0
          %10246 = vmatprep.subr.bf16.mxu0 0
          %10247 = vmatpush1.bf16.msra.mxu0 0
          %10248 = vmatprep.subr.bf16.mxu0 0
          %10249 = vmatpush1.bf16.msra.mxu0 0
          %10250 = vmatprep.subr.bf16.mxu0 0
          %10251 = vmatpush1.bf16.msra.mxu0 0
          %10252 = vmatprep.subr.bf16.mxu0 0
          %10253 = vmatpush1.bf16.msra.mxu0 0
          %10254 = vmatprep.subr.bf16.mxu0 0
          %10255 = vmatpush1.bf16.msra.mxu0 0
          %10256 = vmatprep.subr.bf16.mxu0 0
          %10257 = vmatpush1.bf16.msra.mxu0 0
          %10258 = vmatprep.subr.bf16.mxu0 0
          %10259 = vmatpush1.bf16.msra.mxu0 0
          %10260 = vmatprep.mubr.bf16.mxu0 0
          %10261 = vmatmul.mubr.bf16.gmra.mrb[0].mxu0 %v10163
          %v10262 = vpop.f32.mrb[0].mxu0
          %v10263 = vadd.f32 0.0, %v10262
          %v10264 = vpop.f32.mrb[0].mxu0
          %v10265 = vpop.f32.mrb[0].mxu0
          %v10266 = vpop.f32.mrb[0].mxu0
          %10267 = vdwg.mxu0
          %v10284 = vunpack.c.l.b16 %v10147
          %v10285 = vunpack.c.l.b16 %v10148
          %v10286 = vunpack.c.l.b16 %v10149
          %v10287 = vunpack.c.l.b16 %v10150
          %v10288 = vunpack.c.l.b16 %v10151
          %v10289 = vunpack.c.l.b16 %v10152
          %v10290 = vunpack.c.l.b16 %v10153
          %v10291 = vunpack.c.l.b16 %v10154
          %v10292 = vunpack.c.l.b16 %v10155
          %v10293 = vunpack.c.l.b16 %v10156
          %v10294 = vunpack.c.l.b16 %v10157
          %v10295 = vunpack.c.l.b16 %v10158
          %v10296 = vunpack.c.l.b16 %v10159
          %v10297 = vunpack.c.l.b16 %v10160
          %v10298 = vunpack.c.l.b16 %v10161
          %v10299 = vunpack.c.l.b16 %v10162
          %v10300 = vpack.c.b16 %v10285, %v10284
          %v10301 = vpack.c.b16 %v10287, %v10286
          %v10302 = vpack.c.b16 %v10289, %v10288
          %v10303 = vpack.c.b16 %v10291, %v10290
          %v10304 = vpack.c.b16 %v10293, %v10292
          %v10305 = vpack.c.b16 %v10295, %v10294
          %v10306 = vpack.c.b16 %v10297, %v10296
          %v10307 = vpack.c.b16 %v10299, %v10298
          %10316 = vmatprep.subr.bf16.mxu0 0
          %10317 = vmatpush1.bf16.msra.mxu0 %v10300
          %10318 = vmatprep.subr.bf16.mxu0 0
          %10319 = vmatpush1.bf16.msra.mxu0 %v10301
          %10320 = vmatprep.subr.bf16.mxu0 0
          %10321 = vmatpush1.bf16.msra.mxu0 %v10302
          %10322 = vmatprep.subr.bf16.mxu0 0
          %10323 = vmatpush1.bf16.msra.mxu0 %v10303
          %10324 = vmatprep.subr.bf16.mxu0 0
          %10325 = vmatpush1.bf16.msra.mxu0 %v10304
          %10326 = vmatprep.subr.bf16.mxu0 0
          %10327 = vmatpush1.bf16.msra.mxu0 %v10305
          %10328 = vmatprep.subr.bf16.mxu0 0
          %10329 = vmatpush1.bf16.msra.mxu0 %v10306
          %10330 = vmatprep.subr.bf16.mxu0 0
          %10331 = vmatpush1.bf16.msra.mxu0 %v10307
          %10332 = vmatprep.subr.bf16.mxu0 0
          %10333 = vmatpush1.bf16.msra.mxu0 0
          %10334 = vmatprep.subr.bf16.mxu0 0
          %10335 = vmatpush1.bf16.msra.mxu0 0
          %10336 = vmatprep.subr.bf16.mxu0 0
          %10337 = vmatpush1.bf16.msra.mxu0 0
          %10338 = vmatprep.subr.bf16.mxu0 0
          %10339 = vmatpush1.bf16.msra.mxu0 0
          %10340 = vmatprep.subr.bf16.mxu0 0
          %10341 = vmatpush1.bf16.msra.mxu0 0
          %10342 = vmatprep.subr.bf16.mxu0 0
          %10343 = vmatpush1.bf16.msra.mxu0 0
          %10344 = vmatprep.subr.bf16.mxu0 0
          %10345 = vmatpush1.bf16.msra.mxu0 0
          %10346 = vmatprep.subr.bf16.mxu0 0
          %10347 = vmatpush1.bf16.msra.mxu0 0
          %10348 = vmatprep.mubr.bf16.mxu0 0
          %10349 = vmatmul.mubr.bf16.gmra.mrb[0].mxu0 %v10146
          %v10350 = vpop.f32.mrb[0].mxu0
          %v10351 = vadd.f32 %v10263, %v10350
          %v10352 = vpop.f32.mrb[0].mxu0
          %v10353 = vpop.f32.mrb[0].mxu0
          %v10354 = vpop.f32.mrb[0].mxu0
          %10355 = vdwg.mxu0
          %v10356 = vld [vmem:[#allocation35] sm:$0x1]
          %v10357 = vld [vmem:[#allocation36] sm:$0x1]
          %vm10358 = vcmask 523264
          %v10359 = vsel %vm10358, %v10351, 0.0
          %v10360 = vrot.slane %v10359, 4
          %v10361 = vadd.f32 %v10359, %v10360
          %v10362 = vrot.slane %v10361, 2
          %v10363 = vadd.f32 %v10361, %v10362
          %v10364 = vrot.slane %v10363, 1
          %v10365 = vadd.f32 %v10363, %v10364
          %v10366 = vmul.f32 %v10365, %v5075
          %v10367 = vsub.f32 %v10351, %v10366
          %v10368 = vmul.f32 %v10367, %v10367
          %v10369 = vsel %vm10358, %v10368, 0.0
          %v10370 = vrot.slane %v10369, 4
          %v10371 = vadd.f32 %v10369, %v10370
          %v10372 = vrot.slane %v10371, 2
          %v10373 = vadd.f32 %v10371, %v10372
          %v10374 = vrot.slane %v10373, 1
          %v10375 = vadd.f32 %v10373, %v10374
          %v10376 = vmul.f32 %v10375, %v5075
          %v10377 = vadd.f32 %v10376, 1e-05
          %v10378 = vrsqrt.pop %v10377
          %v10379 = vmul.f32 %v10367, %v10378
          %v10381 = vlaneseq
          %v10382 = vshrl.u32 %v10381, 7
          %v10383 = vsub.s32 0, %v10382
          %v10384 = vrot.slane %v10356, %v10383
          %v10386 = vmul.f32 %v10379, %v10384
          %v10388 = vlaneseq
          %v10389 = vshrl.u32 %v10388, 7
          %v10390 = vsub.s32 0, %v10389
          %v10391 = vrot.slane %v10357, %v10390
          %v10393 = vadd.f32 %v10386, %v10391
          %v10394 = vmax.f32 %v10393, 0.0
          %v10395 = vpack.c.bf16 %v10394, %v10394
          %v10396 = vld [vmem:[%s51] sm:$0xf]
          %v10397 = vld [vmem:[%s51 + $0x4] sm:$0xf]
          %v10398 = vld [vmem:[%s51 + $0x8] sm:$0xf]
          %v10399 = vld [vmem:[%s51 + $0xc] sm:$0xf]
          %v10400 = vld [vmem:[%s51 + $0x10] sm:$0xf]
          %v10401 = vld [vmem:[%s51 + $0x14] sm:$0xf]
          %v10402 = vld [vmem:[%s51 + $0x18] sm:$0xf]
          %v10403 = vld [vmem:[%s51 + $0x1c] sm:$0xf]
          %v10412 = vunpack.c.l.b16 %v10396
          %v10413 = vunpack.c.l.b16 %v10397
          %v10414 = vunpack.c.l.b16 %v10398
          %v10415 = vunpack.c.l.b16 %v10399
          %v10416 = vunpack.c.l.b16 %v10400
          %v10417 = vunpack.c.l.b16 %v10401
          %v10418 = vunpack.c.l.b16 %v10402
          %v10419 = vunpack.c.l.b16 %v10403
          %v10420 = vpack.c.b16 %v10413, %v10412
          %v10421 = vpack.c.b16 %v10415, %v10414
          %v10422 = vpack.c.b16 %v10417, %v10416
          %v10423 = vpack.c.b16 %v10419, %v10418
          %v10429 = vsel %vm10358, %v10395, 0
          %10431 = vmatprep.subr.bf16.mxu0 0
          %10432 = vmatpush1.bf16.msra.mxu0 %v10420
          %10433 = vmatprep.subr.bf16.mxu0 0
          %10434 = vmatpush1.bf16.msra.mxu0 %v10421
          %10435 = vmatprep.subr.bf16.mxu0 0
          %10436 = vmatpush1.bf16.msra.mxu0 %v10422
          %10437 = vmatprep.subr.bf16.mxu0 0
          %10438 = vmatpush1.bf16.msra.mxu0 %v10423
          %10439 = vmatprep.subr.bf16.mxu0 0
          %10440 = vmatpush1.bf16.msra.mxu0 0
          %10441 = vmatprep.subr.bf16.mxu0 0
          %10442 = vmatpush1.bf16.msra.mxu0 0
          %10443 = vmatprep.subr.bf16.mxu0 0
          %10444 = vmatpush1.bf16.msra.mxu0 0
          %10445 = vmatprep.subr.bf16.mxu0 0
          %10446 = vmatpush1.bf16.msra.mxu0 0
          %10447 = vmatprep.subr.bf16.mxu0 0
          %10448 = vmatpush1.bf16.msra.mxu0 0
          %10449 = vmatprep.subr.bf16.mxu0 0
          %10450 = vmatpush1.bf16.msra.mxu0 0
          %10451 = vmatprep.subr.bf16.mxu0 0
          %10452 = vmatpush1.bf16.msra.mxu0 0
          %10453 = vmatprep.subr.bf16.mxu0 0
          %10454 = vmatpush1.bf16.msra.mxu0 0
          %10455 = vmatprep.subr.bf16.mxu0 0
          %10456 = vmatpush1.bf16.msra.mxu0 0
          %10457 = vmatprep.subr.bf16.mxu0 0
          %10458 = vmatpush1.bf16.msra.mxu0 0
          %10459 = vmatprep.subr.bf16.mxu0 0
          %10460 = vmatpush1.bf16.msra.mxu0 0
          %10461 = vmatprep.subr.bf16.mxu0 0
          %10462 = vmatpush1.bf16.msra.mxu0 0
          %10463 = vmatprep.mubr.bf16.mxu0 0
          %10464 = vmatmul.mubr.bf16.gmra.mrb[0].mxu0 %v10429
          %v10465 = vpop.f32.mrb[0].mxu0
          %v10466 = vadd.f32 0.0, %v10465
          %v10467 = vpop.f32.mrb[0].mxu0
          %v10468 = vpop.f32.mrb[0].mxu0
          %v10469 = vpop.f32.mrb[0].mxu0
          %10470 = vdwg.mxu0
          %v10471 = vld [vmem:[#allocation38] sm:$0x1]
          %v10472 = vld [vmem:[#allocation39] sm:$0x1]
          %vm10473 = vcmask 261120
          %v10474 = vsel %vm10473, %v10466, 0.0
          %v10475 = vrot.slane %v10474, 4
          %v10476 = vadd.f32 %v10474, %v10475
          %v10477 = vrot.slane %v10476, 2
          %v10478 = vadd.f32 %v10476, %v10477
          %v10479 = vrot.slane %v10478, 1
          %v10480 = vadd.f32 %v10478, %v10479
          %v10481 = vmul.f32 %v10480, %v5075
          %v10482 = vsub.f32 %v10466, %v10481
          %v10483 = vmul.f32 %v10482, %v10482
          %v10484 = vsel %vm10473, %v10483, 0.0
          %v10485 = vrot.slane %v10484, 4
          %v10486 = vadd.f32 %v10484, %v10485
          %v10487 = vrot.slane %v10486, 2
          %v10488 = vadd.f32 %v10486, %v10487
          %v10489 = vrot.slane %v10488, 1
          %v10490 = vadd.f32 %v10488, %v10489
          %v10491 = vmul.f32 %v10490, %v5075
          %v10492 = vadd.f32 %v10491, 1e-05
          %v10493 = vrsqrt.pop %v10492
          %v10494 = vmul.f32 %v10482, %v10493
          %v10496 = vlaneseq
          %v10497 = vshrl.u32 %v10496, 7
          %v10498 = vsub.s32 0, %v10497
          %v10499 = vrot.slane %v10471, %v10498
          %v10501 = vmul.f32 %v10494, %v10499
          %v10503 = vlaneseq
          %v10504 = vshrl.u32 %v10503, 7
          %v10505 = vsub.s32 0, %v10504
          %v10506 = vrot.slane %v10472, %v10505
          %v10508 = vadd.f32 %v10501, %v10506
          %v10509 = vmax.f32 %v10508, 0.0
          %v10510 = vpack.c.bf16 %v10509, %v10509
          %v10511 = vld [vmem:[%s57] sm:$0xf]
          %v10512 = vld [vmem:[%s57 + $0x4] sm:$0xf]
          %v10513 = vld [vmem:[%s57 + $0x8] sm:$0xf]
          %v10514 = vld [vmem:[%s57 + $0xc] sm:$0xf]
          %v10515 = vld [vmem:[#allocation3] sm:$0x1]
          %v10517 = vlaneseq
          %v10518 = vshrl.u32 %v10517, 7
          %v10519 = vsub.s32 0, %v10518
          %v10520 = vrot.slane %v10515, %v10519
          %v10526 = vunpack.c.l.b16 %v10511
          %v10527 = vunpack.c.l.b16 %v10512
          %v10528 = vunpack.c.l.b16 %v10513
          %v10529 = vunpack.c.l.b16 %v10514
          %v10530 = vpack.c.b16 %v10527, %v10526
          %v10531 = vpack.c.b16 %v10529, %v10528
          %v10535 = vsel %vm10473, %v10510, 0
          %10537 = vmatprep.subr.bf16.mxu0 0
          %10538 = vmatpush1.bf16.msra.mxu0 %v10530
          %10539 = vmatprep.subr.bf16.mxu0 0
          %10540 = vmatpush1.bf16.msra.mxu0 %v10531
          %10541 = vmatprep.subr.bf16.mxu0 0
          %10542 = vmatpush1.bf16.msra.mxu0 0
          %10543 = vmatprep.subr.bf16.mxu0 0
          %10544 = vmatpush1.bf16.msra.mxu0 0
          %10545 = vmatprep.subr.bf16.mxu0 0
          %10546 = vmatpush1.bf16.msra.mxu0 0
          %10547 = vmatprep.subr.bf16.mxu0 0
          %10548 = vmatpush1.bf16.msra.mxu0 0
          %10549 = vmatprep.subr.bf16.mxu0 0
          %10550 = vmatpush1.bf16.msra.mxu0 0
          %10551 = vmatprep.subr.bf16.mxu0 0
          %10552 = vmatpush1.bf16.msra.mxu0 0
          %10553 = vmatprep.subr.bf16.mxu0 0
          %10554 = vmatpush1.bf16.msra.mxu0 0
          %10555 = vmatprep.subr.bf16.mxu0 0
          %10556 = vmatpush1.bf16.msra.mxu0 0
          %10557 = vmatprep.subr.bf16.mxu0 0
          %10558 = vmatpush1.bf16.msra.mxu0 0
          %10559 = vmatprep.subr.bf16.mxu0 0
          %10560 = vmatpush1.bf16.msra.mxu0 0
          %10561 = vmatprep.subr.bf16.mxu0 0
          %10562 = vmatpush1.bf16.msra.mxu0 0
          %10563 = vmatprep.subr.bf16.mxu0 0
          %10564 = vmatpush1.bf16.msra.mxu0 0
          %10565 = vmatprep.subr.bf16.mxu0 0
          %10566 = vmatpush1.bf16.msra.mxu0 0
          %10567 = vmatprep.subr.bf16.mxu0 0
          %10568 = vmatpush1.bf16.msra.mxu0 0
          %10569 = vmatprep.mubr.bf16.mxu0 0
          %10570 = vmatmul.mubr.bf16.gmra.mrb[0].mxu0 %v10535
          %v10571 = vpop.f32.mrb[0].mxu0
          %v10572 = vadd.f32 %v10520, %v10571
          %v10573 = vpop.f32.mrb[0].mxu0
          %v10574 = vpop.f32.mrb[0].mxu0
          %v10575 = vpop.f32.mrb[0].mxu0
          %10576 = vdwg.mxu0
          %v10577 = vxor.u32 %v10572, 2147483648
          %v10578 = vmul.f32 %v10577, 1.442695
          %v10579 = vpow.pop %v10578
          %v10580 = vadd.f32 %v10579, 1.0
          %v10581 = vrcp.pop %v10580
          %v10582 = vmul.f32 1.0, %v10581
          %vm10583 = vcmask 7168
          %10584 = vst.msk [vmem:[%s61] sm:$0xff] %vm10583, %v10582
        $region244: #{posesync_forward.1} parent=139 // pred_fallthru
          _
        // Predicated region
        $region245: #{posesync_forward.1} parent=139 // pred_check
          %p10585 = pneg %p742
        $region246: #{posesync_forward.1} parent=139 // pred_check_branch
          %10587 = sbr.rel (%p10585) target = $region248
        $region247: #{posesync_forward.1} parent=139 // pred_region
          _
        $region248: #{posesync_forward.1} parent=139 // pred_fallthru
          _
        // Predicated region
        $region249: #{posesync_forward.1} parent=139 // pred_check
          %p10588 = pneg %p742
        $region250: #{posesync_forward.1} parent=139 // pred_check_branch
          %10590 = sbr.rel (%p10588) target = $region252
        $region251: #{posesync_forward.1} parent=139 // pred_region
          _
        $region252: #{posesync_forward.1} parent=139 // pred_fallthru
          _
      $region140: #{posesync_forward.1} parent=5 // pred_fallthru
        _
      %p10591 = scmp.le.s32.totalorder 2, %s84
      // Predicated region
      $region253: #{posesync_forward.1} parent=5 // pred_check
        %p10592 = pneg %p10591
      $region254: #{posesync_forward.1} parent=5 // pred_check_branch
        %10594 = sbr.rel (%p10592) target = $region256
      $region255: #{posesync_forward.1} parent=5 // pred_region
        %s10595 = ssub.s32 %s84, 2
      $region256: #{posesync_forward.1} parent=5 // pred_fallthru
        _
    $region6: #{posesync_forward.1} parent=1 // loop_footer
      %s88 = sadd.s32 1, %s84
    $region7: #{posesync_forward.1} parent=1 // loop_footer_branch
      %83 = sbr.rel target = $region3
    $region8: #{posesync_forward.1} parent=1 // loop_exit
      _
    %10596 = vsyncpa [#allocation5], 1
    %s10597 = scalar_lea.sflag [#allocation5], 1
    %10598 = vsyncpa %s10597, 1
    %10599 = vsyncpa [#allocation7], 1
    %10600 = vsyncpa [#allocation10], 1
    %10601 = vsyncpa [#allocation13], 1
    %10602 = vsyncpa [#allocation16], 1
    %10603 = vsyncpa [#allocation19], 1
    %10604 = vsyncpa [#allocation22], 1
    %10605 = vsyncpa [#allocation25], 1
    %10606 = vsyncpa [#allocation28], 1
    %10607 = vsyncpa [#allocation31], 1
    %10608 = vsyncpa [#allocation34], 1
    %10609 = vsyncpa [#allocation37], 1
    %10610 = vsyncpa [#allocation40], 1

</llo_original>
